<compile_context>
chip_gen: v7x
topology: tpu7x:2x2x1
jax: 0.10.0
libtpu: 0.0.40
codegen_flags: <defaults>
</compile_context>

<pallas_src>
import functools

import jax
import jax.numpy as jnp
from jax.experimental import pallas as pl
from jax.experimental.pallas import tpu as pltpu


# ---------------------------------------------------------------------------
# Parameter construction (deterministic, mirrors ConcatSquashLinear shapes)
# ---------------------------------------------------------------------------
def make_csl_params(key, dim_in, dim_out):
    """ConcatSquashLinear(dim_in, dim_out) parameters.

    Returns (Wt, b, wg, bg, wb):
      Wt: [dim_in, dim_out]   = layer.weight^T
      b : [1, dim_out]        = layer.bias
      wg: [1, dim_out]        = hyper_gate.weight (input dim is 1)
      bg: [1, dim_out]        = hyper_gate.bias
      wb: [1, dim_out]        = hyper_bias.weight (no bias)
    """
    k1, k2, k3, k4, k5 = jax.random.split(key, 5)
    s = 1.0 / jnp.sqrt(jnp.float32(dim_in))
    Wt = jax.random.uniform(k1, (dim_in, dim_out), jnp.float32, -s, s)
    b = jax.random.uniform(k2, (1, dim_out), jnp.float32, -s, s)
    wg = jax.random.uniform(k3, (1, dim_out), jnp.float32, -1.0, 1.0)
    bg = jax.random.uniform(k4, (1, dim_out), jnp.float32, -1.0, 1.0)
    wb = jax.random.uniform(k5, (1, dim_out), jnp.float32, -1.0, 1.0)
    return (Wt, b, wg, bg, wb)


# ---------------------------------------------------------------------------
# Pallas kernel: full RK4 integration of the augmented ODE for one batch tile
# ---------------------------------------------------------------------------
def _traj_kernel(n_layers, D, T, ts_ref, x0_ref, *rest):
    n_w = 5 * n_layers
    w_refs = rest[:n_w]
    xs_ref = rest[n_w]        # [T, B, D]  trajectory output (VMEM-resident slab)
    aux_ref = rest[n_w + 1]   # [B, 2]     final (log_det, L), written once

    B = x0_ref.shape[0]
    f32 = jnp.float32
    bf16 = jnp.bfloat16

    # Load all weights once.  Layer 0 arrives in f32 (Jacobian seed + state matmul
    # precision); hidden/output matmul weights arrive pre-cast to bf16 from the wrapper.
    params = []
    for l in range(n_layers):
        Wt = w_refs[5 * l + 0][...]
        b = w_refs[5 * l + 1][...]
        wg = w_refs[5 * l + 2][...]
        bg = w_refs[5 * l + 3][...]
        wb = w_refs[5 * l + 4][...]
        params.append((Wt, b, wg, bg, wb))

    Wt0 = params[0][0]                    # f32, [D, W0]
    W0 = Wt0.shape[1]

    # Hoisted layer-0 Jacobian seed rows: block j (rows [j*B, (j+1)*B)) is Wt0[j, :]
    # broadcast over the batch.  Built ONCE per kernel invocation and reused by every
    # odefunc call (JAX does not CSE broadcast_in_dim, so per-call rebuilds are real work).
    W0_rows = jnp.concatenate(
        [jnp.broadcast_to(Wt0[j:j + 1, :], (B, W0)) for j in range(D)], axis=0)  # [D*B, W0]

    # Hoisted diagonal mask for the Jacobian trace (only used for larger D; for tiny D
    # the explicit static-slice loop is cheaper).
    if D > 4:
        col = jax.lax.broadcasted_iota(jnp.int32, (D * B, D), 1)
        row = jax.lax.broadcasted_iota(jnp.int32, (D * B, D), 0) // B
        diag_mask = (col == row).astype(f32)

    def gates_at(t):
        """Per-layer (gate, bias_term = b*gate + t*wb) for one scalar time t."""
        out = []
        for (_, b, wg, bg, wb) in params:
            g = jax.nn.sigmoid(t * wg + bg)           # [1, W]
            out.append((g, b * g + t * wb))           # ([1, W], [1, W])
        return out

    def odefunc(gb, x):
        """f(t, x) -> (dx [B,D], div [B,1], 0.5*||dx||^2 [B,1]); gb precomputed for t."""
        gate0, bias0 = gb[0]
        # Layer 0 in f32 (tiny K=D matmul, protects the recurrent state).
        lin = jnp.dot(x, Wt0, preferred_element_type=f32) * gate0 + bias0      # [B, W0]

        if n_layers == 1:
            dx = lin
            Jlast = W0_rows * gate0                                            # [D*B, D]
        else:
            h = jnp.tanh(lin)
            dact = 1.0 - h * h                                                 # tanh'
            gd = gate0 * dact                                                  # [B, W0]
            # Jacobian seed J0[j] = Wt0[j,:] * gate0 * tanh' via reshape-broadcast
            # (no per-call row slices / concat, no tiled gd materialization).
            Jseed = (W0_rows.reshape(D, B, W0) * gd[None, :, :]).reshape(D * B, W0)
            # Stack activation + all D Jacobian column-blocks: rows [0:B)=h, [jB:(j+1)B)=J_j.
            S = jnp.concatenate([h, Jseed], axis=0)                            # [(D+1)B, W0]
            for l in range(1, n_layers):
                Wt_bf, _, _, _, _ = params[l]                                  # bf16 weight
                gate, bias = gb[l]
                Wl = Wt_bf.shape[1]
                # ONE MXU matmul carries the activation and all D Jacobian columns
                # (bf16 operands, f32 accumulation).
                lin = jnp.dot(S.astype(bf16), Wt_bf,
                              preferred_element_type=f32) * gate               # [(D+1)B, Wl]
                h_lin = lin[:B] + bias                                         # bias on h rows
                if l < n_layers - 1:
                    h = jnp.tanh(h_lin)
                    dact = 1.0 - h * h
                    # Multiply all Jacobian blocks by tanh' via reshape-broadcast
                    # (no D-way sublane copies of dact).
                    J = (lin[B:].reshape(D, B, Wl) * dact[None, :, :]).reshape(D * B, Wl)
                    S = jnp.concatenate([h, J], axis=0)
                else:
                    dx = h_lin                                                 # [B, D]
                    Jlast = lin[B:]                                            # [D*B, D]

        # Exact divergence = trace of the Jacobian (matches divergence_bf, + sign).
        if D > 4:
            dl = jnp.sum(Jlast * diag_mask, axis=-1, keepdims=True)            # [D*B, 1]
            dl = dl.reshape(D, B, 1).sum(axis=0)                               # [B, 1]
        else:
            dl = Jlast[0:B, 0:1]
            for j in range(1, D):
                dl = dl + Jlast[j * B:(j + 1) * B, j:j + 1]

        dv = 0.5 * jnp.sum(dx * dx, axis=1, keepdims=True)                     # [B, 1]
        return dx, dl, dv

    # Initial augmented state: F.pad(x0, (0, 2)) -> log_det = 0, L = 0.
    x = x0_ref[...]
    ld = jnp.zeros((B, 1), f32)
    Lv = jnp.zeros((B, 1), f32)
    xs_ref[0] = x

    # Fixed-grid RK4 over the requested time points.  T is small & static, so a fully
    # unrolled Python loop gives the scheduler maximal visibility.  Per-layer gates are
    # computed once per DISTINCT time: k2/k3 share the midpoint, and t1 of step i is
    # reused as t0 of step i+1.
    gb0 = gates_at(ts_ref[0])
    for i in range(1, T):
        t0 = ts_ref[i - 1]
        t1 = ts_ref[i]
        dt = t1 - t0
        gb_mid = gates_at(t0 + 0.5 * dt)
        gb1 = gates_at(t1)

        k1x, k1l, k1v = odefunc(gb0, x)
        k2x, k2l, k2v = odefunc(gb_mid, x + 0.5 * dt * k1x)
        k3x, k3l, k3v = odefunc(gb_mid, x + 0.5 * dt * k2x)
        k4x, k4l, k4v = odefunc(gb1, x + dt * k3x)

        c = dt / 6.0
        x = x + c * (k1x + 2.0 * (k2x + k3x) + k4x)
        ld = ld + c * (k1l + 2.0 * (k2l + k3l) + k4l)
        Lv = Lv + c * (k1v + 2.0 * (k2v + k3v) + k4v)
        xs_ref[i] = x
        gb0 = gb1                              # reuse t1 gates as next step's t0 gates

    # Final scalars written once (the module only ever reads them at the last time).
    aux_ref[...] = jnp.concatenate([ld, Lv], axis=1)


# ---------------------------------------------------------------------------
# Wrapper (glue: dtype pre-casting, specs, batch-tile grid)
# ---------------------------------------------------------------------------
def trajectorynet_forward(ts, x0, params, batch_tile=None):
    B, D = x0.shape
    T = int(ts.shape[0])
    n_layers = len(params)

    # Batch-tile grid axis ("parallel"): at small B this is grid=(1,); at large B it
    # splits work across v7x's two TensorCores and bounds per-tile VMEM residency.
    if batch_tile is None:
        bb = B if B <= 128 else 128
    else:
        bb = batch_tile
    assert B % bb == 0, "batch size must be divisible by the batch tile"
    if bb < B:
        assert bb % 8 == 0, "batch tile must be sublane-aligned (multiple of 8)"

    # Pre-cast matmul weights in the wrapper: layer 0 stays f32 (Jacobian seed +
    # recurrent-state precision), layers >= 1 go to bf16 once (halves weight DMA,
    # no in-kernel duplicate copies).  Small hyper-gate/bias vectors stay f32.
    flat = []
    for l, (Wt, b, wg, bg, wb) in enumerate(params):
        Wt_k = Wt.astype(jnp.float32) if l == 0 else Wt.astype(jnp.bfloat16)
        flat += [Wt_k, b.astype(jnp.float32), wg.astype(jnp.float32),
                 bg.astype(jnp.float32), wb.astype(jnp.float32)]

    # All weights are small 2-D arrays, fully VMEM-resident (constant block index, so
    # Pallas does not re-fetch them across grid steps).
    w_specs = [pl.BlockSpec(w.shape, lambda i, ts_ref: (0, 0)) for w in flat]

    kernel = functools.partial(_traj_kernel, n_layers, D, T)

    xs, aux = pl.pallas_call(
        kernel,
        out_shape=(jax.ShapeDtypeStruct((T, B, D), jnp.float32),
                   jax.ShapeDtypeStruct((B, 2), jnp.float32)),
        grid_spec=pltpu.PrefetchScalarGridSpec(
            num_scalar_prefetch=1,                      # ts -> SMEM
            grid=(B // bb,),                            # batch tiles, independent
            in_specs=[pl.BlockSpec((bb, D), lambda i, ts_ref: (i, 0))] + w_specs,
            out_specs=[pl.BlockSpec((T, bb, D), lambda i, ts_ref: (0, i, 0)),
                       pl.BlockSpec((bb, 2), lambda i, ts_ref: (i, 0))],
        ),
        compiler_params=pltpu.CompilerParams(dimension_semantics=("parallel",)),
    )(ts.astype(jnp.float32), x0.astype(jnp.float32), *flat)

    log_det = aux[:, 0]
    loss_L = jnp.abs(aux[:, 1])
    # loss_R is zero in the original module's forward as well.
    return dict(xs=xs, log_det=log_det, loss_L=loss_L,
                loss_R=jnp.zeros_like(loss_L))


# ---------------------------------------------------------------------------
# Pure-JAX reference (autodiff divergence + same RK4) for a sanity check
# ---------------------------------------------------------------------------
def ref_forward(ts, x0, params):
    D = x0.shape[1]
    n_layers = len(params)

    def net(t, x):
        h = x
        for l, (Wt, b, wg, bg, wb) in enumerate(params):
            gate = jax.nn.sigmoid(t * wg + bg)
            lin = (h @ Wt + b) * gate + t * wb
            h = jnp.tanh(lin) if l < n_layers - 1 else lin
        return h

    def odefunc(t, z):
        x = z[:, :D]
        dx = net(t, x)
        jac = jax.vmap(jax.jacfwd(lambda xi: net(t, xi[None, :])[0]))(x)
        dl = jnp.trace(jac, axis1=1, axis2=2)[:, None]
        dv = 0.5 * jnp.sum(dx ** 2, axis=1, keepdims=True)
        return jnp.concatenate([dx, dl, dv], axis=1)

    z = jnp.pad(x0, ((0, 0), (0, 2)))
    zs = [z]
    for k in range(1, ts.shape[0]):
        t0, t1 = ts[k - 1], ts[k]
        dt = t1 - t0
        k1 = odefunc(t0, z)
        k2 = odefunc(t0 + 0.5 * dt, z + 0.5 * dt * k1)
        k3 = odefunc(t0 + 0.5 * dt, z + 0.5 * dt * k2)
        k4 = odefunc(t1, z + dt * k3)
        z = z + dt / 6.0 * (k1 + 2 * k2 + 2 * k3 + k4)
        zs.append(z)
    return jnp.stack(zs)


if __name__ == "__main__":
    key = jax.random.PRNGKey(0)
    B, D, H, T = 8, 2, 32, 5
    hidden_dims = (H, H, H)

    dims = [(D, hidden_dims[0])]
    dims += [(hidden_dims[i - 1], hidden_dims[i]) for i in range(1, len(hidden_dims))]
    dims += [(hidden_dims[-1], D)]

    keys = jax.random.split(key, len(dims) + 1)
    params = [make_csl_params(keys[i], di, do) for i, (di, do) in enumerate(dims)]
    x0 = jax.random.normal(keys[-1], (B, D), jnp.float32)
    ts = jnp.linspace(0.0, 1.0, T).astype(jnp.float32)

    out = trajectorynet_forward(ts, x0, params)
    out = jax.block_until_ready(out)

    ref_zs = ref_forward(ts, x0, params)
    assert out["xs"].shape == (T, B, D)
    assert jnp.allclose(out["xs"], ref_zs[:, :, :-2], rtol=1e-2, atol=1e-2)
    assert jnp.allclose(out["log_det"], ref_zs[-1, :, -2], rtol=1e-2, atol=1e-2)
    assert jnp.allclose(out["loss_L"], jnp.abs(ref_zs[-1, :, -1]), rtol=1e-2, atol=1e-2)
    assert bool(jnp.all(jnp.isfinite(out["xs"])))

    print("KERNEL_OK")
</pallas_src>

<mosaic_0001>
module attributes {stable_mosaic.version = 11 : i64} {
  func.func @_traj_kernel(%arg0: i32, %arg1: memref<5xf32, #tpu.memory_space<smem>>, %arg2: memref<8x2xf32, #tpu.memory_space<vmem>>, %arg3: memref<2x32xf32, #tpu.memory_space<vmem>>, %arg4: memref<1x32xf32, #tpu.memory_space<vmem>>, %arg5: memref<1x32xf32, #tpu.memory_space<vmem>>, %arg6: memref<1x32xf32, #tpu.memory_space<vmem>>, %arg7: memref<1x32xf32, #tpu.memory_space<vmem>>, %arg8: memref<32x32xbf16, #tpu.memory_space<vmem>>, %arg9: memref<1x32xf32, #tpu.memory_space<vmem>>, %arg10: memref<1x32xf32, #tpu.memory_space<vmem>>, %arg11: memref<1x32xf32, #tpu.memory_space<vmem>>, %arg12: memref<1x32xf32, #tpu.memory_space<vmem>>, %arg13: memref<32x32xbf16, #tpu.memory_space<vmem>>, %arg14: memref<1x32xf32, #tpu.memory_space<vmem>>, %arg15: memref<1x32xf32, #tpu.memory_space<vmem>>, %arg16: memref<1x32xf32, #tpu.memory_space<vmem>>, %arg17: memref<1x32xf32, #tpu.memory_space<vmem>>, %arg18: memref<32x2xbf16, #tpu.memory_space<vmem>>, %arg19: memref<1x2xf32, #tpu.memory_space<vmem>>, %arg20: memref<1x2xf32, #tpu.memory_space<vmem>>, %arg21: memref<1x2xf32, #tpu.memory_space<vmem>>, %arg22: memref<1x2xf32, #tpu.memory_space<vmem>>, %arg23: memref<5x8x2xf32, #tpu.memory_space<vmem>>, %arg24: memref<8x2xf32, #tpu.memory_space<vmem>>) attributes {dimension_semantics = [#tpu.dimension_semantics<parallel>], iteration_bounds = array<i64: 1>, scalar_prefetch = 1 : i64, scratch_operands = 0 : i64, tpu.core_type = #tpu.core_type<tc>, window_params = [{transform_indices = @transform_0, window_bounds = array<i64: 8, 2>}, {pipeline_mode = #tpu.pipeline_mode<synchronous>, transform_indices = @transform_1, window_bounds = array<i64: 2, 32>}, {pipeline_mode = #tpu.pipeline_mode<synchronous>, transform_indices = @transform_2, window_bounds = array<i64: 1, 32>}, {pipeline_mode = #tpu.pipeline_mode<synchronous>, transform_indices = @transform_3, window_bounds = array<i64: 1, 32>}, {pipeline_mode = #tpu.pipeline_mode<synchronous>, transform_indices = @transform_4, window_bounds = array<i64: 1, 32>}, {pipeline_mode = #tpu.pipeline_mode<synchronous>, transform_indices = @transform_5, window_bounds = array<i64: 1, 32>}, {pipeline_mode = #tpu.pipeline_mode<synchronous>, transform_indices = @transform_6, window_bounds = array<i64: 32, 32>}, {pipeline_mode = #tpu.pipeline_mode<synchronous>, transform_indices = @transform_7, window_bounds = array<i64: 1, 32>}, {pipeline_mode = #tpu.pipeline_mode<synchronous>, transform_indices = @transform_8, window_bounds = array<i64: 1, 32>}, {pipeline_mode = #tpu.pipeline_mode<synchronous>, transform_indices = @transform_9, window_bounds = array<i64: 1, 32>}, {pipeline_mode = #tpu.pipeline_mode<synchronous>, transform_indices = @transform_10, window_bounds = array<i64: 1, 32>}, {pipeline_mode = #tpu.pipeline_mode<synchronous>, transform_indices = @transform_11, window_bounds = array<i64: 32, 32>}, {pipeline_mode = #tpu.pipeline_mode<synchronous>, transform_indices = @transform_12, window_bounds = array<i64: 1, 32>}, {pipeline_mode = #tpu.pipeline_mode<synchronous>, transform_indices = @transform_13, window_bounds = array<i64: 1, 32>}, {pipeline_mode = #tpu.pipeline_mode<synchronous>, transform_indices = @transform_14, window_bounds = array<i64: 1, 32>}, {pipeline_mode = #tpu.pipeline_mode<synchronous>, transform_indices = @transform_15, window_bounds = array<i64: 1, 32>}, {pipeline_mode = #tpu.pipeline_mode<synchronous>, transform_indices = @transform_16, window_bounds = array<i64: 32, 2>}, {pipeline_mode = #tpu.pipeline_mode<synchronous>, transform_indices = @transform_17, window_bounds = array<i64: 1, 2>}, {pipeline_mode = #tpu.pipeline_mode<synchronous>, transform_indices = @transform_18, window_bounds = array<i64: 1, 2>}, {pipeline_mode = #tpu.pipeline_mode<synchronous>, transform_indices = @transform_19, window_bounds = array<i64: 1, 2>}, {pipeline_mode = #tpu.pipeline_mode<synchronous>, transform_indices = @transform_20, window_bounds = array<i64: 1, 2>}, {transform_indices = @transform_21, window_bounds = array<i64: 5, 8, 2>}, {transform_indices = @transform_22, window_bounds = array<i64: 8, 2>}]} {
    %c0 = arith.constant 0 : index
    %c0_0 = arith.constant 0 : index
    %0 = vector.load %arg3[%c0, %c0_0] : memref<2x32xf32, #tpu.memory_space<vmem>>, vector<2x32xf32>
    %c0_1 = arith.constant 0 : index
    %c0_2 = arith.constant 0 : index
    %1 = vector.load %arg4[%c0_1, %c0_2] : memref<1x32xf32, #tpu.memory_space<vmem>>, vector<1x32xf32>
    %c0_3 = arith.constant 0 : index
    %c0_4 = arith.constant 0 : index
    %2 = vector.load %arg5[%c0_3, %c0_4] : memref<1x32xf32, #tpu.memory_space<vmem>>, vector<1x32xf32>
    %c0_5 = arith.constant 0 : index
    %c0_6 = arith.constant 0 : index
    %3 = vector.load %arg6[%c0_5, %c0_6] : memref<1x32xf32, #tpu.memory_space<vmem>>, vector<1x32xf32>
    %c0_7 = arith.constant 0 : index
    %c0_8 = arith.constant 0 : index
    %4 = vector.load %arg7[%c0_7, %c0_8] : memref<1x32xf32, #tpu.memory_space<vmem>>, vector<1x32xf32>
    %c0_9 = arith.constant 0 : index
    %c0_10 = arith.constant 0 : index
    %5 = vector.load %arg8[%c0_9, %c0_10] : memref<32x32xbf16, #tpu.memory_space<vmem>>, vector<32x32xbf16>
    %c0_11 = arith.constant 0 : index
    %c0_12 = arith.constant 0 : index
    %6 = vector.load %arg9[%c0_11, %c0_12] : memref<1x32xf32, #tpu.memory_space<vmem>>, vector<1x32xf32>
    %c0_13 = arith.constant 0 : index
    %c0_14 = arith.constant 0 : index
    %7 = vector.load %arg10[%c0_13, %c0_14] : memref<1x32xf32, #tpu.memory_space<vmem>>, vector<1x32xf32>
    %c0_15 = arith.constant 0 : index
    %c0_16 = arith.constant 0 : index
    %8 = vector.load %arg11[%c0_15, %c0_16] : memref<1x32xf32, #tpu.memory_space<vmem>>, vector<1x32xf32>
    %c0_17 = arith.constant 0 : index
    %c0_18 = arith.constant 0 : index
    %9 = vector.load %arg12[%c0_17, %c0_18] : memref<1x32xf32, #tpu.memory_space<vmem>>, vector<1x32xf32>
    %c0_19 = arith.constant 0 : index
    %c0_20 = arith.constant 0 : index
    %10 = vector.load %arg13[%c0_19, %c0_20] : memref<32x32xbf16, #tpu.memory_space<vmem>>, vector<32x32xbf16>
    %c0_21 = arith.constant 0 : index
    %c0_22 = arith.constant 0 : index
    %11 = vector.load %arg14[%c0_21, %c0_22] : memref<1x32xf32, #tpu.memory_space<vmem>>, vector<1x32xf32>
    %c0_23 = arith.constant 0 : index
    %c0_24 = arith.constant 0 : index
    %12 = vector.load %arg15[%c0_23, %c0_24] : memref<1x32xf32, #tpu.memory_space<vmem>>, vector<1x32xf32>
    %c0_25 = arith.constant 0 : index
    %c0_26 = arith.constant 0 : index
    %13 = vector.load %arg16[%c0_25, %c0_26] : memref<1x32xf32, #tpu.memory_space<vmem>>, vector<1x32xf32>
    %c0_27 = arith.constant 0 : index
    %c0_28 = arith.constant 0 : index
    %14 = vector.load %arg17[%c0_27, %c0_28] : memref<1x32xf32, #tpu.memory_space<vmem>>, vector<1x32xf32>
    %c0_29 = arith.constant 0 : index
    %c0_30 = arith.constant 0 : index
    %15 = vector.load %arg18[%c0_29, %c0_30] : memref<32x2xbf16, #tpu.memory_space<vmem>>, vector<32x2xbf16>
    %c0_31 = arith.constant 0 : index
    %c0_32 = arith.constant 0 : index
    %16 = vector.load %arg19[%c0_31, %c0_32] : memref<1x2xf32, #tpu.memory_space<vmem>>, vector<1x2xf32>
    %c0_33 = arith.constant 0 : index
    %c0_34 = arith.constant 0 : index
    %17 = vector.load %arg20[%c0_33, %c0_34] : memref<1x2xf32, #tpu.memory_space<vmem>>, vector<1x2xf32>
    %c0_35 = arith.constant 0 : index
    %c0_36 = arith.constant 0 : index
    %18 = vector.load %arg21[%c0_35, %c0_36] : memref<1x2xf32, #tpu.memory_space<vmem>>, vector<1x2xf32>
    %c0_37 = arith.constant 0 : index
    %c0_38 = arith.constant 0 : index
    %19 = vector.load %arg22[%c0_37, %c0_38] : memref<1x2xf32, #tpu.memory_space<vmem>>, vector<1x2xf32>
    %20 = vector.extract_strided_slice %0 {offsets = [0, 0], sizes = [1, 32], strides = [1, 1]} : vector<2x32xf32> to vector<1x32xf32>
    %21 = vector.shape_cast %20 : vector<1x32xf32> to vector<1x32xf32>
    %22 = vector.broadcast %21 : vector<1x32xf32> to vector<8x32xf32>
    %23 = vector.extract_strided_slice %0 {offsets = [1, 0], sizes = [1, 32], strides = [1, 1]} : vector<2x32xf32> to vector<1x32xf32>
    %24 = vector.shape_cast %23 : vector<1x32xf32> to vector<1x32xf32>
    %25 = vector.broadcast %24 : vector<1x32xf32> to vector<8x32xf32>
    %26 = tpu.concatenate %22, %25 in 0 : vector<8x32xf32>, vector<8x32xf32> -> vector<16x32xf32>
    %c0_39 = arith.constant 0 : index
    %c0_40 = arith.constant 0 : index
    %27 = vector.load %arg2[%c0_39, %c0_40] : memref<8x2xf32, #tpu.memory_space<vmem>>, vector<8x2xf32>
    %cst = arith.constant 0.000000e+00 : f32
    %28 = vector.broadcast %cst : f32 to vector<8x1xf32>
    %cst_41 = arith.constant 0.000000e+00 : f32
    %29 = vector.broadcast %cst_41 : f32 to vector<8x1xf32>
    %c0_42 = arith.constant 0 : index
    %c0_43 = arith.constant 0 : index
    %c0_44 = arith.constant 0 : index
    %30 = vector.load %arg23[%c0_42, %c0_43, %c0_44] : memref<5x8x2xf32, #tpu.memory_space<vmem>>, vector<1x8x2xf32>
    %31 = vector.shape_cast %30 : vector<1x8x2xf32> to vector<8x2xf32>
    %32 = vector.shape_cast %27 : vector<8x2xf32> to vector<1x8x2xf32>
    tpu.vector_store %arg23[%c0_42, %c0_43, %c0_44], %32 {strides = array<i32>} : memref<5x8x2xf32, #tpu.memory_space<vmem>>, vector<1x8x2xf32>,
    %c0_45 = arith.constant 0 : index
    %33 = memref.load %arg1[%c0_45] : memref<5xf32, #tpu.memory_space<smem>>
    %34 = vector.broadcast %33 : f32 to vector<1x32xf32>
    %35 = arith.mulf %34, %2 : vector<1x32xf32>
    %36 = arith.addf %35, %3 : vector<1x32xf32>
    %37 = arith.negf %36 : vector<1x32xf32>
    %38 = math.exp %37 : vector<1x32xf32>
    %cst_46 = arith.constant 1.000000e+00 : f32
    %39 = vector.broadcast %cst_46 : f32 to vector<1x32xf32>
    %40 = arith.addf %39, %38 : vector<1x32xf32>
    %41 = arith.divf %39, %40 : vector<1x32xf32>
    %42 = arith.mulf %1, %41 : vector<1x32xf32>
    %43 = vector.broadcast %33 : f32 to vector<1x32xf32>
    %44 = arith.mulf %43, %4 : vector<1x32xf32>
    %45 = arith.addf %42, %44 : vector<1x32xf32>
    %46 = vector.broadcast %33 : f32 to vector<1x32xf32>
    %47 = arith.mulf %46, %7 : vector<1x32xf32>
    %48 = arith.addf %47, %8 : vector<1x32xf32>
    %49 = arith.negf %48 : vector<1x32xf32>
    %50 = math.exp %49 : vector<1x32xf32>
    %cst_47 = arith.constant 1.000000e+00 : f32
    %51 = vector.broadcast %cst_47 : f32 to vector<1x32xf32>
    %52 = arith.addf %51, %50 : vector<1x32xf32>
    %53 = arith.divf %51, %52 : vector<1x32xf32>
    %54 = arith.mulf %6, %53 : vector<1x32xf32>
    %55 = vector.broadcast %33 : f32 to vector<1x32xf32>
    %56 = arith.mulf %55, %9 : vector<1x32xf32>
    %57 = arith.addf %54, %56 : vector<1x32xf32>
    %58 = vector.broadcast %33 : f32 to vector<1x32xf32>
    %59 = arith.mulf %58, %12 : vector<1x32xf32>
    %60 = arith.addf %59, %13 : vector<1x32xf32>
    %61 = arith.negf %60 : vector<1x32xf32>
    %62 = math.exp %61 : vector<1x32xf32>
    %cst_48 = arith.constant 1.000000e+00 : f32
    %63 = vector.broadcast %cst_48 : f32 to vector<1x32xf32>
    %64 = arith.addf %63, %62 : vector<1x32xf32>
    %65 = arith.divf %63, %64 : vector<1x32xf32>
    %66 = arith.mulf %11, %65 : vector<1x32xf32>
    %67 = vector.broadcast %33 : f32 to vector<1x32xf32>
    %68 = arith.mulf %67, %14 : vector<1x32xf32>
    %69 = arith.addf %66, %68 : vector<1x32xf32>
    %70 = vector.broadcast %33 : f32 to vector<1x2xf32>
    %71 = arith.mulf %70, %17 : vector<1x2xf32>
    %72 = arith.addf %71, %18 : vector<1x2xf32>
    %73 = arith.negf %72 : vector<1x2xf32>
    %74 = math.exp %73 : vector<1x2xf32>
    %cst_49 = arith.constant 1.000000e+00 : f32
    %75 = vector.broadcast %cst_49 : f32 to vector<1x2xf32>
    %76 = arith.addf %75, %74 : vector<1x2xf32>
    %77 = arith.divf %75, %76 : vector<1x2xf32>
    %78 = arith.mulf %16, %77 : vector<1x2xf32>
    %79 = vector.broadcast %33 : f32 to vector<1x2xf32>
    %80 = arith.mulf %79, %19 : vector<1x2xf32>
    %81 = arith.addf %78, %80 : vector<1x2xf32>
    %c0_50 = arith.constant 0 : index
    %82 = memref.load %arg1[%c0_50] : memref<5xf32, #tpu.memory_space<smem>>
    %c1 = arith.constant 1 : index
    %83 = memref.load %arg1[%c1] : memref<5xf32, #tpu.memory_space<smem>>
    %84 = arith.subf %83, %82 : f32
    %cst_51 = arith.constant 5.000000e-01 : f32
    %85 = arith.mulf %cst_51, %84 : f32
    %86 = arith.addf %82, %85 : f32
    %87 = vector.broadcast %86 : f32 to vector<1x32xf32>
    %88 = arith.mulf %87, %2 : vector<1x32xf32>
    %89 = arith.addf %88, %3 : vector<1x32xf32>
    %90 = arith.negf %89 : vector<1x32xf32>
    %91 = math.exp %90 : vector<1x32xf32>
    %cst_52 = arith.constant 1.000000e+00 : f32
    %92 = vector.broadcast %cst_52 : f32 to vector<1x32xf32>
    %93 = arith.addf %92, %91 : vector<1x32xf32>
    %94 = arith.divf %92, %93 : vector<1x32xf32>
    %95 = arith.mulf %1, %94 : vector<1x32xf32>
    %96 = vector.broadcast %86 : f32 to vector<1x32xf32>
    %97 = arith.mulf %96, %4 : vector<1x32xf32>
    %98 = arith.addf %95, %97 : vector<1x32xf32>
    %99 = vector.broadcast %86 : f32 to vector<1x32xf32>
    %100 = arith.mulf %99, %7 : vector<1x32xf32>
    %101 = arith.addf %100, %8 : vector<1x32xf32>
    %102 = arith.negf %101 : vector<1x32xf32>
    %103 = math.exp %102 : vector<1x32xf32>
    %cst_53 = arith.constant 1.000000e+00 : f32
    %104 = vector.broadcast %cst_53 : f32 to vector<1x32xf32>
    %105 = arith.addf %104, %103 : vector<1x32xf32>
    %106 = arith.divf %104, %105 : vector<1x32xf32>
    %107 = arith.mulf %6, %106 : vector<1x32xf32>
    %108 = vector.broadcast %86 : f32 to vector<1x32xf32>
    %109 = arith.mulf %108, %9 : vector<1x32xf32>
    %110 = arith.addf %107, %109 : vector<1x32xf32>
    %111 = vector.broadcast %86 : f32 to vector<1x32xf32>
    %112 = arith.mulf %111, %12 : vector<1x32xf32>
    %113 = arith.addf %112, %13 : vector<1x32xf32>
    %114 = arith.negf %113 : vector<1x32xf32>
    %115 = math.exp %114 : vector<1x32xf32>
    %cst_54 = arith.constant 1.000000e+00 : f32
    %116 = vector.broadcast %cst_54 : f32 to vector<1x32xf32>
    %117 = arith.addf %116, %115 : vector<1x32xf32>
    %118 = arith.divf %116, %117 : vector<1x32xf32>
    %119 = arith.mulf %11, %118 : vector<1x32xf32>
    %120 = vector.broadcast %86 : f32 to vector<1x32xf32>
    %121 = arith.mulf %120, %14 : vector<1x32xf32>
    %122 = arith.addf %119, %121 : vector<1x32xf32>
    %123 = vector.broadcast %86 : f32 to vector<1x2xf32>
    %124 = arith.mulf %123, %17 : vector<1x2xf32>
    %125 = arith.addf %124, %18 : vector<1x2xf32>
    %126 = arith.negf %125 : vector<1x2xf32>
    %127 = math.exp %126 : vector<1x2xf32>
    %cst_55 = arith.constant 1.000000e+00 : f32
    %128 = vector.broadcast %cst_55 : f32 to vector<1x2xf32>
    %129 = arith.addf %128, %127 : vector<1x2xf32>
    %130 = arith.divf %128, %129 : vector<1x2xf32>
    %131 = arith.mulf %16, %130 : vector<1x2xf32>
    %132 = vector.broadcast %86 : f32 to vector<1x2xf32>
    %133 = arith.mulf %132, %19 : vector<1x2xf32>
    %134 = arith.addf %131, %133 : vector<1x2xf32>
    %135 = vector.broadcast %83 : f32 to vector<1x32xf32>
    %136 = arith.mulf %135, %2 : vector<1x32xf32>
    %137 = arith.addf %136, %3 : vector<1x32xf32>
    %138 = arith.negf %137 : vector<1x32xf32>
    %139 = math.exp %138 : vector<1x32xf32>
    %cst_56 = arith.constant 1.000000e+00 : f32
    %140 = vector.broadcast %cst_56 : f32 to vector<1x32xf32>
    %141 = arith.addf %140, %139 : vector<1x32xf32>
    %142 = arith.divf %140, %141 : vector<1x32xf32>
    %143 = arith.mulf %1, %142 : vector<1x32xf32>
    %144 = vector.broadcast %83 : f32 to vector<1x32xf32>
    %145 = arith.mulf %144, %4 : vector<1x32xf32>
    %146 = arith.addf %143, %145 : vector<1x32xf32>
    %147 = vector.broadcast %83 : f32 to vector<1x32xf32>
    %148 = arith.mulf %147, %7 : vector<1x32xf32>
    %149 = arith.addf %148, %8 : vector<1x32xf32>
    %150 = arith.negf %149 : vector<1x32xf32>
    %151 = math.exp %150 : vector<1x32xf32>
    %cst_57 = arith.constant 1.000000e+00 : f32
    %152 = vector.broadcast %cst_57 : f32 to vector<1x32xf32>
    %153 = arith.addf %152, %151 : vector<1x32xf32>
    %154 = arith.divf %152, %153 : vector<1x32xf32>
    %155 = arith.mulf %6, %154 : vector<1x32xf32>
    %156 = vector.broadcast %83 : f32 to vector<1x32xf32>
    %157 = arith.mulf %156, %9 : vector<1x32xf32>
    %158 = arith.addf %155, %157 : vector<1x32xf32>
    %159 = vector.broadcast %83 : f32 to vector<1x32xf32>
    %160 = arith.mulf %159, %12 : vector<1x32xf32>
    %161 = arith.addf %160, %13 : vector<1x32xf32>
    %162 = arith.negf %161 : vector<1x32xf32>
    %163 = math.exp %162 : vector<1x32xf32>
    %cst_58 = arith.constant 1.000000e+00 : f32
    %164 = vector.broadcast %cst_58 : f32 to vector<1x32xf32>
    %165 = arith.addf %164, %163 : vector<1x32xf32>
    %166 = arith.divf %164, %165 : vector<1x32xf32>
    %167 = arith.mulf %11, %166 : vector<1x32xf32>
    %168 = vector.broadcast %83 : f32 to vector<1x32xf32>
    %169 = arith.mulf %168, %14 : vector<1x32xf32>
    %170 = arith.addf %167, %169 : vector<1x32xf32>
    %171 = vector.broadcast %83 : f32 to vector<1x2xf32>
    %172 = arith.mulf %171, %17 : vector<1x2xf32>
    %173 = arith.addf %172, %18 : vector<1x2xf32>
    %174 = arith.negf %173 : vector<1x2xf32>
    %175 = math.exp %174 : vector<1x2xf32>
    %cst_59 = arith.constant 1.000000e+00 : f32
    %176 = vector.broadcast %cst_59 : f32 to vector<1x2xf32>
    %177 = arith.addf %176, %175 : vector<1x2xf32>
    %178 = arith.divf %176, %177 : vector<1x2xf32>
    %179 = arith.mulf %16, %178 : vector<1x2xf32>
    %180 = vector.broadcast %83 : f32 to vector<1x2xf32>
    %181 = arith.mulf %180, %19 : vector<1x2xf32>
    %182 = arith.addf %179, %181 : vector<1x2xf32>
    %cst_60 = arith.constant dense<0.000000e+00> : vector<8x32xf32>
    %183 = tpu.matmul %27, %0, %cst_60 {dimension_numbers = #tpu.dot_dimension_numbers<[1], [0], [0], [1], [0, 0, 1, 1], [], []>} : vector<8x2xf32>, vector<2x32xf32>, vector<8x32xf32> -> vector<8x32xf32>
    %184 = vector.broadcast %41 : vector<1x32xf32> to vector<8x32xf32>
    %185 = arith.mulf %183, %184 : vector<8x32xf32>
    %186 = vector.broadcast %45 : vector<1x32xf32> to vector<8x32xf32>
    %187 = arith.addf %185, %186 : vector<8x32xf32>
    %188 = math.tanh %187 : vector<8x32xf32>
    %189 = arith.mulf %188, %188 : vector<8x32xf32>
    %cst_61 = arith.constant 1.000000e+00 : f32
    %190 = vector.broadcast %cst_61 : f32 to vector<8x32xf32>
    %191 = arith.subf %190, %189 : vector<8x32xf32>
    %192 = vector.broadcast %41 : vector<1x32xf32> to vector<8x32xf32>
    %193 = arith.mulf %192, %191 : vector<8x32xf32>
    %194 = vector.shape_cast %26 : vector<16x32xf32> to vector<2x8x32xf32>
    %195 = vector.shape_cast %193 : vector<8x32xf32> to vector<1x8x32xf32>
    %196 = vector.broadcast %195 : vector<1x8x32xf32> to vector<2x8x32xf32>
    %197 = arith.mulf %194, %196 : vector<2x8x32xf32>
    %198 = vector.shape_cast %197 : vector<2x8x32xf32> to vector<16x32xf32>
    %199 = tpu.concatenate %188, %198 in 0 : vector<8x32xf32>, vector<16x32xf32> -> vector<24x32xf32>
    %200 = arith.truncf %199 : vector<24x32xf32> to vector<24x32xbf16>
    %cst_62 = arith.constant dense<0.000000e+00> : vector<24x32xf32>
    %201 = tpu.matmul %200, %5, %cst_62 {dimension_numbers = #tpu.dot_dimension_numbers<[1], [0], [0], [1], [0, 0, 1, 1], [], []>} : vector<24x32xbf16>, vector<32x32xbf16>, vector<24x32xf32> -> vector<24x32xf32>
    %202 = vector.broadcast %53 : vector<1x32xf32> to vector<24x32xf32>
    %203 = arith.mulf %201, %202 : vector<24x32xf32>
    %204 = vector.extract_strided_slice %203 {offsets = [0, 0], sizes = [8, 32], strides = [1, 1]} : vector<24x32xf32> to vector<8x32xf32>
    %205 = vector.broadcast %57 : vector<1x32xf32> to vector<8x32xf32>
    %206 = arith.addf %204, %205 : vector<8x32xf32>
    %207 = math.tanh %206 : vector<8x32xf32>
    %208 = arith.mulf %207, %207 : vector<8x32xf32>
    %cst_63 = arith.constant 1.000000e+00 : f32
    %209 = vector.broadcast %cst_63 : f32 to vector<8x32xf32>
    %210 = arith.subf %209, %208 : vector<8x32xf32>
    %211 = vector.extract_strided_slice %203 {offsets = [8, 0], sizes = [16, 32], strides = [1, 1]} : vector<24x32xf32> to vector<16x32xf32>
    %212 = vector.shape_cast %211 : vector<16x32xf32> to vector<2x8x32xf32>
    %213 = vector.shape_cast %210 : vector<8x32xf32> to vector<1x8x32xf32>
    %214 = vector.broadcast %213 : vector<1x8x32xf32> to vector<2x8x32xf32>
    %215 = arith.mulf %212, %214 : vector<2x8x32xf32>
    %216 = vector.shape_cast %215 : vector<2x8x32xf32> to vector<16x32xf32>
    %217 = tpu.concatenate %207, %216 in 0 : vector<8x32xf32>, vector<16x32xf32> -> vector<24x32xf32>
    %218 = arith.truncf %217 : vector<24x32xf32> to vector<24x32xbf16>
    %cst_64 = arith.constant dense<0.000000e+00> : vector<24x32xf32>
    %219 = tpu.matmul %218, %10, %cst_64 {dimension_numbers = #tpu.dot_dimension_numbers<[1], [0], [0], [1], [0, 0, 1, 1], [], []>} : vector<24x32xbf16>, vector<32x32xbf16>, vector<24x32xf32> -> vector<24x32xf32>
    %220 = vector.broadcast %65 : vector<1x32xf32> to vector<24x32xf32>
    %221 = arith.mulf %219, %220 : vector<24x32xf32>
    %222 = vector.extract_strided_slice %221 {offsets = [0, 0], sizes = [8, 32], strides = [1, 1]} : vector<24x32xf32> to vector<8x32xf32>
    %223 = vector.broadcast %69 : vector<1x32xf32> to vector<8x32xf32>
    %224 = arith.addf %222, %223 : vector<8x32xf32>
    %225 = math.tanh %224 : vector<8x32xf32>
    %226 = arith.mulf %225, %225 : vector<8x32xf32>
    %cst_65 = arith.constant 1.000000e+00 : f32
    %227 = vector.broadcast %cst_65 : f32 to vector<8x32xf32>
    %228 = arith.subf %227, %226 : vector<8x32xf32>
    %229 = vector.extract_strided_slice %221 {offsets = [8, 0], sizes = [16, 32], strides = [1, 1]} : vector<24x32xf32> to vector<16x32xf32>
    %230 = vector.shape_cast %229 : vector<16x32xf32> to vector<2x8x32xf32>
    %231 = vector.shape_cast %228 : vector<8x32xf32> to vector<1x8x32xf32>
    %232 = vector.broadcast %231 : vector<1x8x32xf32> to vector<2x8x32xf32>
    %233 = arith.mulf %230, %232 : vector<2x8x32xf32>
    %234 = vector.shape_cast %233 : vector<2x8x32xf32> to vector<16x32xf32>
    %235 = tpu.concatenate %225, %234 in 0 : vector<8x32xf32>, vector<16x32xf32> -> vector<24x32xf32>
    %236 = arith.truncf %235 : vector<24x32xf32> to vector<24x32xbf16>
    %cst_66 = arith.constant dense<0.000000e+00> : vector<24x2xf32>
    %237 = tpu.matmul %236, %15, %cst_66 {dimension_numbers = #tpu.dot_dimension_numbers<[1], [0], [0], [1], [0, 0, 1, 1], [], []>} : vector<24x32xbf16>, vector<32x2xbf16>, vector<24x2xf32> -> vector<24x2xf32>
    %238 = vector.broadcast %77 : vector<1x2xf32> to vector<24x2xf32>
    %239 = arith.mulf %237, %238 : vector<24x2xf32>
    %240 = vector.extract_strided_slice %239 {offsets = [0, 0], sizes = [8, 2], strides = [1, 1]} : vector<24x2xf32> to vector<8x2xf32>
    %241 = vector.broadcast %81 : vector<1x2xf32> to vector<8x2xf32>
    %242 = arith.addf %240, %241 : vector<8x2xf32>
    %243 = vector.extract_strided_slice %239 {offsets = [8, 0], sizes = [16, 2], strides = [1, 1]} : vector<24x2xf32> to vector<16x2xf32>
    %244 = vector.extract_strided_slice %243 {offsets = [0, 0], sizes = [8, 1], strides = [1, 1]} : vector<16x2xf32> to vector<8x1xf32>
    %245 = vector.extract_strided_slice %243 {offsets = [8, 1], sizes = [8, 1], strides = [1, 1]} : vector<16x2xf32> to vector<8x1xf32>
    %246 = arith.addf %244, %245 : vector<8x1xf32>
    %247 = arith.mulf %242, %242 : vector<8x2xf32>
    %cst_67 = arith.constant dense<0.000000e+00> : vector<8xf32>
    %248 = vector.multi_reduction <add>, %247, %cst_67 [1] : vector<8x2xf32> to vector<8xf32>
    %249 = vector.shape_cast %248 : vector<8xf32> to vector<8x1xf32>
    %cst_68 = arith.constant 5.000000e-01 : f32
    %250 = vector.broadcast %cst_68 : f32 to vector<8x1xf32>
    %251 = arith.mulf %250, %249 : vector<8x1xf32>
    %cst_69 = arith.constant 5.000000e-01 : f32
    %252 = arith.mulf %cst_69, %84 : f32
    %253 = vector.broadcast %252 : f32 to vector<8x2xf32>
    %254 = arith.mulf %253, %242 : vector<8x2xf32>
    %255 = arith.addf %27, %254 : vector<8x2xf32>
    %cst_70 = arith.constant dense<0.000000e+00> : vector<8x32xf32>
    %256 = tpu.matmul %255, %0, %cst_70 {dimension_numbers = #tpu.dot_dimension_numbers<[1], [0], [0], [1], [0, 0, 1, 1], [], []>} : vector<8x2xf32>, vector<2x32xf32>, vector<8x32xf32> -> vector<8x32xf32>
    %257 = vector.broadcast %94 : vector<1x32xf32> to vector<8x32xf32>
    %258 = arith.mulf %256, %257 : vector<8x32xf32>
    %259 = vector.broadcast %98 : vector<1x32xf32> to vector<8x32xf32>
    %260 = arith.addf %258, %259 : vector<8x32xf32>
    %261 = math.tanh %260 : vector<8x32xf32>
    %262 = arith.mulf %261, %261 : vector<8x32xf32>
    %cst_71 = arith.constant 1.000000e+00 : f32
    %263 = vector.broadcast %cst_71 : f32 to vector<8x32xf32>
    %264 = arith.subf %263, %262 : vector<8x32xf32>
    %265 = vector.broadcast %94 : vector<1x32xf32> to vector<8x32xf32>
    %266 = arith.mulf %265, %264 : vector<8x32xf32>
    %267 = vector.shape_cast %26 : vector<16x32xf32> to vector<2x8x32xf32>
    %268 = vector.shape_cast %266 : vector<8x32xf32> to vector<1x8x32xf32>
    %269 = vector.broadcast %268 : vector<1x8x32xf32> to vector<2x8x32xf32>
    %270 = arith.mulf %267, %269 : vector<2x8x32xf32>
    %271 = vector.shape_cast %270 : vector<2x8x32xf32> to vector<16x32xf32>
    %272 = tpu.concatenate %261, %271 in 0 : vector<8x32xf32>, vector<16x32xf32> -> vector<24x32xf32>
    %273 = arith.truncf %272 : vector<24x32xf32> to vector<24x32xbf16>
    %cst_72 = arith.constant dense<0.000000e+00> : vector<24x32xf32>
    %274 = tpu.matmul %273, %5, %cst_72 {dimension_numbers = #tpu.dot_dimension_numbers<[1], [0], [0], [1], [0, 0, 1, 1], [], []>} : vector<24x32xbf16>, vector<32x32xbf16>, vector<24x32xf32> -> vector<24x32xf32>
    %275 = vector.broadcast %106 : vector<1x32xf32> to vector<24x32xf32>
    %276 = arith.mulf %274, %275 : vector<24x32xf32>
    %277 = vector.extract_strided_slice %276 {offsets = [0, 0], sizes = [8, 32], strides = [1, 1]} : vector<24x32xf32> to vector<8x32xf32>
    %278 = vector.broadcast %110 : vector<1x32xf32> to vector<8x32xf32>
    %279 = arith.addf %277, %278 : vector<8x32xf32>
    %280 = math.tanh %279 : vector<8x32xf32>
    %281 = arith.mulf %280, %280 : vector<8x32xf32>
    %cst_73 = arith.constant 1.000000e+00 : f32
    %282 = vector.broadcast %cst_73 : f32 to vector<8x32xf32>
    %283 = arith.subf %282, %281 : vector<8x32xf32>
    %284 = vector.extract_strided_slice %276 {offsets = [8, 0], sizes = [16, 32], strides = [1, 1]} : vector<24x32xf32> to vector<16x32xf32>
    %285 = vector.shape_cast %284 : vector<16x32xf32> to vector<2x8x32xf32>
    %286 = vector.shape_cast %283 : vector<8x32xf32> to vector<1x8x32xf32>
    %287 = vector.broadcast %286 : vector<1x8x32xf32> to vector<2x8x32xf32>
    %288 = arith.mulf %285, %287 : vector<2x8x32xf32>
    %289 = vector.shape_cast %288 : vector<2x8x32xf32> to vector<16x32xf32>
    %290 = tpu.concatenate %280, %289 in 0 : vector<8x32xf32>, vector<16x32xf32> -> vector<24x32xf32>
    %291 = arith.truncf %290 : vector<24x32xf32> to vector<24x32xbf16>
    %cst_74 = arith.constant dense<0.000000e+00> : vector<24x32xf32>
    %292 = tpu.matmul %291, %10, %cst_74 {dimension_numbers = #tpu.dot_dimension_numbers<[1], [0], [0], [1], [0, 0, 1, 1], [], []>} : vector<24x32xbf16>, vector<32x32xbf16>, vector<24x32xf32> -> vector<24x32xf32>
    %293 = vector.broadcast %118 : vector<1x32xf32> to vector<24x32xf32>
    %294 = arith.mulf %292, %293 : vector<24x32xf32>
    %295 = vector.extract_strided_slice %294 {offsets = [0, 0], sizes = [8, 32], strides = [1, 1]} : vector<24x32xf32> to vector<8x32xf32>
    %296 = vector.broadcast %122 : vector<1x32xf32> to vector<8x32xf32>
    %297 = arith.addf %295, %296 : vector<8x32xf32>
    %298 = math.tanh %297 : vector<8x32xf32>
    %299 = arith.mulf %298, %298 : vector<8x32xf32>
    %cst_75 = arith.constant 1.000000e+00 : f32
    %300 = vector.broadcast %cst_75 : f32 to vector<8x32xf32>
    %301 = arith.subf %300, %299 : vector<8x32xf32>
    %302 = vector.extract_strided_slice %294 {offsets = [8, 0], sizes = [16, 32], strides = [1, 1]} : vector<24x32xf32> to vector<16x32xf32>
    %303 = vector.shape_cast %302 : vector<16x32xf32> to vector<2x8x32xf32>
    %304 = vector.shape_cast %301 : vector<8x32xf32> to vector<1x8x32xf32>
    %305 = vector.broadcast %304 : vector<1x8x32xf32> to vector<2x8x32xf32>
    %306 = arith.mulf %303, %305 : vector<2x8x32xf32>
    %307 = vector.shape_cast %306 : vector<2x8x32xf32> to vector<16x32xf32>
    %308 = tpu.concatenate %298, %307 in 0 : vector<8x32xf32>, vector<16x32xf32> -> vector<24x32xf32>
    %309 = arith.truncf %308 : vector<24x32xf32> to vector<24x32xbf16>
    %cst_76 = arith.constant dense<0.000000e+00> : vector<24x2xf32>
    %310 = tpu.matmul %309, %15, %cst_76 {dimension_numbers = #tpu.dot_dimension_numbers<[1], [0], [0], [1], [0, 0, 1, 1], [], []>} : vector<24x32xbf16>, vector<32x2xbf16>, vector<24x2xf32> -> vector<24x2xf32>
    %311 = vector.broadcast %130 : vector<1x2xf32> to vector<24x2xf32>
    %312 = arith.mulf %310, %311 : vector<24x2xf32>
    %313 = vector.extract_strided_slice %312 {offsets = [0, 0], sizes = [8, 2], strides = [1, 1]} : vector<24x2xf32> to vector<8x2xf32>
    %314 = vector.broadcast %134 : vector<1x2xf32> to vector<8x2xf32>
    %315 = arith.addf %313, %314 : vector<8x2xf32>
    %316 = vector.extract_strided_slice %312 {offsets = [8, 0], sizes = [16, 2], strides = [1, 1]} : vector<24x2xf32> to vector<16x2xf32>
    %317 = vector.extract_strided_slice %316 {offsets = [0, 0], sizes = [8, 1], strides = [1, 1]} : vector<16x2xf32> to vector<8x1xf32>
    %318 = vector.extract_strided_slice %316 {offsets = [8, 1], sizes = [8, 1], strides = [1, 1]} : vector<16x2xf32> to vector<8x1xf32>
    %319 = arith.addf %317, %318 : vector<8x1xf32>
    %320 = arith.mulf %315, %315 : vector<8x2xf32>
    %cst_77 = arith.constant dense<0.000000e+00> : vector<8xf32>
    %321 = vector.multi_reduction <add>, %320, %cst_77 [1] : vector<8x2xf32> to vector<8xf32>
    %322 = vector.shape_cast %321 : vector<8xf32> to vector<8x1xf32>
    %cst_78 = arith.constant 5.000000e-01 : f32
    %323 = vector.broadcast %cst_78 : f32 to vector<8x1xf32>
    %324 = arith.mulf %323, %322 : vector<8x1xf32>
    %cst_79 = arith.constant 5.000000e-01 : f32
    %325 = arith.mulf %cst_79, %84 : f32
    %326 = vector.broadcast %325 : f32 to vector<8x2xf32>
    %327 = arith.mulf %326, %315 : vector<8x2xf32>
    %328 = arith.addf %27, %327 : vector<8x2xf32>
    %cst_80 = arith.constant dense<0.000000e+00> : vector<8x32xf32>
    %329 = tpu.matmul %328, %0, %cst_80 {dimension_numbers = #tpu.dot_dimension_numbers<[1], [0], [0], [1], [0, 0, 1, 1], [], []>} : vector<8x2xf32>, vector<2x32xf32>, vector<8x32xf32> -> vector<8x32xf32>
    %330 = vector.broadcast %94 : vector<1x32xf32> to vector<8x32xf32>
    %331 = arith.mulf %329, %330 : vector<8x32xf32>
    %332 = vector.broadcast %98 : vector<1x32xf32> to vector<8x32xf32>
    %333 = arith.addf %331, %332 : vector<8x32xf32>
    %334 = math.tanh %333 : vector<8x32xf32>
    %335 = arith.mulf %334, %334 : vector<8x32xf32>
    %cst_81 = arith.constant 1.000000e+00 : f32
    %336 = vector.broadcast %cst_81 : f32 to vector<8x32xf32>
    %337 = arith.subf %336, %335 : vector<8x32xf32>
    %338 = vector.broadcast %94 : vector<1x32xf32> to vector<8x32xf32>
    %339 = arith.mulf %338, %337 : vector<8x32xf32>
    %340 = vector.shape_cast %26 : vector<16x32xf32> to vector<2x8x32xf32>
    %341 = vector.shape_cast %339 : vector<8x32xf32> to vector<1x8x32xf32>
    %342 = vector.broadcast %341 : vector<1x8x32xf32> to vector<2x8x32xf32>
    %343 = arith.mulf %340, %342 : vector<2x8x32xf32>
    %344 = vector.shape_cast %343 : vector<2x8x32xf32> to vector<16x32xf32>
    %345 = tpu.concatenate %334, %344 in 0 : vector<8x32xf32>, vector<16x32xf32> -> vector<24x32xf32>
    %346 = arith.truncf %345 : vector<24x32xf32> to vector<24x32xbf16>
    %cst_82 = arith.constant dense<0.000000e+00> : vector<24x32xf32>
    %347 = tpu.matmul %346, %5, %cst_82 {dimension_numbers = #tpu.dot_dimension_numbers<[1], [0], [0], [1], [0, 0, 1, 1], [], []>} : vector<24x32xbf16>, vector<32x32xbf16>, vector<24x32xf32> -> vector<24x32xf32>
    %348 = vector.broadcast %106 : vector<1x32xf32> to vector<24x32xf32>
    %349 = arith.mulf %347, %348 : vector<24x32xf32>
    %350 = vector.extract_strided_slice %349 {offsets = [0, 0], sizes = [8, 32], strides = [1, 1]} : vector<24x32xf32> to vector<8x32xf32>
    %351 = vector.broadcast %110 : vector<1x32xf32> to vector<8x32xf32>
    %352 = arith.addf %350, %351 : vector<8x32xf32>
    %353 = math.tanh %352 : vector<8x32xf32>
    %354 = arith.mulf %353, %353 : vector<8x32xf32>
    %cst_83 = arith.constant 1.000000e+00 : f32
    %355 = vector.broadcast %cst_83 : f32 to vector<8x32xf32>
    %356 = arith.subf %355, %354 : vector<8x32xf32>
    %357 = vector.extract_strided_slice %349 {offsets = [8, 0], sizes = [16, 32], strides = [1, 1]} : vector<24x32xf32> to vector<16x32xf32>
    %358 = vector.shape_cast %357 : vector<16x32xf32> to vector<2x8x32xf32>
    %359 = vector.shape_cast %356 : vector<8x32xf32> to vector<1x8x32xf32>
    %360 = vector.broadcast %359 : vector<1x8x32xf32> to vector<2x8x32xf32>
    %361 = arith.mulf %358, %360 : vector<2x8x32xf32>
    %362 = vector.shape_cast %361 : vector<2x8x32xf32> to vector<16x32xf32>
    %363 = tpu.concatenate %353, %362 in 0 : vector<8x32xf32>, vector<16x32xf32> -> vector<24x32xf32>
    %364 = arith.truncf %363 : vector<24x32xf32> to vector<24x32xbf16>
    %cst_84 = arith.constant dense<0.000000e+00> : vector<24x32xf32>
    %365 = tpu.matmul %364, %10, %cst_84 {dimension_numbers = #tpu.dot_dimension_numbers<[1], [0], [0], [1], [0, 0, 1, 1], [], []>} : vector<24x32xbf16>, vector<32x32xbf16>, vector<24x32xf32> -> vector<24x32xf32>
    %366 = vector.broadcast %118 : vector<1x32xf32> to vector<24x32xf32>
    %367 = arith.mulf %365, %366 : vector<24x32xf32>
    %368 = vector.extract_strided_slice %367 {offsets = [0, 0], sizes = [8, 32], strides = [1, 1]} : vector<24x32xf32> to vector<8x32xf32>
    %369 = vector.broadcast %122 : vector<1x32xf32> to vector<8x32xf32>
    %370 = arith.addf %368, %369 : vector<8x32xf32>
    %371 = math.tanh %370 : vector<8x32xf32>
    %372 = arith.mulf %371, %371 : vector<8x32xf32>
    %cst_85 = arith.constant 1.000000e+00 : f32
    %373 = vector.broadcast %cst_85 : f32 to vector<8x32xf32>
    %374 = arith.subf %373, %372 : vector<8x32xf32>
    %375 = vector.extract_strided_slice %367 {offsets = [8, 0], sizes = [16, 32], strides = [1, 1]} : vector<24x32xf32> to vector<16x32xf32>
    %376 = vector.shape_cast %375 : vector<16x32xf32> to vector<2x8x32xf32>
    %377 = vector.shape_cast %374 : vector<8x32xf32> to vector<1x8x32xf32>
    %378 = vector.broadcast %377 : vector<1x8x32xf32> to vector<2x8x32xf32>
    %379 = arith.mulf %376, %378 : vector<2x8x32xf32>
    %380 = vector.shape_cast %379 : vector<2x8x32xf32> to vector<16x32xf32>
    %381 = tpu.concatenate %371, %380 in 0 : vector<8x32xf32>, vector<16x32xf32> -> vector<24x32xf32>
    %382 = arith.truncf %381 : vector<24x32xf32> to vector<24x32xbf16>
    %cst_86 = arith.constant dense<0.000000e+00> : vector<24x2xf32>
    %383 = tpu.matmul %382, %15, %cst_86 {dimension_numbers = #tpu.dot_dimension_numbers<[1], [0], [0], [1], [0, 0, 1, 1], [], []>} : vector<24x32xbf16>, vector<32x2xbf16>, vector<24x2xf32> -> vector<24x2xf32>
    %384 = vector.broadcast %130 : vector<1x2xf32> to vector<24x2xf32>
    %385 = arith.mulf %383, %384 : vector<24x2xf32>
    %386 = vector.extract_strided_slice %385 {offsets = [0, 0], sizes = [8, 2], strides = [1, 1]} : vector<24x2xf32> to vector<8x2xf32>
    %387 = vector.broadcast %134 : vector<1x2xf32> to vector<8x2xf32>
    %388 = arith.addf %386, %387 : vector<8x2xf32>
    %389 = vector.extract_strided_slice %385 {offsets = [8, 0], sizes = [16, 2], strides = [1, 1]} : vector<24x2xf32> to vector<16x2xf32>
    %390 = vector.extract_strided_slice %389 {offsets = [0, 0], sizes = [8, 1], strides = [1, 1]} : vector<16x2xf32> to vector<8x1xf32>
    %391 = vector.extract_strided_slice %389 {offsets = [8, 1], sizes = [8, 1], strides = [1, 1]} : vector<16x2xf32> to vector<8x1xf32>
    %392 = arith.addf %390, %391 : vector<8x1xf32>
    %393 = arith.mulf %388, %388 : vector<8x2xf32>
    %cst_87 = arith.constant dense<0.000000e+00> : vector<8xf32>
    %394 = vector.multi_reduction <add>, %393, %cst_87 [1] : vector<8x2xf32> to vector<8xf32>
    %395 = vector.shape_cast %394 : vector<8xf32> to vector<8x1xf32>
    %cst_88 = arith.constant 5.000000e-01 : f32
    %396 = vector.broadcast %cst_88 : f32 to vector<8x1xf32>
    %397 = arith.mulf %396, %395 : vector<8x1xf32>
    %398 = vector.broadcast %84 : f32 to vector<8x2xf32>
    %399 = arith.mulf %398, %388 : vector<8x2xf32>
    %400 = arith.addf %27, %399 : vector<8x2xf32>
    %cst_89 = arith.constant dense<0.000000e+00> : vector<8x32xf32>
    %401 = tpu.matmul %400, %0, %cst_89 {dimension_numbers = #tpu.dot_dimension_numbers<[1], [0], [0], [1], [0, 0, 1, 1], [], []>} : vector<8x2xf32>, vector<2x32xf32>, vector<8x32xf32> -> vector<8x32xf32>
    %402 = vector.broadcast %142 : vector<1x32xf32> to vector<8x32xf32>
    %403 = arith.mulf %401, %402 : vector<8x32xf32>
    %404 = vector.broadcast %146 : vector<1x32xf32> to vector<8x32xf32>
    %405 = arith.addf %403, %404 : vector<8x32xf32>
    %406 = math.tanh %405 : vector<8x32xf32>
    %407 = arith.mulf %406, %406 : vector<8x32xf32>
    %cst_90 = arith.constant 1.000000e+00 : f32
    %408 = vector.broadcast %cst_90 : f32 to vector<8x32xf32>
    %409 = arith.subf %408, %407 : vector<8x32xf32>
    %410 = vector.broadcast %142 : vector<1x32xf32> to vector<8x32xf32>
    %411 = arith.mulf %410, %409 : vector<8x32xf32>
    %412 = vector.shape_cast %26 : vector<16x32xf32> to vector<2x8x32xf32>
    %413 = vector.shape_cast %411 : vector<8x32xf32> to vector<1x8x32xf32>
    %414 = vector.broadcast %413 : vector<1x8x32xf32> to vector<2x8x32xf32>
    %415 = arith.mulf %412, %414 : vector<2x8x32xf32>
    %416 = vector.shape_cast %415 : vector<2x8x32xf32> to vector<16x32xf32>
    %417 = tpu.concatenate %406, %416 in 0 : vector<8x32xf32>, vector<16x32xf32> -> vector<24x32xf32>
    %418 = arith.truncf %417 : vector<24x32xf32> to vector<24x32xbf16>
    %cst_91 = arith.constant dense<0.000000e+00> : vector<24x32xf32>
    %419 = tpu.matmul %418, %5, %cst_91 {dimension_numbers = #tpu.dot_dimension_numbers<[1], [0], [0], [1], [0, 0, 1, 1], [], []>} : vector<24x32xbf16>, vector<32x32xbf16>, vector<24x32xf32> -> vector<24x32xf32>
    %420 = vector.broadcast %154 : vector<1x32xf32> to vector<24x32xf32>
    %421 = arith.mulf %419, %420 : vector<24x32xf32>
    %422 = vector.extract_strided_slice %421 {offsets = [0, 0], sizes = [8, 32], strides = [1, 1]} : vector<24x32xf32> to vector<8x32xf32>
    %423 = vector.broadcast %158 : vector<1x32xf32> to vector<8x32xf32>
    %424 = arith.addf %422, %423 : vector<8x32xf32>
    %425 = math.tanh %424 : vector<8x32xf32>
    %426 = arith.mulf %425, %425 : vector<8x32xf32>
    %cst_92 = arith.constant 1.000000e+00 : f32
    %427 = vector.broadcast %cst_92 : f32 to vector<8x32xf32>
    %428 = arith.subf %427, %426 : vector<8x32xf32>
    %429 = vector.extract_strided_slice %421 {offsets = [8, 0], sizes = [16, 32], strides = [1, 1]} : vector<24x32xf32> to vector<16x32xf32>
    %430 = vector.shape_cast %429 : vector<16x32xf32> to vector<2x8x32xf32>
    %431 = vector.shape_cast %428 : vector<8x32xf32> to vector<1x8x32xf32>
    %432 = vector.broadcast %431 : vector<1x8x32xf32> to vector<2x8x32xf32>
    %433 = arith.mulf %430, %432 : vector<2x8x32xf32>
    %434 = vector.shape_cast %433 : vector<2x8x32xf32> to vector<16x32xf32>
    %435 = tpu.concatenate %425, %434 in 0 : vector<8x32xf32>, vector<16x32xf32> -> vector<24x32xf32>
    %436 = arith.truncf %435 : vector<24x32xf32> to vector<24x32xbf16>
    %cst_93 = arith.constant dense<0.000000e+00> : vector<24x32xf32>
    %437 = tpu.matmul %436, %10, %cst_93 {dimension_numbers = #tpu.dot_dimension_numbers<[1], [0], [0], [1], [0, 0, 1, 1], [], []>} : vector<24x32xbf16>, vector<32x32xbf16>, vector<24x32xf32> -> vector<24x32xf32>
    %438 = vector.broadcast %166 : vector<1x32xf32> to vector<24x32xf32>
    %439 = arith.mulf %437, %438 : vector<24x32xf32>
    %440 = vector.extract_strided_slice %439 {offsets = [0, 0], sizes = [8, 32], strides = [1, 1]} : vector<24x32xf32> to vector<8x32xf32>
    %441 = vector.broadcast %170 : vector<1x32xf32> to vector<8x32xf32>
    %442 = arith.addf %440, %441 : vector<8x32xf32>
    %443 = math.tanh %442 : vector<8x32xf32>
    %444 = arith.mulf %443, %443 : vector<8x32xf32>
    %cst_94 = arith.constant 1.000000e+00 : f32
    %445 = vector.broadcast %cst_94 : f32 to vector<8x32xf32>
    %446 = arith.subf %445, %444 : vector<8x32xf32>
    %447 = vector.extract_strided_slice %439 {offsets = [8, 0], sizes = [16, 32], strides = [1, 1]} : vector<24x32xf32> to vector<16x32xf32>
    %448 = vector.shape_cast %447 : vector<16x32xf32> to vector<2x8x32xf32>
    %449 = vector.shape_cast %446 : vector<8x32xf32> to vector<1x8x32xf32>
    %450 = vector.broadcast %449 : vector<1x8x32xf32> to vector<2x8x32xf32>
    %451 = arith.mulf %448, %450 : vector<2x8x32xf32>
    %452 = vector.shape_cast %451 : vector<2x8x32xf32> to vector<16x32xf32>
    %453 = tpu.concatenate %443, %452 in 0 : vector<8x32xf32>, vector<16x32xf32> -> vector<24x32xf32>
    %454 = arith.truncf %453 : vector<24x32xf32> to vector<24x32xbf16>
    %cst_95 = arith.constant dense<0.000000e+00> : vector<24x2xf32>
    %455 = tpu.matmul %454, %15, %cst_95 {dimension_numbers = #tpu.dot_dimension_numbers<[1], [0], [0], [1], [0, 0, 1, 1], [], []>} : vector<24x32xbf16>, vector<32x2xbf16>, vector<24x2xf32> -> vector<24x2xf32>
    %456 = vector.broadcast %178 : vector<1x2xf32> to vector<24x2xf32>
    %457 = arith.mulf %455, %456 : vector<24x2xf32>
    %458 = vector.extract_strided_slice %457 {offsets = [0, 0], sizes = [8, 2], strides = [1, 1]} : vector<24x2xf32> to vector<8x2xf32>
    %459 = vector.broadcast %182 : vector<1x2xf32> to vector<8x2xf32>
    %460 = arith.addf %458, %459 : vector<8x2xf32>
    %461 = vector.extract_strided_slice %457 {offsets = [8, 0], sizes = [16, 2], strides = [1, 1]} : vector<24x2xf32> to vector<16x2xf32>
    %462 = vector.extract_strided_slice %461 {offsets = [0, 0], sizes = [8, 1], strides = [1, 1]} : vector<16x2xf32> to vector<8x1xf32>
    %463 = vector.extract_strided_slice %461 {offsets = [8, 1], sizes = [8, 1], strides = [1, 1]} : vector<16x2xf32> to vector<8x1xf32>
    %464 = arith.addf %462, %463 : vector<8x1xf32>
    %465 = arith.mulf %460, %460 : vector<8x2xf32>
    %cst_96 = arith.constant dense<0.000000e+00> : vector<8xf32>
    %466 = vector.multi_reduction <add>, %465, %cst_96 [1] : vector<8x2xf32> to vector<8xf32>
    %467 = vector.shape_cast %466 : vector<8xf32> to vector<8x1xf32>
    %cst_97 = arith.constant 5.000000e-01 : f32
    %468 = vector.broadcast %cst_97 : f32 to vector<8x1xf32>
    %469 = arith.mulf %468, %467 : vector<8x1xf32>
    %cst_98 = arith.constant 6.000000e+00 : f32
    %470 = arith.divf %84, %cst_98 : f32
    %471 = arith.addf %315, %388 : vector<8x2xf32>
    %cst_99 = arith.constant 2.000000e+00 : f32
    %472 = vector.broadcast %cst_99 : f32 to vector<8x2xf32>
    %473 = arith.mulf %472, %471 : vector<8x2xf32>
    %474 = arith.addf %242, %473 : vector<8x2xf32>
    %475 = arith.addf %474, %460 : vector<8x2xf32>
    %476 = vector.broadcast %470 : f32 to vector<8x2xf32>
    %477 = arith.mulf %476, %475 : vector<8x2xf32>
    %478 = arith.addf %27, %477 : vector<8x2xf32>
    %479 = arith.addf %319, %392 : vector<8x1xf32>
    %cst_100 = arith.constant 2.000000e+00 : f32
    %480 = vector.broadcast %cst_100 : f32 to vector<8x1xf32>
    %481 = arith.mulf %480, %479 : vector<8x1xf32>
    %482 = arith.addf %246, %481 : vector<8x1xf32>
    %483 = arith.addf %482, %464 : vector<8x1xf32>
    %484 = vector.broadcast %470 : f32 to vector<8x1xf32>
    %485 = arith.mulf %484, %483 : vector<8x1xf32>
    %486 = arith.addf %28, %485 : vector<8x1xf32>
    %487 = arith.addf %324, %397 : vector<8x1xf32>
    %cst_101 = arith.constant 2.000000e+00 : f32
    %488 = vector.broadcast %cst_101 : f32 to vector<8x1xf32>
    %489 = arith.mulf %488, %487 : vector<8x1xf32>
    %490 = arith.addf %251, %489 : vector<8x1xf32>
    %491 = arith.addf %490, %469 : vector<8x1xf32>
    %492 = vector.broadcast %470 : f32 to vector<8x1xf32>
    %493 = arith.mulf %492, %491 : vector<8x1xf32>
    %494 = arith.addf %29, %493 : vector<8x1xf32>
    %c1_102 = arith.constant 1 : index
    %c0_103 = arith.constant 0 : index
    %c0_104 = arith.constant 0 : index
    %495 = vector.load %arg23[%c1_102, %c0_103, %c0_104] : memref<5x8x2xf32, #tpu.memory_space<vmem>>, vector<1x8x2xf32>
    %496 = vector.shape_cast %495 : vector<1x8x2xf32> to vector<8x2xf32>
    %497 = vector.shape_cast %478 : vector<8x2xf32> to vector<1x8x2xf32>
    tpu.vector_store %arg23[%c1_102, %c0_103, %c0_104], %497 {strides = array<i32>} : memref<5x8x2xf32, #tpu.memory_space<vmem>>, vector<1x8x2xf32>,
    %c1_105 = arith.constant 1 : index
    %498 = memref.load %arg1[%c1_105] : memref<5xf32, #tpu.memory_space<smem>>
    %c2 = arith.constant 2 : index
    %499 = memref.load %arg1[%c2] : memref<5xf32, #tpu.memory_space<smem>>
    %500 = arith.subf %499, %498 : f32
    %cst_106 = arith.constant 5.000000e-01 : f32
    %501 = arith.mulf %cst_106, %500 : f32
    %502 = arith.addf %498, %501 : f32
    %503 = vector.broadcast %502 : f32 to vector<1x32xf32>
    %504 = arith.mulf %503, %2 : vector<1x32xf32>
    %505 = arith.addf %504, %3 : vector<1x32xf32>
    %506 = arith.negf %505 : vector<1x32xf32>
    %507 = math.exp %506 : vector<1x32xf32>
    %cst_107 = arith.constant 1.000000e+00 : f32
    %508 = vector.broadcast %cst_107 : f32 to vector<1x32xf32>
    %509 = arith.addf %508, %507 : vector<1x32xf32>
    %510 = arith.divf %508, %509 : vector<1x32xf32>
    %511 = arith.mulf %1, %510 : vector<1x32xf32>
    %512 = vector.broadcast %502 : f32 to vector<1x32xf32>
    %513 = arith.mulf %512, %4 : vector<1x32xf32>
    %514 = arith.addf %511, %513 : vector<1x32xf32>
    %515 = vector.broadcast %502 : f32 to vector<1x32xf32>
    %516 = arith.mulf %515, %7 : vector<1x32xf32>
    %517 = arith.addf %516, %8 : vector<1x32xf32>
    %518 = arith.negf %517 : vector<1x32xf32>
    %519 = math.exp %518 : vector<1x32xf32>
    %cst_108 = arith.constant 1.000000e+00 : f32
    %520 = vector.broadcast %cst_108 : f32 to vector<1x32xf32>
    %521 = arith.addf %520, %519 : vector<1x32xf32>
    %522 = arith.divf %520, %521 : vector<1x32xf32>
    %523 = arith.mulf %6, %522 : vector<1x32xf32>
    %524 = vector.broadcast %502 : f32 to vector<1x32xf32>
    %525 = arith.mulf %524, %9 : vector<1x32xf32>
    %526 = arith.addf %523, %525 : vector<1x32xf32>
    %527 = vector.broadcast %502 : f32 to vector<1x32xf32>
    %528 = arith.mulf %527, %12 : vector<1x32xf32>
    %529 = arith.addf %528, %13 : vector<1x32xf32>
    %530 = arith.negf %529 : vector<1x32xf32>
    %531 = math.exp %530 : vector<1x32xf32>
    %cst_109 = arith.constant 1.000000e+00 : f32
    %532 = vector.broadcast %cst_109 : f32 to vector<1x32xf32>
    %533 = arith.addf %532, %531 : vector<1x32xf32>
    %534 = arith.divf %532, %533 : vector<1x32xf32>
    %535 = arith.mulf %11, %534 : vector<1x32xf32>
    %536 = vector.broadcast %502 : f32 to vector<1x32xf32>
    %537 = arith.mulf %536, %14 : vector<1x32xf32>
    %538 = arith.addf %535, %537 : vector<1x32xf32>
    %539 = vector.broadcast %502 : f32 to vector<1x2xf32>
    %540 = arith.mulf %539, %17 : vector<1x2xf32>
    %541 = arith.addf %540, %18 : vector<1x2xf32>
    %542 = arith.negf %541 : vector<1x2xf32>
    %543 = math.exp %542 : vector<1x2xf32>
    %cst_110 = arith.constant 1.000000e+00 : f32
    %544 = vector.broadcast %cst_110 : f32 to vector<1x2xf32>
    %545 = arith.addf %544, %543 : vector<1x2xf32>
    %546 = arith.divf %544, %545 : vector<1x2xf32>
    %547 = arith.mulf %16, %546 : vector<1x2xf32>
    %548 = vector.broadcast %502 : f32 to vector<1x2xf32>
    %549 = arith.mulf %548, %19 : vector<1x2xf32>
    %550 = arith.addf %547, %549 : vector<1x2xf32>
    %551 = vector.broadcast %499 : f32 to vector<1x32xf32>
    %552 = arith.mulf %551, %2 : vector<1x32xf32>
    %553 = arith.addf %552, %3 : vector<1x32xf32>
    %554 = arith.negf %553 : vector<1x32xf32>
    %555 = math.exp %554 : vector<1x32xf32>
    %cst_111 = arith.constant 1.000000e+00 : f32
    %556 = vector.broadcast %cst_111 : f32 to vector<1x32xf32>
    %557 = arith.addf %556, %555 : vector<1x32xf32>
    %558 = arith.divf %556, %557 : vector<1x32xf32>
    %559 = arith.mulf %1, %558 : vector<1x32xf32>
    %560 = vector.broadcast %499 : f32 to vector<1x32xf32>
    %561 = arith.mulf %560, %4 : vector<1x32xf32>
    %562 = arith.addf %559, %561 : vector<1x32xf32>
    %563 = vector.broadcast %499 : f32 to vector<1x32xf32>
    %564 = arith.mulf %563, %7 : vector<1x32xf32>
    %565 = arith.addf %564, %8 : vector<1x32xf32>
    %566 = arith.negf %565 : vector<1x32xf32>
    %567 = math.exp %566 : vector<1x32xf32>
    %cst_112 = arith.constant 1.000000e+00 : f32
    %568 = vector.broadcast %cst_112 : f32 to vector<1x32xf32>
    %569 = arith.addf %568, %567 : vector<1x32xf32>
    %570 = arith.divf %568, %569 : vector<1x32xf32>
    %571 = arith.mulf %6, %570 : vector<1x32xf32>
    %572 = vector.broadcast %499 : f32 to vector<1x32xf32>
    %573 = arith.mulf %572, %9 : vector<1x32xf32>
    %574 = arith.addf %571, %573 : vector<1x32xf32>
    %575 = vector.broadcast %499 : f32 to vector<1x32xf32>
    %576 = arith.mulf %575, %12 : vector<1x32xf32>
    %577 = arith.addf %576, %13 : vector<1x32xf32>
    %578 = arith.negf %577 : vector<1x32xf32>
    %579 = math.exp %578 : vector<1x32xf32>
    %cst_113 = arith.constant 1.000000e+00 : f32
    %580 = vector.broadcast %cst_113 : f32 to vector<1x32xf32>
    %581 = arith.addf %580, %579 : vector<1x32xf32>
    %582 = arith.divf %580, %581 : vector<1x32xf32>
    %583 = arith.mulf %11, %582 : vector<1x32xf32>
    %584 = vector.broadcast %499 : f32 to vector<1x32xf32>
    %585 = arith.mulf %584, %14 : vector<1x32xf32>
    %586 = arith.addf %583, %585 : vector<1x32xf32>
    %587 = vector.broadcast %499 : f32 to vector<1x2xf32>
    %588 = arith.mulf %587, %17 : vector<1x2xf32>
    %589 = arith.addf %588, %18 : vector<1x2xf32>
    %590 = arith.negf %589 : vector<1x2xf32>
    %591 = math.exp %590 : vector<1x2xf32>
    %cst_114 = arith.constant 1.000000e+00 : f32
    %592 = vector.broadcast %cst_114 : f32 to vector<1x2xf32>
    %593 = arith.addf %592, %591 : vector<1x2xf32>
    %594 = arith.divf %592, %593 : vector<1x2xf32>
    %595 = arith.mulf %16, %594 : vector<1x2xf32>
    %596 = vector.broadcast %499 : f32 to vector<1x2xf32>
    %597 = arith.mulf %596, %19 : vector<1x2xf32>
    %598 = arith.addf %595, %597 : vector<1x2xf32>
    %cst_115 = arith.constant dense<0.000000e+00> : vector<8x32xf32>
    %599 = tpu.matmul %478, %0, %cst_115 {dimension_numbers = #tpu.dot_dimension_numbers<[1], [0], [0], [1], [0, 0, 1, 1], [], []>} : vector<8x2xf32>, vector<2x32xf32>, vector<8x32xf32> -> vector<8x32xf32>
    %600 = vector.broadcast %142 : vector<1x32xf32> to vector<8x32xf32>
    %601 = arith.mulf %599, %600 : vector<8x32xf32>
    %602 = vector.broadcast %146 : vector<1x32xf32> to vector<8x32xf32>
    %603 = arith.addf %601, %602 : vector<8x32xf32>
    %604 = math.tanh %603 : vector<8x32xf32>
    %605 = arith.mulf %604, %604 : vector<8x32xf32>
    %cst_116 = arith.constant 1.000000e+00 : f32
    %606 = vector.broadcast %cst_116 : f32 to vector<8x32xf32>
    %607 = arith.subf %606, %605 : vector<8x32xf32>
    %608 = vector.broadcast %142 : vector<1x32xf32> to vector<8x32xf32>
    %609 = arith.mulf %608, %607 : vector<8x32xf32>
    %610 = vector.shape_cast %26 : vector<16x32xf32> to vector<2x8x32xf32>
    %611 = vector.shape_cast %609 : vector<8x32xf32> to vector<1x8x32xf32>
    %612 = vector.broadcast %611 : vector<1x8x32xf32> to vector<2x8x32xf32>
    %613 = arith.mulf %610, %612 : vector<2x8x32xf32>
    %614 = vector.shape_cast %613 : vector<2x8x32xf32> to vector<16x32xf32>
    %615 = tpu.concatenate %604, %614 in 0 : vector<8x32xf32>, vector<16x32xf32> -> vector<24x32xf32>
    %616 = arith.truncf %615 : vector<24x32xf32> to vector<24x32xbf16>
    %cst_117 = arith.constant dense<0.000000e+00> : vector<24x32xf32>
    %617 = tpu.matmul %616, %5, %cst_117 {dimension_numbers = #tpu.dot_dimension_numbers<[1], [0], [0], [1], [0, 0, 1, 1], [], []>} : vector<24x32xbf16>, vector<32x32xbf16>, vector<24x32xf32> -> vector<24x32xf32>
    %618 = vector.broadcast %154 : vector<1x32xf32> to vector<24x32xf32>
    %619 = arith.mulf %617, %618 : vector<24x32xf32>
    %620 = vector.extract_strided_slice %619 {offsets = [0, 0], sizes = [8, 32], strides = [1, 1]} : vector<24x32xf32> to vector<8x32xf32>
    %621 = vector.broadcast %158 : vector<1x32xf32> to vector<8x32xf32>
    %622 = arith.addf %620, %621 : vector<8x32xf32>
    %623 = math.tanh %622 : vector<8x32xf32>
    %624 = arith.mulf %623, %623 : vector<8x32xf32>
    %cst_118 = arith.constant 1.000000e+00 : f32
    %625 = vector.broadcast %cst_118 : f32 to vector<8x32xf32>
    %626 = arith.subf %625, %624 : vector<8x32xf32>
    %627 = vector.extract_strided_slice %619 {offsets = [8, 0], sizes = [16, 32], strides = [1, 1]} : vector<24x32xf32> to vector<16x32xf32>
    %628 = vector.shape_cast %627 : vector<16x32xf32> to vector<2x8x32xf32>
    %629 = vector.shape_cast %626 : vector<8x32xf32> to vector<1x8x32xf32>
    %630 = vector.broadcast %629 : vector<1x8x32xf32> to vector<2x8x32xf32>
    %631 = arith.mulf %628, %630 : vector<2x8x32xf32>
    %632 = vector.shape_cast %631 : vector<2x8x32xf32> to vector<16x32xf32>
    %633 = tpu.concatenate %623, %632 in 0 : vector<8x32xf32>, vector<16x32xf32> -> vector<24x32xf32>
    %634 = arith.truncf %633 : vector<24x32xf32> to vector<24x32xbf16>
    %cst_119 = arith.constant dense<0.000000e+00> : vector<24x32xf32>
    %635 = tpu.matmul %634, %10, %cst_119 {dimension_numbers = #tpu.dot_dimension_numbers<[1], [0], [0], [1], [0, 0, 1, 1], [], []>} : vector<24x32xbf16>, vector<32x32xbf16>, vector<24x32xf32> -> vector<24x32xf32>
    %636 = vector.broadcast %166 : vector<1x32xf32> to vector<24x32xf32>
    %637 = arith.mulf %635, %636 : vector<24x32xf32>
    %638 = vector.extract_strided_slice %637 {offsets = [0, 0], sizes = [8, 32], strides = [1, 1]} : vector<24x32xf32> to vector<8x32xf32>
    %639 = vector.broadcast %170 : vector<1x32xf32> to vector<8x32xf32>
    %640 = arith.addf %638, %639 : vector<8x32xf32>
    %641 = math.tanh %640 : vector<8x32xf32>
    %642 = arith.mulf %641, %641 : vector<8x32xf32>
    %cst_120 = arith.constant 1.000000e+00 : f32
    %643 = vector.broadcast %cst_120 : f32 to vector<8x32xf32>
    %644 = arith.subf %643, %642 : vector<8x32xf32>
    %645 = vector.extract_strided_slice %637 {offsets = [8, 0], sizes = [16, 32], strides = [1, 1]} : vector<24x32xf32> to vector<16x32xf32>
    %646 = vector.shape_cast %645 : vector<16x32xf32> to vector<2x8x32xf32>
    %647 = vector.shape_cast %644 : vector<8x32xf32> to vector<1x8x32xf32>
    %648 = vector.broadcast %647 : vector<1x8x32xf32> to vector<2x8x32xf32>
    %649 = arith.mulf %646, %648 : vector<2x8x32xf32>
    %650 = vector.shape_cast %649 : vector<2x8x32xf32> to vector<16x32xf32>
    %651 = tpu.concatenate %641, %650 in 0 : vector<8x32xf32>, vector<16x32xf32> -> vector<24x32xf32>
    %652 = arith.truncf %651 : vector<24x32xf32> to vector<24x32xbf16>
    %cst_121 = arith.constant dense<0.000000e+00> : vector<24x2xf32>
    %653 = tpu.matmul %652, %15, %cst_121 {dimension_numbers = #tpu.dot_dimension_numbers<[1], [0], [0], [1], [0, 0, 1, 1], [], []>} : vector<24x32xbf16>, vector<32x2xbf16>, vector<24x2xf32> -> vector<24x2xf32>
    %654 = vector.broadcast %178 : vector<1x2xf32> to vector<24x2xf32>
    %655 = arith.mulf %653, %654 : vector<24x2xf32>
    %656 = vector.extract_strided_slice %655 {offsets = [0, 0], sizes = [8, 2], strides = [1, 1]} : vector<24x2xf32> to vector<8x2xf32>
    %657 = vector.broadcast %182 : vector<1x2xf32> to vector<8x2xf32>
    %658 = arith.addf %656, %657 : vector<8x2xf32>
    %659 = vector.extract_strided_slice %655 {offsets = [8, 0], sizes = [16, 2], strides = [1, 1]} : vector<24x2xf32> to vector<16x2xf32>
    %660 = vector.extract_strided_slice %659 {offsets = [0, 0], sizes = [8, 1], strides = [1, 1]} : vector<16x2xf32> to vector<8x1xf32>
    %661 = vector.extract_strided_slice %659 {offsets = [8, 1], sizes = [8, 1], strides = [1, 1]} : vector<16x2xf32> to vector<8x1xf32>
    %662 = arith.addf %660, %661 : vector<8x1xf32>
    %663 = arith.mulf %658, %658 : vector<8x2xf32>
    %cst_122 = arith.constant dense<0.000000e+00> : vector<8xf32>
    %664 = vector.multi_reduction <add>, %663, %cst_122 [1] : vector<8x2xf32> to vector<8xf32>
    %665 = vector.shape_cast %664 : vector<8xf32> to vector<8x1xf32>
    %cst_123 = arith.constant 5.000000e-01 : f32
    %666 = vector.broadcast %cst_123 : f32 to vector<8x1xf32>
    %667 = arith.mulf %666, %665 : vector<8x1xf32>
    %cst_124 = arith.constant 5.000000e-01 : f32
    %668 = arith.mulf %cst_124, %500 : f32
    %669 = vector.broadcast %668 : f32 to vector<8x2xf32>
    %670 = arith.mulf %669, %658 : vector<8x2xf32>
    %671 = arith.addf %478, %670 : vector<8x2xf32>
    %cst_125 = arith.constant dense<0.000000e+00> : vector<8x32xf32>
    %672 = tpu.matmul %671, %0, %cst_125 {dimension_numbers = #tpu.dot_dimension_numbers<[1], [0], [0], [1], [0, 0, 1, 1], [], []>} : vector<8x2xf32>, vector<2x32xf32>, vector<8x32xf32> -> vector<8x32xf32>
    %673 = vector.broadcast %510 : vector<1x32xf32> to vector<8x32xf32>
    %674 = arith.mulf %672, %673 : vector<8x32xf32>
    %675 = vector.broadcast %514 : vector<1x32xf32> to vector<8x32xf32>
    %676 = arith.addf %674, %675 : vector<8x32xf32>
    %677 = math.tanh %676 : vector<8x32xf32>
    %678 = arith.mulf %677, %677 : vector<8x32xf32>
    %cst_126 = arith.constant 1.000000e+00 : f32
    %679 = vector.broadcast %cst_126 : f32 to vector<8x32xf32>
    %680 = arith.subf %679, %678 : vector<8x32xf32>
    %681 = vector.broadcast %510 : vector<1x32xf32> to vector<8x32xf32>
    %682 = arith.mulf %681, %680 : vector<8x32xf32>
    %683 = vector.shape_cast %26 : vector<16x32xf32> to vector<2x8x32xf32>
    %684 = vector.shape_cast %682 : vector<8x32xf32> to vector<1x8x32xf32>
    %685 = vector.broadcast %684 : vector<1x8x32xf32> to vector<2x8x32xf32>
    %686 = arith.mulf %683, %685 : vector<2x8x32xf32>
    %687 = vector.shape_cast %686 : vector<2x8x32xf32> to vector<16x32xf32>
    %688 = tpu.concatenate %677, %687 in 0 : vector<8x32xf32>, vector<16x32xf32> -> vector<24x32xf32>
    %689 = arith.truncf %688 : vector<24x32xf32> to vector<24x32xbf16>
    %cst_127 = arith.constant dense<0.000000e+00> : vector<24x32xf32>
    %690 = tpu.matmul %689, %5, %cst_127 {dimension_numbers = #tpu.dot_dimension_numbers<[1], [0], [0], [1], [0, 0, 1, 1], [], []>} : vector<24x32xbf16>, vector<32x32xbf16>, vector<24x32xf32> -> vector<24x32xf32>
    %691 = vector.broadcast %522 : vector<1x32xf32> to vector<24x32xf32>
    %692 = arith.mulf %690, %691 : vector<24x32xf32>
    %693 = vector.extract_strided_slice %692 {offsets = [0, 0], sizes = [8, 32], strides = [1, 1]} : vector<24x32xf32> to vector<8x32xf32>
    %694 = vector.broadcast %526 : vector<1x32xf32> to vector<8x32xf32>
    %695 = arith.addf %693, %694 : vector<8x32xf32>
    %696 = math.tanh %695 : vector<8x32xf32>
    %697 = arith.mulf %696, %696 : vector<8x32xf32>
    %cst_128 = arith.constant 1.000000e+00 : f32
    %698 = vector.broadcast %cst_128 : f32 to vector<8x32xf32>
    %699 = arith.subf %698, %697 : vector<8x32xf32>
    %700 = vector.extract_strided_slice %692 {offsets = [8, 0], sizes = [16, 32], strides = [1, 1]} : vector<24x32xf32> to vector<16x32xf32>
    %701 = vector.shape_cast %700 : vector<16x32xf32> to vector<2x8x32xf32>
    %702 = vector.shape_cast %699 : vector<8x32xf32> to vector<1x8x32xf32>
    %703 = vector.broadcast %702 : vector<1x8x32xf32> to vector<2x8x32xf32>
    %704 = arith.mulf %701, %703 : vector<2x8x32xf32>
    %705 = vector.shape_cast %704 : vector<2x8x32xf32> to vector<16x32xf32>
    %706 = tpu.concatenate %696, %705 in 0 : vector<8x32xf32>, vector<16x32xf32> -> vector<24x32xf32>
    %707 = arith.truncf %706 : vector<24x32xf32> to vector<24x32xbf16>
    %cst_129 = arith.constant dense<0.000000e+00> : vector<24x32xf32>
    %708 = tpu.matmul %707, %10, %cst_129 {dimension_numbers = #tpu.dot_dimension_numbers<[1], [0], [0], [1], [0, 0, 1, 1], [], []>} : vector<24x32xbf16>, vector<32x32xbf16>, vector<24x32xf32> -> vector<24x32xf32>
    %709 = vector.broadcast %534 : vector<1x32xf32> to vector<24x32xf32>
    %710 = arith.mulf %708, %709 : vector<24x32xf32>
    %711 = vector.extract_strided_slice %710 {offsets = [0, 0], sizes = [8, 32], strides = [1, 1]} : vector<24x32xf32> to vector<8x32xf32>
    %712 = vector.broadcast %538 : vector<1x32xf32> to vector<8x32xf32>
    %713 = arith.addf %711, %712 : vector<8x32xf32>
    %714 = math.tanh %713 : vector<8x32xf32>
    %715 = arith.mulf %714, %714 : vector<8x32xf32>
    %cst_130 = arith.constant 1.000000e+00 : f32
    %716 = vector.broadcast %cst_130 : f32 to vector<8x32xf32>
    %717 = arith.subf %716, %715 : vector<8x32xf32>
    %718 = vector.extract_strided_slice %710 {offsets = [8, 0], sizes = [16, 32], strides = [1, 1]} : vector<24x32xf32> to vector<16x32xf32>
    %719 = vector.shape_cast %718 : vector<16x32xf32> to vector<2x8x32xf32>
    %720 = vector.shape_cast %717 : vector<8x32xf32> to vector<1x8x32xf32>
    %721 = vector.broadcast %720 : vector<1x8x32xf32> to vector<2x8x32xf32>
    %722 = arith.mulf %719, %721 : vector<2x8x32xf32>
    %723 = vector.shape_cast %722 : vector<2x8x32xf32> to vector<16x32xf32>
    %724 = tpu.concatenate %714, %723 in 0 : vector<8x32xf32>, vector<16x32xf32> -> vector<24x32xf32>
    %725 = arith.truncf %724 : vector<24x32xf32> to vector<24x32xbf16>
    %cst_131 = arith.constant dense<0.000000e+00> : vector<24x2xf32>
    %726 = tpu.matmul %725, %15, %cst_131 {dimension_numbers = #tpu.dot_dimension_numbers<[1], [0], [0], [1], [0, 0, 1, 1], [], []>} : vector<24x32xbf16>, vector<32x2xbf16>, vector<24x2xf32> -> vector<24x2xf32>
    %727 = vector.broadcast %546 : vector<1x2xf32> to vector<24x2xf32>
    %728 = arith.mulf %726, %727 : vector<24x2xf32>
    %729 = vector.extract_strided_slice %728 {offsets = [0, 0], sizes = [8, 2], strides = [1, 1]} : vector<24x2xf32> to vector<8x2xf32>
    %730 = vector.broadcast %550 : vector<1x2xf32> to vector<8x2xf32>
    %731 = arith.addf %729, %730 : vector<8x2xf32>
    %732 = vector.extract_strided_slice %728 {offsets = [8, 0], sizes = [16, 2], strides = [1, 1]} : vector<24x2xf32> to vector<16x2xf32>
    %733 = vector.extract_strided_slice %732 {offsets = [0, 0], sizes = [8, 1], strides = [1, 1]} : vector<16x2xf32> to vector<8x1xf32>
    %734 = vector.extract_strided_slice %732 {offsets = [8, 1], sizes = [8, 1], strides = [1, 1]} : vector<16x2xf32> to vector<8x1xf32>
    %735 = arith.addf %733, %734 : vector<8x1xf32>
    %736 = arith.mulf %731, %731 : vector<8x2xf32>
    %cst_132 = arith.constant dense<0.000000e+00> : vector<8xf32>
    %737 = vector.multi_reduction <add>, %736, %cst_132 [1] : vector<8x2xf32> to vector<8xf32>
    %738 = vector.shape_cast %737 : vector<8xf32> to vector<8x1xf32>
    %cst_133 = arith.constant 5.000000e-01 : f32
    %739 = vector.broadcast %cst_133 : f32 to vector<8x1xf32>
    %740 = arith.mulf %739, %738 : vector<8x1xf32>
    %cst_134 = arith.constant 5.000000e-01 : f32
    %741 = arith.mulf %cst_134, %500 : f32
    %742 = vector.broadcast %741 : f32 to vector<8x2xf32>
    %743 = arith.mulf %742, %731 : vector<8x2xf32>
    %744 = arith.addf %478, %743 : vector<8x2xf32>
    %cst_135 = arith.constant dense<0.000000e+00> : vector<8x32xf32>
    %745 = tpu.matmul %744, %0, %cst_135 {dimension_numbers = #tpu.dot_dimension_numbers<[1], [0], [0], [1], [0, 0, 1, 1], [], []>} : vector<8x2xf32>, vector<2x32xf32>, vector<8x32xf32> -> vector<8x32xf32>
    %746 = vector.broadcast %510 : vector<1x32xf32> to vector<8x32xf32>
    %747 = arith.mulf %745, %746 : vector<8x32xf32>
    %748 = vector.broadcast %514 : vector<1x32xf32> to vector<8x32xf32>
    %749 = arith.addf %747, %748 : vector<8x32xf32>
    %750 = math.tanh %749 : vector<8x32xf32>
    %751 = arith.mulf %750, %750 : vector<8x32xf32>
    %cst_136 = arith.constant 1.000000e+00 : f32
    %752 = vector.broadcast %cst_136 : f32 to vector<8x32xf32>
    %753 = arith.subf %752, %751 : vector<8x32xf32>
    %754 = vector.broadcast %510 : vector<1x32xf32> to vector<8x32xf32>
    %755 = arith.mulf %754, %753 : vector<8x32xf32>
    %756 = vector.shape_cast %26 : vector<16x32xf32> to vector<2x8x32xf32>
    %757 = vector.shape_cast %755 : vector<8x32xf32> to vector<1x8x32xf32>
    %758 = vector.broadcast %757 : vector<1x8x32xf32> to vector<2x8x32xf32>
    %759 = arith.mulf %756, %758 : vector<2x8x32xf32>
    %760 = vector.shape_cast %759 : vector<2x8x32xf32> to vector<16x32xf32>
    %761 = tpu.concatenate %750, %760 in 0 : vector<8x32xf32>, vector<16x32xf32> -> vector<24x32xf32>
    %762 = arith.truncf %761 : vector<24x32xf32> to vector<24x32xbf16>
    %cst_137 = arith.constant dense<0.000000e+00> : vector<24x32xf32>
    %763 = tpu.matmul %762, %5, %cst_137 {dimension_numbers = #tpu.dot_dimension_numbers<[1], [0], [0], [1], [0, 0, 1, 1], [], []>} : vector<24x32xbf16>, vector<32x32xbf16>, vector<24x32xf32> -> vector<24x32xf32>
    %764 = vector.broadcast %522 : vector<1x32xf32> to vector<24x32xf32>
    %765 = arith.mulf %763, %764 : vector<24x32xf32>
    %766 = vector.extract_strided_slice %765 {offsets = [0, 0], sizes = [8, 32], strides = [1, 1]} : vector<24x32xf32> to vector<8x32xf32>
    %767 = vector.broadcast %526 : vector<1x32xf32> to vector<8x32xf32>
    %768 = arith.addf %766, %767 : vector<8x32xf32>
    %769 = math.tanh %768 : vector<8x32xf32>
    %770 = arith.mulf %769, %769 : vector<8x32xf32>
    %cst_138 = arith.constant 1.000000e+00 : f32
    %771 = vector.broadcast %cst_138 : f32 to vector<8x32xf32>
    %772 = arith.subf %771, %770 : vector<8x32xf32>
    %773 = vector.extract_strided_slice %765 {offsets = [8, 0], sizes = [16, 32], strides = [1, 1]} : vector<24x32xf32> to vector<16x32xf32>
    %774 = vector.shape_cast %773 : vector<16x32xf32> to vector<2x8x32xf32>
    %775 = vector.shape_cast %772 : vector<8x32xf32> to vector<1x8x32xf32>
    %776 = vector.broadcast %775 : vector<1x8x32xf32> to vector<2x8x32xf32>
    %777 = arith.mulf %774, %776 : vector<2x8x32xf32>
    %778 = vector.shape_cast %777 : vector<2x8x32xf32> to vector<16x32xf32>
    %779 = tpu.concatenate %769, %778 in 0 : vector<8x32xf32>, vector<16x32xf32> -> vector<24x32xf32>
    %780 = arith.truncf %779 : vector<24x32xf32> to vector<24x32xbf16>
    %cst_139 = arith.constant dense<0.000000e+00> : vector<24x32xf32>
    %781 = tpu.matmul %780, %10, %cst_139 {dimension_numbers = #tpu.dot_dimension_numbers<[1], [0], [0], [1], [0, 0, 1, 1], [], []>} : vector<24x32xbf16>, vector<32x32xbf16>, vector<24x32xf32> -> vector<24x32xf32>
    %782 = vector.broadcast %534 : vector<1x32xf32> to vector<24x32xf32>
    %783 = arith.mulf %781, %782 : vector<24x32xf32>
    %784 = vector.extract_strided_slice %783 {offsets = [0, 0], sizes = [8, 32], strides = [1, 1]} : vector<24x32xf32> to vector<8x32xf32>
    %785 = vector.broadcast %538 : vector<1x32xf32> to vector<8x32xf32>
    %786 = arith.addf %784, %785 : vector<8x32xf32>
    %787 = math.tanh %786 : vector<8x32xf32>
    %788 = arith.mulf %787, %787 : vector<8x32xf32>
    %cst_140 = arith.constant 1.000000e+00 : f32
    %789 = vector.broadcast %cst_140 : f32 to vector<8x32xf32>
    %790 = arith.subf %789, %788 : vector<8x32xf32>
    %791 = vector.extract_strided_slice %783 {offsets = [8, 0], sizes = [16, 32], strides = [1, 1]} : vector<24x32xf32> to vector<16x32xf32>
    %792 = vector.shape_cast %791 : vector<16x32xf32> to vector<2x8x32xf32>
    %793 = vector.shape_cast %790 : vector<8x32xf32> to vector<1x8x32xf32>
    %794 = vector.broadcast %793 : vector<1x8x32xf32> to vector<2x8x32xf32>
    %795 = arith.mulf %792, %794 : vector<2x8x32xf32>
    %796 = vector.shape_cast %795 : vector<2x8x32xf32> to vector<16x32xf32>
    %797 = tpu.concatenate %787, %796 in 0 : vector<8x32xf32>, vector<16x32xf32> -> vector<24x32xf32>
    %798 = arith.truncf %797 : vector<24x32xf32> to vector<24x32xbf16>
    %cst_141 = arith.constant dense<0.000000e+00> : vector<24x2xf32>
    %799 = tpu.matmul %798, %15, %cst_141 {dimension_numbers = #tpu.dot_dimension_numbers<[1], [0], [0], [1], [0, 0, 1, 1], [], []>} : vector<24x32xbf16>, vector<32x2xbf16>, vector<24x2xf32> -> vector<24x2xf32>
    %800 = vector.broadcast %546 : vector<1x2xf32> to vector<24x2xf32>
    %801 = arith.mulf %799, %800 : vector<24x2xf32>
    %802 = vector.extract_strided_slice %801 {offsets = [0, 0], sizes = [8, 2], strides = [1, 1]} : vector<24x2xf32> to vector<8x2xf32>
    %803 = vector.broadcast %550 : vector<1x2xf32> to vector<8x2xf32>
    %804 = arith.addf %802, %803 : vector<8x2xf32>
    %805 = vector.extract_strided_slice %801 {offsets = [8, 0], sizes = [16, 2], strides = [1, 1]} : vector<24x2xf32> to vector<16x2xf32>
    %806 = vector.extract_strided_slice %805 {offsets = [0, 0], sizes = [8, 1], strides = [1, 1]} : vector<16x2xf32> to vector<8x1xf32>
    %807 = vector.extract_strided_slice %805 {offsets = [8, 1], sizes = [8, 1], strides = [1, 1]} : vector<16x2xf32> to vector<8x1xf32>
    %808 = arith.addf %806, %807 : vector<8x1xf32>
    %809 = arith.mulf %804, %804 : vector<8x2xf32>
    %cst_142 = arith.constant dense<0.000000e+00> : vector<8xf32>
    %810 = vector.multi_reduction <add>, %809, %cst_142 [1] : vector<8x2xf32> to vector<8xf32>
    %811 = vector.shape_cast %810 : vector<8xf32> to vector<8x1xf32>
    %cst_143 = arith.constant 5.000000e-01 : f32
    %812 = vector.broadcast %cst_143 : f32 to vector<8x1xf32>
    %813 = arith.mulf %812, %811 : vector<8x1xf32>
    %814 = vector.broadcast %500 : f32 to vector<8x2xf32>
    %815 = arith.mulf %814, %804 : vector<8x2xf32>
    %816 = arith.addf %478, %815 : vector<8x2xf32>
    %cst_144 = arith.constant dense<0.000000e+00> : vector<8x32xf32>
    %817 = tpu.matmul %816, %0, %cst_144 {dimension_numbers = #tpu.dot_dimension_numbers<[1], [0], [0], [1], [0, 0, 1, 1], [], []>} : vector<8x2xf32>, vector<2x32xf32>, vector<8x32xf32> -> vector<8x32xf32>
    %818 = vector.broadcast %558 : vector<1x32xf32> to vector<8x32xf32>
    %819 = arith.mulf %817, %818 : vector<8x32xf32>
    %820 = vector.broadcast %562 : vector<1x32xf32> to vector<8x32xf32>
    %821 = arith.addf %819, %820 : vector<8x32xf32>
    %822 = math.tanh %821 : vector<8x32xf32>
    %823 = arith.mulf %822, %822 : vector<8x32xf32>
    %cst_145 = arith.constant 1.000000e+00 : f32
    %824 = vector.broadcast %cst_145 : f32 to vector<8x32xf32>
    %825 = arith.subf %824, %823 : vector<8x32xf32>
    %826 = vector.broadcast %558 : vector<1x32xf32> to vector<8x32xf32>
    %827 = arith.mulf %826, %825 : vector<8x32xf32>
    %828 = vector.shape_cast %26 : vector<16x32xf32> to vector<2x8x32xf32>
    %829 = vector.shape_cast %827 : vector<8x32xf32> to vector<1x8x32xf32>
    %830 = vector.broadcast %829 : vector<1x8x32xf32> to vector<2x8x32xf32>
    %831 = arith.mulf %828, %830 : vector<2x8x32xf32>
    %832 = vector.shape_cast %831 : vector<2x8x32xf32> to vector<16x32xf32>
    %833 = tpu.concatenate %822, %832 in 0 : vector<8x32xf32>, vector<16x32xf32> -> vector<24x32xf32>
    %834 = arith.truncf %833 : vector<24x32xf32> to vector<24x32xbf16>
    %cst_146 = arith.constant dense<0.000000e+00> : vector<24x32xf32>
    %835 = tpu.matmul %834, %5, %cst_146 {dimension_numbers = #tpu.dot_dimension_numbers<[1], [0], [0], [1], [0, 0, 1, 1], [], []>} : vector<24x32xbf16>, vector<32x32xbf16>, vector<24x32xf32> -> vector<24x32xf32>
    %836 = vector.broadcast %570 : vector<1x32xf32> to vector<24x32xf32>
    %837 = arith.mulf %835, %836 : vector<24x32xf32>
    %838 = vector.extract_strided_slice %837 {offsets = [0, 0], sizes = [8, 32], strides = [1, 1]} : vector<24x32xf32> to vector<8x32xf32>
    %839 = vector.broadcast %574 : vector<1x32xf32> to vector<8x32xf32>
    %840 = arith.addf %838, %839 : vector<8x32xf32>
    %841 = math.tanh %840 : vector<8x32xf32>
    %842 = arith.mulf %841, %841 : vector<8x32xf32>
    %cst_147 = arith.constant 1.000000e+00 : f32
    %843 = vector.broadcast %cst_147 : f32 to vector<8x32xf32>
    %844 = arith.subf %843, %842 : vector<8x32xf32>
    %845 = vector.extract_strided_slice %837 {offsets = [8, 0], sizes = [16, 32], strides = [1, 1]} : vector<24x32xf32> to vector<16x32xf32>
    %846 = vector.shape_cast %845 : vector<16x32xf32> to vector<2x8x32xf32>
    %847 = vector.shape_cast %844 : vector<8x32xf32> to vector<1x8x32xf32>
    %848 = vector.broadcast %847 : vector<1x8x32xf32> to vector<2x8x32xf32>
    %849 = arith.mulf %846, %848 : vector<2x8x32xf32>
    %850 = vector.shape_cast %849 : vector<2x8x32xf32> to vector<16x32xf32>
    %851 = tpu.concatenate %841, %850 in 0 : vector<8x32xf32>, vector<16x32xf32> -> vector<24x32xf32>
    %852 = arith.truncf %851 : vector<24x32xf32> to vector<24x32xbf16>
    %cst_148 = arith.constant dense<0.000000e+00> : vector<24x32xf32>
    %853 = tpu.matmul %852, %10, %cst_148 {dimension_numbers = #tpu.dot_dimension_numbers<[1], [0], [0], [1], [0, 0, 1, 1], [], []>} : vector<24x32xbf16>, vector<32x32xbf16>, vector<24x32xf32> -> vector<24x32xf32>
    %854 = vector.broadcast %582 : vector<1x32xf32> to vector<24x32xf32>
    %855 = arith.mulf %853, %854 : vector<24x32xf32>
    %856 = vector.extract_strided_slice %855 {offsets = [0, 0], sizes = [8, 32], strides = [1, 1]} : vector<24x32xf32> to vector<8x32xf32>
    %857 = vector.broadcast %586 : vector<1x32xf32> to vector<8x32xf32>
    %858 = arith.addf %856, %857 : vector<8x32xf32>
    %859 = math.tanh %858 : vector<8x32xf32>
    %860 = arith.mulf %859, %859 : vector<8x32xf32>
    %cst_149 = arith.constant 1.000000e+00 : f32
    %861 = vector.broadcast %cst_149 : f32 to vector<8x32xf32>
    %862 = arith.subf %861, %860 : vector<8x32xf32>
    %863 = vector.extract_strided_slice %855 {offsets = [8, 0], sizes = [16, 32], strides = [1, 1]} : vector<24x32xf32> to vector<16x32xf32>
    %864 = vector.shape_cast %863 : vector<16x32xf32> to vector<2x8x32xf32>
    %865 = vector.shape_cast %862 : vector<8x32xf32> to vector<1x8x32xf32>
    %866 = vector.broadcast %865 : vector<1x8x32xf32> to vector<2x8x32xf32>
    %867 = arith.mulf %864, %866 : vector<2x8x32xf32>
    %868 = vector.shape_cast %867 : vector<2x8x32xf32> to vector<16x32xf32>
    %869 = tpu.concatenate %859, %868 in 0 : vector<8x32xf32>, vector<16x32xf32> -> vector<24x32xf32>
    %870 = arith.truncf %869 : vector<24x32xf32> to vector<24x32xbf16>
    %cst_150 = arith.constant dense<0.000000e+00> : vector<24x2xf32>
    %871 = tpu.matmul %870, %15, %cst_150 {dimension_numbers = #tpu.dot_dimension_numbers<[1], [0], [0], [1], [0, 0, 1, 1], [], []>} : vector<24x32xbf16>, vector<32x2xbf16>, vector<24x2xf32> -> vector<24x2xf32>
    %872 = vector.broadcast %594 : vector<1x2xf32> to vector<24x2xf32>
    %873 = arith.mulf %871, %872 : vector<24x2xf32>
    %874 = vector.extract_strided_slice %873 {offsets = [0, 0], sizes = [8, 2], strides = [1, 1]} : vector<24x2xf32> to vector<8x2xf32>
    %875 = vector.broadcast %598 : vector<1x2xf32> to vector<8x2xf32>
    %876 = arith.addf %874, %875 : vector<8x2xf32>
    %877 = vector.extract_strided_slice %873 {offsets = [8, 0], sizes = [16, 2], strides = [1, 1]} : vector<24x2xf32> to vector<16x2xf32>
    %878 = vector.extract_strided_slice %877 {offsets = [0, 0], sizes = [8, 1], strides = [1, 1]} : vector<16x2xf32> to vector<8x1xf32>
    %879 = vector.extract_strided_slice %877 {offsets = [8, 1], sizes = [8, 1], strides = [1, 1]} : vector<16x2xf32> to vector<8x1xf32>
    %880 = arith.addf %878, %879 : vector<8x1xf32>
    %881 = arith.mulf %876, %876 : vector<8x2xf32>
    %cst_151 = arith.constant dense<0.000000e+00> : vector<8xf32>
    %882 = vector.multi_reduction <add>, %881, %cst_151 [1] : vector<8x2xf32> to vector<8xf32>
    %883 = vector.shape_cast %882 : vector<8xf32> to vector<8x1xf32>
    %cst_152 = arith.constant 5.000000e-01 : f32
    %884 = vector.broadcast %cst_152 : f32 to vector<8x1xf32>
    %885 = arith.mulf %884, %883 : vector<8x1xf32>
    %cst_153 = arith.constant 6.000000e+00 : f32
    %886 = arith.divf %500, %cst_153 : f32
    %887 = arith.addf %731, %804 : vector<8x2xf32>
    %cst_154 = arith.constant 2.000000e+00 : f32
    %888 = vector.broadcast %cst_154 : f32 to vector<8x2xf32>
    %889 = arith.mulf %888, %887 : vector<8x2xf32>
    %890 = arith.addf %658, %889 : vector<8x2xf32>
    %891 = arith.addf %890, %876 : vector<8x2xf32>
    %892 = vector.broadcast %886 : f32 to vector<8x2xf32>
    %893 = arith.mulf %892, %891 : vector<8x2xf32>
    %894 = arith.addf %478, %893 : vector<8x2xf32>
    %895 = arith.addf %735, %808 : vector<8x1xf32>
    %cst_155 = arith.constant 2.000000e+00 : f32
    %896 = vector.broadcast %cst_155 : f32 to vector<8x1xf32>
    %897 = arith.mulf %896, %895 : vector<8x1xf32>
    %898 = arith.addf %662, %897 : vector<8x1xf32>
    %899 = arith.addf %898, %880 : vector<8x1xf32>
    %900 = vector.broadcast %886 : f32 to vector<8x1xf32>
    %901 = arith.mulf %900, %899 : vector<8x1xf32>
    %902 = arith.addf %486, %901 : vector<8x1xf32>
    %903 = arith.addf %740, %813 : vector<8x1xf32>
    %cst_156 = arith.constant 2.000000e+00 : f32
    %904 = vector.broadcast %cst_156 : f32 to vector<8x1xf32>
    %905 = arith.mulf %904, %903 : vector<8x1xf32>
    %906 = arith.addf %667, %905 : vector<8x1xf32>
    %907 = arith.addf %906, %885 : vector<8x1xf32>
    %908 = vector.broadcast %886 : f32 to vector<8x1xf32>
    %909 = arith.mulf %908, %907 : vector<8x1xf32>
    %910 = arith.addf %494, %909 : vector<8x1xf32>
    %c2_157 = arith.constant 2 : index
    %c0_158 = arith.constant 0 : index
    %c0_159 = arith.constant 0 : index
    %911 = vector.load %arg23[%c2_157, %c0_158, %c0_159] : memref<5x8x2xf32, #tpu.memory_space<vmem>>, vector<1x8x2xf32>
    %912 = vector.shape_cast %911 : vector<1x8x2xf32> to vector<8x2xf32>
    %913 = vector.shape_cast %894 : vector<8x2xf32> to vector<1x8x2xf32>
    tpu.vector_store %arg23[%c2_157, %c0_158, %c0_159], %913 {strides = array<i32>} : memref<5x8x2xf32, #tpu.memory_space<vmem>>, vector<1x8x2xf32>,
    %c2_160 = arith.constant 2 : index
    %914 = memref.load %arg1[%c2_160] : memref<5xf32, #tpu.memory_space<smem>>
    %c3 = arith.constant 3 : index
    %915 = memref.load %arg1[%c3] : memref<5xf32, #tpu.memory_space<smem>>
    %916 = arith.subf %915, %914 : f32
    %cst_161 = arith.constant 5.000000e-01 : f32
    %917 = arith.mulf %cst_161, %916 : f32
    %918 = arith.addf %914, %917 : f32
    %919 = vector.broadcast %918 : f32 to vector<1x32xf32>
    %920 = arith.mulf %919, %2 : vector<1x32xf32>
    %921 = arith.addf %920, %3 : vector<1x32xf32>
    %922 = arith.negf %921 : vector<1x32xf32>
    %923 = math.exp %922 : vector<1x32xf32>
    %cst_162 = arith.constant 1.000000e+00 : f32
    %924 = vector.broadcast %cst_162 : f32 to vector<1x32xf32>
    %925 = arith.addf %924, %923 : vector<1x32xf32>
    %926 = arith.divf %924, %925 : vector<1x32xf32>
    %927 = arith.mulf %1, %926 : vector<1x32xf32>
    %928 = vector.broadcast %918 : f32 to vector<1x32xf32>
    %929 = arith.mulf %928, %4 : vector<1x32xf32>
    %930 = arith.addf %927, %929 : vector<1x32xf32>
    %931 = vector.broadcast %918 : f32 to vector<1x32xf32>
    %932 = arith.mulf %931, %7 : vector<1x32xf32>
    %933 = arith.addf %932, %8 : vector<1x32xf32>
    %934 = arith.negf %933 : vector<1x32xf32>
    %935 = math.exp %934 : vector<1x32xf32>
    %cst_163 = arith.constant 1.000000e+00 : f32
    %936 = vector.broadcast %cst_163 : f32 to vector<1x32xf32>
    %937 = arith.addf %936, %935 : vector<1x32xf32>
    %938 = arith.divf %936, %937 : vector<1x32xf32>
    %939 = arith.mulf %6, %938 : vector<1x32xf32>
    %940 = vector.broadcast %918 : f32 to vector<1x32xf32>
    %941 = arith.mulf %940, %9 : vector<1x32xf32>
    %942 = arith.addf %939, %941 : vector<1x32xf32>
    %943 = vector.broadcast %918 : f32 to vector<1x32xf32>
    %944 = arith.mulf %943, %12 : vector<1x32xf32>
    %945 = arith.addf %944, %13 : vector<1x32xf32>
    %946 = arith.negf %945 : vector<1x32xf32>
    %947 = math.exp %946 : vector<1x32xf32>
    %cst_164 = arith.constant 1.000000e+00 : f32
    %948 = vector.broadcast %cst_164 : f32 to vector<1x32xf32>
    %949 = arith.addf %948, %947 : vector<1x32xf32>
    %950 = arith.divf %948, %949 : vector<1x32xf32>
    %951 = arith.mulf %11, %950 : vector<1x32xf32>
    %952 = vector.broadcast %918 : f32 to vector<1x32xf32>
    %953 = arith.mulf %952, %14 : vector<1x32xf32>
    %954 = arith.addf %951, %953 : vector<1x32xf32>
    %955 = vector.broadcast %918 : f32 to vector<1x2xf32>
    %956 = arith.mulf %955, %17 : vector<1x2xf32>
    %957 = arith.addf %956, %18 : vector<1x2xf32>
    %958 = arith.negf %957 : vector<1x2xf32>
    %959 = math.exp %958 : vector<1x2xf32>
    %cst_165 = arith.constant 1.000000e+00 : f32
    %960 = vector.broadcast %cst_165 : f32 to vector<1x2xf32>
    %961 = arith.addf %960, %959 : vector<1x2xf32>
    %962 = arith.divf %960, %961 : vector<1x2xf32>
    %963 = arith.mulf %16, %962 : vector<1x2xf32>
    %964 = vector.broadcast %918 : f32 to vector<1x2xf32>
    %965 = arith.mulf %964, %19 : vector<1x2xf32>
    %966 = arith.addf %963, %965 : vector<1x2xf32>
    %967 = vector.broadcast %915 : f32 to vector<1x32xf32>
    %968 = arith.mulf %967, %2 : vector<1x32xf32>
    %969 = arith.addf %968, %3 : vector<1x32xf32>
    %970 = arith.negf %969 : vector<1x32xf32>
    %971 = math.exp %970 : vector<1x32xf32>
    %cst_166 = arith.constant 1.000000e+00 : f32
    %972 = vector.broadcast %cst_166 : f32 to vector<1x32xf32>
    %973 = arith.addf %972, %971 : vector<1x32xf32>
    %974 = arith.divf %972, %973 : vector<1x32xf32>
    %975 = arith.mulf %1, %974 : vector<1x32xf32>
    %976 = vector.broadcast %915 : f32 to vector<1x32xf32>
    %977 = arith.mulf %976, %4 : vector<1x32xf32>
    %978 = arith.addf %975, %977 : vector<1x32xf32>
    %979 = vector.broadcast %915 : f32 to vector<1x32xf32>
    %980 = arith.mulf %979, %7 : vector<1x32xf32>
    %981 = arith.addf %980, %8 : vector<1x32xf32>
    %982 = arith.negf %981 : vector<1x32xf32>
    %983 = math.exp %982 : vector<1x32xf32>
    %cst_167 = arith.constant 1.000000e+00 : f32
    %984 = vector.broadcast %cst_167 : f32 to vector<1x32xf32>
    %985 = arith.addf %984, %983 : vector<1x32xf32>
    %986 = arith.divf %984, %985 : vector<1x32xf32>
    %987 = arith.mulf %6, %986 : vector<1x32xf32>
    %988 = vector.broadcast %915 : f32 to vector<1x32xf32>
    %989 = arith.mulf %988, %9 : vector<1x32xf32>
    %990 = arith.addf %987, %989 : vector<1x32xf32>
    %991 = vector.broadcast %915 : f32 to vector<1x32xf32>
    %992 = arith.mulf %991, %12 : vector<1x32xf32>
    %993 = arith.addf %992, %13 : vector<1x32xf32>
    %994 = arith.negf %993 : vector<1x32xf32>
    %995 = math.exp %994 : vector<1x32xf32>
    %cst_168 = arith.constant 1.000000e+00 : f32
    %996 = vector.broadcast %cst_168 : f32 to vector<1x32xf32>
    %997 = arith.addf %996, %995 : vector<1x32xf32>
    %998 = arith.divf %996, %997 : vector<1x32xf32>
    %999 = arith.mulf %11, %998 : vector<1x32xf32>
    %1000 = vector.broadcast %915 : f32 to vector<1x32xf32>
    %1001 = arith.mulf %1000, %14 : vector<1x32xf32>
    %1002 = arith.addf %999, %1001 : vector<1x32xf32>
    %1003 = vector.broadcast %915 : f32 to vector<1x2xf32>
    %1004 = arith.mulf %1003, %17 : vector<1x2xf32>
    %1005 = arith.addf %1004, %18 : vector<1x2xf32>
    %1006 = arith.negf %1005 : vector<1x2xf32>
    %1007 = math.exp %1006 : vector<1x2xf32>
    %cst_169 = arith.constant 1.000000e+00 : f32
    %1008 = vector.broadcast %cst_169 : f32 to vector<1x2xf32>
    %1009 = arith.addf %1008, %1007 : vector<1x2xf32>
    %1010 = arith.divf %1008, %1009 : vector<1x2xf32>
    %1011 = arith.mulf %16, %1010 : vector<1x2xf32>
    %1012 = vector.broadcast %915 : f32 to vector<1x2xf32>
    %1013 = arith.mulf %1012, %19 : vector<1x2xf32>
    %1014 = arith.addf %1011, %1013 : vector<1x2xf32>
    %cst_170 = arith.constant dense<0.000000e+00> : vector<8x32xf32>
    %1015 = tpu.matmul %894, %0, %cst_170 {dimension_numbers = #tpu.dot_dimension_numbers<[1], [0], [0], [1], [0, 0, 1, 1], [], []>} : vector<8x2xf32>, vector<2x32xf32>, vector<8x32xf32> -> vector<8x32xf32>
    %1016 = vector.broadcast %558 : vector<1x32xf32> to vector<8x32xf32>
    %1017 = arith.mulf %1015, %1016 : vector<8x32xf32>
    %1018 = vector.broadcast %562 : vector<1x32xf32> to vector<8x32xf32>
    %1019 = arith.addf %1017, %1018 : vector<8x32xf32>
    %1020 = math.tanh %1019 : vector<8x32xf32>
    %1021 = arith.mulf %1020, %1020 : vector<8x32xf32>
    %cst_171 = arith.constant 1.000000e+00 : f32
    %1022 = vector.broadcast %cst_171 : f32 to vector<8x32xf32>
    %1023 = arith.subf %1022, %1021 : vector<8x32xf32>
    %1024 = vector.broadcast %558 : vector<1x32xf32> to vector<8x32xf32>
    %1025 = arith.mulf %1024, %1023 : vector<8x32xf32>
    %1026 = vector.shape_cast %26 : vector<16x32xf32> to vector<2x8x32xf32>
    %1027 = vector.shape_cast %1025 : vector<8x32xf32> to vector<1x8x32xf32>
    %1028 = vector.broadcast %1027 : vector<1x8x32xf32> to vector<2x8x32xf32>
    %1029 = arith.mulf %1026, %1028 : vector<2x8x32xf32>
    %1030 = vector.shape_cast %1029 : vector<2x8x32xf32> to vector<16x32xf32>
    %1031 = tpu.concatenate %1020, %1030 in 0 : vector<8x32xf32>, vector<16x32xf32> -> vector<24x32xf32>
    %1032 = arith.truncf %1031 : vector<24x32xf32> to vector<24x32xbf16>
    %cst_172 = arith.constant dense<0.000000e+00> : vector<24x32xf32>
    %1033 = tpu.matmul %1032, %5, %cst_172 {dimension_numbers = #tpu.dot_dimension_numbers<[1], [0], [0], [1], [0, 0, 1, 1], [], []>} : vector<24x32xbf16>, vector<32x32xbf16>, vector<24x32xf32> -> vector<24x32xf32>
    %1034 = vector.broadcast %570 : vector<1x32xf32> to vector<24x32xf32>
    %1035 = arith.mulf %1033, %1034 : vector<24x32xf32>
    %1036 = vector.extract_strided_slice %1035 {offsets = [0, 0], sizes = [8, 32], strides = [1, 1]} : vector<24x32xf32> to vector<8x32xf32>
    %1037 = vector.broadcast %574 : vector<1x32xf32> to vector<8x32xf32>
    %1038 = arith.addf %1036, %1037 : vector<8x32xf32>
    %1039 = math.tanh %1038 : vector<8x32xf32>
    %1040 = arith.mulf %1039, %1039 : vector<8x32xf32>
    %cst_173 = arith.constant 1.000000e+00 : f32
    %1041 = vector.broadcast %cst_173 : f32 to vector<8x32xf32>
    %1042 = arith.subf %1041, %1040 : vector<8x32xf32>
    %1043 = vector.extract_strided_slice %1035 {offsets = [8, 0], sizes = [16, 32], strides = [1, 1]} : vector<24x32xf32> to vector<16x32xf32>
    %1044 = vector.shape_cast %1043 : vector<16x32xf32> to vector<2x8x32xf32>
    %1045 = vector.shape_cast %1042 : vector<8x32xf32> to vector<1x8x32xf32>
    %1046 = vector.broadcast %1045 : vector<1x8x32xf32> to vector<2x8x32xf32>
    %1047 = arith.mulf %1044, %1046 : vector<2x8x32xf32>
    %1048 = vector.shape_cast %1047 : vector<2x8x32xf32> to vector<16x32xf32>
    %1049 = tpu.concatenate %1039, %1048 in 0 : vector<8x32xf32>, vector<16x32xf32> -> vector<24x32xf32>
    %1050 = arith.truncf %1049 : vector<24x32xf32> to vector<24x32xbf16>
    %cst_174 = arith.constant dense<0.000000e+00> : vector<24x32xf32>
    %1051 = tpu.matmul %1050, %10, %cst_174 {dimension_numbers = #tpu.dot_dimension_numbers<[1], [0], [0], [1], [0, 0, 1, 1], [], []>} : vector<24x32xbf16>, vector<32x32xbf16>, vector<24x32xf32> -> vector<24x32xf32>
    %1052 = vector.broadcast %582 : vector<1x32xf32> to vector<24x32xf32>
    %1053 = arith.mulf %1051, %1052 : vector<24x32xf32>
    %1054 = vector.extract_strided_slice %1053 {offsets = [0, 0], sizes = [8, 32], strides = [1, 1]} : vector<24x32xf32> to vector<8x32xf32>
    %1055 = vector.broadcast %586 : vector<1x32xf32> to vector<8x32xf32>
    %1056 = arith.addf %1054, %1055 : vector<8x32xf32>
    %1057 = math.tanh %1056 : vector<8x32xf32>
    %1058 = arith.mulf %1057, %1057 : vector<8x32xf32>
    %cst_175 = arith.constant 1.000000e+00 : f32
    %1059 = vector.broadcast %cst_175 : f32 to vector<8x32xf32>
    %1060 = arith.subf %1059, %1058 : vector<8x32xf32>
    %1061 = vector.extract_strided_slice %1053 {offsets = [8, 0], sizes = [16, 32], strides = [1, 1]} : vector<24x32xf32> to vector<16x32xf32>
    %1062 = vector.shape_cast %1061 : vector<16x32xf32> to vector<2x8x32xf32>
    %1063 = vector.shape_cast %1060 : vector<8x32xf32> to vector<1x8x32xf32>
    %1064 = vector.broadcast %1063 : vector<1x8x32xf32> to vector<2x8x32xf32>
    %1065 = arith.mulf %1062, %1064 : vector<2x8x32xf32>
    %1066 = vector.shape_cast %1065 : vector<2x8x32xf32> to vector<16x32xf32>
    %1067 = tpu.concatenate %1057, %1066 in 0 : vector<8x32xf32>, vector<16x32xf32> -> vector<24x32xf32>
    %1068 = arith.truncf %1067 : vector<24x32xf32> to vector<24x32xbf16>
    %cst_176 = arith.constant dense<0.000000e+00> : vector<24x2xf32>
    %1069 = tpu.matmul %1068, %15, %cst_176 {dimension_numbers = #tpu.dot_dimension_numbers<[1], [0], [0], [1], [0, 0, 1, 1], [], []>} : vector<24x32xbf16>, vector<32x2xbf16>, vector<24x2xf32> -> vector<24x2xf32>
    %1070 = vector.broadcast %594 : vector<1x2xf32> to vector<24x2xf32>
    %1071 = arith.mulf %1069, %1070 : vector<24x2xf32>
    %1072 = vector.extract_strided_slice %1071 {offsets = [0, 0], sizes = [8, 2], strides = [1, 1]} : vector<24x2xf32> to vector<8x2xf32>
    %1073 = vector.broadcast %598 : vector<1x2xf32> to vector<8x2xf32>
    %1074 = arith.addf %1072, %1073 : vector<8x2xf32>
    %1075 = vector.extract_strided_slice %1071 {offsets = [8, 0], sizes = [16, 2], strides = [1, 1]} : vector<24x2xf32> to vector<16x2xf32>
    %1076 = vector.extract_strided_slice %1075 {offsets = [0, 0], sizes = [8, 1], strides = [1, 1]} : vector<16x2xf32> to vector<8x1xf32>
    %1077 = vector.extract_strided_slice %1075 {offsets = [8, 1], sizes = [8, 1], strides = [1, 1]} : vector<16x2xf32> to vector<8x1xf32>
    %1078 = arith.addf %1076, %1077 : vector<8x1xf32>
    %1079 = arith.mulf %1074, %1074 : vector<8x2xf32>
    %cst_177 = arith.constant dense<0.000000e+00> : vector<8xf32>
    %1080 = vector.multi_reduction <add>, %1079, %cst_177 [1] : vector<8x2xf32> to vector<8xf32>
    %1081 = vector.shape_cast %1080 : vector<8xf32> to vector<8x1xf32>
    %cst_178 = arith.constant 5.000000e-01 : f32
    %1082 = vector.broadcast %cst_178 : f32 to vector<8x1xf32>
    %1083 = arith.mulf %1082, %1081 : vector<8x1xf32>
    %cst_179 = arith.constant 5.000000e-01 : f32
    %1084 = arith.mulf %cst_179, %916 : f32
    %1085 = vector.broadcast %1084 : f32 to vector<8x2xf32>
    %1086 = arith.mulf %1085, %1074 : vector<8x2xf32>
    %1087 = arith.addf %894, %1086 : vector<8x2xf32>
    %cst_180 = arith.constant dense<0.000000e+00> : vector<8x32xf32>
    %1088 = tpu.matmul %1087, %0, %cst_180 {dimension_numbers = #tpu.dot_dimension_numbers<[1], [0], [0], [1], [0, 0, 1, 1], [], []>} : vector<8x2xf32>, vector<2x32xf32>, vector<8x32xf32> -> vector<8x32xf32>
    %1089 = vector.broadcast %926 : vector<1x32xf32> to vector<8x32xf32>
    %1090 = arith.mulf %1088, %1089 : vector<8x32xf32>
    %1091 = vector.broadcast %930 : vector<1x32xf32> to vector<8x32xf32>
    %1092 = arith.addf %1090, %1091 : vector<8x32xf32>
    %1093 = math.tanh %1092 : vector<8x32xf32>
    %1094 = arith.mulf %1093, %1093 : vector<8x32xf32>
    %cst_181 = arith.constant 1.000000e+00 : f32
    %1095 = vector.broadcast %cst_181 : f32 to vector<8x32xf32>
    %1096 = arith.subf %1095, %1094 : vector<8x32xf32>
    %1097 = vector.broadcast %926 : vector<1x32xf32> to vector<8x32xf32>
    %1098 = arith.mulf %1097, %1096 : vector<8x32xf32>
    %1099 = vector.shape_cast %26 : vector<16x32xf32> to vector<2x8x32xf32>
    %1100 = vector.shape_cast %1098 : vector<8x32xf32> to vector<1x8x32xf32>
    %1101 = vector.broadcast %1100 : vector<1x8x32xf32> to vector<2x8x32xf32>
    %1102 = arith.mulf %1099, %1101 : vector<2x8x32xf32>
    %1103 = vector.shape_cast %1102 : vector<2x8x32xf32> to vector<16x32xf32>
    %1104 = tpu.concatenate %1093, %1103 in 0 : vector<8x32xf32>, vector<16x32xf32> -> vector<24x32xf32>
    %1105 = arith.truncf %1104 : vector<24x32xf32> to vector<24x32xbf16>
    %cst_182 = arith.constant dense<0.000000e+00> : vector<24x32xf32>
    %1106 = tpu.matmul %1105, %5, %cst_182 {dimension_numbers = #tpu.dot_dimension_numbers<[1], [0], [0], [1], [0, 0, 1, 1], [], []>} : vector<24x32xbf16>, vector<32x32xbf16>, vector<24x32xf32> -> vector<24x32xf32>
    %1107 = vector.broadcast %938 : vector<1x32xf32> to vector<24x32xf32>
    %1108 = arith.mulf %1106, %1107 : vector<24x32xf32>
    %1109 = vector.extract_strided_slice %1108 {offsets = [0, 0], sizes = [8, 32], strides = [1, 1]} : vector<24x32xf32> to vector<8x32xf32>
    %1110 = vector.broadcast %942 : vector<1x32xf32> to vector<8x32xf32>
    %1111 = arith.addf %1109, %1110 : vector<8x32xf32>
    %1112 = math.tanh %1111 : vector<8x32xf32>
    %1113 = arith.mulf %1112, %1112 : vector<8x32xf32>
    %cst_183 = arith.constant 1.000000e+00 : f32
    %1114 = vector.broadcast %cst_183 : f32 to vector<8x32xf32>
    %1115 = arith.subf %1114, %1113 : vector<8x32xf32>
    %1116 = vector.extract_strided_slice %1108 {offsets = [8, 0], sizes = [16, 32], strides = [1, 1]} : vector<24x32xf32> to vector<16x32xf32>
    %1117 = vector.shape_cast %1116 : vector<16x32xf32> to vector<2x8x32xf32>
    %1118 = vector.shape_cast %1115 : vector<8x32xf32> to vector<1x8x32xf32>
    %1119 = vector.broadcast %1118 : vector<1x8x32xf32> to vector<2x8x32xf32>
    %1120 = arith.mulf %1117, %1119 : vector<2x8x32xf32>
    %1121 = vector.shape_cast %1120 : vector<2x8x32xf32> to vector<16x32xf32>
    %1122 = tpu.concatenate %1112, %1121 in 0 : vector<8x32xf32>, vector<16x32xf32> -> vector<24x32xf32>
    %1123 = arith.truncf %1122 : vector<24x32xf32> to vector<24x32xbf16>
    %cst_184 = arith.constant dense<0.000000e+00> : vector<24x32xf32>
    %1124 = tpu.matmul %1123, %10, %cst_184 {dimension_numbers = #tpu.dot_dimension_numbers<[1], [0], [0], [1], [0, 0, 1, 1], [], []>} : vector<24x32xbf16>, vector<32x32xbf16>, vector<24x32xf32> -> vector<24x32xf32>
    %1125 = vector.broadcast %950 : vector<1x32xf32> to vector<24x32xf32>
    %1126 = arith.mulf %1124, %1125 : vector<24x32xf32>
    %1127 = vector.extract_strided_slice %1126 {offsets = [0, 0], sizes = [8, 32], strides = [1, 1]} : vector<24x32xf32> to vector<8x32xf32>
    %1128 = vector.broadcast %954 : vector<1x32xf32> to vector<8x32xf32>
    %1129 = arith.addf %1127, %1128 : vector<8x32xf32>
    %1130 = math.tanh %1129 : vector<8x32xf32>
    %1131 = arith.mulf %1130, %1130 : vector<8x32xf32>
    %cst_185 = arith.constant 1.000000e+00 : f32
    %1132 = vector.broadcast %cst_185 : f32 to vector<8x32xf32>
    %1133 = arith.subf %1132, %1131 : vector<8x32xf32>
    %1134 = vector.extract_strided_slice %1126 {offsets = [8, 0], sizes = [16, 32], strides = [1, 1]} : vector<24x32xf32> to vector<16x32xf32>
    %1135 = vector.shape_cast %1134 : vector<16x32xf32> to vector<2x8x32xf32>
    %1136 = vector.shape_cast %1133 : vector<8x32xf32> to vector<1x8x32xf32>
    %1137 = vector.broadcast %1136 : vector<1x8x32xf32> to vector<2x8x32xf32>
    %1138 = arith.mulf %1135, %1137 : vector<2x8x32xf32>
    %1139 = vector.shape_cast %1138 : vector<2x8x32xf32> to vector<16x32xf32>
    %1140 = tpu.concatenate %1130, %1139 in 0 : vector<8x32xf32>, vector<16x32xf32> -> vector<24x32xf32>
    %1141 = arith.truncf %1140 : vector<24x32xf32> to vector<24x32xbf16>
    %cst_186 = arith.constant dense<0.000000e+00> : vector<24x2xf32>
    %1142 = tpu.matmul %1141, %15, %cst_186 {dimension_numbers = #tpu.dot_dimension_numbers<[1], [0], [0], [1], [0, 0, 1, 1], [], []>} : vector<24x32xbf16>, vector<32x2xbf16>, vector<24x2xf32> -> vector<24x2xf32>
    %1143 = vector.broadcast %962 : vector<1x2xf32> to vector<24x2xf32>
    %1144 = arith.mulf %1142, %1143 : vector<24x2xf32>
    %1145 = vector.extract_strided_slice %1144 {offsets = [0, 0], sizes = [8, 2], strides = [1, 1]} : vector<24x2xf32> to vector<8x2xf32>
    %1146 = vector.broadcast %966 : vector<1x2xf32> to vector<8x2xf32>
    %1147 = arith.addf %1145, %1146 : vector<8x2xf32>
    %1148 = vector.extract_strided_slice %1144 {offsets = [8, 0], sizes = [16, 2], strides = [1, 1]} : vector<24x2xf32> to vector<16x2xf32>
    %1149 = vector.extract_strided_slice %1148 {offsets = [0, 0], sizes = [8, 1], strides = [1, 1]} : vector<16x2xf32> to vector<8x1xf32>
    %1150 = vector.extract_strided_slice %1148 {offsets = [8, 1], sizes = [8, 1], strides = [1, 1]} : vector<16x2xf32> to vector<8x1xf32>
    %1151 = arith.addf %1149, %1150 : vector<8x1xf32>
    %1152 = arith.mulf %1147, %1147 : vector<8x2xf32>
    %cst_187 = arith.constant dense<0.000000e+00> : vector<8xf32>
    %1153 = vector.multi_reduction <add>, %1152, %cst_187 [1] : vector<8x2xf32> to vector<8xf32>
    %1154 = vector.shape_cast %1153 : vector<8xf32> to vector<8x1xf32>
    %cst_188 = arith.constant 5.000000e-01 : f32
    %1155 = vector.broadcast %cst_188 : f32 to vector<8x1xf32>
    %1156 = arith.mulf %1155, %1154 : vector<8x1xf32>
    %cst_189 = arith.constant 5.000000e-01 : f32
    %1157 = arith.mulf %cst_189, %916 : f32
    %1158 = vector.broadcast %1157 : f32 to vector<8x2xf32>
    %1159 = arith.mulf %1158, %1147 : vector<8x2xf32>
    %1160 = arith.addf %894, %1159 : vector<8x2xf32>
    %cst_190 = arith.constant dense<0.000000e+00> : vector<8x32xf32>
    %1161 = tpu.matmul %1160, %0, %cst_190 {dimension_numbers = #tpu.dot_dimension_numbers<[1], [0], [0], [1], [0, 0, 1, 1], [], []>} : vector<8x2xf32>, vector<2x32xf32>, vector<8x32xf32> -> vector<8x32xf32>
    %1162 = vector.broadcast %926 : vector<1x32xf32> to vector<8x32xf32>
    %1163 = arith.mulf %1161, %1162 : vector<8x32xf32>
    %1164 = vector.broadcast %930 : vector<1x32xf32> to vector<8x32xf32>
    %1165 = arith.addf %1163, %1164 : vector<8x32xf32>
    %1166 = math.tanh %1165 : vector<8x32xf32>
    %1167 = arith.mulf %1166, %1166 : vector<8x32xf32>
    %cst_191 = arith.constant 1.000000e+00 : f32
    %1168 = vector.broadcast %cst_191 : f32 to vector<8x32xf32>
    %1169 = arith.subf %1168, %1167 : vector<8x32xf32>
    %1170 = vector.broadcast %926 : vector<1x32xf32> to vector<8x32xf32>
    %1171 = arith.mulf %1170, %1169 : vector<8x32xf32>
    %1172 = vector.shape_cast %26 : vector<16x32xf32> to vector<2x8x32xf32>
    %1173 = vector.shape_cast %1171 : vector<8x32xf32> to vector<1x8x32xf32>
    %1174 = vector.broadcast %1173 : vector<1x8x32xf32> to vector<2x8x32xf32>
    %1175 = arith.mulf %1172, %1174 : vector<2x8x32xf32>
    %1176 = vector.shape_cast %1175 : vector<2x8x32xf32> to vector<16x32xf32>
    %1177 = tpu.concatenate %1166, %1176 in 0 : vector<8x32xf32>, vector<16x32xf32> -> vector<24x32xf32>
    %1178 = arith.truncf %1177 : vector<24x32xf32> to vector<24x32xbf16>
    %cst_192 = arith.constant dense<0.000000e+00> : vector<24x32xf32>
    %1179 = tpu.matmul %1178, %5, %cst_192 {dimension_numbers = #tpu.dot_dimension_numbers<[1], [0], [0], [1], [0, 0, 1, 1], [], []>} : vector<24x32xbf16>, vector<32x32xbf16>, vector<24x32xf32> -> vector<24x32xf32>
    %1180 = vector.broadcast %938 : vector<1x32xf32> to vector<24x32xf32>
    %1181 = arith.mulf %1179, %1180 : vector<24x32xf32>
    %1182 = vector.extract_strided_slice %1181 {offsets = [0, 0], sizes = [8, 32], strides = [1, 1]} : vector<24x32xf32> to vector<8x32xf32>
    %1183 = vector.broadcast %942 : vector<1x32xf32> to vector<8x32xf32>
    %1184 = arith.addf %1182, %1183 : vector<8x32xf32>
    %1185 = math.tanh %1184 : vector<8x32xf32>
    %1186 = arith.mulf %1185, %1185 : vector<8x32xf32>
    %cst_193 = arith.constant 1.000000e+00 : f32
    %1187 = vector.broadcast %cst_193 : f32 to vector<8x32xf32>
    %1188 = arith.subf %1187, %1186 : vector<8x32xf32>
    %1189 = vector.extract_strided_slice %1181 {offsets = [8, 0], sizes = [16, 32], strides = [1, 1]} : vector<24x32xf32> to vector<16x32xf32>
    %1190 = vector.shape_cast %1189 : vector<16x32xf32> to vector<2x8x32xf32>
    %1191 = vector.shape_cast %1188 : vector<8x32xf32> to vector<1x8x32xf32>
    %1192 = vector.broadcast %1191 : vector<1x8x32xf32> to vector<2x8x32xf32>
    %1193 = arith.mulf %1190, %1192 : vector<2x8x32xf32>
    %1194 = vector.shape_cast %1193 : vector<2x8x32xf32> to vector<16x32xf32>
    %1195 = tpu.concatenate %1185, %1194 in 0 : vector<8x32xf32>, vector<16x32xf32> -> vector<24x32xf32>
    %1196 = arith.truncf %1195 : vector<24x32xf32> to vector<24x32xbf16>
    %cst_194 = arith.constant dense<0.000000e+00> : vector<24x32xf32>
    %1197 = tpu.matmul %1196, %10, %cst_194 {dimension_numbers = #tpu.dot_dimension_numbers<[1], [0], [0], [1], [0, 0, 1, 1], [], []>} : vector<24x32xbf16>, vector<32x32xbf16>, vector<24x32xf32> -> vector<24x32xf32>
    %1198 = vector.broadcast %950 : vector<1x32xf32> to vector<24x32xf32>
    %1199 = arith.mulf %1197, %1198 : vector<24x32xf32>
    %1200 = vector.extract_strided_slice %1199 {offsets = [0, 0], sizes = [8, 32], strides = [1, 1]} : vector<24x32xf32> to vector<8x32xf32>
    %1201 = vector.broadcast %954 : vector<1x32xf32> to vector<8x32xf32>
    %1202 = arith.addf %1200, %1201 : vector<8x32xf32>
    %1203 = math.tanh %1202 : vector<8x32xf32>
    %1204 = arith.mulf %1203, %1203 : vector<8x32xf32>
    %cst_195 = arith.constant 1.000000e+00 : f32
    %1205 = vector.broadcast %cst_195 : f32 to vector<8x32xf32>
    %1206 = arith.subf %1205, %1204 : vector<8x32xf32>
    %1207 = vector.extract_strided_slice %1199 {offsets = [8, 0], sizes = [16, 32], strides = [1, 1]} : vector<24x32xf32> to vector<16x32xf32>
    %1208 = vector.shape_cast %1207 : vector<16x32xf32> to vector<2x8x32xf32>
    %1209 = vector.shape_cast %1206 : vector<8x32xf32> to vector<1x8x32xf32>
    %1210 = vector.broadcast %1209 : vector<1x8x32xf32> to vector<2x8x32xf32>
    %1211 = arith.mulf %1208, %1210 : vector<2x8x32xf32>
    %1212 = vector.shape_cast %1211 : vector<2x8x32xf32> to vector<16x32xf32>
    %1213 = tpu.concatenate %1203, %1212 in 0 : vector<8x32xf32>, vector<16x32xf32> -> vector<24x32xf32>
    %1214 = arith.truncf %1213 : vector<24x32xf32> to vector<24x32xbf16>
    %cst_196 = arith.constant dense<0.000000e+00> : vector<24x2xf32>
    %1215 = tpu.matmul %1214, %15, %cst_196 {dimension_numbers = #tpu.dot_dimension_numbers<[1], [0], [0], [1], [0, 0, 1, 1], [], []>} : vector<24x32xbf16>, vector<32x2xbf16>, vector<24x2xf32> -> vector<24x2xf32>
    %1216 = vector.broadcast %962 : vector<1x2xf32> to vector<24x2xf32>
    %1217 = arith.mulf %1215, %1216 : vector<24x2xf32>
    %1218 = vector.extract_strided_slice %1217 {offsets = [0, 0], sizes = [8, 2], strides = [1, 1]} : vector<24x2xf32> to vector<8x2xf32>
    %1219 = vector.broadcast %966 : vector<1x2xf32> to vector<8x2xf32>
    %1220 = arith.addf %1218, %1219 : vector<8x2xf32>
    %1221 = vector.extract_strided_slice %1217 {offsets = [8, 0], sizes = [16, 2], strides = [1, 1]} : vector<24x2xf32> to vector<16x2xf32>
    %1222 = vector.extract_strided_slice %1221 {offsets = [0, 0], sizes = [8, 1], strides = [1, 1]} : vector<16x2xf32> to vector<8x1xf32>
    %1223 = vector.extract_strided_slice %1221 {offsets = [8, 1], sizes = [8, 1], strides = [1, 1]} : vector<16x2xf32> to vector<8x1xf32>
    %1224 = arith.addf %1222, %1223 : vector<8x1xf32>
    %1225 = arith.mulf %1220, %1220 : vector<8x2xf32>
    %cst_197 = arith.constant dense<0.000000e+00> : vector<8xf32>
    %1226 = vector.multi_reduction <add>, %1225, %cst_197 [1] : vector<8x2xf32> to vector<8xf32>
    %1227 = vector.shape_cast %1226 : vector<8xf32> to vector<8x1xf32>
    %cst_198 = arith.constant 5.000000e-01 : f32
    %1228 = vector.broadcast %cst_198 : f32 to vector<8x1xf32>
    %1229 = arith.mulf %1228, %1227 : vector<8x1xf32>
    %1230 = vector.broadcast %916 : f32 to vector<8x2xf32>
    %1231 = arith.mulf %1230, %1220 : vector<8x2xf32>
    %1232 = arith.addf %894, %1231 : vector<8x2xf32>
    %cst_199 = arith.constant dense<0.000000e+00> : vector<8x32xf32>
    %1233 = tpu.matmul %1232, %0, %cst_199 {dimension_numbers = #tpu.dot_dimension_numbers<[1], [0], [0], [1], [0, 0, 1, 1], [], []>} : vector<8x2xf32>, vector<2x32xf32>, vector<8x32xf32> -> vector<8x32xf32>
    %1234 = vector.broadcast %974 : vector<1x32xf32> to vector<8x32xf32>
    %1235 = arith.mulf %1233, %1234 : vector<8x32xf32>
    %1236 = vector.broadcast %978 : vector<1x32xf32> to vector<8x32xf32>
    %1237 = arith.addf %1235, %1236 : vector<8x32xf32>
    %1238 = math.tanh %1237 : vector<8x32xf32>
    %1239 = arith.mulf %1238, %1238 : vector<8x32xf32>
    %cst_200 = arith.constant 1.000000e+00 : f32
    %1240 = vector.broadcast %cst_200 : f32 to vector<8x32xf32>
    %1241 = arith.subf %1240, %1239 : vector<8x32xf32>
    %1242 = vector.broadcast %974 : vector<1x32xf32> to vector<8x32xf32>
    %1243 = arith.mulf %1242, %1241 : vector<8x32xf32>
    %1244 = vector.shape_cast %26 : vector<16x32xf32> to vector<2x8x32xf32>
    %1245 = vector.shape_cast %1243 : vector<8x32xf32> to vector<1x8x32xf32>
    %1246 = vector.broadcast %1245 : vector<1x8x32xf32> to vector<2x8x32xf32>
    %1247 = arith.mulf %1244, %1246 : vector<2x8x32xf32>
    %1248 = vector.shape_cast %1247 : vector<2x8x32xf32> to vector<16x32xf32>
    %1249 = tpu.concatenate %1238, %1248 in 0 : vector<8x32xf32>, vector<16x32xf32> -> vector<24x32xf32>
    %1250 = arith.truncf %1249 : vector<24x32xf32> to vector<24x32xbf16>
    %cst_201 = arith.constant dense<0.000000e+00> : vector<24x32xf32>
    %1251 = tpu.matmul %1250, %5, %cst_201 {dimension_numbers = #tpu.dot_dimension_numbers<[1], [0], [0], [1], [0, 0, 1, 1], [], []>} : vector<24x32xbf16>, vector<32x32xbf16>, vector<24x32xf32> -> vector<24x32xf32>
    %1252 = vector.broadcast %986 : vector<1x32xf32> to vector<24x32xf32>
    %1253 = arith.mulf %1251, %1252 : vector<24x32xf32>
    %1254 = vector.extract_strided_slice %1253 {offsets = [0, 0], sizes = [8, 32], strides = [1, 1]} : vector<24x32xf32> to vector<8x32xf32>
    %1255 = vector.broadcast %990 : vector<1x32xf32> to vector<8x32xf32>
    %1256 = arith.addf %1254, %1255 : vector<8x32xf32>
    %1257 = math.tanh %1256 : vector<8x32xf32>
    %1258 = arith.mulf %1257, %1257 : vector<8x32xf32>
    %cst_202 = arith.constant 1.000000e+00 : f32
    %1259 = vector.broadcast %cst_202 : f32 to vector<8x32xf32>
    %1260 = arith.subf %1259, %1258 : vector<8x32xf32>
    %1261 = vector.extract_strided_slice %1253 {offsets = [8, 0], sizes = [16, 32], strides = [1, 1]} : vector<24x32xf32> to vector<16x32xf32>
    %1262 = vector.shape_cast %1261 : vector<16x32xf32> to vector<2x8x32xf32>
    %1263 = vector.shape_cast %1260 : vector<8x32xf32> to vector<1x8x32xf32>
    %1264 = vector.broadcast %1263 : vector<1x8x32xf32> to vector<2x8x32xf32>
    %1265 = arith.mulf %1262, %1264 : vector<2x8x32xf32>
    %1266 = vector.shape_cast %1265 : vector<2x8x32xf32> to vector<16x32xf32>
    %1267 = tpu.concatenate %1257, %1266 in 0 : vector<8x32xf32>, vector<16x32xf32> -> vector<24x32xf32>
    %1268 = arith.truncf %1267 : vector<24x32xf32> to vector<24x32xbf16>
    %cst_203 = arith.constant dense<0.000000e+00> : vector<24x32xf32>
    %1269 = tpu.matmul %1268, %10, %cst_203 {dimension_numbers = #tpu.dot_dimension_numbers<[1], [0], [0], [1], [0, 0, 1, 1], [], []>} : vector<24x32xbf16>, vector<32x32xbf16>, vector<24x32xf32> -> vector<24x32xf32>
    %1270 = vector.broadcast %998 : vector<1x32xf32> to vector<24x32xf32>
    %1271 = arith.mulf %1269, %1270 : vector<24x32xf32>
    %1272 = vector.extract_strided_slice %1271 {offsets = [0, 0], sizes = [8, 32], strides = [1, 1]} : vector<24x32xf32> to vector<8x32xf32>
    %1273 = vector.broadcast %1002 : vector<1x32xf32> to vector<8x32xf32>
    %1274 = arith.addf %1272, %1273 : vector<8x32xf32>
    %1275 = math.tanh %1274 : vector<8x32xf32>
    %1276 = arith.mulf %1275, %1275 : vector<8x32xf32>
    %cst_204 = arith.constant 1.000000e+00 : f32
    %1277 = vector.broadcast %cst_204 : f32 to vector<8x32xf32>
    %1278 = arith.subf %1277, %1276 : vector<8x32xf32>
    %1279 = vector.extract_strided_slice %1271 {offsets = [8, 0], sizes = [16, 32], strides = [1, 1]} : vector<24x32xf32> to vector<16x32xf32>
    %1280 = vector.shape_cast %1279 : vector<16x32xf32> to vector<2x8x32xf32>
    %1281 = vector.shape_cast %1278 : vector<8x32xf32> to vector<1x8x32xf32>
    %1282 = vector.broadcast %1281 : vector<1x8x32xf32> to vector<2x8x32xf32>
    %1283 = arith.mulf %1280, %1282 : vector<2x8x32xf32>
    %1284 = vector.shape_cast %1283 : vector<2x8x32xf32> to vector<16x32xf32>
    %1285 = tpu.concatenate %1275, %1284 in 0 : vector<8x32xf32>, vector<16x32xf32> -> vector<24x32xf32>
    %1286 = arith.truncf %1285 : vector<24x32xf32> to vector<24x32xbf16>
    %cst_205 = arith.constant dense<0.000000e+00> : vector<24x2xf32>
    %1287 = tpu.matmul %1286, %15, %cst_205 {dimension_numbers = #tpu.dot_dimension_numbers<[1], [0], [0], [1], [0, 0, 1, 1], [], []>} : vector<24x32xbf16>, vector<32x2xbf16>, vector<24x2xf32> -> vector<24x2xf32>
    %1288 = vector.broadcast %1010 : vector<1x2xf32> to vector<24x2xf32>
    %1289 = arith.mulf %1287, %1288 : vector<24x2xf32>
    %1290 = vector.extract_strided_slice %1289 {offsets = [0, 0], sizes = [8, 2], strides = [1, 1]} : vector<24x2xf32> to vector<8x2xf32>
    %1291 = vector.broadcast %1014 : vector<1x2xf32> to vector<8x2xf32>
    %1292 = arith.addf %1290, %1291 : vector<8x2xf32>
    %1293 = vector.extract_strided_slice %1289 {offsets = [8, 0], sizes = [16, 2], strides = [1, 1]} : vector<24x2xf32> to vector<16x2xf32>
    %1294 = vector.extract_strided_slice %1293 {offsets = [0, 0], sizes = [8, 1], strides = [1, 1]} : vector<16x2xf32> to vector<8x1xf32>
    %1295 = vector.extract_strided_slice %1293 {offsets = [8, 1], sizes = [8, 1], strides = [1, 1]} : vector<16x2xf32> to vector<8x1xf32>
    %1296 = arith.addf %1294, %1295 : vector<8x1xf32>
    %1297 = arith.mulf %1292, %1292 : vector<8x2xf32>
    %cst_206 = arith.constant dense<0.000000e+00> : vector<8xf32>
    %1298 = vector.multi_reduction <add>, %1297, %cst_206 [1] : vector<8x2xf32> to vector<8xf32>
    %1299 = vector.shape_cast %1298 : vector<8xf32> to vector<8x1xf32>
    %cst_207 = arith.constant 5.000000e-01 : f32
    %1300 = vector.broadcast %cst_207 : f32 to vector<8x1xf32>
    %1301 = arith.mulf %1300, %1299 : vector<8x1xf32>
    %cst_208 = arith.constant 6.000000e+00 : f32
    %1302 = arith.divf %916, %cst_208 : f32
    %1303 = arith.addf %1147, %1220 : vector<8x2xf32>
    %cst_209 = arith.constant 2.000000e+00 : f32
    %1304 = vector.broadcast %cst_209 : f32 to vector<8x2xf32>
    %1305 = arith.mulf %1304, %1303 : vector<8x2xf32>
    %1306 = arith.addf %1074, %1305 : vector<8x2xf32>
    %1307 = arith.addf %1306, %1292 : vector<8x2xf32>
    %1308 = vector.broadcast %1302 : f32 to vector<8x2xf32>
    %1309 = arith.mulf %1308, %1307 : vector<8x2xf32>
    %1310 = arith.addf %894, %1309 : vector<8x2xf32>
    %1311 = arith.addf %1151, %1224 : vector<8x1xf32>
    %cst_210 = arith.constant 2.000000e+00 : f32
    %1312 = vector.broadcast %cst_210 : f32 to vector<8x1xf32>
    %1313 = arith.mulf %1312, %1311 : vector<8x1xf32>
    %1314 = arith.addf %1078, %1313 : vector<8x1xf32>
    %1315 = arith.addf %1314, %1296 : vector<8x1xf32>
    %1316 = vector.broadcast %1302 : f32 to vector<8x1xf32>
    %1317 = arith.mulf %1316, %1315 : vector<8x1xf32>
    %1318 = arith.addf %902, %1317 : vector<8x1xf32>
    %1319 = arith.addf %1156, %1229 : vector<8x1xf32>
    %cst_211 = arith.constant 2.000000e+00 : f32
    %1320 = vector.broadcast %cst_211 : f32 to vector<8x1xf32>
    %1321 = arith.mulf %1320, %1319 : vector<8x1xf32>
    %1322 = arith.addf %1083, %1321 : vector<8x1xf32>
    %1323 = arith.addf %1322, %1301 : vector<8x1xf32>
    %1324 = vector.broadcast %1302 : f32 to vector<8x1xf32>
    %1325 = arith.mulf %1324, %1323 : vector<8x1xf32>
    %1326 = arith.addf %910, %1325 : vector<8x1xf32>
    %c3_212 = arith.constant 3 : index
    %c0_213 = arith.constant 0 : index
    %c0_214 = arith.constant 0 : index
    %1327 = vector.load %arg23[%c3_212, %c0_213, %c0_214] : memref<5x8x2xf32, #tpu.memory_space<vmem>>, vector<1x8x2xf32>
    %1328 = vector.shape_cast %1327 : vector<1x8x2xf32> to vector<8x2xf32>
    %1329 = vector.shape_cast %1310 : vector<8x2xf32> to vector<1x8x2xf32>
    tpu.vector_store %arg23[%c3_212, %c0_213, %c0_214], %1329 {strides = array<i32>} : memref<5x8x2xf32, #tpu.memory_space<vmem>>, vector<1x8x2xf32>,
    %c3_215 = arith.constant 3 : index
    %1330 = memref.load %arg1[%c3_215] : memref<5xf32, #tpu.memory_space<smem>>
    %c4 = arith.constant 4 : index
    %1331 = memref.load %arg1[%c4] : memref<5xf32, #tpu.memory_space<smem>>
    %1332 = arith.subf %1331, %1330 : f32
    %cst_216 = arith.constant 5.000000e-01 : f32
    %1333 = arith.mulf %cst_216, %1332 : f32
    %1334 = arith.addf %1330, %1333 : f32
    %1335 = vector.broadcast %1334 : f32 to vector<1x32xf32>
    %1336 = arith.mulf %1335, %2 : vector<1x32xf32>
    %1337 = arith.addf %1336, %3 : vector<1x32xf32>
    %1338 = arith.negf %1337 : vector<1x32xf32>
    %1339 = math.exp %1338 : vector<1x32xf32>
    %cst_217 = arith.constant 1.000000e+00 : f32
    %1340 = vector.broadcast %cst_217 : f32 to vector<1x32xf32>
    %1341 = arith.addf %1340, %1339 : vector<1x32xf32>
    %1342 = arith.divf %1340, %1341 : vector<1x32xf32>
    %1343 = arith.mulf %1, %1342 : vector<1x32xf32>
    %1344 = vector.broadcast %1334 : f32 to vector<1x32xf32>
    %1345 = arith.mulf %1344, %4 : vector<1x32xf32>
    %1346 = arith.addf %1343, %1345 : vector<1x32xf32>
    %1347 = vector.broadcast %1334 : f32 to vector<1x32xf32>
    %1348 = arith.mulf %1347, %7 : vector<1x32xf32>
    %1349 = arith.addf %1348, %8 : vector<1x32xf32>
    %1350 = arith.negf %1349 : vector<1x32xf32>
    %1351 = math.exp %1350 : vector<1x32xf32>
    %cst_218 = arith.constant 1.000000e+00 : f32
    %1352 = vector.broadcast %cst_218 : f32 to vector<1x32xf32>
    %1353 = arith.addf %1352, %1351 : vector<1x32xf32>
    %1354 = arith.divf %1352, %1353 : vector<1x32xf32>
    %1355 = arith.mulf %6, %1354 : vector<1x32xf32>
    %1356 = vector.broadcast %1334 : f32 to vector<1x32xf32>
    %1357 = arith.mulf %1356, %9 : vector<1x32xf32>
    %1358 = arith.addf %1355, %1357 : vector<1x32xf32>
    %1359 = vector.broadcast %1334 : f32 to vector<1x32xf32>
    %1360 = arith.mulf %1359, %12 : vector<1x32xf32>
    %1361 = arith.addf %1360, %13 : vector<1x32xf32>
    %1362 = arith.negf %1361 : vector<1x32xf32>
    %1363 = math.exp %1362 : vector<1x32xf32>
    %cst_219 = arith.constant 1.000000e+00 : f32
    %1364 = vector.broadcast %cst_219 : f32 to vector<1x32xf32>
    %1365 = arith.addf %1364, %1363 : vector<1x32xf32>
    %1366 = arith.divf %1364, %1365 : vector<1x32xf32>
    %1367 = arith.mulf %11, %1366 : vector<1x32xf32>
    %1368 = vector.broadcast %1334 : f32 to vector<1x32xf32>
    %1369 = arith.mulf %1368, %14 : vector<1x32xf32>
    %1370 = arith.addf %1367, %1369 : vector<1x32xf32>
    %1371 = vector.broadcast %1334 : f32 to vector<1x2xf32>
    %1372 = arith.mulf %1371, %17 : vector<1x2xf32>
    %1373 = arith.addf %1372, %18 : vector<1x2xf32>
    %1374 = arith.negf %1373 : vector<1x2xf32>
    %1375 = math.exp %1374 : vector<1x2xf32>
    %cst_220 = arith.constant 1.000000e+00 : f32
    %1376 = vector.broadcast %cst_220 : f32 to vector<1x2xf32>
    %1377 = arith.addf %1376, %1375 : vector<1x2xf32>
    %1378 = arith.divf %1376, %1377 : vector<1x2xf32>
    %1379 = arith.mulf %16, %1378 : vector<1x2xf32>
    %1380 = vector.broadcast %1334 : f32 to vector<1x2xf32>
    %1381 = arith.mulf %1380, %19 : vector<1x2xf32>
    %1382 = arith.addf %1379, %1381 : vector<1x2xf32>
    %1383 = vector.broadcast %1331 : f32 to vector<1x32xf32>
    %1384 = arith.mulf %1383, %2 : vector<1x32xf32>
    %1385 = arith.addf %1384, %3 : vector<1x32xf32>
    %1386 = arith.negf %1385 : vector<1x32xf32>
    %1387 = math.exp %1386 : vector<1x32xf32>
    %cst_221 = arith.constant 1.000000e+00 : f32
    %1388 = vector.broadcast %cst_221 : f32 to vector<1x32xf32>
    %1389 = arith.addf %1388, %1387 : vector<1x32xf32>
    %1390 = arith.divf %1388, %1389 : vector<1x32xf32>
    %1391 = arith.mulf %1, %1390 : vector<1x32xf32>
    %1392 = vector.broadcast %1331 : f32 to vector<1x32xf32>
    %1393 = arith.mulf %1392, %4 : vector<1x32xf32>
    %1394 = arith.addf %1391, %1393 : vector<1x32xf32>
    %1395 = vector.broadcast %1331 : f32 to vector<1x32xf32>
    %1396 = arith.mulf %1395, %7 : vector<1x32xf32>
    %1397 = arith.addf %1396, %8 : vector<1x32xf32>
    %1398 = arith.negf %1397 : vector<1x32xf32>
    %1399 = math.exp %1398 : vector<1x32xf32>
    %cst_222 = arith.constant 1.000000e+00 : f32
    %1400 = vector.broadcast %cst_222 : f32 to vector<1x32xf32>
    %1401 = arith.addf %1400, %1399 : vector<1x32xf32>
    %1402 = arith.divf %1400, %1401 : vector<1x32xf32>
    %1403 = arith.mulf %6, %1402 : vector<1x32xf32>
    %1404 = vector.broadcast %1331 : f32 to vector<1x32xf32>
    %1405 = arith.mulf %1404, %9 : vector<1x32xf32>
    %1406 = arith.addf %1403, %1405 : vector<1x32xf32>
    %1407 = vector.broadcast %1331 : f32 to vector<1x32xf32>
    %1408 = arith.mulf %1407, %12 : vector<1x32xf32>
    %1409 = arith.addf %1408, %13 : vector<1x32xf32>
    %1410 = arith.negf %1409 : vector<1x32xf32>
    %1411 = math.exp %1410 : vector<1x32xf32>
    %cst_223 = arith.constant 1.000000e+00 : f32
    %1412 = vector.broadcast %cst_223 : f32 to vector<1x32xf32>
    %1413 = arith.addf %1412, %1411 : vector<1x32xf32>
    %1414 = arith.divf %1412, %1413 : vector<1x32xf32>
    %1415 = arith.mulf %11, %1414 : vector<1x32xf32>
    %1416 = vector.broadcast %1331 : f32 to vector<1x32xf32>
    %1417 = arith.mulf %1416, %14 : vector<1x32xf32>
    %1418 = arith.addf %1415, %1417 : vector<1x32xf32>
    %1419 = vector.broadcast %1331 : f32 to vector<1x2xf32>
    %1420 = arith.mulf %1419, %17 : vector<1x2xf32>
    %1421 = arith.addf %1420, %18 : vector<1x2xf32>
    %1422 = arith.negf %1421 : vector<1x2xf32>
    %1423 = math.exp %1422 : vector<1x2xf32>
    %cst_224 = arith.constant 1.000000e+00 : f32
    %1424 = vector.broadcast %cst_224 : f32 to vector<1x2xf32>
    %1425 = arith.addf %1424, %1423 : vector<1x2xf32>
    %1426 = arith.divf %1424, %1425 : vector<1x2xf32>
    %1427 = arith.mulf %16, %1426 : vector<1x2xf32>
    %1428 = vector.broadcast %1331 : f32 to vector<1x2xf32>
    %1429 = arith.mulf %1428, %19 : vector<1x2xf32>
    %1430 = arith.addf %1427, %1429 : vector<1x2xf32>
    %cst_225 = arith.constant dense<0.000000e+00> : vector<8x32xf32>
    %1431 = tpu.matmul %1310, %0, %cst_225 {dimension_numbers = #tpu.dot_dimension_numbers<[1], [0], [0], [1], [0, 0, 1, 1], [], []>} : vector<8x2xf32>, vector<2x32xf32>, vector<8x32xf32> -> vector<8x32xf32>
    %1432 = vector.broadcast %974 : vector<1x32xf32> to vector<8x32xf32>
    %1433 = arith.mulf %1431, %1432 : vector<8x32xf32>
    %1434 = vector.broadcast %978 : vector<1x32xf32> to vector<8x32xf32>
    %1435 = arith.addf %1433, %1434 : vector<8x32xf32>
    %1436 = math.tanh %1435 : vector<8x32xf32>
    %1437 = arith.mulf %1436, %1436 : vector<8x32xf32>
    %cst_226 = arith.constant 1.000000e+00 : f32
    %1438 = vector.broadcast %cst_226 : f32 to vector<8x32xf32>
    %1439 = arith.subf %1438, %1437 : vector<8x32xf32>
    %1440 = vector.broadcast %974 : vector<1x32xf32> to vector<8x32xf32>
    %1441 = arith.mulf %1440, %1439 : vector<8x32xf32>
    %1442 = vector.shape_cast %26 : vector<16x32xf32> to vector<2x8x32xf32>
    %1443 = vector.shape_cast %1441 : vector<8x32xf32> to vector<1x8x32xf32>
    %1444 = vector.broadcast %1443 : vector<1x8x32xf32> to vector<2x8x32xf32>
    %1445 = arith.mulf %1442, %1444 : vector<2x8x32xf32>
    %1446 = vector.shape_cast %1445 : vector<2x8x32xf32> to vector<16x32xf32>
    %1447 = tpu.concatenate %1436, %1446 in 0 : vector<8x32xf32>, vector<16x32xf32> -> vector<24x32xf32>
    %1448 = arith.truncf %1447 : vector<24x32xf32> to vector<24x32xbf16>
    %cst_227 = arith.constant dense<0.000000e+00> : vector<24x32xf32>
    %1449 = tpu.matmul %1448, %5, %cst_227 {dimension_numbers = #tpu.dot_dimension_numbers<[1], [0], [0], [1], [0, 0, 1, 1], [], []>} : vector<24x32xbf16>, vector<32x32xbf16>, vector<24x32xf32> -> vector<24x32xf32>
    %1450 = vector.broadcast %986 : vector<1x32xf32> to vector<24x32xf32>
    %1451 = arith.mulf %1449, %1450 : vector<24x32xf32>
    %1452 = vector.extract_strided_slice %1451 {offsets = [0, 0], sizes = [8, 32], strides = [1, 1]} : vector<24x32xf32> to vector<8x32xf32>
    %1453 = vector.broadcast %990 : vector<1x32xf32> to vector<8x32xf32>
    %1454 = arith.addf %1452, %1453 : vector<8x32xf32>
    %1455 = math.tanh %1454 : vector<8x32xf32>
    %1456 = arith.mulf %1455, %1455 : vector<8x32xf32>
    %cst_228 = arith.constant 1.000000e+00 : f32
    %1457 = vector.broadcast %cst_228 : f32 to vector<8x32xf32>
    %1458 = arith.subf %1457, %1456 : vector<8x32xf32>
    %1459 = vector.extract_strided_slice %1451 {offsets = [8, 0], sizes = [16, 32], strides = [1, 1]} : vector<24x32xf32> to vector<16x32xf32>
    %1460 = vector.shape_cast %1459 : vector<16x32xf32> to vector<2x8x32xf32>
    %1461 = vector.shape_cast %1458 : vector<8x32xf32> to vector<1x8x32xf32>
    %1462 = vector.broadcast %1461 : vector<1x8x32xf32> to vector<2x8x32xf32>
    %1463 = arith.mulf %1460, %1462 : vector<2x8x32xf32>
    %1464 = vector.shape_cast %1463 : vector<2x8x32xf32> to vector<16x32xf32>
    %1465 = tpu.concatenate %1455, %1464 in 0 : vector<8x32xf32>, vector<16x32xf32> -> vector<24x32xf32>
    %1466 = arith.truncf %1465 : vector<24x32xf32> to vector<24x32xbf16>
    %cst_229 = arith.constant dense<0.000000e+00> : vector<24x32xf32>
    %1467 = tpu.matmul %1466, %10, %cst_229 {dimension_numbers = #tpu.dot_dimension_numbers<[1], [0], [0], [1], [0, 0, 1, 1], [], []>} : vector<24x32xbf16>, vector<32x32xbf16>, vector<24x32xf32> -> vector<24x32xf32>
    %1468 = vector.broadcast %998 : vector<1x32xf32> to vector<24x32xf32>
    %1469 = arith.mulf %1467, %1468 : vector<24x32xf32>
    %1470 = vector.extract_strided_slice %1469 {offsets = [0, 0], sizes = [8, 32], strides = [1, 1]} : vector<24x32xf32> to vector<8x32xf32>
    %1471 = vector.broadcast %1002 : vector<1x32xf32> to vector<8x32xf32>
    %1472 = arith.addf %1470, %1471 : vector<8x32xf32>
    %1473 = math.tanh %1472 : vector<8x32xf32>
    %1474 = arith.mulf %1473, %1473 : vector<8x32xf32>
    %cst_230 = arith.constant 1.000000e+00 : f32
    %1475 = vector.broadcast %cst_230 : f32 to vector<8x32xf32>
    %1476 = arith.subf %1475, %1474 : vector<8x32xf32>
    %1477 = vector.extract_strided_slice %1469 {offsets = [8, 0], sizes = [16, 32], strides = [1, 1]} : vector<24x32xf32> to vector<16x32xf32>
    %1478 = vector.shape_cast %1477 : vector<16x32xf32> to vector<2x8x32xf32>
    %1479 = vector.shape_cast %1476 : vector<8x32xf32> to vector<1x8x32xf32>
    %1480 = vector.broadcast %1479 : vector<1x8x32xf32> to vector<2x8x32xf32>
    %1481 = arith.mulf %1478, %1480 : vector<2x8x32xf32>
    %1482 = vector.shape_cast %1481 : vector<2x8x32xf32> to vector<16x32xf32>
    %1483 = tpu.concatenate %1473, %1482 in 0 : vector<8x32xf32>, vector<16x32xf32> -> vector<24x32xf32>
    %1484 = arith.truncf %1483 : vector<24x32xf32> to vector<24x32xbf16>
    %cst_231 = arith.constant dense<0.000000e+00> : vector<24x2xf32>
    %1485 = tpu.matmul %1484, %15, %cst_231 {dimension_numbers = #tpu.dot_dimension_numbers<[1], [0], [0], [1], [0, 0, 1, 1], [], []>} : vector<24x32xbf16>, vector<32x2xbf16>, vector<24x2xf32> -> vector<24x2xf32>
    %1486 = vector.broadcast %1010 : vector<1x2xf32> to vector<24x2xf32>
    %1487 = arith.mulf %1485, %1486 : vector<24x2xf32>
    %1488 = vector.extract_strided_slice %1487 {offsets = [0, 0], sizes = [8, 2], strides = [1, 1]} : vector<24x2xf32> to vector<8x2xf32>
    %1489 = vector.broadcast %1014 : vector<1x2xf32> to vector<8x2xf32>
    %1490 = arith.addf %1488, %1489 : vector<8x2xf32>
    %1491 = vector.extract_strided_slice %1487 {offsets = [8, 0], sizes = [16, 2], strides = [1, 1]} : vector<24x2xf32> to vector<16x2xf32>
    %1492 = vector.extract_strided_slice %1491 {offsets = [0, 0], sizes = [8, 1], strides = [1, 1]} : vector<16x2xf32> to vector<8x1xf32>
    %1493 = vector.extract_strided_slice %1491 {offsets = [8, 1], sizes = [8, 1], strides = [1, 1]} : vector<16x2xf32> to vector<8x1xf32>
    %1494 = arith.addf %1492, %1493 : vector<8x1xf32>
    %1495 = arith.mulf %1490, %1490 : vector<8x2xf32>
    %cst_232 = arith.constant dense<0.000000e+00> : vector<8xf32>
    %1496 = vector.multi_reduction <add>, %1495, %cst_232 [1] : vector<8x2xf32> to vector<8xf32>
    %1497 = vector.shape_cast %1496 : vector<8xf32> to vector<8x1xf32>
    %cst_233 = arith.constant 5.000000e-01 : f32
    %1498 = vector.broadcast %cst_233 : f32 to vector<8x1xf32>
    %1499 = arith.mulf %1498, %1497 : vector<8x1xf32>
    %cst_234 = arith.constant 5.000000e-01 : f32
    %1500 = arith.mulf %cst_234, %1332 : f32
    %1501 = vector.broadcast %1500 : f32 to vector<8x2xf32>
    %1502 = arith.mulf %1501, %1490 : vector<8x2xf32>
    %1503 = arith.addf %1310, %1502 : vector<8x2xf32>
    %cst_235 = arith.constant dense<0.000000e+00> : vector<8x32xf32>
    %1504 = tpu.matmul %1503, %0, %cst_235 {dimension_numbers = #tpu.dot_dimension_numbers<[1], [0], [0], [1], [0, 0, 1, 1], [], []>} : vector<8x2xf32>, vector<2x32xf32>, vector<8x32xf32> -> vector<8x32xf32>
    %1505 = vector.broadcast %1342 : vector<1x32xf32> to vector<8x32xf32>
    %1506 = arith.mulf %1504, %1505 : vector<8x32xf32>
    %1507 = vector.broadcast %1346 : vector<1x32xf32> to vector<8x32xf32>
    %1508 = arith.addf %1506, %1507 : vector<8x32xf32>
    %1509 = math.tanh %1508 : vector<8x32xf32>
    %1510 = arith.mulf %1509, %1509 : vector<8x32xf32>
    %cst_236 = arith.constant 1.000000e+00 : f32
    %1511 = vector.broadcast %cst_236 : f32 to vector<8x32xf32>
    %1512 = arith.subf %1511, %1510 : vector<8x32xf32>
    %1513 = vector.broadcast %1342 : vector<1x32xf32> to vector<8x32xf32>
    %1514 = arith.mulf %1513, %1512 : vector<8x32xf32>
    %1515 = vector.shape_cast %26 : vector<16x32xf32> to vector<2x8x32xf32>
    %1516 = vector.shape_cast %1514 : vector<8x32xf32> to vector<1x8x32xf32>
    %1517 = vector.broadcast %1516 : vector<1x8x32xf32> to vector<2x8x32xf32>
    %1518 = arith.mulf %1515, %1517 : vector<2x8x32xf32>
    %1519 = vector.shape_cast %1518 : vector<2x8x32xf32> to vector<16x32xf32>
    %1520 = tpu.concatenate %1509, %1519 in 0 : vector<8x32xf32>, vector<16x32xf32> -> vector<24x32xf32>
    %1521 = arith.truncf %1520 : vector<24x32xf32> to vector<24x32xbf16>
    %cst_237 = arith.constant dense<0.000000e+00> : vector<24x32xf32>
    %1522 = tpu.matmul %1521, %5, %cst_237 {dimension_numbers = #tpu.dot_dimension_numbers<[1], [0], [0], [1], [0, 0, 1, 1], [], []>} : vector<24x32xbf16>, vector<32x32xbf16>, vector<24x32xf32> -> vector<24x32xf32>
    %1523 = vector.broadcast %1354 : vector<1x32xf32> to vector<24x32xf32>
    %1524 = arith.mulf %1522, %1523 : vector<24x32xf32>
    %1525 = vector.extract_strided_slice %1524 {offsets = [0, 0], sizes = [8, 32], strides = [1, 1]} : vector<24x32xf32> to vector<8x32xf32>
    %1526 = vector.broadcast %1358 : vector<1x32xf32> to vector<8x32xf32>
    %1527 = arith.addf %1525, %1526 : vector<8x32xf32>
    %1528 = math.tanh %1527 : vector<8x32xf32>
    %1529 = arith.mulf %1528, %1528 : vector<8x32xf32>
    %cst_238 = arith.constant 1.000000e+00 : f32
    %1530 = vector.broadcast %cst_238 : f32 to vector<8x32xf32>
    %1531 = arith.subf %1530, %1529 : vector<8x32xf32>
    %1532 = vector.extract_strided_slice %1524 {offsets = [8, 0], sizes = [16, 32], strides = [1, 1]} : vector<24x32xf32> to vector<16x32xf32>
    %1533 = vector.shape_cast %1532 : vector<16x32xf32> to vector<2x8x32xf32>
    %1534 = vector.shape_cast %1531 : vector<8x32xf32> to vector<1x8x32xf32>
    %1535 = vector.broadcast %1534 : vector<1x8x32xf32> to vector<2x8x32xf32>
    %1536 = arith.mulf %1533, %1535 : vector<2x8x32xf32>
    %1537 = vector.shape_cast %1536 : vector<2x8x32xf32> to vector<16x32xf32>
    %1538 = tpu.concatenate %1528, %1537 in 0 : vector<8x32xf32>, vector<16x32xf32> -> vector<24x32xf32>
    %1539 = arith.truncf %1538 : vector<24x32xf32> to vector<24x32xbf16>
    %cst_239 = arith.constant dense<0.000000e+00> : vector<24x32xf32>
    %1540 = tpu.matmul %1539, %10, %cst_239 {dimension_numbers = #tpu.dot_dimension_numbers<[1], [0], [0], [1], [0, 0, 1, 1], [], []>} : vector<24x32xbf16>, vector<32x32xbf16>, vector<24x32xf32> -> vector<24x32xf32>
    %1541 = vector.broadcast %1366 : vector<1x32xf32> to vector<24x32xf32>
    %1542 = arith.mulf %1540, %1541 : vector<24x32xf32>
    %1543 = vector.extract_strided_slice %1542 {offsets = [0, 0], sizes = [8, 32], strides = [1, 1]} : vector<24x32xf32> to vector<8x32xf32>
    %1544 = vector.broadcast %1370 : vector<1x32xf32> to vector<8x32xf32>
    %1545 = arith.addf %1543, %1544 : vector<8x32xf32>
    %1546 = math.tanh %1545 : vector<8x32xf32>
    %1547 = arith.mulf %1546, %1546 : vector<8x32xf32>
    %cst_240 = arith.constant 1.000000e+00 : f32
    %1548 = vector.broadcast %cst_240 : f32 to vector<8x32xf32>
    %1549 = arith.subf %1548, %1547 : vector<8x32xf32>
    %1550 = vector.extract_strided_slice %1542 {offsets = [8, 0], sizes = [16, 32], strides = [1, 1]} : vector<24x32xf32> to vector<16x32xf32>
    %1551 = vector.shape_cast %1550 : vector<16x32xf32> to vector<2x8x32xf32>
    %1552 = vector.shape_cast %1549 : vector<8x32xf32> to vector<1x8x32xf32>
    %1553 = vector.broadcast %1552 : vector<1x8x32xf32> to vector<2x8x32xf32>
    %1554 = arith.mulf %1551, %1553 : vector<2x8x32xf32>
    %1555 = vector.shape_cast %1554 : vector<2x8x32xf32> to vector<16x32xf32>
    %1556 = tpu.concatenate %1546, %1555 in 0 : vector<8x32xf32>, vector<16x32xf32> -> vector<24x32xf32>
    %1557 = arith.truncf %1556 : vector<24x32xf32> to vector<24x32xbf16>
    %cst_241 = arith.constant dense<0.000000e+00> : vector<24x2xf32>
    %1558 = tpu.matmul %1557, %15, %cst_241 {dimension_numbers = #tpu.dot_dimension_numbers<[1], [0], [0], [1], [0, 0, 1, 1], [], []>} : vector<24x32xbf16>, vector<32x2xbf16>, vector<24x2xf32> -> vector<24x2xf32>
    %1559 = vector.broadcast %1378 : vector<1x2xf32> to vector<24x2xf32>
    %1560 = arith.mulf %1558, %1559 : vector<24x2xf32>
    %1561 = vector.extract_strided_slice %1560 {offsets = [0, 0], sizes = [8, 2], strides = [1, 1]} : vector<24x2xf32> to vector<8x2xf32>
    %1562 = vector.broadcast %1382 : vector<1x2xf32> to vector<8x2xf32>
    %1563 = arith.addf %1561, %1562 : vector<8x2xf32>
    %1564 = vector.extract_strided_slice %1560 {offsets = [8, 0], sizes = [16, 2], strides = [1, 1]} : vector<24x2xf32> to vector<16x2xf32>
    %1565 = vector.extract_strided_slice %1564 {offsets = [0, 0], sizes = [8, 1], strides = [1, 1]} : vector<16x2xf32> to vector<8x1xf32>
    %1566 = vector.extract_strided_slice %1564 {offsets = [8, 1], sizes = [8, 1], strides = [1, 1]} : vector<16x2xf32> to vector<8x1xf32>
    %1567 = arith.addf %1565, %1566 : vector<8x1xf32>
    %1568 = arith.mulf %1563, %1563 : vector<8x2xf32>
    %cst_242 = arith.constant dense<0.000000e+00> : vector<8xf32>
    %1569 = vector.multi_reduction <add>, %1568, %cst_242 [1] : vector<8x2xf32> to vector<8xf32>
    %1570 = vector.shape_cast %1569 : vector<8xf32> to vector<8x1xf32>
    %cst_243 = arith.constant 5.000000e-01 : f32
    %1571 = vector.broadcast %cst_243 : f32 to vector<8x1xf32>
    %1572 = arith.mulf %1571, %1570 : vector<8x1xf32>
    %cst_244 = arith.constant 5.000000e-01 : f32
    %1573 = arith.mulf %cst_244, %1332 : f32
    %1574 = vector.broadcast %1573 : f32 to vector<8x2xf32>
    %1575 = arith.mulf %1574, %1563 : vector<8x2xf32>
    %1576 = arith.addf %1310, %1575 : vector<8x2xf32>
    %cst_245 = arith.constant dense<0.000000e+00> : vector<8x32xf32>
    %1577 = tpu.matmul %1576, %0, %cst_245 {dimension_numbers = #tpu.dot_dimension_numbers<[1], [0], [0], [1], [0, 0, 1, 1], [], []>} : vector<8x2xf32>, vector<2x32xf32>, vector<8x32xf32> -> vector<8x32xf32>
    %1578 = vector.broadcast %1342 : vector<1x32xf32> to vector<8x32xf32>
    %1579 = arith.mulf %1577, %1578 : vector<8x32xf32>
    %1580 = vector.broadcast %1346 : vector<1x32xf32> to vector<8x32xf32>
    %1581 = arith.addf %1579, %1580 : vector<8x32xf32>
    %1582 = math.tanh %1581 : vector<8x32xf32>
    %1583 = arith.mulf %1582, %1582 : vector<8x32xf32>
    %cst_246 = arith.constant 1.000000e+00 : f32
    %1584 = vector.broadcast %cst_246 : f32 to vector<8x32xf32>
    %1585 = arith.subf %1584, %1583 : vector<8x32xf32>
    %1586 = vector.broadcast %1342 : vector<1x32xf32> to vector<8x32xf32>
    %1587 = arith.mulf %1586, %1585 : vector<8x32xf32>
    %1588 = vector.shape_cast %26 : vector<16x32xf32> to vector<2x8x32xf32>
    %1589 = vector.shape_cast %1587 : vector<8x32xf32> to vector<1x8x32xf32>
    %1590 = vector.broadcast %1589 : vector<1x8x32xf32> to vector<2x8x32xf32>
    %1591 = arith.mulf %1588, %1590 : vector<2x8x32xf32>
    %1592 = vector.shape_cast %1591 : vector<2x8x32xf32> to vector<16x32xf32>
    %1593 = tpu.concatenate %1582, %1592 in 0 : vector<8x32xf32>, vector<16x32xf32> -> vector<24x32xf32>
    %1594 = arith.truncf %1593 : vector<24x32xf32> to vector<24x32xbf16>
    %cst_247 = arith.constant dense<0.000000e+00> : vector<24x32xf32>
    %1595 = tpu.matmul %1594, %5, %cst_247 {dimension_numbers = #tpu.dot_dimension_numbers<[1], [0], [0], [1], [0, 0, 1, 1], [], []>} : vector<24x32xbf16>, vector<32x32xbf16>, vector<24x32xf32> -> vector<24x32xf32>
    %1596 = vector.broadcast %1354 : vector<1x32xf32> to vector<24x32xf32>
    %1597 = arith.mulf %1595, %1596 : vector<24x32xf32>
    %1598 = vector.extract_strided_slice %1597 {offsets = [0, 0], sizes = [8, 32], strides = [1, 1]} : vector<24x32xf32> to vector<8x32xf32>
    %1599 = vector.broadcast %1358 : vector<1x32xf32> to vector<8x32xf32>
    %1600 = arith.addf %1598, %1599 : vector<8x32xf32>
    %1601 = math.tanh %1600 : vector<8x32xf32>
    %1602 = arith.mulf %1601, %1601 : vector<8x32xf32>
    %cst_248 = arith.constant 1.000000e+00 : f32
    %1603 = vector.broadcast %cst_248 : f32 to vector<8x32xf32>
    %1604 = arith.subf %1603, %1602 : vector<8x32xf32>
    %1605 = vector.extract_strided_slice %1597 {offsets = [8, 0], sizes = [16, 32], strides = [1, 1]} : vector<24x32xf32> to vector<16x32xf32>
    %1606 = vector.shape_cast %1605 : vector<16x32xf32> to vector<2x8x32xf32>
    %1607 = vector.shape_cast %1604 : vector<8x32xf32> to vector<1x8x32xf32>
    %1608 = vector.broadcast %1607 : vector<1x8x32xf32> to vector<2x8x32xf32>
    %1609 = arith.mulf %1606, %1608 : vector<2x8x32xf32>
    %1610 = vector.shape_cast %1609 : vector<2x8x32xf32> to vector<16x32xf32>
    %1611 = tpu.concatenate %1601, %1610 in 0 : vector<8x32xf32>, vector<16x32xf32> -> vector<24x32xf32>
    %1612 = arith.truncf %1611 : vector<24x32xf32> to vector<24x32xbf16>
    %cst_249 = arith.constant dense<0.000000e+00> : vector<24x32xf32>
    %1613 = tpu.matmul %1612, %10, %cst_249 {dimension_numbers = #tpu.dot_dimension_numbers<[1], [0], [0], [1], [0, 0, 1, 1], [], []>} : vector<24x32xbf16>, vector<32x32xbf16>, vector<24x32xf32> -> vector<24x32xf32>
    %1614 = vector.broadcast %1366 : vector<1x32xf32> to vector<24x32xf32>
    %1615 = arith.mulf %1613, %1614 : vector<24x32xf32>
    %1616 = vector.extract_strided_slice %1615 {offsets = [0, 0], sizes = [8, 32], strides = [1, 1]} : vector<24x32xf32> to vector<8x32xf32>
    %1617 = vector.broadcast %1370 : vector<1x32xf32> to vector<8x32xf32>
    %1618 = arith.addf %1616, %1617 : vector<8x32xf32>
    %1619 = math.tanh %1618 : vector<8x32xf32>
    %1620 = arith.mulf %1619, %1619 : vector<8x32xf32>
    %cst_250 = arith.constant 1.000000e+00 : f32
    %1621 = vector.broadcast %cst_250 : f32 to vector<8x32xf32>
    %1622 = arith.subf %1621, %1620 : vector<8x32xf32>
    %1623 = vector.extract_strided_slice %1615 {offsets = [8, 0], sizes = [16, 32], strides = [1, 1]} : vector<24x32xf32> to vector<16x32xf32>
    %1624 = vector.shape_cast %1623 : vector<16x32xf32> to vector<2x8x32xf32>
    %1625 = vector.shape_cast %1622 : vector<8x32xf32> to vector<1x8x32xf32>
    %1626 = vector.broadcast %1625 : vector<1x8x32xf32> to vector<2x8x32xf32>
    %1627 = arith.mulf %1624, %1626 : vector<2x8x32xf32>
    %1628 = vector.shape_cast %1627 : vector<2x8x32xf32> to vector<16x32xf32>
    %1629 = tpu.concatenate %1619, %1628 in 0 : vector<8x32xf32>, vector<16x32xf32> -> vector<24x32xf32>
    %1630 = arith.truncf %1629 : vector<24x32xf32> to vector<24x32xbf16>
    %cst_251 = arith.constant dense<0.000000e+00> : vector<24x2xf32>
    %1631 = tpu.matmul %1630, %15, %cst_251 {dimension_numbers = #tpu.dot_dimension_numbers<[1], [0], [0], [1], [0, 0, 1, 1], [], []>} : vector<24x32xbf16>, vector<32x2xbf16>, vector<24x2xf32> -> vector<24x2xf32>
    %1632 = vector.broadcast %1378 : vector<1x2xf32> to vector<24x2xf32>
    %1633 = arith.mulf %1631, %1632 : vector<24x2xf32>
    %1634 = vector.extract_strided_slice %1633 {offsets = [0, 0], sizes = [8, 2], strides = [1, 1]} : vector<24x2xf32> to vector<8x2xf32>
    %1635 = vector.broadcast %1382 : vector<1x2xf32> to vector<8x2xf32>
    %1636 = arith.addf %1634, %1635 : vector<8x2xf32>
    %1637 = vector.extract_strided_slice %1633 {offsets = [8, 0], sizes = [16, 2], strides = [1, 1]} : vector<24x2xf32> to vector<16x2xf32>
    %1638 = vector.extract_strided_slice %1637 {offsets = [0, 0], sizes = [8, 1], strides = [1, 1]} : vector<16x2xf32> to vector<8x1xf32>
    %1639 = vector.extract_strided_slice %1637 {offsets = [8, 1], sizes = [8, 1], strides = [1, 1]} : vector<16x2xf32> to vector<8x1xf32>
    %1640 = arith.addf %1638, %1639 : vector<8x1xf32>
    %1641 = arith.mulf %1636, %1636 : vector<8x2xf32>
    %cst_252 = arith.constant dense<0.000000e+00> : vector<8xf32>
    %1642 = vector.multi_reduction <add>, %1641, %cst_252 [1] : vector<8x2xf32> to vector<8xf32>
    %1643 = vector.shape_cast %1642 : vector<8xf32> to vector<8x1xf32>
    %cst_253 = arith.constant 5.000000e-01 : f32
    %1644 = vector.broadcast %cst_253 : f32 to vector<8x1xf32>
    %1645 = arith.mulf %1644, %1643 : vector<8x1xf32>
    %1646 = vector.broadcast %1332 : f32 to vector<8x2xf32>
    %1647 = arith.mulf %1646, %1636 : vector<8x2xf32>
    %1648 = arith.addf %1310, %1647 : vector<8x2xf32>
    %cst_254 = arith.constant dense<0.000000e+00> : vector<8x32xf32>
    %1649 = tpu.matmul %1648, %0, %cst_254 {dimension_numbers = #tpu.dot_dimension_numbers<[1], [0], [0], [1], [0, 0, 1, 1], [], []>} : vector<8x2xf32>, vector<2x32xf32>, vector<8x32xf32> -> vector<8x32xf32>
    %1650 = vector.broadcast %1390 : vector<1x32xf32> to vector<8x32xf32>
    %1651 = arith.mulf %1649, %1650 : vector<8x32xf32>
    %1652 = vector.broadcast %1394 : vector<1x32xf32> to vector<8x32xf32>
    %1653 = arith.addf %1651, %1652 : vector<8x32xf32>
    %1654 = math.tanh %1653 : vector<8x32xf32>
    %1655 = arith.mulf %1654, %1654 : vector<8x32xf32>
    %cst_255 = arith.constant 1.000000e+00 : f32
    %1656 = vector.broadcast %cst_255 : f32 to vector<8x32xf32>
    %1657 = arith.subf %1656, %1655 : vector<8x32xf32>
    %1658 = vector.broadcast %1390 : vector<1x32xf32> to vector<8x32xf32>
    %1659 = arith.mulf %1658, %1657 : vector<8x32xf32>
    %1660 = vector.shape_cast %26 : vector<16x32xf32> to vector<2x8x32xf32>
    %1661 = vector.shape_cast %1659 : vector<8x32xf32> to vector<1x8x32xf32>
    %1662 = vector.broadcast %1661 : vector<1x8x32xf32> to vector<2x8x32xf32>
    %1663 = arith.mulf %1660, %1662 : vector<2x8x32xf32>
    %1664 = vector.shape_cast %1663 : vector<2x8x32xf32> to vector<16x32xf32>
    %1665 = tpu.concatenate %1654, %1664 in 0 : vector<8x32xf32>, vector<16x32xf32> -> vector<24x32xf32>
    %1666 = arith.truncf %1665 : vector<24x32xf32> to vector<24x32xbf16>
    %cst_256 = arith.constant dense<0.000000e+00> : vector<24x32xf32>
    %1667 = tpu.matmul %1666, %5, %cst_256 {dimension_numbers = #tpu.dot_dimension_numbers<[1], [0], [0], [1], [0, 0, 1, 1], [], []>} : vector<24x32xbf16>, vector<32x32xbf16>, vector<24x32xf32> -> vector<24x32xf32>
    %1668 = vector.broadcast %1402 : vector<1x32xf32> to vector<24x32xf32>
    %1669 = arith.mulf %1667, %1668 : vector<24x32xf32>
    %1670 = vector.extract_strided_slice %1669 {offsets = [0, 0], sizes = [8, 32], strides = [1, 1]} : vector<24x32xf32> to vector<8x32xf32>
    %1671 = vector.broadcast %1406 : vector<1x32xf32> to vector<8x32xf32>
    %1672 = arith.addf %1670, %1671 : vector<8x32xf32>
    %1673 = math.tanh %1672 : vector<8x32xf32>
    %1674 = arith.mulf %1673, %1673 : vector<8x32xf32>
    %cst_257 = arith.constant 1.000000e+00 : f32
    %1675 = vector.broadcast %cst_257 : f32 to vector<8x32xf32>
    %1676 = arith.subf %1675, %1674 : vector<8x32xf32>
    %1677 = vector.extract_strided_slice %1669 {offsets = [8, 0], sizes = [16, 32], strides = [1, 1]} : vector<24x32xf32> to vector<16x32xf32>
    %1678 = vector.shape_cast %1677 : vector<16x32xf32> to vector<2x8x32xf32>
    %1679 = vector.shape_cast %1676 : vector<8x32xf32> to vector<1x8x32xf32>
    %1680 = vector.broadcast %1679 : vector<1x8x32xf32> to vector<2x8x32xf32>
    %1681 = arith.mulf %1678, %1680 : vector<2x8x32xf32>
    %1682 = vector.shape_cast %1681 : vector<2x8x32xf32> to vector<16x32xf32>
    %1683 = tpu.concatenate %1673, %1682 in 0 : vector<8x32xf32>, vector<16x32xf32> -> vector<24x32xf32>
    %1684 = arith.truncf %1683 : vector<24x32xf32> to vector<24x32xbf16>
    %cst_258 = arith.constant dense<0.000000e+00> : vector<24x32xf32>
    %1685 = tpu.matmul %1684, %10, %cst_258 {dimension_numbers = #tpu.dot_dimension_numbers<[1], [0], [0], [1], [0, 0, 1, 1], [], []>} : vector<24x32xbf16>, vector<32x32xbf16>, vector<24x32xf32> -> vector<24x32xf32>
    %1686 = vector.broadcast %1414 : vector<1x32xf32> to vector<24x32xf32>
    %1687 = arith.mulf %1685, %1686 : vector<24x32xf32>
    %1688 = vector.extract_strided_slice %1687 {offsets = [0, 0], sizes = [8, 32], strides = [1, 1]} : vector<24x32xf32> to vector<8x32xf32>
    %1689 = vector.broadcast %1418 : vector<1x32xf32> to vector<8x32xf32>
    %1690 = arith.addf %1688, %1689 : vector<8x32xf32>
    %1691 = math.tanh %1690 : vector<8x32xf32>
    %1692 = arith.mulf %1691, %1691 : vector<8x32xf32>
    %cst_259 = arith.constant 1.000000e+00 : f32
    %1693 = vector.broadcast %cst_259 : f32 to vector<8x32xf32>
    %1694 = arith.subf %1693, %1692 : vector<8x32xf32>
    %1695 = vector.extract_strided_slice %1687 {offsets = [8, 0], sizes = [16, 32], strides = [1, 1]} : vector<24x32xf32> to vector<16x32xf32>
    %1696 = vector.shape_cast %1695 : vector<16x32xf32> to vector<2x8x32xf32>
    %1697 = vector.shape_cast %1694 : vector<8x32xf32> to vector<1x8x32xf32>
    %1698 = vector.broadcast %1697 : vector<1x8x32xf32> to vector<2x8x32xf32>
    %1699 = arith.mulf %1696, %1698 : vector<2x8x32xf32>
    %1700 = vector.shape_cast %1699 : vector<2x8x32xf32> to vector<16x32xf32>
    %1701 = tpu.concatenate %1691, %1700 in 0 : vector<8x32xf32>, vector<16x32xf32> -> vector<24x32xf32>
    %1702 = arith.truncf %1701 : vector<24x32xf32> to vector<24x32xbf16>
    %cst_260 = arith.constant dense<0.000000e+00> : vector<24x2xf32>
    %1703 = tpu.matmul %1702, %15, %cst_260 {dimension_numbers = #tpu.dot_dimension_numbers<[1], [0], [0], [1], [0, 0, 1, 1], [], []>} : vector<24x32xbf16>, vector<32x2xbf16>, vector<24x2xf32> -> vector<24x2xf32>
    %1704 = vector.broadcast %1426 : vector<1x2xf32> to vector<24x2xf32>
    %1705 = arith.mulf %1703, %1704 : vector<24x2xf32>
    %1706 = vector.extract_strided_slice %1705 {offsets = [0, 0], sizes = [8, 2], strides = [1, 1]} : vector<24x2xf32> to vector<8x2xf32>
    %1707 = vector.broadcast %1430 : vector<1x2xf32> to vector<8x2xf32>
    %1708 = arith.addf %1706, %1707 : vector<8x2xf32>
    %1709 = vector.extract_strided_slice %1705 {offsets = [8, 0], sizes = [16, 2], strides = [1, 1]} : vector<24x2xf32> to vector<16x2xf32>
    %1710 = vector.extract_strided_slice %1709 {offsets = [0, 0], sizes = [8, 1], strides = [1, 1]} : vector<16x2xf32> to vector<8x1xf32>
    %1711 = vector.extract_strided_slice %1709 {offsets = [8, 1], sizes = [8, 1], strides = [1, 1]} : vector<16x2xf32> to vector<8x1xf32>
    %1712 = arith.addf %1710, %1711 : vector<8x1xf32>
    %1713 = arith.mulf %1708, %1708 : vector<8x2xf32>
    %cst_261 = arith.constant dense<0.000000e+00> : vector<8xf32>
    %1714 = vector.multi_reduction <add>, %1713, %cst_261 [1] : vector<8x2xf32> to vector<8xf32>
    %1715 = vector.shape_cast %1714 : vector<8xf32> to vector<8x1xf32>
    %cst_262 = arith.constant 5.000000e-01 : f32
    %1716 = vector.broadcast %cst_262 : f32 to vector<8x1xf32>
    %1717 = arith.mulf %1716, %1715 : vector<8x1xf32>
    %cst_263 = arith.constant 6.000000e+00 : f32
    %1718 = arith.divf %1332, %cst_263 : f32
    %1719 = arith.addf %1563, %1636 : vector<8x2xf32>
    %cst_264 = arith.constant 2.000000e+00 : f32
    %1720 = vector.broadcast %cst_264 : f32 to vector<8x2xf32>
    %1721 = arith.mulf %1720, %1719 : vector<8x2xf32>
    %1722 = arith.addf %1490, %1721 : vector<8x2xf32>
    %1723 = arith.addf %1722, %1708 : vector<8x2xf32>
    %1724 = vector.broadcast %1718 : f32 to vector<8x2xf32>
    %1725 = arith.mulf %1724, %1723 : vector<8x2xf32>
    %1726 = arith.addf %1310, %1725 : vector<8x2xf32>
    %1727 = arith.addf %1567, %1640 : vector<8x1xf32>
    %cst_265 = arith.constant 2.000000e+00 : f32
    %1728 = vector.broadcast %cst_265 : f32 to vector<8x1xf32>
    %1729 = arith.mulf %1728, %1727 : vector<8x1xf32>
    %1730 = arith.addf %1494, %1729 : vector<8x1xf32>
    %1731 = arith.addf %1730, %1712 : vector<8x1xf32>
    %1732 = vector.broadcast %1718 : f32 to vector<8x1xf32>
    %1733 = arith.mulf %1732, %1731 : vector<8x1xf32>
    %1734 = arith.addf %1318, %1733 : vector<8x1xf32>
    %1735 = arith.addf %1572, %1645 : vector<8x1xf32>
    %cst_266 = arith.constant 2.000000e+00 : f32
    %1736 = vector.broadcast %cst_266 : f32 to vector<8x1xf32>
    %1737 = arith.mulf %1736, %1735 : vector<8x1xf32>
    %1738 = arith.addf %1499, %1737 : vector<8x1xf32>
    %1739 = arith.addf %1738, %1717 : vector<8x1xf32>
    %1740 = vector.broadcast %1718 : f32 to vector<8x1xf32>
    %1741 = arith.mulf %1740, %1739 : vector<8x1xf32>
    %1742 = arith.addf %1326, %1741 : vector<8x1xf32>
    %c4_267 = arith.constant 4 : index
    %c0_268 = arith.constant 0 : index
    %c0_269 = arith.constant 0 : index
    %1743 = vector.load %arg23[%c4_267, %c0_268, %c0_269] : memref<5x8x2xf32, #tpu.memory_space<vmem>>, vector<1x8x2xf32>
    %1744 = vector.shape_cast %1743 : vector<1x8x2xf32> to vector<8x2xf32>
    %1745 = vector.shape_cast %1726 : vector<8x2xf32> to vector<1x8x2xf32>
    tpu.vector_store %arg23[%c4_267, %c0_268, %c0_269], %1745 {strides = array<i32>} : memref<5x8x2xf32, #tpu.memory_space<vmem>>, vector<1x8x2xf32>,
    %1746 = tpu.concatenate %1734, %1742 in 1 : vector<8x1xf32>, vector<8x1xf32> -> vector<8x2xf32>
    %c0_270 = arith.constant 0 : index
    %c0_271 = arith.constant 0 : index
    %1747 = vector.load %arg24[%c0_270, %c0_271] : memref<8x2xf32, #tpu.memory_space<vmem>>, vector<8x2xf32>
    tpu.vector_store %arg24[%c0_270, %c0_271], %1746 {strides = array<i32>} : memref<8x2xf32, #tpu.memory_space<vmem>>, vector<8x2xf32>,
    return
  }
  func.func @transform_0(%arg0: i32, %arg1: memref<5xf32, #tpu.memory_space<smem>>) -> (i32, i32) {
    %c0_i32 = arith.constant 0 : i32
    %c0_i32_0 = arith.constant 0 : i32
    return %arg0, %c0_i32 : i32, i32
  }
  func.func @transform_1(%arg0: i32, %arg1: memref<5xf32, #tpu.memory_space<smem>>) -> (i32, i32) {
    %c0_i32 = arith.constant 0 : i32
    %c0_i32_0 = arith.constant 0 : i32
    %c0_i32_1 = arith.constant 0 : i32
    return %c0_i32, %c0_i32_0 : i32, i32
  }
  func.func @transform_2(%arg0: i32, %arg1: memref<5xf32, #tpu.memory_space<smem>>) -> (i32, i32) {
    %c0_i32 = arith.constant 0 : i32
    %c0_i32_0 = arith.constant 0 : i32
    %c0_i32_1 = arith.constant 0 : i32
    return %c0_i32, %c0_i32_0 : i32, i32
  }
  func.func @transform_3(%arg0: i32, %arg1: memref<5xf32, #tpu.memory_space<smem>>) -> (i32, i32) {
    %c0_i32 = arith.constant 0 : i32
    %c0_i32_0 = arith.constant 0 : i32
    %c0_i32_1 = arith.constant 0 : i32
    return %c0_i32, %c0_i32_0 : i32, i32
  }
  func.func @transform_4(%arg0: i32, %arg1: memref<5xf32, #tpu.memory_space<smem>>) -> (i32, i32) {
    %c0_i32 = arith.constant 0 : i32
    %c0_i32_0 = arith.constant 0 : i32
    %c0_i32_1 = arith.constant 0 : i32
    return %c0_i32, %c0_i32_0 : i32, i32
  }
  func.func @transform_5(%arg0: i32, %arg1: memref<5xf32, #tpu.memory_space<smem>>) -> (i32, i32) {
    %c0_i32 = arith.constant 0 : i32
    %c0_i32_0 = arith.constant 0 : i32
    %c0_i32_1 = arith.constant 0 : i32
    return %c0_i32, %c0_i32_0 : i32, i32
  }
  func.func @transform_6(%arg0: i32, %arg1: memref<5xf32, #tpu.memory_space<smem>>) -> (i32, i32) {
    %c0_i32 = arith.constant 0 : i32
    %c0_i32_0 = arith.constant 0 : i32
    %c0_i32_1 = arith.constant 0 : i32
    return %c0_i32, %c0_i32_0 : i32, i32
  }
  func.func @transform_7(%arg0: i32, %arg1: memref<5xf32, #tpu.memory_space<smem>>) -> (i32, i32) {
    %c0_i32 = arith.constant 0 : i32
    %c0_i32_0 = arith.constant 0 : i32
    %c0_i32_1 = arith.constant 0 : i32
    return %c0_i32, %c0_i32_0 : i32, i32
  }
  func.func @transform_8(%arg0: i32, %arg1: memref<5xf32, #tpu.memory_space<smem>>) -> (i32, i32) {
    %c0_i32 = arith.constant 0 : i32
    %c0_i32_0 = arith.constant 0 : i32
    %c0_i32_1 = arith.constant 0 : i32
    return %c0_i32, %c0_i32_0 : i32, i32
  }
  func.func @transform_9(%arg0: i32, %arg1: memref<5xf32, #tpu.memory_space<smem>>) -> (i32, i32) {
    %c0_i32 = arith.constant 0 : i32
    %c0_i32_0 = arith.constant 0 : i32
    %c0_i32_1 = arith.constant 0 : i32
    return %c0_i32, %c0_i32_0 : i32, i32
  }
  func.func @transform_10(%arg0: i32, %arg1: memref<5xf32, #tpu.memory_space<smem>>) -> (i32, i32) {
    %c0_i32 = arith.constant 0 : i32
    %c0_i32_0 = arith.constant 0 : i32
    %c0_i32_1 = arith.constant 0 : i32
    return %c0_i32, %c0_i32_0 : i32, i32
  }
  func.func @transform_11(%arg0: i32, %arg1: memref<5xf32, #tpu.memory_space<smem>>) -> (i32, i32) {
    %c0_i32 = arith.constant 0 : i32
    %c0_i32_0 = arith.constant 0 : i32
    %c0_i32_1 = arith.constant 0 : i32
    return %c0_i32, %c0_i32_0 : i32, i32
  }
  func.func @transform_12(%arg0: i32, %arg1: memref<5xf32, #tpu.memory_space<smem>>) -> (i32, i32) {
    %c0_i32 = arith.constant 0 : i32
    %c0_i32_0 = arith.constant 0 : i32
    %c0_i32_1 = arith.constant 0 : i32
    return %c0_i32, %c0_i32_0 : i32, i32
  }
  func.func @transform_13(%arg0: i32, %arg1: memref<5xf32, #tpu.memory_space<smem>>) -> (i32, i32) {
    %c0_i32 = arith.constant 0 : i32
    %c0_i32_0 = arith.constant 0 : i32
    %c0_i32_1 = arith.constant 0 : i32
    return %c0_i32, %c0_i32_0 : i32, i32
  }
  func.func @transform_14(%arg0: i32, %arg1: memref<5xf32, #tpu.memory_space<smem>>) -> (i32, i32) {
    %c0_i32 = arith.constant 0 : i32
    %c0_i32_0 = arith.constant 0 : i32
    %c0_i32_1 = arith.constant 0 : i32
    return %c0_i32, %c0_i32_0 : i32, i32
  }
  func.func @transform_15(%arg0: i32, %arg1: memref<5xf32, #tpu.memory_space<smem>>) -> (i32, i32) {
    %c0_i32 = arith.constant 0 : i32
    %c0_i32_0 = arith.constant 0 : i32
    %c0_i32_1 = arith.constant 0 : i32
    return %c0_i32, %c0_i32_0 : i32, i32
  }
  func.func @transform_16(%arg0: i32, %arg1: memref<5xf32, #tpu.memory_space<smem>>) -> (i32, i32) {
    %c0_i32 = arith.constant 0 : i32
    %c0_i32_0 = arith.constant 0 : i32
    %c0_i32_1 = arith.constant 0 : i32
    return %c0_i32, %c0_i32_0 : i32, i32
  }
  func.func @transform_17(%arg0: i32, %arg1: memref<5xf32, #tpu.memory_space<smem>>) -> (i32, i32) {
    %c0_i32 = arith.constant 0 : i32
    %c0_i32_0 = arith.constant 0 : i32
    %c0_i32_1 = arith.constant 0 : i32
    return %c0_i32, %c0_i32_0 : i32, i32
  }
  func.func @transform_18(%arg0: i32, %arg1: memref<5xf32, #tpu.memory_space<smem>>) -> (i32, i32) {
    %c0_i32 = arith.constant 0 : i32
    %c0_i32_0 = arith.constant 0 : i32
    %c0_i32_1 = arith.constant 0 : i32
    return %c0_i32, %c0_i32_0 : i32, i32
  }
  func.func @transform_19(%arg0: i32, %arg1: memref<5xf32, #tpu.memory_space<smem>>) -> (i32, i32) {
    %c0_i32 = arith.constant 0 : i32
    %c0_i32_0 = arith.constant 0 : i32
    %c0_i32_1 = arith.constant 0 : i32
    return %c0_i32, %c0_i32_0 : i32, i32
  }
  func.func @transform_20(%arg0: i32, %arg1: memref<5xf32, #tpu.memory_space<smem>>) -> (i32, i32) {
    %c0_i32 = arith.constant 0 : i32
    %c0_i32_0 = arith.constant 0 : i32
    %c0_i32_1 = arith.constant 0 : i32
    return %c0_i32, %c0_i32_0 : i32, i32
  }
  func.func @transform_21(%arg0: i32, %arg1: memref<5xf32, #tpu.memory_space<smem>>) -> (i32, i32, i32) {
    %c0_i32 = arith.constant 0 : i32
    %c0_i32_0 = arith.constant 0 : i32
    %c0_i32_1 = arith.constant 0 : i32
    return %c0_i32, %arg0, %c0_i32_0 : i32, i32, i32
  }
  func.func @transform_22(%arg0: i32, %arg1: memref<5xf32, #tpu.memory_space<smem>>) -> (i32, i32) {
    %c0_i32 = arith.constant 0 : i32
    %c0_i32_0 = arith.constant 0 : i32
    return %arg0, %c0_i32 : i32, i32
  }
}

</mosaic_0001>

<llo_original>
// kernel: tpu_custom_call.1
$region0: #{tpu_custom_call.1}
  #allocation0 [shape = 'u32[]', space=smem, size = 0x4, offset = 0x4, fixed_abs, tag = 'smem constant byte address 0x4 - core index']
  #allocation1 [shape = 'u32[144,128]{1,0:T(1,128)}', space=vmem, size = 0x12000, scoped, tag = 'internal scratch']
  #allocation2 [shape = 's32[1]{0}', space=sflag, size = 0x4, scoped, tag = 'scoped memory for tpu_custom_call.1']
  #allocation3 [shape = 'u8[512]{0}', space=smem, size = 0x200, scoped, tag = 'prefetched SMEM operand 0']
  %s0 = inlined_call_operand.hbm [shape: f32[5], index: 0, kind: input, shape index: {}]
  %s1 = inlined_call_operand.vmem [shape: f32[8,2], index: 1, kind: input, shape index: {}]
  %s2 = inlined_call_operand.vmem [shape: f32[2,32], index: 2, kind: input, shape index: {}]
  %s3 = inlined_call_operand.vmem [shape: f32[1,32], index: 3, kind: input, shape index: {}]
  %s4 = inlined_call_operand.vmem [shape: f32[1,32], index: 4, kind: input, shape index: {}]
  %s5 = inlined_call_operand.vmem [shape: f32[1,32], index: 5, kind: input, shape index: {}]
  %s6 = inlined_call_operand.vmem [shape: f32[1,32], index: 6, kind: input, shape index: {}]
  %s7 = inlined_call_operand.vmem [shape: bf16[32,32], index: 7, kind: input, shape index: {}]
  %s8 = inlined_call_operand.vmem [shape: f32[1,32], index: 8, kind: input, shape index: {}]
  %s9 = inlined_call_operand.vmem [shape: f32[1,32], index: 9, kind: input, shape index: {}]
  %s10 = inlined_call_operand.vmem [shape: f32[1,32], index: 10, kind: input, shape index: {}]
  %s11 = inlined_call_operand.vmem [shape: f32[1,32], index: 11, kind: input, shape index: {}]
  %s12 = inlined_call_operand.vmem [shape: bf16[32,32], index: 12, kind: input, shape index: {}]
  %s13 = inlined_call_operand.vmem [shape: f32[1,32], index: 13, kind: input, shape index: {}]
  %s14 = inlined_call_operand.vmem [shape: f32[1,32], index: 14, kind: input, shape index: {}]
  %s15 = inlined_call_operand.vmem [shape: f32[1,32], index: 15, kind: input, shape index: {}]
  %s16 = inlined_call_operand.vmem [shape: f32[1,32], index: 16, kind: input, shape index: {}]
  %s17 = inlined_call_operand.vmem [shape: bf16[32,2], index: 17, kind: input, shape index: {}]
  %s18 = inlined_call_operand.vmem [shape: f32[1,2], index: 18, kind: input, shape index: {}]
  %s19 = inlined_call_operand.vmem [shape: f32[1,2], index: 19, kind: input, shape index: {}]
  %s20 = inlined_call_operand.vmem [shape: f32[1,2], index: 20, kind: input, shape index: {}]
  %s21 = inlined_call_operand.vmem [shape: f32[1,2], index: 21, kind: input, shape index: {}]
  %s22 = inlined_call_operand.vmem [shape: f32[5,8,2], index: 22, kind: output, shape index: {0}]
  %s23 = inlined_call_operand.vmem [shape: f32[8,2], index: 23, kind: output, shape index: {1}]
  %24 = xla_tuple %s22, %s23
  %s25 = sld [smem:[#allocation0]]
  $region102: #{tpu_custom_call.1} parent=0
    _
  %s27 = ssub.s32 1, %s25
  %s28 = scalar_select 0, %s27, %s25
  %30 = dma.hbm_to_smem %s0, 16, [#allocation3], [#allocation2]
  %31 = dma.done [#allocation2], 16
  %32 = sfence
  // Predicated region
  $region2: #{tpu_custom_call.1} parent=0 // pred_check
    _
  $region3: #{tpu_custom_call.1} parent=0 // pred_check_branch
    %34 = sbr.rel (0) target = $region5
  $region4: #{tpu_custom_call.1} parent=0 // pred_region
    _
  $region5: #{tpu_custom_call.1} parent=0 // pred_fallthru
    _
  // Predicated region
  $region6: #{tpu_custom_call.1} parent=0 // pred_check
    _
  $region7: #{tpu_custom_call.1} parent=0 // pred_check_branch
    %36 = sbr.rel (0) target = $region9
  $region8: #{tpu_custom_call.1} parent=0 // pred_region
    _
  $region9: #{tpu_custom_call.1} parent=0 // pred_fallthru
    _
  // Predicated region
  $region10: #{tpu_custom_call.1} parent=0 // pred_check
    _
  $region11: #{tpu_custom_call.1} parent=0 // pred_check_branch
    %38 = sbr.rel (0) target = $region13
  $region12: #{tpu_custom_call.1} parent=0 // pred_region
    _
  $region13: #{tpu_custom_call.1} parent=0 // pred_fallthru
    _
  // Predicated region
  $region14: #{tpu_custom_call.1} parent=0 // pred_check
    _
  $region15: #{tpu_custom_call.1} parent=0 // pred_check_branch
    %40 = sbr.rel (0) target = $region17
  $region16: #{tpu_custom_call.1} parent=0 // pred_region
    _
  $region17: #{tpu_custom_call.1} parent=0 // pred_fallthru
    _
  // Predicated region
  $region18: #{tpu_custom_call.1} parent=0 // pred_check
    _
  $region19: #{tpu_custom_call.1} parent=0 // pred_check_branch
    %42 = sbr.rel (0) target = $region21
  $region20: #{tpu_custom_call.1} parent=0 // pred_region
    _
  $region21: #{tpu_custom_call.1} parent=0 // pred_fallthru
    _
  // Predicated region
  $region22: #{tpu_custom_call.1} parent=0 // pred_check
    _
  $region23: #{tpu_custom_call.1} parent=0 // pred_check_branch
    %44 = sbr.rel (0) target = $region25
  $region24: #{tpu_custom_call.1} parent=0 // pred_region
    _
  $region25: #{tpu_custom_call.1} parent=0 // pred_fallthru
    _
  // Predicated region
  $region26: #{tpu_custom_call.1} parent=0 // pred_check
    _
  $region27: #{tpu_custom_call.1} parent=0 // pred_check_branch
    %46 = sbr.rel (0) target = $region29
  $region28: #{tpu_custom_call.1} parent=0 // pred_region
    _
  $region29: #{tpu_custom_call.1} parent=0 // pred_fallthru
    _
  // Predicated region
  $region30: #{tpu_custom_call.1} parent=0 // pred_check
    _
  $region31: #{tpu_custom_call.1} parent=0 // pred_check_branch
    %48 = sbr.rel (0) target = $region33
  $region32: #{tpu_custom_call.1} parent=0 // pred_region
    _
  $region33: #{tpu_custom_call.1} parent=0 // pred_fallthru
    _
  // Predicated region
  $region34: #{tpu_custom_call.1} parent=0 // pred_check
    _
  $region35: #{tpu_custom_call.1} parent=0 // pred_check_branch
    %50 = sbr.rel (0) target = $region37
  $region36: #{tpu_custom_call.1} parent=0 // pred_region
    _
  $region37: #{tpu_custom_call.1} parent=0 // pred_fallthru
    _
  // Predicated region
  $region38: #{tpu_custom_call.1} parent=0 // pred_check
    _
  $region39: #{tpu_custom_call.1} parent=0 // pred_check_branch
    %52 = sbr.rel (0) target = $region41
  $region40: #{tpu_custom_call.1} parent=0 // pred_region
    _
  $region41: #{tpu_custom_call.1} parent=0 // pred_fallthru
    _
  // Predicated region
  $region42: #{tpu_custom_call.1} parent=0 // pred_check
    _
  $region43: #{tpu_custom_call.1} parent=0 // pred_check_branch
    %54 = sbr.rel (0) target = $region45
  $region44: #{tpu_custom_call.1} parent=0 // pred_region
    _
  $region45: #{tpu_custom_call.1} parent=0 // pred_fallthru
    _
  // Predicated region
  $region46: #{tpu_custom_call.1} parent=0 // pred_check
    _
  $region47: #{tpu_custom_call.1} parent=0 // pred_check_branch
    %56 = sbr.rel (0) target = $region49
  $region48: #{tpu_custom_call.1} parent=0 // pred_region
    _
  $region49: #{tpu_custom_call.1} parent=0 // pred_fallthru
    _
  // Predicated region
  $region50: #{tpu_custom_call.1} parent=0 // pred_check
    _
  $region51: #{tpu_custom_call.1} parent=0 // pred_check_branch
    %58 = sbr.rel (0) target = $region53
  $region52: #{tpu_custom_call.1} parent=0 // pred_region
    _
  $region53: #{tpu_custom_call.1} parent=0 // pred_fallthru
    _
  // Predicated region
  $region54: #{tpu_custom_call.1} parent=0 // pred_check
    _
  $region55: #{tpu_custom_call.1} parent=0 // pred_check_branch
    %60 = sbr.rel (0) target = $region57
  $region56: #{tpu_custom_call.1} parent=0 // pred_region
    _
  $region57: #{tpu_custom_call.1} parent=0 // pred_fallthru
    _
  // Predicated region
  $region58: #{tpu_custom_call.1} parent=0 // pred_check
    _
  $region59: #{tpu_custom_call.1} parent=0 // pred_check_branch
    %62 = sbr.rel (0) target = $region61
  $region60: #{tpu_custom_call.1} parent=0 // pred_region
    _
  $region61: #{tpu_custom_call.1} parent=0 // pred_fallthru
    _
  // Predicated region
  $region62: #{tpu_custom_call.1} parent=0 // pred_check
    _
  $region63: #{tpu_custom_call.1} parent=0 // pred_check_branch
    %64 = sbr.rel (0) target = $region65
  $region64: #{tpu_custom_call.1} parent=0 // pred_region
    _
  $region65: #{tpu_custom_call.1} parent=0 // pred_fallthru
    _
  // Predicated region
  $region66: #{tpu_custom_call.1} parent=0 // pred_check
    _
  $region67: #{tpu_custom_call.1} parent=0 // pred_check_branch
    %66 = sbr.rel (0) target = $region69
  $region68: #{tpu_custom_call.1} parent=0 // pred_region
    _
  $region69: #{tpu_custom_call.1} parent=0 // pred_fallthru
    _
  // Predicated region
  $region70: #{tpu_custom_call.1} parent=0 // pred_check
    _
  $region71: #{tpu_custom_call.1} parent=0 // pred_check_branch
    %68 = sbr.rel (0) target = $region73
  $region72: #{tpu_custom_call.1} parent=0 // pred_region
    _
  $region73: #{tpu_custom_call.1} parent=0 // pred_fallthru
    _
  // Predicated region
  $region74: #{tpu_custom_call.1} parent=0 // pred_check
    _
  $region75: #{tpu_custom_call.1} parent=0 // pred_check_branch
    %70 = sbr.rel (0) target = $region77
  $region76: #{tpu_custom_call.1} parent=0 // pred_region
    _
  $region77: #{tpu_custom_call.1} parent=0 // pred_fallthru
    _
  // Predicated region
  $region78: #{tpu_custom_call.1} parent=0 // pred_check
    _
  $region79: #{tpu_custom_call.1} parent=0 // pred_check_branch
    %72 = sbr.rel (0) target = $region81
  $region80: #{tpu_custom_call.1} parent=0 // pred_region
    _
  $region81: #{tpu_custom_call.1} parent=0 // pred_fallthru
    _
  // Predicated region
  $region82: #{tpu_custom_call.1} parent=0 // pred_check
    _
  $region83: #{tpu_custom_call.1} parent=0 // pred_check_branch
    %74 = sbr.rel (0) target = $region85
  $region84: #{tpu_custom_call.1} parent=0 // pred_region
    _
  $region85: #{tpu_custom_call.1} parent=0 // pred_fallthru
    _
  %v76 = vld [vmem:[%s2] sm:$0x3]
  %v77 = vld [vmem:[%s3] sm:$0x1]
  %v78 = vld [vmem:[%s4] sm:$0x1]
  %v79 = vld [vmem:[%s5] sm:$0x1]
  %v80 = vld [vmem:[%s6] sm:$0x1]
  %v81 = vld [vmem:[%s7] sm:$0xf]
  %v82 = vld [vmem:[%s7 + $0x4] sm:$0xf]
  %v83 = vld [vmem:[%s7 + $0x8] sm:$0xf]
  %v84 = vld [vmem:[%s7 + $0xc] sm:$0xf]
  %v85 = vld [vmem:[%s8] sm:$0x1]
  %v86 = vld [vmem:[%s9] sm:$0x1]
  %v87 = vld [vmem:[%s10] sm:$0x1]
  %v88 = vld [vmem:[%s11] sm:$0x1]
  %v89 = vld [vmem:[%s12] sm:$0xf]
  %v90 = vld [vmem:[%s12 + $0x4] sm:$0xf]
  %v91 = vld [vmem:[%s12 + $0x8] sm:$0xf]
  %v92 = vld [vmem:[%s12 + $0xc] sm:$0xf]
  %v93 = vld [vmem:[%s13] sm:$0x1]
  %v94 = vld [vmem:[%s14] sm:$0x1]
  %v95 = vld [vmem:[%s15] sm:$0x1]
  %v96 = vld [vmem:[%s16] sm:$0x1]
  %v97 = vld [vmem:[%s17] sm:$0xf]
  %v98 = vld [vmem:[%s17 + $0x4] sm:$0xf]
  %v99 = vld [vmem:[%s17 + $0x8] sm:$0xf]
  %v100 = vld [vmem:[%s17 + $0xc] sm:$0xf]
  %v101 = vld [vmem:[%s18] sm:$0x1]
  %v102 = vld [vmem:[%s19] sm:$0x1]
  %v103 = vld [vmem:[%s20] sm:$0x1]
  %v104 = vld [vmem:[%s21] sm:$0x1]
  %v105 = vlaneseq
  %v106 = vshrl.u32 %v105, 7
  %v107 = vsub.s32 0, %v106
  %v108 = vrot.slane %v76, %v107
  %v109 = vlaneseq
  %v110 = vshrl.u32 %v109, 7
  %v111 = vsub.s32 1, %v110
  %v112 = vrot.slane %v76, %v111
  %v113 = vld [vmem:[%s1] sm:$0xff]
  %vm114 = vcmask 15360
  %115 = vst.msk [vmem:[%s22] sm:$0xff] %vm114, %v113
  %s116 = sld [smem:[#allocation3]]
  %v117 = vstv %s116
  %v118 = vmul.f32 %v117, %v78
  %v119 = vadd.f32 %v118, %v79
  %v120 = vxor.u32 %v119, 2147483648
  %v121 = vmul.f32 %v120, 1.442695
  %v122 = vpow.pop %v121
  %v123 = vadd.f32 %v122, 1.0
  %v124 = vrcp.pop %v123
  %v125 = vmul.f32 1.0, %v124
  %v126 = vmul.f32 %v77, %v125
  %v127 = vmul.f32 %v117, %v80
  %v128 = vadd.f32 %v126, %v127
  %v129 = vmul.f32 %v117, %v86
  %v130 = vadd.f32 %v129, %v87
  %v131 = vxor.u32 %v130, 2147483648
  %v132 = vmul.f32 %v131, 1.442695
  %v133 = vpow.pop %v132
  %v134 = vadd.f32 %v133, 1.0
  %v135 = vrcp.pop %v134
  %v136 = vmul.f32 1.0, %v135
  %v137 = vmul.f32 %v85, %v136
  %v138 = vmul.f32 %v117, %v88
  %v139 = vadd.f32 %v137, %v138
  %v140 = vmul.f32 %v117, %v94
  %v141 = vadd.f32 %v140, %v95
  %v142 = vxor.u32 %v141, 2147483648
  %v143 = vmul.f32 %v142, 1.442695
  %v144 = vpow.pop %v143
  %v145 = vadd.f32 %v144, 1.0
  %v146 = vrcp.pop %v145
  %v147 = vmul.f32 1.0, %v146
  %v148 = vmul.f32 %v93, %v147
  %v149 = vmul.f32 %v117, %v96
  %v150 = vadd.f32 %v148, %v149
  %v151 = vmul.f32 %v117, %v102
  %v152 = vadd.f32 %v151, %v103
  %v153 = vxor.u32 %v152, 2147483648
  %v154 = vmul.f32 %v153, 1.442695
  %v155 = vpow.pop %v154
  %v156 = vadd.f32 %v155, 1.0
  %v157 = vrcp.pop %v156
  %v158 = vmul.f32 1.0, %v157
  %v159 = vmul.f32 %v101, %v158
  %v160 = vmul.f32 %v117, %v104
  %v161 = vadd.f32 %v159, %v160
  %s162 = sld [smem:[#allocation3 + $0x1]]
  %s163 = ssub.f32 %s162, %s116
  %s164 = smul.f32 %s163, 0.5
  %s165 = sadd.f32 %s116, %s164
  %v166 = vstv %s165
  %v167 = vmul.f32 %v166, %v78
  %v168 = vadd.f32 %v167, %v79
  %v169 = vxor.u32 %v168, 2147483648
  %v170 = vmul.f32 %v169, 1.442695
  %v171 = vpow.pop %v170
  %v172 = vadd.f32 %v171, 1.0
  %v173 = vrcp.pop %v172
  %v174 = vmul.f32 1.0, %v173
  %v175 = vmul.f32 %v77, %v174
  %v176 = vmul.f32 %v166, %v80
  %v177 = vadd.f32 %v175, %v176
  %v178 = vmul.f32 %v166, %v86
  %v179 = vadd.f32 %v178, %v87
  %v180 = vxor.u32 %v179, 2147483648
  %v181 = vmul.f32 %v180, 1.442695
  %v182 = vpow.pop %v181
  %v183 = vadd.f32 %v182, 1.0
  %v184 = vrcp.pop %v183
  %v185 = vmul.f32 1.0, %v184
  %v186 = vmul.f32 %v85, %v185
  %v187 = vmul.f32 %v166, %v88
  %v188 = vadd.f32 %v186, %v187
  %v189 = vmul.f32 %v166, %v94
  %v190 = vadd.f32 %v189, %v95
  %v191 = vxor.u32 %v190, 2147483648
  %v192 = vmul.f32 %v191, 1.442695
  %v193 = vpow.pop %v192
  %v194 = vadd.f32 %v193, 1.0
  %v195 = vrcp.pop %v194
  %v196 = vmul.f32 1.0, %v195
  %v197 = vmul.f32 %v93, %v196
  %v198 = vmul.f32 %v166, %v96
  %v199 = vadd.f32 %v197, %v198
  %v200 = vmul.f32 %v166, %v102
  %v201 = vadd.f32 %v200, %v103
  %v202 = vxor.u32 %v201, 2147483648
  %v203 = vmul.f32 %v202, 1.442695
  %v204 = vpow.pop %v203
  %v205 = vadd.f32 %v204, 1.0
  %v206 = vrcp.pop %v205
  %v207 = vmul.f32 1.0, %v206
  %v208 = vmul.f32 %v101, %v207
  %v209 = vmul.f32 %v166, %v104
  %v210 = vadd.f32 %v208, %v209
  %v211 = vstv %s162
  %v212 = vmul.f32 %v211, %v78
  %v213 = vadd.f32 %v212, %v79
  %v214 = vxor.u32 %v213, 2147483648
  %v215 = vmul.f32 %v214, 1.442695
  %v216 = vpow.pop %v215
  %v217 = vadd.f32 %v216, 1.0
  %v218 = vrcp.pop %v217
  %v219 = vmul.f32 1.0, %v218
  %v220 = vmul.f32 %v77, %v219
  %v221 = vmul.f32 %v211, %v80
  %v222 = vadd.f32 %v220, %v221
  %v223 = vmul.f32 %v211, %v86
  %v224 = vadd.f32 %v223, %v87
  %v225 = vxor.u32 %v224, 2147483648
  %v226 = vmul.f32 %v225, 1.442695
  %v227 = vpow.pop %v226
  %v228 = vadd.f32 %v227, 1.0
  %v229 = vrcp.pop %v228
  %v230 = vmul.f32 1.0, %v229
  %v231 = vmul.f32 %v85, %v230
  %v232 = vmul.f32 %v211, %v88
  %v233 = vadd.f32 %v231, %v232
  %v234 = vmul.f32 %v211, %v94
  %v235 = vadd.f32 %v234, %v95
  %v236 = vxor.u32 %v235, 2147483648
  %v237 = vmul.f32 %v236, 1.442695
  %v238 = vpow.pop %v237
  %v239 = vadd.f32 %v238, 1.0
  %v240 = vrcp.pop %v239
  %v241 = vmul.f32 1.0, %v240
  %v242 = vmul.f32 %v93, %v241
  %v243 = vmul.f32 %v211, %v96
  %v244 = vadd.f32 %v242, %v243
  %v245 = vmul.f32 %v211, %v102
  %v246 = vadd.f32 %v245, %v103
  %v247 = vxor.u32 %v246, 2147483648
  %v248 = vmul.f32 %v247, 1.442695
  %v249 = vpow.pop %v248
  %v250 = vadd.f32 %v249, 1.0
  %v251 = vrcp.pop %v250
  %v252 = vmul.f32 1.0, %v251
  %v253 = vmul.f32 %v101, %v252
  %v254 = vmul.f32 %v211, %v104
  %v255 = vadd.f32 %v253, %v254
  %v257 = vsel %vm114, %v113, 0
  %vm259 = vcmask 1041408
  %v261 = vsel %vm259, %v76, 0
  %263 = vmatprep.subr.mxu0 0.0
  %264 = vmatpush1.msra.mxu0 %v261
  %265 = vmatprep.subr.mxu0 0.0
  %266 = vmatpush1.msra.mxu0 0.0
  %267 = vmatprep.subr.mxu0 0.0
  %268 = vmatpush1.msra.mxu0 0.0
  %269 = vmatprep.subr.mxu0 0.0
  %270 = vmatpush1.msra.mxu0 0.0
  %271 = vmatprep.subr.mxu0 0.0
  %272 = vmatpush1.msra.mxu0 0.0
  %273 = vmatprep.subr.mxu0 0.0
  %274 = vmatpush1.msra.mxu0 0.0
  %275 = vmatprep.subr.mxu0 0.0
  %276 = vmatpush1.msra.mxu0 0.0
  %277 = vmatprep.subr.mxu0 0.0
  %278 = vmatpush1.msra.mxu0 0.0
  %279 = vmatprep.subr.mxu0 0.0
  %280 = vmatpush1.msra.mxu0 0.0
  %281 = vmatprep.subr.mxu0 0.0
  %282 = vmatpush1.msra.mxu0 0.0
  %283 = vmatprep.subr.mxu0 0.0
  %284 = vmatpush1.msra.mxu0 0.0
  %285 = vmatprep.subr.mxu0 0.0
  %286 = vmatpush1.msra.mxu0 0.0
  %287 = vmatprep.subr.mxu0 0.0
  %288 = vmatpush1.msra.mxu0 0.0
  %289 = vmatprep.subr.mxu0 0.0
  %290 = vmatpush1.msra.mxu0 0.0
  %291 = vmatprep.subr.mxu0 0.0
  %292 = vmatpush1.msra.mxu0 0.0
  %293 = vmatprep.subr.mxu0 0.0
  %294 = vmatpush1.msra.mxu0 0.0
  %295 = vmatprep.subr.mxu0 0.0
  %296 = vmatpush1.msra.mxu0 0.0
  %297 = vmatprep.subr.mxu0 0.0
  %298 = vmatpush1.msra.mxu0 0.0
  %299 = vmatprep.subr.mxu0 0.0
  %300 = vmatpush1.msra.mxu0 0.0
  %301 = vmatprep.subr.mxu0 0.0
  %302 = vmatpush1.msra.mxu0 0.0
  %303 = vmatprep.subr.mxu0 0.0
  %304 = vmatpush1.msra.mxu0 0.0
  %305 = vmatprep.subr.mxu0 0.0
  %306 = vmatpush1.msra.mxu0 0.0
  %307 = vmatprep.subr.mxu0 0.0
  %308 = vmatpush1.msra.mxu0 0.0
  %309 = vmatprep.subr.mxu0 0.0
  %310 = vmatpush1.msra.mxu0 0.0
  %311 = vmatprep.subr.mxu0 0.0
  %312 = vmatpush1.msra.mxu0 0.0
  %313 = vmatprep.subr.mxu0 0.0
  %314 = vmatpush1.msra.mxu0 0.0
  %315 = vmatprep.subr.mxu0 0.0
  %316 = vmatpush1.msra.mxu0 0.0
  %317 = vmatprep.subr.mxu0 0.0
  %318 = vmatpush1.msra.mxu0 0.0
  %319 = vmatprep.subr.mxu0 0.0
  %320 = vmatpush1.msra.mxu0 0.0
  %321 = vmatprep.subr.mxu0 0.0
  %322 = vmatpush1.msra.mxu0 0.0
  %323 = vmatprep.subr.mxu0 0.0
  %324 = vmatpush1.msra.mxu0 0.0
  %325 = vmatprep.subr.mxu0 0.0
  %326 = vmatpush1.msra.mxu0 0.0
  %327 = vmatprep.mubr.f32.mxu0 0.0
  %328 = vmatmul.mubr.f32.gmra.mrb[0].mxu0 %v257
  %v329 = vpop.f32.mrb[0].mxu0
  %v330 = vadd.f32 0.0, %v329
  %v331 = vpop.f32.mrb[0].mxu0
  %332 = vdwg.mxu0
  %v334 = vlaneseq
  %v335 = vshrl.u32 %v334, 7
  %v336 = vsub.s32 0, %v335
  %v337 = vrot.slane %v125, %v336
  %v339 = vmul.f32 %v330, %v337
  %v341 = vlaneseq
  %v342 = vshrl.u32 %v341, 7
  %v343 = vsub.s32 0, %v342
  %v344 = vrot.slane %v128, %v343
  %v346 = vadd.f32 %v339, %v344
  %v347 = vtanh.pop %v346
  %v348 = vmul.f32 %v347, %v347
  %v349 = vsub.f32 1.0, %v348
  %v350 = vmul.f32 %v337, %v349
  %v351 = vmul.f32 %v108, %v350
  %v352 = vmul.f32 %v112, %v350
  %v353 = vpack.c.bf16 %v351, %v347
  %v354 = vpack.c.bf16 %v352, %v352
  %v359 = vunpack.c.l.b16 %v81
  %v360 = vunpack.c.l.b16 %v82
  %v361 = vunpack.c.l.b16 %v83
  %v362 = vunpack.c.l.b16 %v84
  %v363 = vpack.c.b16 %v360, %v359
  %v364 = vpack.c.b16 %v362, %v361
  %vm367 = vcmask 261120
  %v369 = vsel %vm367, %v353, 0
  %v372 = vsel %vm367, %v354, 0
  %374 = vmatprep.subr.bf16.mxu0 0
  %375 = vmatpush1.bf16.msra.mxu0 %v363
  %376 = vmatprep.subr.bf16.mxu0 0
  %377 = vmatpush1.bf16.msra.mxu0 %v364
  %378 = vmatprep.subr.bf16.mxu0 0
  %379 = vmatpush1.bf16.msra.mxu0 0
  %380 = vmatprep.subr.bf16.mxu0 0
  %381 = vmatpush1.bf16.msra.mxu0 0
  %382 = vmatprep.subr.bf16.mxu0 0
  %383 = vmatpush1.bf16.msra.mxu0 0
  %384 = vmatprep.subr.bf16.mxu0 0
  %385 = vmatpush1.bf16.msra.mxu0 0
  %386 = vmatprep.subr.bf16.mxu0 0
  %387 = vmatpush1.bf16.msra.mxu0 0
  %388 = vmatprep.subr.bf16.mxu0 0
  %389 = vmatpush1.bf16.msra.mxu0 0
  %390 = vmatprep.subr.bf16.mxu0 0
  %391 = vmatpush1.bf16.msra.mxu0 0
  %392 = vmatprep.subr.bf16.mxu0 0
  %393 = vmatpush1.bf16.msra.mxu0 0
  %394 = vmatprep.subr.bf16.mxu0 0
  %395 = vmatpush1.bf16.msra.mxu0 0
  %396 = vmatprep.subr.bf16.mxu0 0
  %397 = vmatpush1.bf16.msra.mxu0 0
  %398 = vmatprep.subr.bf16.mxu0 0
  %399 = vmatpush1.bf16.msra.mxu0 0
  %400 = vmatprep.subr.bf16.mxu0 0
  %401 = vmatpush1.bf16.msra.mxu0 0
  %402 = vmatprep.subr.bf16.mxu0 0
  %403 = vmatpush1.bf16.msra.mxu0 0
  %404 = vmatprep.subr.bf16.mxu0 0
  %405 = vmatpush1.bf16.msra.mxu0 0
  %406 = vmatprep.mubr.bf16.mxu0 0
  %407 = vmatmul.mubr.bf16.gmra.mrb[0].mxu0 %v369
  %v408 = vpop.f32.mrb[0].mxu0
  %v409 = vadd.f32 0.0, %v408
  %v410 = vpop.f32.mrb[0].mxu0
  %v411 = vpop.f32.mrb[0].mxu0
  %v412 = vadd.f32 0.0, %v411
  %v413 = vpop.f32.mrb[0].mxu0
  %414 = vmatprep.mubr.bf16.mxu0 0
  %415 = vmatmul.mubr.bf16.gmra.mrb[0].mxu0 %v372
  %v416 = vpop.f32.mrb[0].mxu0
  %v417 = vadd.f32 0.0, %v416
  %v418 = vpop.f32.mrb[0].mxu0
  %v419 = vpop.f32.mrb[0].mxu0
  %v420 = vpop.f32.mrb[0].mxu0
  %421 = vdwg.mxu0
  %v423 = vlaneseq
  %v424 = vshrl.u32 %v423, 7
  %v425 = vsub.s32 0, %v424
  %v426 = vrot.slane %v136, %v425
  %v428 = vmul.f32 %v409, %v426
  %v429 = vmul.f32 %v412, %v426
  %v430 = vmul.f32 %v417, %v426
  %v432 = vlaneseq
  %v433 = vshrl.u32 %v432, 7
  %v434 = vsub.s32 0, %v433
  %v435 = vrot.slane %v139, %v434
  %v437 = vadd.f32 %v428, %v435
  %v438 = vtanh.pop %v437
  %v439 = vmul.f32 %v438, %v438
  %v440 = vsub.f32 1.0, %v439
  %v441 = vmul.f32 %v429, %v440
  %v442 = vmul.f32 %v430, %v440
  %v443 = vpack.c.bf16 %v441, %v438
  %v444 = vpack.c.bf16 %v442, %v442
  %v449 = vunpack.c.l.b16 %v89
  %v450 = vunpack.c.l.b16 %v90
  %v451 = vunpack.c.l.b16 %v91
  %v452 = vunpack.c.l.b16 %v92
  %v453 = vpack.c.b16 %v450, %v449
  %v454 = vpack.c.b16 %v452, %v451
  %v458 = vsel %vm367, %v443, 0
  %v461 = vsel %vm367, %v444, 0
  %463 = vmatprep.subr.bf16.mxu0 0
  %464 = vmatpush1.bf16.msra.mxu0 %v453
  %465 = vmatprep.subr.bf16.mxu0 0
  %466 = vmatpush1.bf16.msra.mxu0 %v454
  %467 = vmatprep.subr.bf16.mxu0 0
  %468 = vmatpush1.bf16.msra.mxu0 0
  %469 = vmatprep.subr.bf16.mxu0 0
  %470 = vmatpush1.bf16.msra.mxu0 0
  %471 = vmatprep.subr.bf16.mxu0 0
  %472 = vmatpush1.bf16.msra.mxu0 0
  %473 = vmatprep.subr.bf16.mxu0 0
  %474 = vmatpush1.bf16.msra.mxu0 0
  %475 = vmatprep.subr.bf16.mxu0 0
  %476 = vmatpush1.bf16.msra.mxu0 0
  %477 = vmatprep.subr.bf16.mxu0 0
  %478 = vmatpush1.bf16.msra.mxu0 0
  %479 = vmatprep.subr.bf16.mxu0 0
  %480 = vmatpush1.bf16.msra.mxu0 0
  %481 = vmatprep.subr.bf16.mxu0 0
  %482 = vmatpush1.bf16.msra.mxu0 0
  %483 = vmatprep.subr.bf16.mxu0 0
  %484 = vmatpush1.bf16.msra.mxu0 0
  %485 = vmatprep.subr.bf16.mxu0 0
  %486 = vmatpush1.bf16.msra.mxu0 0
  %487 = vmatprep.subr.bf16.mxu0 0
  %488 = vmatpush1.bf16.msra.mxu0 0
  %489 = vmatprep.subr.bf16.mxu0 0
  %490 = vmatpush1.bf16.msra.mxu0 0
  %491 = vmatprep.subr.bf16.mxu0 0
  %492 = vmatpush1.bf16.msra.mxu0 0
  %493 = vmatprep.subr.bf16.mxu0 0
  %494 = vmatpush1.bf16.msra.mxu0 0
  %495 = vmatprep.mubr.bf16.mxu0 0
  %496 = vmatmul.mubr.bf16.gmra.mrb[0].mxu0 %v458
  %v497 = vpop.f32.mrb[0].mxu0
  %v498 = vadd.f32 0.0, %v497
  %v499 = vpop.f32.mrb[0].mxu0
  %v500 = vpop.f32.mrb[0].mxu0
  %v501 = vadd.f32 0.0, %v500
  %v502 = vpop.f32.mrb[0].mxu0
  %503 = vmatprep.mubr.bf16.mxu0 0
  %504 = vmatmul.mubr.bf16.gmra.mrb[0].mxu0 %v461
  %v505 = vpop.f32.mrb[0].mxu0
  %v506 = vadd.f32 0.0, %v505
  %v507 = vpop.f32.mrb[0].mxu0
  %v508 = vpop.f32.mrb[0].mxu0
  %v509 = vpop.f32.mrb[0].mxu0
  %510 = vdwg.mxu0
  %v512 = vlaneseq
  %v513 = vshrl.u32 %v512, 7
  %v514 = vsub.s32 0, %v513
  %v515 = vrot.slane %v147, %v514
  %v517 = vmul.f32 %v498, %v515
  %v518 = vmul.f32 %v501, %v515
  %v519 = vmul.f32 %v506, %v515
  %v521 = vlaneseq
  %v522 = vshrl.u32 %v521, 7
  %v523 = vsub.s32 0, %v522
  %v524 = vrot.slane %v150, %v523
  %v526 = vadd.f32 %v517, %v524
  %v527 = vtanh.pop %v526
  %v528 = vmul.f32 %v527, %v527
  %v529 = vsub.f32 1.0, %v528
  %v530 = vmul.f32 %v518, %v529
  %v531 = vmul.f32 %v519, %v529
  %v532 = vpack.c.bf16 %v530, %v527
  %v533 = vpack.c.bf16 %v531, %v531
  %v538 = vunpack.c.l.b16 %v97
  %v539 = vunpack.c.l.b16 %v98
  %v540 = vunpack.c.l.b16 %v99
  %v541 = vunpack.c.l.b16 %v100
  %v542 = vpack.c.b16 %v539, %v538
  %v543 = vpack.c.b16 %v541, %v540
  %v547 = vsel %vm367, %v532, 0
  %v550 = vsel %vm367, %v533, 0
  %552 = vmatprep.subr.bf16.mxu0 0
  %553 = vmatpush1.bf16.msra.mxu0 %v542
  %554 = vmatprep.subr.bf16.mxu0 0
  %555 = vmatpush1.bf16.msra.mxu0 %v543
  %556 = vmatprep.subr.bf16.mxu0 0
  %557 = vmatpush1.bf16.msra.mxu0 0
  %558 = vmatprep.subr.bf16.mxu0 0
  %559 = vmatpush1.bf16.msra.mxu0 0
  %560 = vmatprep.subr.bf16.mxu0 0
  %561 = vmatpush1.bf16.msra.mxu0 0
  %562 = vmatprep.subr.bf16.mxu0 0
  %563 = vmatpush1.bf16.msra.mxu0 0
  %564 = vmatprep.subr.bf16.mxu0 0
  %565 = vmatpush1.bf16.msra.mxu0 0
  %566 = vmatprep.subr.bf16.mxu0 0
  %567 = vmatpush1.bf16.msra.mxu0 0
  %568 = vmatprep.subr.bf16.mxu0 0
  %569 = vmatpush1.bf16.msra.mxu0 0
  %570 = vmatprep.subr.bf16.mxu0 0
  %571 = vmatpush1.bf16.msra.mxu0 0
  %572 = vmatprep.subr.bf16.mxu0 0
  %573 = vmatpush1.bf16.msra.mxu0 0
  %574 = vmatprep.subr.bf16.mxu0 0
  %575 = vmatpush1.bf16.msra.mxu0 0
  %576 = vmatprep.subr.bf16.mxu0 0
  %577 = vmatpush1.bf16.msra.mxu0 0
  %578 = vmatprep.subr.bf16.mxu0 0
  %579 = vmatpush1.bf16.msra.mxu0 0
  %580 = vmatprep.subr.bf16.mxu0 0
  %581 = vmatpush1.bf16.msra.mxu0 0
  %582 = vmatprep.subr.bf16.mxu0 0
  %583 = vmatpush1.bf16.msra.mxu0 0
  %584 = vmatprep.mubr.bf16.mxu0 0
  %585 = vmatmul.mubr.bf16.gmra.mrb[0].mxu0 %v547
  %v586 = vpop.f32.mrb[0].mxu0
  %v587 = vadd.f32 0.0, %v586
  %v588 = vpop.f32.mrb[0].mxu0
  %v589 = vpop.f32.mrb[0].mxu0
  %v590 = vadd.f32 0.0, %v589
  %v591 = vpop.f32.mrb[0].mxu0
  %592 = vmatprep.mubr.bf16.mxu0 0
  %593 = vmatmul.mubr.bf16.gmra.mrb[0].mxu0 %v550
  %v594 = vpop.f32.mrb[0].mxu0
  %v595 = vadd.f32 0.0, %v594
  %v596 = vpop.f32.mrb[0].mxu0
  %v597 = vpop.f32.mrb[0].mxu0
  %v598 = vpop.f32.mrb[0].mxu0
  %599 = vdwg.mxu0
  %v601 = vlaneseq
  %v602 = vshrl.u32 %v601, 7
  %v603 = vsub.s32 0, %v602
  %v604 = vrot.slane %v158, %v603
  %v606 = vmul.f32 %v587, %v604
  %v607 = vmul.f32 %v590, %v604
  %v608 = vmul.f32 %v595, %v604
  %v610 = vlaneseq
  %v611 = vshrl.u32 %v610, 7
  %v612 = vsub.s32 0, %v611
  %v613 = vrot.slane %v161, %v612
  %v615 = vadd.f32 %v606, %v613
  %617 = vrot.lane.b32.xlu0 %v608, 127
  %v618 = vpop.permute.xlu0 %617
  %v620 = vadd.f32 %v607, %v618
  %v621 = vmul.f32 %v615, %v615
  %v622 = vsel %vm114, %v621, 0.0
  %623 = vadd.xlane.f32.xlu0 %v622
  %v624 = vpop.xlane.xlu0 %623
  %v625 = vmul.f32 %v624, 0.5
  %v626 = vstv %s164
  %v627 = vmul.f32 %v626, %v615
  %v628 = vadd.f32 %v113, %v627
  %v630 = vsel %vm114, %v628, 0
  %632 = vmatprep.subr.mxu0 0.0
  %633 = vmatpush1.msra.mxu0 %v261
  %634 = vmatprep.subr.mxu0 0.0
  %635 = vmatpush1.msra.mxu0 0.0
  %636 = vmatprep.subr.mxu0 0.0
  %637 = vmatpush1.msra.mxu0 0.0
  %638 = vmatprep.subr.mxu0 0.0
  %639 = vmatpush1.msra.mxu0 0.0
  %640 = vmatprep.subr.mxu0 0.0
  %641 = vmatpush1.msra.mxu0 0.0
  %642 = vmatprep.subr.mxu0 0.0
  %643 = vmatpush1.msra.mxu0 0.0
  %644 = vmatprep.subr.mxu0 0.0
  %645 = vmatpush1.msra.mxu0 0.0
  %646 = vmatprep.subr.mxu0 0.0
  %647 = vmatpush1.msra.mxu0 0.0
  %648 = vmatprep.subr.mxu0 0.0
  %649 = vmatpush1.msra.mxu0 0.0
  %650 = vmatprep.subr.mxu0 0.0
  %651 = vmatpush1.msra.mxu0 0.0
  %652 = vmatprep.subr.mxu0 0.0
  %653 = vmatpush1.msra.mxu0 0.0
  %654 = vmatprep.subr.mxu0 0.0
  %655 = vmatpush1.msra.mxu0 0.0
  %656 = vmatprep.subr.mxu0 0.0
  %657 = vmatpush1.msra.mxu0 0.0
  %658 = vmatprep.subr.mxu0 0.0
  %659 = vmatpush1.msra.mxu0 0.0
  %660 = vmatprep.subr.mxu0 0.0
  %661 = vmatpush1.msra.mxu0 0.0
  %662 = vmatprep.subr.mxu0 0.0
  %663 = vmatpush1.msra.mxu0 0.0
  %664 = vmatprep.subr.mxu0 0.0
  %665 = vmatpush1.msra.mxu0 0.0
  %666 = vmatprep.subr.mxu0 0.0
  %667 = vmatpush1.msra.mxu0 0.0
  %668 = vmatprep.subr.mxu0 0.0
  %669 = vmatpush1.msra.mxu0 0.0
  %670 = vmatprep.subr.mxu0 0.0
  %671 = vmatpush1.msra.mxu0 0.0
  %672 = vmatprep.subr.mxu0 0.0
  %673 = vmatpush1.msra.mxu0 0.0
  %674 = vmatprep.subr.mxu0 0.0
  %675 = vmatpush1.msra.mxu0 0.0
  %676 = vmatprep.subr.mxu0 0.0
  %677 = vmatpush1.msra.mxu0 0.0
  %678 = vmatprep.subr.mxu0 0.0
  %679 = vmatpush1.msra.mxu0 0.0
  %680 = vmatprep.subr.mxu0 0.0
  %681 = vmatpush1.msra.mxu0 0.0
  %682 = vmatprep.subr.mxu0 0.0
  %683 = vmatpush1.msra.mxu0 0.0
  %684 = vmatprep.subr.mxu0 0.0
  %685 = vmatpush1.msra.mxu0 0.0
  %686 = vmatprep.subr.mxu0 0.0
  %687 = vmatpush1.msra.mxu0 0.0
  %688 = vmatprep.subr.mxu0 0.0
  %689 = vmatpush1.msra.mxu0 0.0
  %690 = vmatprep.subr.mxu0 0.0
  %691 = vmatpush1.msra.mxu0 0.0
  %692 = vmatprep.subr.mxu0 0.0
  %693 = vmatpush1.msra.mxu0 0.0
  %694 = vmatprep.subr.mxu0 0.0
  %695 = vmatpush1.msra.mxu0 0.0
  %696 = vmatprep.mubr.f32.mxu0 0.0
  %697 = vmatmul.mubr.f32.gmra.mrb[0].mxu0 %v630
  %v698 = vpop.f32.mrb[0].mxu0
  %v699 = vadd.f32 0.0, %v698
  %v700 = vpop.f32.mrb[0].mxu0
  %701 = vdwg.mxu0
  %v703 = vlaneseq
  %v704 = vshrl.u32 %v703, 7
  %v705 = vsub.s32 0, %v704
  %v706 = vrot.slane %v174, %v705
  %v708 = vmul.f32 %v699, %v706
  %v710 = vlaneseq
  %v711 = vshrl.u32 %v710, 7
  %v712 = vsub.s32 0, %v711
  %v713 = vrot.slane %v177, %v712
  %v715 = vadd.f32 %v708, %v713
  %v716 = vtanh.pop %v715
  %v717 = vmul.f32 %v716, %v716
  %v718 = vsub.f32 1.0, %v717
  %v719 = vmul.f32 %v706, %v718
  %v720 = vmul.f32 %v108, %v719
  %v721 = vmul.f32 %v112, %v719
  %v722 = vpack.c.bf16 %v720, %v716
  %v723 = vpack.c.bf16 %v721, %v721
  %v725 = vsel %vm367, %v722, 0
  %v728 = vsel %vm367, %v723, 0
  %730 = vmatprep.subr.bf16.mxu0 0
  %731 = vmatpush1.bf16.msra.mxu0 %v363
  %732 = vmatprep.subr.bf16.mxu0 0
  %733 = vmatpush1.bf16.msra.mxu0 %v364
  %734 = vmatprep.subr.bf16.mxu0 0
  %735 = vmatpush1.bf16.msra.mxu0 0
  %736 = vmatprep.subr.bf16.mxu0 0
  %737 = vmatpush1.bf16.msra.mxu0 0
  %738 = vmatprep.subr.bf16.mxu0 0
  %739 = vmatpush1.bf16.msra.mxu0 0
  %740 = vmatprep.subr.bf16.mxu0 0
  %741 = vmatpush1.bf16.msra.mxu0 0
  %742 = vmatprep.subr.bf16.mxu0 0
  %743 = vmatpush1.bf16.msra.mxu0 0
  %744 = vmatprep.subr.bf16.mxu0 0
  %745 = vmatpush1.bf16.msra.mxu0 0
  %746 = vmatprep.subr.bf16.mxu0 0
  %747 = vmatpush1.bf16.msra.mxu0 0
  %748 = vmatprep.subr.bf16.mxu0 0
  %749 = vmatpush1.bf16.msra.mxu0 0
  %750 = vmatprep.subr.bf16.mxu0 0
  %751 = vmatpush1.bf16.msra.mxu0 0
  %752 = vmatprep.subr.bf16.mxu0 0
  %753 = vmatpush1.bf16.msra.mxu0 0
  %754 = vmatprep.subr.bf16.mxu0 0
  %755 = vmatpush1.bf16.msra.mxu0 0
  %756 = vmatprep.subr.bf16.mxu0 0
  %757 = vmatpush1.bf16.msra.mxu0 0
  %758 = vmatprep.subr.bf16.mxu0 0
  %759 = vmatpush1.bf16.msra.mxu0 0
  %760 = vmatprep.subr.bf16.mxu0 0
  %761 = vmatpush1.bf16.msra.mxu0 0
  %762 = vmatprep.mubr.bf16.mxu0 0
  %763 = vmatmul.mubr.bf16.gmra.mrb[0].mxu0 %v725
  %v764 = vpop.f32.mrb[0].mxu0
  %v765 = vadd.f32 0.0, %v764
  %v766 = vpop.f32.mrb[0].mxu0
  %v767 = vpop.f32.mrb[0].mxu0
  %v768 = vadd.f32 0.0, %v767
  %v769 = vpop.f32.mrb[0].mxu0
  %770 = vmatprep.mubr.bf16.mxu0 0
  %771 = vmatmul.mubr.bf16.gmra.mrb[0].mxu0 %v728
  %v772 = vpop.f32.mrb[0].mxu0
  %v773 = vadd.f32 0.0, %v772
  %v774 = vpop.f32.mrb[0].mxu0
  %v775 = vpop.f32.mrb[0].mxu0
  %v776 = vpop.f32.mrb[0].mxu0
  %777 = vdwg.mxu0
  %v779 = vlaneseq
  %v780 = vshrl.u32 %v779, 7
  %v781 = vsub.s32 0, %v780
  %v782 = vrot.slane %v185, %v781
  %v784 = vmul.f32 %v765, %v782
  %v785 = vmul.f32 %v768, %v782
  %v786 = vmul.f32 %v773, %v782
  %v788 = vlaneseq
  %v789 = vshrl.u32 %v788, 7
  %v790 = vsub.s32 0, %v789
  %v791 = vrot.slane %v188, %v790
  %v793 = vadd.f32 %v784, %v791
  %v794 = vtanh.pop %v793
  %v795 = vmul.f32 %v794, %v794
  %v796 = vsub.f32 1.0, %v795
  %v797 = vmul.f32 %v785, %v796
  %v798 = vmul.f32 %v786, %v796
  %v799 = vpack.c.bf16 %v797, %v794
  %v800 = vpack.c.bf16 %v798, %v798
  %v802 = vsel %vm367, %v799, 0
  %v805 = vsel %vm367, %v800, 0
  %807 = vmatprep.subr.bf16.mxu0 0
  %808 = vmatpush1.bf16.msra.mxu0 %v453
  %809 = vmatprep.subr.bf16.mxu0 0
  %810 = vmatpush1.bf16.msra.mxu0 %v454
  %811 = vmatprep.subr.bf16.mxu0 0
  %812 = vmatpush1.bf16.msra.mxu0 0
  %813 = vmatprep.subr.bf16.mxu0 0
  %814 = vmatpush1.bf16.msra.mxu0 0
  %815 = vmatprep.subr.bf16.mxu0 0
  %816 = vmatpush1.bf16.msra.mxu0 0
  %817 = vmatprep.subr.bf16.mxu0 0
  %818 = vmatpush1.bf16.msra.mxu0 0
  %819 = vmatprep.subr.bf16.mxu0 0
  %820 = vmatpush1.bf16.msra.mxu0 0
  %821 = vmatprep.subr.bf16.mxu0 0
  %822 = vmatpush1.bf16.msra.mxu0 0
  %823 = vmatprep.subr.bf16.mxu0 0
  %824 = vmatpush1.bf16.msra.mxu0 0
  %825 = vmatprep.subr.bf16.mxu0 0
  %826 = vmatpush1.bf16.msra.mxu0 0
  %827 = vmatprep.subr.bf16.mxu0 0
  %828 = vmatpush1.bf16.msra.mxu0 0
  %829 = vmatprep.subr.bf16.mxu0 0
  %830 = vmatpush1.bf16.msra.mxu0 0
  %831 = vmatprep.subr.bf16.mxu0 0
  %832 = vmatpush1.bf16.msra.mxu0 0
  %833 = vmatprep.subr.bf16.mxu0 0
  %834 = vmatpush1.bf16.msra.mxu0 0
  %835 = vmatprep.subr.bf16.mxu0 0
  %836 = vmatpush1.bf16.msra.mxu0 0
  %837 = vmatprep.subr.bf16.mxu0 0
  %838 = vmatpush1.bf16.msra.mxu0 0
  %839 = vmatprep.mubr.bf16.mxu0 0
  %840 = vmatmul.mubr.bf16.gmra.mrb[0].mxu0 %v802
  %v841 = vpop.f32.mrb[0].mxu0
  %v842 = vadd.f32 0.0, %v841
  %v843 = vpop.f32.mrb[0].mxu0
  %v844 = vpop.f32.mrb[0].mxu0
  %v845 = vadd.f32 0.0, %v844
  %v846 = vpop.f32.mrb[0].mxu0
  %847 = vmatprep.mubr.bf16.mxu0 0
  %848 = vmatmul.mubr.bf16.gmra.mrb[0].mxu0 %v805
  %v849 = vpop.f32.mrb[0].mxu0
  %v850 = vadd.f32 0.0, %v849
  %v851 = vpop.f32.mrb[0].mxu0
  %v852 = vpop.f32.mrb[0].mxu0
  %v853 = vpop.f32.mrb[0].mxu0
  %854 = vdwg.mxu0
  %v856 = vlaneseq
  %v857 = vshrl.u32 %v856, 7
  %v858 = vsub.s32 0, %v857
  %v859 = vrot.slane %v196, %v858
  %v861 = vmul.f32 %v842, %v859
  %v862 = vmul.f32 %v845, %v859
  %v863 = vmul.f32 %v850, %v859
  %v865 = vlaneseq
  %v866 = vshrl.u32 %v865, 7
  %v867 = vsub.s32 0, %v866
  %v868 = vrot.slane %v199, %v867
  %v870 = vadd.f32 %v861, %v868
  %v871 = vtanh.pop %v870
  %v872 = vmul.f32 %v871, %v871
  %v873 = vsub.f32 1.0, %v872
  %v874 = vmul.f32 %v862, %v873
  %v875 = vmul.f32 %v863, %v873
  %v876 = vpack.c.bf16 %v874, %v871
  %v877 = vpack.c.bf16 %v875, %v875
  %v879 = vsel %vm367, %v876, 0
  %v882 = vsel %vm367, %v877, 0
  %884 = vmatprep.subr.bf16.mxu0 0
  %885 = vmatpush1.bf16.msra.mxu0 %v542
  %886 = vmatprep.subr.bf16.mxu0 0
  %887 = vmatpush1.bf16.msra.mxu0 %v543
  %888 = vmatprep.subr.bf16.mxu0 0
  %889 = vmatpush1.bf16.msra.mxu0 0
  %890 = vmatprep.subr.bf16.mxu0 0
  %891 = vmatpush1.bf16.msra.mxu0 0
  %892 = vmatprep.subr.bf16.mxu0 0
  %893 = vmatpush1.bf16.msra.mxu0 0
  %894 = vmatprep.subr.bf16.mxu0 0
  %895 = vmatpush1.bf16.msra.mxu0 0
  %896 = vmatprep.subr.bf16.mxu0 0
  %897 = vmatpush1.bf16.msra.mxu0 0
  %898 = vmatprep.subr.bf16.mxu0 0
  %899 = vmatpush1.bf16.msra.mxu0 0
  %900 = vmatprep.subr.bf16.mxu0 0
  %901 = vmatpush1.bf16.msra.mxu0 0
  %902 = vmatprep.subr.bf16.mxu0 0
  %903 = vmatpush1.bf16.msra.mxu0 0
  %904 = vmatprep.subr.bf16.mxu0 0
  %905 = vmatpush1.bf16.msra.mxu0 0
  %906 = vmatprep.subr.bf16.mxu0 0
  %907 = vmatpush1.bf16.msra.mxu0 0
  %908 = vmatprep.subr.bf16.mxu0 0
  %909 = vmatpush1.bf16.msra.mxu0 0
  %910 = vmatprep.subr.bf16.mxu0 0
  %911 = vmatpush1.bf16.msra.mxu0 0
  %912 = vmatprep.subr.bf16.mxu0 0
  %913 = vmatpush1.bf16.msra.mxu0 0
  %914 = vmatprep.subr.bf16.mxu0 0
  %915 = vmatpush1.bf16.msra.mxu0 0
  %916 = vmatprep.mubr.bf16.mxu0 0
  %917 = vmatmul.mubr.bf16.gmra.mrb[0].mxu0 %v879
  %v918 = vpop.f32.mrb[0].mxu0
  %v919 = vadd.f32 0.0, %v918
  %v920 = vpop.f32.mrb[0].mxu0
  %v921 = vpop.f32.mrb[0].mxu0
  %v922 = vadd.f32 0.0, %v921
  %v923 = vpop.f32.mrb[0].mxu0
  %924 = vmatprep.mubr.bf16.mxu0 0
  %925 = vmatmul.mubr.bf16.gmra.mrb[0].mxu0 %v882
  %v926 = vpop.f32.mrb[0].mxu0
  %v927 = vadd.f32 0.0, %v926
  %v928 = vpop.f32.mrb[0].mxu0
  %v929 = vpop.f32.mrb[0].mxu0
  %v930 = vpop.f32.mrb[0].mxu0
  %931 = vdwg.mxu0
  %v933 = vlaneseq
  %v934 = vshrl.u32 %v933, 7
  %v935 = vsub.s32 0, %v934
  %v936 = vrot.slane %v207, %v935
  %v938 = vmul.f32 %v919, %v936
  %v939 = vmul.f32 %v922, %v936
  %v940 = vmul.f32 %v927, %v936
  %v942 = vlaneseq
  %v943 = vshrl.u32 %v942, 7
  %v944 = vsub.s32 0, %v943
  %v945 = vrot.slane %v210, %v944
  %v947 = vadd.f32 %v938, %v945
  %949 = vrot.lane.b32.xlu0 %v940, 127
  %v950 = vpop.permute.xlu0 %949
  %v952 = vadd.f32 %v939, %v950
  %v953 = vmul.f32 %v947, %v947
  %v954 = vsel %vm114, %v953, 0.0
  %955 = vadd.xlane.f32.xlu0 %v954
  %v956 = vpop.xlane.xlu0 %955
  %v957 = vmul.f32 %v956, 0.5
  %v958 = vmul.f32 %v626, %v947
  %v959 = vadd.f32 %v113, %v958
  %v961 = vsel %vm114, %v959, 0
  %963 = vmatprep.subr.mxu0 0.0
  %964 = vmatpush1.msra.mxu0 %v261
  %965 = vmatprep.subr.mxu0 0.0
  %966 = vmatpush1.msra.mxu0 0.0
  %967 = vmatprep.subr.mxu0 0.0
  %968 = vmatpush1.msra.mxu0 0.0
  %969 = vmatprep.subr.mxu0 0.0
  %970 = vmatpush1.msra.mxu0 0.0
  %971 = vmatprep.subr.mxu0 0.0
  %972 = vmatpush1.msra.mxu0 0.0
  %973 = vmatprep.subr.mxu0 0.0
  %974 = vmatpush1.msra.mxu0 0.0
  %975 = vmatprep.subr.mxu0 0.0
  %976 = vmatpush1.msra.mxu0 0.0
  %977 = vmatprep.subr.mxu0 0.0
  %978 = vmatpush1.msra.mxu0 0.0
  %979 = vmatprep.subr.mxu0 0.0
  %980 = vmatpush1.msra.mxu0 0.0
  %981 = vmatprep.subr.mxu0 0.0
  %982 = vmatpush1.msra.mxu0 0.0
  %983 = vmatprep.subr.mxu0 0.0
  %984 = vmatpush1.msra.mxu0 0.0
  %985 = vmatprep.subr.mxu0 0.0
  %986 = vmatpush1.msra.mxu0 0.0
  %987 = vmatprep.subr.mxu0 0.0
  %988 = vmatpush1.msra.mxu0 0.0
  %989 = vmatprep.subr.mxu0 0.0
  %990 = vmatpush1.msra.mxu0 0.0
  %991 = vmatprep.subr.mxu0 0.0
  %992 = vmatpush1.msra.mxu0 0.0
  %993 = vmatprep.subr.mxu0 0.0
  %994 = vmatpush1.msra.mxu0 0.0
  %995 = vmatprep.subr.mxu0 0.0
  %996 = vmatpush1.msra.mxu0 0.0
  %997 = vmatprep.subr.mxu0 0.0
  %998 = vmatpush1.msra.mxu0 0.0
  %999 = vmatprep.subr.mxu0 0.0
  %1000 = vmatpush1.msra.mxu0 0.0
  %1001 = vmatprep.subr.mxu0 0.0
  %1002 = vmatpush1.msra.mxu0 0.0
  %1003 = vmatprep.subr.mxu0 0.0
  %1004 = vmatpush1.msra.mxu0 0.0
  %1005 = vmatprep.subr.mxu0 0.0
  %1006 = vmatpush1.msra.mxu0 0.0
  %1007 = vmatprep.subr.mxu0 0.0
  %1008 = vmatpush1.msra.mxu0 0.0
  %1009 = vmatprep.subr.mxu0 0.0
  %1010 = vmatpush1.msra.mxu0 0.0
  %1011 = vmatprep.subr.mxu0 0.0
  %1012 = vmatpush1.msra.mxu0 0.0
  %1013 = vmatprep.subr.mxu0 0.0
  %1014 = vmatpush1.msra.mxu0 0.0
  %1015 = vmatprep.subr.mxu0 0.0
  %1016 = vmatpush1.msra.mxu0 0.0
  %1017 = vmatprep.subr.mxu0 0.0
  %1018 = vmatpush1.msra.mxu0 0.0
  %1019 = vmatprep.subr.mxu0 0.0
  %1020 = vmatpush1.msra.mxu0 0.0
  %1021 = vmatprep.subr.mxu0 0.0
  %1022 = vmatpush1.msra.mxu0 0.0
  %1023 = vmatprep.subr.mxu0 0.0
  %1024 = vmatpush1.msra.mxu0 0.0
  %1025 = vmatprep.subr.mxu0 0.0
  %1026 = vmatpush1.msra.mxu0 0.0
  %1027 = vmatprep.mubr.f32.mxu0 0.0
  %1028 = vmatmul.mubr.f32.gmra.mrb[0].mxu0 %v961
  %v1029 = vpop.f32.mrb[0].mxu0
  %v1030 = vadd.f32 0.0, %v1029
  %v1031 = vpop.f32.mrb[0].mxu0
  %1032 = vdwg.mxu0
  %v1033 = vmul.f32 %v1030, %v706
  %v1034 = vadd.f32 %v1033, %v713
  %v1035 = vtanh.pop %v1034
  %v1036 = vmul.f32 %v1035, %v1035
  %v1037 = vsub.f32 1.0, %v1036
  %v1038 = vmul.f32 %v706, %v1037
  %v1039 = vmul.f32 %v108, %v1038
  %v1040 = vmul.f32 %v112, %v1038
  %v1041 = vpack.c.bf16 %v1039, %v1035
  %v1042 = vpack.c.bf16 %v1040, %v1040
  %v1044 = vsel %vm367, %v1041, 0
  %v1047 = vsel %vm367, %v1042, 0
  %1049 = vmatprep.subr.bf16.mxu0 0
  %1050 = vmatpush1.bf16.msra.mxu0 %v363
  %1051 = vmatprep.subr.bf16.mxu0 0
  %1052 = vmatpush1.bf16.msra.mxu0 %v364
  %1053 = vmatprep.subr.bf16.mxu0 0
  %1054 = vmatpush1.bf16.msra.mxu0 0
  %1055 = vmatprep.subr.bf16.mxu0 0
  %1056 = vmatpush1.bf16.msra.mxu0 0
  %1057 = vmatprep.subr.bf16.mxu0 0
  %1058 = vmatpush1.bf16.msra.mxu0 0
  %1059 = vmatprep.subr.bf16.mxu0 0
  %1060 = vmatpush1.bf16.msra.mxu0 0
  %1061 = vmatprep.subr.bf16.mxu0 0
  %1062 = vmatpush1.bf16.msra.mxu0 0
  %1063 = vmatprep.subr.bf16.mxu0 0
  %1064 = vmatpush1.bf16.msra.mxu0 0
  %1065 = vmatprep.subr.bf16.mxu0 0
  %1066 = vmatpush1.bf16.msra.mxu0 0
  %1067 = vmatprep.subr.bf16.mxu0 0
  %1068 = vmatpush1.bf16.msra.mxu0 0
  %1069 = vmatprep.subr.bf16.mxu0 0
  %1070 = vmatpush1.bf16.msra.mxu0 0
  %1071 = vmatprep.subr.bf16.mxu0 0
  %1072 = vmatpush1.bf16.msra.mxu0 0
  %1073 = vmatprep.subr.bf16.mxu0 0
  %1074 = vmatpush1.bf16.msra.mxu0 0
  %1075 = vmatprep.subr.bf16.mxu0 0
  %1076 = vmatpush1.bf16.msra.mxu0 0
  %1077 = vmatprep.subr.bf16.mxu0 0
  %1078 = vmatpush1.bf16.msra.mxu0 0
  %1079 = vmatprep.subr.bf16.mxu0 0
  %1080 = vmatpush1.bf16.msra.mxu0 0
  %1081 = vmatprep.mubr.bf16.mxu0 0
  %1082 = vmatmul.mubr.bf16.gmra.mrb[0].mxu0 %v1044
  %v1083 = vpop.f32.mrb[0].mxu0
  %v1084 = vadd.f32 0.0, %v1083
  %v1085 = vpop.f32.mrb[0].mxu0
  %v1086 = vpop.f32.mrb[0].mxu0
  %v1087 = vadd.f32 0.0, %v1086
  %v1088 = vpop.f32.mrb[0].mxu0
  %1089 = vmatprep.mubr.bf16.mxu0 0
  %1090 = vmatmul.mubr.bf16.gmra.mrb[0].mxu0 %v1047
  %v1091 = vpop.f32.mrb[0].mxu0
  %v1092 = vadd.f32 0.0, %v1091
  %v1093 = vpop.f32.mrb[0].mxu0
  %v1094 = vpop.f32.mrb[0].mxu0
  %v1095 = vpop.f32.mrb[0].mxu0
  %1096 = vdwg.mxu0
  %v1097 = vmul.f32 %v1084, %v782
  %v1098 = vmul.f32 %v1087, %v782
  %v1099 = vmul.f32 %v1092, %v782
  %v1100 = vadd.f32 %v1097, %v791
  %v1101 = vtanh.pop %v1100
  %v1102 = vmul.f32 %v1101, %v1101
  %v1103 = vsub.f32 1.0, %v1102
  %v1104 = vmul.f32 %v1098, %v1103
  %v1105 = vmul.f32 %v1099, %v1103
  %v1106 = vpack.c.bf16 %v1104, %v1101
  %v1107 = vpack.c.bf16 %v1105, %v1105
  %v1109 = vsel %vm367, %v1106, 0
  %v1112 = vsel %vm367, %v1107, 0
  %1114 = vmatprep.subr.bf16.mxu0 0
  %1115 = vmatpush1.bf16.msra.mxu0 %v453
  %1116 = vmatprep.subr.bf16.mxu0 0
  %1117 = vmatpush1.bf16.msra.mxu0 %v454
  %1118 = vmatprep.subr.bf16.mxu0 0
  %1119 = vmatpush1.bf16.msra.mxu0 0
  %1120 = vmatprep.subr.bf16.mxu0 0
  %1121 = vmatpush1.bf16.msra.mxu0 0
  %1122 = vmatprep.subr.bf16.mxu0 0
  %1123 = vmatpush1.bf16.msra.mxu0 0
  %1124 = vmatprep.subr.bf16.mxu0 0
  %1125 = vmatpush1.bf16.msra.mxu0 0
  %1126 = vmatprep.subr.bf16.mxu0 0
  %1127 = vmatpush1.bf16.msra.mxu0 0
  %1128 = vmatprep.subr.bf16.mxu0 0
  %1129 = vmatpush1.bf16.msra.mxu0 0
  %1130 = vmatprep.subr.bf16.mxu0 0
  %1131 = vmatpush1.bf16.msra.mxu0 0
  %1132 = vmatprep.subr.bf16.mxu0 0
  %1133 = vmatpush1.bf16.msra.mxu0 0
  %1134 = vmatprep.subr.bf16.mxu0 0
  %1135 = vmatpush1.bf16.msra.mxu0 0
  %1136 = vmatprep.subr.bf16.mxu0 0
  %1137 = vmatpush1.bf16.msra.mxu0 0
  %1138 = vmatprep.subr.bf16.mxu0 0
  %1139 = vmatpush1.bf16.msra.mxu0 0
  %1140 = vmatprep.subr.bf16.mxu0 0
  %1141 = vmatpush1.bf16.msra.mxu0 0
  %1142 = vmatprep.subr.bf16.mxu0 0
  %1143 = vmatpush1.bf16.msra.mxu0 0
  %1144 = vmatprep.subr.bf16.mxu0 0
  %1145 = vmatpush1.bf16.msra.mxu0 0
  %1146 = vmatprep.mubr.bf16.mxu0 0
  %1147 = vmatmul.mubr.bf16.gmra.mrb[0].mxu0 %v1109
  %v1148 = vpop.f32.mrb[0].mxu0
  %v1149 = vadd.f32 0.0, %v1148
  %v1150 = vpop.f32.mrb[0].mxu0
  %v1151 = vpop.f32.mrb[0].mxu0
  %v1152 = vadd.f32 0.0, %v1151
  %v1153 = vpop.f32.mrb[0].mxu0
  %1154 = vmatprep.mubr.bf16.mxu0 0
  %1155 = vmatmul.mubr.bf16.gmra.mrb[0].mxu0 %v1112
  %v1156 = vpop.f32.mrb[0].mxu0
  %v1157 = vadd.f32 0.0, %v1156
  %v1158 = vpop.f32.mrb[0].mxu0
  %v1159 = vpop.f32.mrb[0].mxu0
  %v1160 = vpop.f32.mrb[0].mxu0
  %1161 = vdwg.mxu0
  %v1162 = vmul.f32 %v1149, %v859
  %v1163 = vmul.f32 %v1152, %v859
  %v1164 = vmul.f32 %v1157, %v859
  %v1165 = vadd.f32 %v1162, %v868
  %v1166 = vtanh.pop %v1165
  %v1167 = vmul.f32 %v1166, %v1166
  %v1168 = vsub.f32 1.0, %v1167
  %v1169 = vmul.f32 %v1163, %v1168
  %v1170 = vmul.f32 %v1164, %v1168
  %v1171 = vpack.c.bf16 %v1169, %v1166
  %v1172 = vpack.c.bf16 %v1170, %v1170
  %v1174 = vsel %vm367, %v1171, 0
  %v1177 = vsel %vm367, %v1172, 0
  %1179 = vmatprep.subr.bf16.mxu0 0
  %1180 = vmatpush1.bf16.msra.mxu0 %v542
  %1181 = vmatprep.subr.bf16.mxu0 0
  %1182 = vmatpush1.bf16.msra.mxu0 %v543
  %1183 = vmatprep.subr.bf16.mxu0 0
  %1184 = vmatpush1.bf16.msra.mxu0 0
  %1185 = vmatprep.subr.bf16.mxu0 0
  %1186 = vmatpush1.bf16.msra.mxu0 0
  %1187 = vmatprep.subr.bf16.mxu0 0
  %1188 = vmatpush1.bf16.msra.mxu0 0
  %1189 = vmatprep.subr.bf16.mxu0 0
  %1190 = vmatpush1.bf16.msra.mxu0 0
  %1191 = vmatprep.subr.bf16.mxu0 0
  %1192 = vmatpush1.bf16.msra.mxu0 0
  %1193 = vmatprep.subr.bf16.mxu0 0
  %1194 = vmatpush1.bf16.msra.mxu0 0
  %1195 = vmatprep.subr.bf16.mxu0 0
  %1196 = vmatpush1.bf16.msra.mxu0 0
  %1197 = vmatprep.subr.bf16.mxu0 0
  %1198 = vmatpush1.bf16.msra.mxu0 0
  %1199 = vmatprep.subr.bf16.mxu0 0
  %1200 = vmatpush1.bf16.msra.mxu0 0
  %1201 = vmatprep.subr.bf16.mxu0 0
  %1202 = vmatpush1.bf16.msra.mxu0 0
  %1203 = vmatprep.subr.bf16.mxu0 0
  %1204 = vmatpush1.bf16.msra.mxu0 0
  %1205 = vmatprep.subr.bf16.mxu0 0
  %1206 = vmatpush1.bf16.msra.mxu0 0
  %1207 = vmatprep.subr.bf16.mxu0 0
  %1208 = vmatpush1.bf16.msra.mxu0 0
  %1209 = vmatprep.subr.bf16.mxu0 0
  %1210 = vmatpush1.bf16.msra.mxu0 0
  %1211 = vmatprep.mubr.bf16.mxu0 0
  %1212 = vmatmul.mubr.bf16.gmra.mrb[0].mxu0 %v1174
  %v1213 = vpop.f32.mrb[0].mxu0
  %v1214 = vadd.f32 0.0, %v1213
  %v1215 = vpop.f32.mrb[0].mxu0
  %v1216 = vpop.f32.mrb[0].mxu0
  %v1217 = vadd.f32 0.0, %v1216
  %v1218 = vpop.f32.mrb[0].mxu0
  %1219 = vmatprep.mubr.bf16.mxu0 0
  %1220 = vmatmul.mubr.bf16.gmra.mrb[0].mxu0 %v1177
  %v1221 = vpop.f32.mrb[0].mxu0
  %v1222 = vadd.f32 0.0, %v1221
  %v1223 = vpop.f32.mrb[0].mxu0
  %v1224 = vpop.f32.mrb[0].mxu0
  %v1225 = vpop.f32.mrb[0].mxu0
  %1226 = vdwg.mxu0
  %v1227 = vmul.f32 %v1214, %v936
  %v1228 = vmul.f32 %v1217, %v936
  %v1229 = vmul.f32 %v1222, %v936
  %v1230 = vadd.f32 %v1227, %v945
  %1232 = vrot.lane.b32.xlu0 %v1229, 127
  %v1233 = vpop.permute.xlu0 %1232
  %v1235 = vadd.f32 %v1228, %v1233
  %v1236 = vmul.f32 %v1230, %v1230
  %v1237 = vsel %vm114, %v1236, 0.0
  %1238 = vadd.xlane.f32.xlu0 %v1237
  %v1239 = vpop.xlane.xlu0 %1238
  %v1240 = vmul.f32 %v1239, 0.5
  %v1241 = vstv %s163
  %v1242 = vmul.f32 %v1241, %v1230
  %v1243 = vadd.f32 %v113, %v1242
  %v1245 = vsel %vm114, %v1243, 0
  %1247 = vmatprep.subr.mxu0 0.0
  %1248 = vmatpush1.msra.mxu0 %v261
  %1249 = vmatprep.subr.mxu0 0.0
  %1250 = vmatpush1.msra.mxu0 0.0
  %1251 = vmatprep.subr.mxu0 0.0
  %1252 = vmatpush1.msra.mxu0 0.0
  %1253 = vmatprep.subr.mxu0 0.0
  %1254 = vmatpush1.msra.mxu0 0.0
  %1255 = vmatprep.subr.mxu0 0.0
  %1256 = vmatpush1.msra.mxu0 0.0
  %1257 = vmatprep.subr.mxu0 0.0
  %1258 = vmatpush1.msra.mxu0 0.0
  %1259 = vmatprep.subr.mxu0 0.0
  %1260 = vmatpush1.msra.mxu0 0.0
  %1261 = vmatprep.subr.mxu0 0.0
  %1262 = vmatpush1.msra.mxu0 0.0
  %1263 = vmatprep.subr.mxu0 0.0
  %1264 = vmatpush1.msra.mxu0 0.0
  %1265 = vmatprep.subr.mxu0 0.0
  %1266 = vmatpush1.msra.mxu0 0.0
  %1267 = vmatprep.subr.mxu0 0.0
  %1268 = vmatpush1.msra.mxu0 0.0
  %1269 = vmatprep.subr.mxu0 0.0
  %1270 = vmatpush1.msra.mxu0 0.0
  %1271 = vmatprep.subr.mxu0 0.0
  %1272 = vmatpush1.msra.mxu0 0.0
  %1273 = vmatprep.subr.mxu0 0.0
  %1274 = vmatpush1.msra.mxu0 0.0
  %1275 = vmatprep.subr.mxu0 0.0
  %1276 = vmatpush1.msra.mxu0 0.0
  %1277 = vmatprep.subr.mxu0 0.0
  %1278 = vmatpush1.msra.mxu0 0.0
  %1279 = vmatprep.subr.mxu0 0.0
  %1280 = vmatpush1.msra.mxu0 0.0
  %1281 = vmatprep.subr.mxu0 0.0
  %1282 = vmatpush1.msra.mxu0 0.0
  %1283 = vmatprep.subr.mxu0 0.0
  %1284 = vmatpush1.msra.mxu0 0.0
  %1285 = vmatprep.subr.mxu0 0.0
  %1286 = vmatpush1.msra.mxu0 0.0
  %1287 = vmatprep.subr.mxu0 0.0
  %1288 = vmatpush1.msra.mxu0 0.0
  %1289 = vmatprep.subr.mxu0 0.0
  %1290 = vmatpush1.msra.mxu0 0.0
  %1291 = vmatprep.subr.mxu0 0.0
  %1292 = vmatpush1.msra.mxu0 0.0
  %1293 = vmatprep.subr.mxu0 0.0
  %1294 = vmatpush1.msra.mxu0 0.0
  %1295 = vmatprep.subr.mxu0 0.0
  %1296 = vmatpush1.msra.mxu0 0.0
  %1297 = vmatprep.subr.mxu0 0.0
  %1298 = vmatpush1.msra.mxu0 0.0
  %1299 = vmatprep.subr.mxu0 0.0
  %1300 = vmatpush1.msra.mxu0 0.0
  %1301 = vmatprep.subr.mxu0 0.0
  %1302 = vmatpush1.msra.mxu0 0.0
  %1303 = vmatprep.subr.mxu0 0.0
  %1304 = vmatpush1.msra.mxu0 0.0
  %1305 = vmatprep.subr.mxu0 0.0
  %1306 = vmatpush1.msra.mxu0 0.0
  %1307 = vmatprep.subr.mxu0 0.0
  %1308 = vmatpush1.msra.mxu0 0.0
  %1309 = vmatprep.subr.mxu0 0.0
  %1310 = vmatpush1.msra.mxu0 0.0
  %1311 = vmatprep.mubr.f32.mxu0 0.0
  %1312 = vmatmul.mubr.f32.gmra.mrb[0].mxu0 %v1245
  %v1313 = vpop.f32.mrb[0].mxu0
  %v1314 = vadd.f32 0.0, %v1313
  %v1315 = vpop.f32.mrb[0].mxu0
  %1316 = vdwg.mxu0
  %v1318 = vlaneseq
  %v1319 = vshrl.u32 %v1318, 7
  %v1320 = vsub.s32 0, %v1319
  %v1321 = vrot.slane %v219, %v1320
  %v1323 = vmul.f32 %v1314, %v1321
  %v1325 = vlaneseq
  %v1326 = vshrl.u32 %v1325, 7
  %v1327 = vsub.s32 0, %v1326
  %v1328 = vrot.slane %v222, %v1327
  %v1330 = vadd.f32 %v1323, %v1328
  %v1331 = vtanh.pop %v1330
  %v1332 = vmul.f32 %v1331, %v1331
  %v1333 = vsub.f32 1.0, %v1332
  %v1334 = vmul.f32 %v1321, %v1333
  %v1335 = vmul.f32 %v108, %v1334
  %v1336 = vmul.f32 %v112, %v1334
  %v1337 = vpack.c.bf16 %v1335, %v1331
  %v1338 = vpack.c.bf16 %v1336, %v1336
  %v1340 = vsel %vm367, %v1337, 0
  %v1343 = vsel %vm367, %v1338, 0
  %1345 = vmatprep.subr.bf16.mxu0 0
  %1346 = vmatpush1.bf16.msra.mxu0 %v363
  %1347 = vmatprep.subr.bf16.mxu0 0
  %1348 = vmatpush1.bf16.msra.mxu0 %v364
  %1349 = vmatprep.subr.bf16.mxu0 0
  %1350 = vmatpush1.bf16.msra.mxu0 0
  %1351 = vmatprep.subr.bf16.mxu0 0
  %1352 = vmatpush1.bf16.msra.mxu0 0
  %1353 = vmatprep.subr.bf16.mxu0 0
  %1354 = vmatpush1.bf16.msra.mxu0 0
  %1355 = vmatprep.subr.bf16.mxu0 0
  %1356 = vmatpush1.bf16.msra.mxu0 0
  %1357 = vmatprep.subr.bf16.mxu0 0
  %1358 = vmatpush1.bf16.msra.mxu0 0
  %1359 = vmatprep.subr.bf16.mxu0 0
  %1360 = vmatpush1.bf16.msra.mxu0 0
  %1361 = vmatprep.subr.bf16.mxu0 0
  %1362 = vmatpush1.bf16.msra.mxu0 0
  %1363 = vmatprep.subr.bf16.mxu0 0
  %1364 = vmatpush1.bf16.msra.mxu0 0
  %1365 = vmatprep.subr.bf16.mxu0 0
  %1366 = vmatpush1.bf16.msra.mxu0 0
  %1367 = vmatprep.subr.bf16.mxu0 0
  %1368 = vmatpush1.bf16.msra.mxu0 0
  %1369 = vmatprep.subr.bf16.mxu0 0
  %1370 = vmatpush1.bf16.msra.mxu0 0
  %1371 = vmatprep.subr.bf16.mxu0 0
  %1372 = vmatpush1.bf16.msra.mxu0 0
  %1373 = vmatprep.subr.bf16.mxu0 0
  %1374 = vmatpush1.bf16.msra.mxu0 0
  %1375 = vmatprep.subr.bf16.mxu0 0
  %1376 = vmatpush1.bf16.msra.mxu0 0
  %1377 = vmatprep.mubr.bf16.mxu0 0
  %1378 = vmatmul.mubr.bf16.gmra.mrb[0].mxu0 %v1340
  %v1379 = vpop.f32.mrb[0].mxu0
  %v1380 = vadd.f32 0.0, %v1379
  %v1381 = vpop.f32.mrb[0].mxu0
  %v1382 = vpop.f32.mrb[0].mxu0
  %v1383 = vadd.f32 0.0, %v1382
  %v1384 = vpop.f32.mrb[0].mxu0
  %1385 = vmatprep.mubr.bf16.mxu0 0
  %1386 = vmatmul.mubr.bf16.gmra.mrb[0].mxu0 %v1343
  %v1387 = vpop.f32.mrb[0].mxu0
  %v1388 = vadd.f32 0.0, %v1387
  %v1389 = vpop.f32.mrb[0].mxu0
  %v1390 = vpop.f32.mrb[0].mxu0
  %v1391 = vpop.f32.mrb[0].mxu0
  %1392 = vdwg.mxu0
  %v1394 = vlaneseq
  %v1395 = vshrl.u32 %v1394, 7
  %v1396 = vsub.s32 0, %v1395
  %v1397 = vrot.slane %v230, %v1396
  %v1399 = vmul.f32 %v1380, %v1397
  %v1400 = vmul.f32 %v1383, %v1397
  %v1401 = vmul.f32 %v1388, %v1397
  %v1403 = vlaneseq
  %v1404 = vshrl.u32 %v1403, 7
  %v1405 = vsub.s32 0, %v1404
  %v1406 = vrot.slane %v233, %v1405
  %v1408 = vadd.f32 %v1399, %v1406
  %v1409 = vtanh.pop %v1408
  %v1410 = vmul.f32 %v1409, %v1409
  %v1411 = vsub.f32 1.0, %v1410
  %v1412 = vmul.f32 %v1400, %v1411
  %v1413 = vmul.f32 %v1401, %v1411
  %v1414 = vpack.c.bf16 %v1412, %v1409
  %v1415 = vpack.c.bf16 %v1413, %v1413
  %v1417 = vsel %vm367, %v1414, 0
  %v1420 = vsel %vm367, %v1415, 0
  %1422 = vmatprep.subr.bf16.mxu0 0
  %1423 = vmatpush1.bf16.msra.mxu0 %v453
  %1424 = vmatprep.subr.bf16.mxu0 0
  %1425 = vmatpush1.bf16.msra.mxu0 %v454
  %1426 = vmatprep.subr.bf16.mxu0 0
  %1427 = vmatpush1.bf16.msra.mxu0 0
  %1428 = vmatprep.subr.bf16.mxu0 0
  %1429 = vmatpush1.bf16.msra.mxu0 0
  %1430 = vmatprep.subr.bf16.mxu0 0
  %1431 = vmatpush1.bf16.msra.mxu0 0
  %1432 = vmatprep.subr.bf16.mxu0 0
  %1433 = vmatpush1.bf16.msra.mxu0 0
  %1434 = vmatprep.subr.bf16.mxu0 0
  %1435 = vmatpush1.bf16.msra.mxu0 0
  %1436 = vmatprep.subr.bf16.mxu0 0
  %1437 = vmatpush1.bf16.msra.mxu0 0
  %1438 = vmatprep.subr.bf16.mxu0 0
  %1439 = vmatpush1.bf16.msra.mxu0 0
  %1440 = vmatprep.subr.bf16.mxu0 0
  %1441 = vmatpush1.bf16.msra.mxu0 0
  %1442 = vmatprep.subr.bf16.mxu0 0
  %1443 = vmatpush1.bf16.msra.mxu0 0
  %1444 = vmatprep.subr.bf16.mxu0 0
  %1445 = vmatpush1.bf16.msra.mxu0 0
  %1446 = vmatprep.subr.bf16.mxu0 0
  %1447 = vmatpush1.bf16.msra.mxu0 0
  %1448 = vmatprep.subr.bf16.mxu0 0
  %1449 = vmatpush1.bf16.msra.mxu0 0
  %1450 = vmatprep.subr.bf16.mxu0 0
  %1451 = vmatpush1.bf16.msra.mxu0 0
  %1452 = vmatprep.subr.bf16.mxu0 0
  %1453 = vmatpush1.bf16.msra.mxu0 0
  %1454 = vmatprep.mubr.bf16.mxu0 0
  %1455 = vmatmul.mubr.bf16.gmra.mrb[0].mxu0 %v1417
  %v1456 = vpop.f32.mrb[0].mxu0
  %v1457 = vadd.f32 0.0, %v1456
  %v1458 = vpop.f32.mrb[0].mxu0
  %v1459 = vpop.f32.mrb[0].mxu0
  %v1460 = vadd.f32 0.0, %v1459
  %v1461 = vpop.f32.mrb[0].mxu0
  %1462 = vmatprep.mubr.bf16.mxu0 0
  %1463 = vmatmul.mubr.bf16.gmra.mrb[0].mxu0 %v1420
  %v1464 = vpop.f32.mrb[0].mxu0
  %v1465 = vadd.f32 0.0, %v1464
  %v1466 = vpop.f32.mrb[0].mxu0
  %v1467 = vpop.f32.mrb[0].mxu0
  %v1468 = vpop.f32.mrb[0].mxu0
  %1469 = vdwg.mxu0
  %v1471 = vlaneseq
  %v1472 = vshrl.u32 %v1471, 7
  %v1473 = vsub.s32 0, %v1472
  %v1474 = vrot.slane %v241, %v1473
  %v1476 = vmul.f32 %v1457, %v1474
  %v1477 = vmul.f32 %v1460, %v1474
  %v1478 = vmul.f32 %v1465, %v1474
  %v1480 = vlaneseq
  %v1481 = vshrl.u32 %v1480, 7
  %v1482 = vsub.s32 0, %v1481
  %v1483 = vrot.slane %v244, %v1482
  %v1485 = vadd.f32 %v1476, %v1483
  %v1486 = vtanh.pop %v1485
  %v1487 = vmul.f32 %v1486, %v1486
  %v1488 = vsub.f32 1.0, %v1487
  %v1489 = vmul.f32 %v1477, %v1488
  %v1490 = vmul.f32 %v1478, %v1488
  %v1491 = vpack.c.bf16 %v1489, %v1486
  %v1492 = vpack.c.bf16 %v1490, %v1490
  %v1494 = vsel %vm367, %v1491, 0
  %v1497 = vsel %vm367, %v1492, 0
  %1499 = vmatprep.subr.bf16.mxu0 0
  %1500 = vmatpush1.bf16.msra.mxu0 %v542
  %1501 = vmatprep.subr.bf16.mxu0 0
  %1502 = vmatpush1.bf16.msra.mxu0 %v543
  %1503 = vmatprep.subr.bf16.mxu0 0
  %1504 = vmatpush1.bf16.msra.mxu0 0
  %1505 = vmatprep.subr.bf16.mxu0 0
  %1506 = vmatpush1.bf16.msra.mxu0 0
  %1507 = vmatprep.subr.bf16.mxu0 0
  %1508 = vmatpush1.bf16.msra.mxu0 0
  %1509 = vmatprep.subr.bf16.mxu0 0
  %1510 = vmatpush1.bf16.msra.mxu0 0
  %1511 = vmatprep.subr.bf16.mxu0 0
  %1512 = vmatpush1.bf16.msra.mxu0 0
  %1513 = vmatprep.subr.bf16.mxu0 0
  %1514 = vmatpush1.bf16.msra.mxu0 0
  %1515 = vmatprep.subr.bf16.mxu0 0
  %1516 = vmatpush1.bf16.msra.mxu0 0
  %1517 = vmatprep.subr.bf16.mxu0 0
  %1518 = vmatpush1.bf16.msra.mxu0 0
  %1519 = vmatprep.subr.bf16.mxu0 0
  %1520 = vmatpush1.bf16.msra.mxu0 0
  %1521 = vmatprep.subr.bf16.mxu0 0
  %1522 = vmatpush1.bf16.msra.mxu0 0
  %1523 = vmatprep.subr.bf16.mxu0 0
  %1524 = vmatpush1.bf16.msra.mxu0 0
  %1525 = vmatprep.subr.bf16.mxu0 0
  %1526 = vmatpush1.bf16.msra.mxu0 0
  %1527 = vmatprep.subr.bf16.mxu0 0
  %1528 = vmatpush1.bf16.msra.mxu0 0
  %1529 = vmatprep.subr.bf16.mxu0 0
  %1530 = vmatpush1.bf16.msra.mxu0 0
  %1531 = vmatprep.mubr.bf16.mxu0 0
  %1532 = vmatmul.mubr.bf16.gmra.mrb[0].mxu0 %v1494
  %v1533 = vpop.f32.mrb[0].mxu0
  %v1534 = vadd.f32 0.0, %v1533
  %v1535 = vpop.f32.mrb[0].mxu0
  %v1536 = vpop.f32.mrb[0].mxu0
  %v1537 = vadd.f32 0.0, %v1536
  %v1538 = vpop.f32.mrb[0].mxu0
  %1539 = vmatprep.mubr.bf16.mxu0 0
  %1540 = vmatmul.mubr.bf16.gmra.mrb[0].mxu0 %v1497
  %v1541 = vpop.f32.mrb[0].mxu0
  %v1542 = vadd.f32 0.0, %v1541
  %v1543 = vpop.f32.mrb[0].mxu0
  %v1544 = vpop.f32.mrb[0].mxu0
  %v1545 = vpop.f32.mrb[0].mxu0
  %1546 = vdwg.mxu0
  %v1548 = vlaneseq
  %v1549 = vshrl.u32 %v1548, 7
  %v1550 = vsub.s32 0, %v1549
  %v1551 = vrot.slane %v252, %v1550
  %v1553 = vmul.f32 %v1534, %v1551
  %v1554 = vmul.f32 %v1537, %v1551
  %v1555 = vmul.f32 %v1542, %v1551
  %v1557 = vlaneseq
  %v1558 = vshrl.u32 %v1557, 7
  %v1559 = vsub.s32 0, %v1558
  %v1560 = vrot.slane %v255, %v1559
  %v1562 = vadd.f32 %v1553, %v1560
  %1564 = vrot.lane.b32.xlu0 %v1555, 127
  %v1565 = vpop.permute.xlu0 %1564
  %v1567 = vadd.f32 %v1554, %v1565
  %v1568 = vmul.f32 %v1562, %v1562
  %v1569 = vsel %vm114, %v1568, 0.0
  %1570 = vadd.xlane.f32.xlu0 %v1569
  %v1571 = vpop.xlane.xlu0 %1570
  %v1572 = vmul.f32 %v1571, 0.5
  %v1573 = vrcp.pop 6.0
  %s1574 = vtos %v1573
  %s1575 = smul.f32 %s163, %s1574
  %v1576 = vadd.f32 %v947, %v1230
  %v1577 = vmul.f32 %v1576, 2.0
  %v1578 = vadd.f32 %v615, %v1577
  %v1579 = vadd.f32 %v1578, %v1562
  %v1580 = vstv %s1575
  %v1581 = vmul.f32 %v1580, %v1579
  %v1582 = vadd.f32 %v113, %v1581
  %v1583 = vadd.f32 %v952, %v1235
  %v1584 = vmul.f32 %v1583, 2.0
  %v1585 = vadd.f32 %v620, %v1584
  %v1586 = vadd.f32 %v1585, %v1567
  %v1587 = vmul.f32 %v1580, %v1586
  %v1588 = vadd.f32 %v1587, 0.0
  %v1589 = vadd.f32 %v957, %v1240
  %v1590 = vmul.f32 %v1589, 2.0
  %v1591 = vadd.f32 %v625, %v1590
  %v1592 = vadd.f32 %v1591, %v1572
  %v1593 = vmul.f32 %v1580, %v1592
  %v1594 = vadd.f32 %v1593, 0.0
  %s1595 = scalar_lea.vmem %s22, 8
  %1596 = vst.msk [vmem:[%s1595] sm:$0xff] %vm114, %v1582
  %s1597 = sld [smem:[#allocation3 + $0x1]]
  %s1598 = sld [smem:[#allocation3 + $0x2]]
  %s1599 = ssub.f32 %s1598, %s1597
  %s1600 = smul.f32 %s1599, 0.5
  %s1601 = sadd.f32 %s1597, %s1600
  %v1602 = vstv %s1601
  %v1603 = vmul.f32 %v1602, %v78
  %v1604 = vadd.f32 %v1603, %v79
  %v1605 = vxor.u32 %v1604, 2147483648
  %v1606 = vmul.f32 %v1605, 1.442695
  %v1607 = vpow.pop %v1606
  %v1608 = vadd.f32 %v1607, 1.0
  %v1609 = vrcp.pop %v1608
  %v1610 = vmul.f32 1.0, %v1609
  %v1611 = vmul.f32 %v77, %v1610
  %v1612 = vmul.f32 %v1602, %v80
  %v1613 = vadd.f32 %v1611, %v1612
  %v1614 = vmul.f32 %v1602, %v86
  %v1615 = vadd.f32 %v1614, %v87
  %v1616 = vxor.u32 %v1615, 2147483648
  %v1617 = vmul.f32 %v1616, 1.442695
  %v1618 = vpow.pop %v1617
  %v1619 = vadd.f32 %v1618, 1.0
  %v1620 = vrcp.pop %v1619
  %v1621 = vmul.f32 1.0, %v1620
  %v1622 = vmul.f32 %v85, %v1621
  %v1623 = vmul.f32 %v1602, %v88
  %v1624 = vadd.f32 %v1622, %v1623
  %v1625 = vmul.f32 %v1602, %v94
  %v1626 = vadd.f32 %v1625, %v95
  %v1627 = vxor.u32 %v1626, 2147483648
  %v1628 = vmul.f32 %v1627, 1.442695
  %v1629 = vpow.pop %v1628
  %v1630 = vadd.f32 %v1629, 1.0
  %v1631 = vrcp.pop %v1630
  %v1632 = vmul.f32 1.0, %v1631
  %v1633 = vmul.f32 %v93, %v1632
  %v1634 = vmul.f32 %v1602, %v96
  %v1635 = vadd.f32 %v1633, %v1634
  %v1636 = vmul.f32 %v1602, %v102
  %v1637 = vadd.f32 %v1636, %v103
  %v1638 = vxor.u32 %v1637, 2147483648
  %v1639 = vmul.f32 %v1638, 1.442695
  %v1640 = vpow.pop %v1639
  %v1641 = vadd.f32 %v1640, 1.0
  %v1642 = vrcp.pop %v1641
  %v1643 = vmul.f32 1.0, %v1642
  %v1644 = vmul.f32 %v101, %v1643
  %v1645 = vmul.f32 %v1602, %v104
  %v1646 = vadd.f32 %v1644, %v1645
  %v1647 = vstv %s1598
  %v1648 = vmul.f32 %v1647, %v78
  %v1649 = vadd.f32 %v1648, %v79
  %v1650 = vxor.u32 %v1649, 2147483648
  %v1651 = vmul.f32 %v1650, 1.442695
  %v1652 = vpow.pop %v1651
  %v1653 = vadd.f32 %v1652, 1.0
  %v1654 = vrcp.pop %v1653
  %v1655 = vmul.f32 1.0, %v1654
  %v1656 = vmul.f32 %v77, %v1655
  %v1657 = vmul.f32 %v1647, %v80
  %v1658 = vadd.f32 %v1656, %v1657
  %v1659 = vmul.f32 %v1647, %v86
  %v1660 = vadd.f32 %v1659, %v87
  %v1661 = vxor.u32 %v1660, 2147483648
  %v1662 = vmul.f32 %v1661, 1.442695
  %v1663 = vpow.pop %v1662
  %v1664 = vadd.f32 %v1663, 1.0
  %v1665 = vrcp.pop %v1664
  %v1666 = vmul.f32 1.0, %v1665
  %v1667 = vmul.f32 %v85, %v1666
  %v1668 = vmul.f32 %v1647, %v88
  %v1669 = vadd.f32 %v1667, %v1668
  %v1670 = vmul.f32 %v1647, %v94
  %v1671 = vadd.f32 %v1670, %v95
  %v1672 = vxor.u32 %v1671, 2147483648
  %v1673 = vmul.f32 %v1672, 1.442695
  %v1674 = vpow.pop %v1673
  %v1675 = vadd.f32 %v1674, 1.0
  %v1676 = vrcp.pop %v1675
  %v1677 = vmul.f32 1.0, %v1676
  %v1678 = vmul.f32 %v93, %v1677
  %v1679 = vmul.f32 %v1647, %v96
  %v1680 = vadd.f32 %v1678, %v1679
  %v1681 = vmul.f32 %v1647, %v102
  %v1682 = vadd.f32 %v1681, %v103
  %v1683 = vxor.u32 %v1682, 2147483648
  %v1684 = vmul.f32 %v1683, 1.442695
  %v1685 = vpow.pop %v1684
  %v1686 = vadd.f32 %v1685, 1.0
  %v1687 = vrcp.pop %v1686
  %v1688 = vmul.f32 1.0, %v1687
  %v1689 = vmul.f32 %v101, %v1688
  %v1690 = vmul.f32 %v1647, %v104
  %v1691 = vadd.f32 %v1689, %v1690
  %v1693 = vsel %vm114, %v1582, 0
  %1695 = vmatprep.subr.mxu0 0.0
  %1696 = vmatpush1.msra.mxu0 %v261
  %1697 = vmatprep.subr.mxu0 0.0
  %1698 = vmatpush1.msra.mxu0 0.0
  %1699 = vmatprep.subr.mxu0 0.0
  %1700 = vmatpush1.msra.mxu0 0.0
  %1701 = vmatprep.subr.mxu0 0.0
  %1702 = vmatpush1.msra.mxu0 0.0
  %1703 = vmatprep.subr.mxu0 0.0
  %1704 = vmatpush1.msra.mxu0 0.0
  %1705 = vmatprep.subr.mxu0 0.0
  %1706 = vmatpush1.msra.mxu0 0.0
  %1707 = vmatprep.subr.mxu0 0.0
  %1708 = vmatpush1.msra.mxu0 0.0
  %1709 = vmatprep.subr.mxu0 0.0
  %1710 = vmatpush1.msra.mxu0 0.0
  %1711 = vmatprep.subr.mxu0 0.0
  %1712 = vmatpush1.msra.mxu0 0.0
  %1713 = vmatprep.subr.mxu0 0.0
  %1714 = vmatpush1.msra.mxu0 0.0
  %1715 = vmatprep.subr.mxu0 0.0
  %1716 = vmatpush1.msra.mxu0 0.0
  %1717 = vmatprep.subr.mxu0 0.0
  %1718 = vmatpush1.msra.mxu0 0.0
  %1719 = vmatprep.subr.mxu0 0.0
  %1720 = vmatpush1.msra.mxu0 0.0
  %1721 = vmatprep.subr.mxu0 0.0
  %1722 = vmatpush1.msra.mxu0 0.0
  %1723 = vmatprep.subr.mxu0 0.0
  %1724 = vmatpush1.msra.mxu0 0.0
  %1725 = vmatprep.subr.mxu0 0.0
  %1726 = vmatpush1.msra.mxu0 0.0
  %1727 = vmatprep.subr.mxu0 0.0
  %1728 = vmatpush1.msra.mxu0 0.0
  %1729 = vmatprep.subr.mxu0 0.0
  %1730 = vmatpush1.msra.mxu0 0.0
  %1731 = vmatprep.subr.mxu0 0.0
  %1732 = vmatpush1.msra.mxu0 0.0
  %1733 = vmatprep.subr.mxu0 0.0
  %1734 = vmatpush1.msra.mxu0 0.0
  %1735 = vmatprep.subr.mxu0 0.0
  %1736 = vmatpush1.msra.mxu0 0.0
  %1737 = vmatprep.subr.mxu0 0.0
  %1738 = vmatpush1.msra.mxu0 0.0
  %1739 = vmatprep.subr.mxu0 0.0
  %1740 = vmatpush1.msra.mxu0 0.0
  %1741 = vmatprep.subr.mxu0 0.0
  %1742 = vmatpush1.msra.mxu0 0.0
  %1743 = vmatprep.subr.mxu0 0.0
  %1744 = vmatpush1.msra.mxu0 0.0
  %1745 = vmatprep.subr.mxu0 0.0
  %1746 = vmatpush1.msra.mxu0 0.0
  %1747 = vmatprep.subr.mxu0 0.0
  %1748 = vmatpush1.msra.mxu0 0.0
  %1749 = vmatprep.subr.mxu0 0.0
  %1750 = vmatpush1.msra.mxu0 0.0
  %1751 = vmatprep.subr.mxu0 0.0
  %1752 = vmatpush1.msra.mxu0 0.0
  %1753 = vmatprep.subr.mxu0 0.0
  %1754 = vmatpush1.msra.mxu0 0.0
  %1755 = vmatprep.subr.mxu0 0.0
  %1756 = vmatpush1.msra.mxu0 0.0
  %1757 = vmatprep.subr.mxu0 0.0
  %1758 = vmatpush1.msra.mxu0 0.0
  %1759 = vmatprep.mubr.f32.mxu0 0.0
  %1760 = vmatmul.mubr.f32.gmra.mrb[0].mxu0 %v1693
  %v1761 = vpop.f32.mrb[0].mxu0
  %v1762 = vadd.f32 0.0, %v1761
  %v1763 = vpop.f32.mrb[0].mxu0
  %1764 = vdwg.mxu0
  %v1765 = vmul.f32 %v1762, %v1321
  %v1766 = vadd.f32 %v1765, %v1328
  %v1767 = vtanh.pop %v1766
  %v1768 = vmul.f32 %v1767, %v1767
  %v1769 = vsub.f32 1.0, %v1768
  %v1770 = vmul.f32 %v1321, %v1769
  %v1771 = vmul.f32 %v108, %v1770
  %v1772 = vmul.f32 %v112, %v1770
  %v1773 = vpack.c.bf16 %v1771, %v1767
  %v1774 = vpack.c.bf16 %v1772, %v1772
  %v1776 = vsel %vm367, %v1773, 0
  %v1779 = vsel %vm367, %v1774, 0
  %1781 = vmatprep.subr.bf16.mxu0 0
  %1782 = vmatpush1.bf16.msra.mxu0 %v363
  %1783 = vmatprep.subr.bf16.mxu0 0
  %1784 = vmatpush1.bf16.msra.mxu0 %v364
  %1785 = vmatprep.subr.bf16.mxu0 0
  %1786 = vmatpush1.bf16.msra.mxu0 0
  %1787 = vmatprep.subr.bf16.mxu0 0
  %1788 = vmatpush1.bf16.msra.mxu0 0
  %1789 = vmatprep.subr.bf16.mxu0 0
  %1790 = vmatpush1.bf16.msra.mxu0 0
  %1791 = vmatprep.subr.bf16.mxu0 0
  %1792 = vmatpush1.bf16.msra.mxu0 0
  %1793 = vmatprep.subr.bf16.mxu0 0
  %1794 = vmatpush1.bf16.msra.mxu0 0
  %1795 = vmatprep.subr.bf16.mxu0 0
  %1796 = vmatpush1.bf16.msra.mxu0 0
  %1797 = vmatprep.subr.bf16.mxu0 0
  %1798 = vmatpush1.bf16.msra.mxu0 0
  %1799 = vmatprep.subr.bf16.mxu0 0
  %1800 = vmatpush1.bf16.msra.mxu0 0
  %1801 = vmatprep.subr.bf16.mxu0 0
  %1802 = vmatpush1.bf16.msra.mxu0 0
  %1803 = vmatprep.subr.bf16.mxu0 0
  %1804 = vmatpush1.bf16.msra.mxu0 0
  %1805 = vmatprep.subr.bf16.mxu0 0
  %1806 = vmatpush1.bf16.msra.mxu0 0
  %1807 = vmatprep.subr.bf16.mxu0 0
  %1808 = vmatpush1.bf16.msra.mxu0 0
  %1809 = vmatprep.subr.bf16.mxu0 0
  %1810 = vmatpush1.bf16.msra.mxu0 0
  %1811 = vmatprep.subr.bf16.mxu0 0
  %1812 = vmatpush1.bf16.msra.mxu0 0
  %1813 = vmatprep.mubr.bf16.mxu0 0
  %1814 = vmatmul.mubr.bf16.gmra.mrb[0].mxu0 %v1776
  %v1815 = vpop.f32.mrb[0].mxu0
  %v1816 = vadd.f32 0.0, %v1815
  %v1817 = vpop.f32.mrb[0].mxu0
  %v1818 = vpop.f32.mrb[0].mxu0
  %v1819 = vadd.f32 0.0, %v1818
  %v1820 = vpop.f32.mrb[0].mxu0
  %1821 = vmatprep.mubr.bf16.mxu0 0
  %1822 = vmatmul.mubr.bf16.gmra.mrb[0].mxu0 %v1779
  %v1823 = vpop.f32.mrb[0].mxu0
  %v1824 = vadd.f32 0.0, %v1823
  %v1825 = vpop.f32.mrb[0].mxu0
  %v1826 = vpop.f32.mrb[0].mxu0
  %v1827 = vpop.f32.mrb[0].mxu0
  %1828 = vdwg.mxu0
  %v1829 = vmul.f32 %v1816, %v1397
  %v1830 = vmul.f32 %v1819, %v1397
  %v1831 = vmul.f32 %v1824, %v1397
  %v1832 = vadd.f32 %v1829, %v1406
  %v1833 = vtanh.pop %v1832
  %v1834 = vmul.f32 %v1833, %v1833
  %v1835 = vsub.f32 1.0, %v1834
  %v1836 = vmul.f32 %v1830, %v1835
  %v1837 = vmul.f32 %v1831, %v1835
  %v1838 = vpack.c.bf16 %v1836, %v1833
  %v1839 = vpack.c.bf16 %v1837, %v1837
  %v1841 = vsel %vm367, %v1838, 0
  %v1844 = vsel %vm367, %v1839, 0
  %1846 = vmatprep.subr.bf16.mxu0 0
  %1847 = vmatpush1.bf16.msra.mxu0 %v453
  %1848 = vmatprep.subr.bf16.mxu0 0
  %1849 = vmatpush1.bf16.msra.mxu0 %v454
  %1850 = vmatprep.subr.bf16.mxu0 0
  %1851 = vmatpush1.bf16.msra.mxu0 0
  %1852 = vmatprep.subr.bf16.mxu0 0
  %1853 = vmatpush1.bf16.msra.mxu0 0
  %1854 = vmatprep.subr.bf16.mxu0 0
  %1855 = vmatpush1.bf16.msra.mxu0 0
  %1856 = vmatprep.subr.bf16.mxu0 0
  %1857 = vmatpush1.bf16.msra.mxu0 0
  %1858 = vmatprep.subr.bf16.mxu0 0
  %1859 = vmatpush1.bf16.msra.mxu0 0
  %1860 = vmatprep.subr.bf16.mxu0 0
  %1861 = vmatpush1.bf16.msra.mxu0 0
  %1862 = vmatprep.subr.bf16.mxu0 0
  %1863 = vmatpush1.bf16.msra.mxu0 0
  %1864 = vmatprep.subr.bf16.mxu0 0
  %1865 = vmatpush1.bf16.msra.mxu0 0
  %1866 = vmatprep.subr.bf16.mxu0 0
  %1867 = vmatpush1.bf16.msra.mxu0 0
  %1868 = vmatprep.subr.bf16.mxu0 0
  %1869 = vmatpush1.bf16.msra.mxu0 0
  %1870 = vmatprep.subr.bf16.mxu0 0
  %1871 = vmatpush1.bf16.msra.mxu0 0
  %1872 = vmatprep.subr.bf16.mxu0 0
  %1873 = vmatpush1.bf16.msra.mxu0 0
  %1874 = vmatprep.subr.bf16.mxu0 0
  %1875 = vmatpush1.bf16.msra.mxu0 0
  %1876 = vmatprep.subr.bf16.mxu0 0
  %1877 = vmatpush1.bf16.msra.mxu0 0
  %1878 = vmatprep.mubr.bf16.mxu0 0
  %1879 = vmatmul.mubr.bf16.gmra.mrb[0].mxu0 %v1841
  %v1880 = vpop.f32.mrb[0].mxu0
  %v1881 = vadd.f32 0.0, %v1880
  %v1882 = vpop.f32.mrb[0].mxu0
  %v1883 = vpop.f32.mrb[0].mxu0
  %v1884 = vadd.f32 0.0, %v1883
  %v1885 = vpop.f32.mrb[0].mxu0
  %1886 = vmatprep.mubr.bf16.mxu0 0
  %1887 = vmatmul.mubr.bf16.gmra.mrb[0].mxu0 %v1844
  %v1888 = vpop.f32.mrb[0].mxu0
  %v1889 = vadd.f32 0.0, %v1888
  %v1890 = vpop.f32.mrb[0].mxu0
  %v1891 = vpop.f32.mrb[0].mxu0
  %v1892 = vpop.f32.mrb[0].mxu0
  %1893 = vdwg.mxu0
  %v1894 = vmul.f32 %v1881, %v1474
  %v1895 = vmul.f32 %v1884, %v1474
  %v1896 = vmul.f32 %v1889, %v1474
  %v1897 = vadd.f32 %v1894, %v1483
  %v1898 = vtanh.pop %v1897
  %v1899 = vmul.f32 %v1898, %v1898
  %v1900 = vsub.f32 1.0, %v1899
  %v1901 = vmul.f32 %v1895, %v1900
  %v1902 = vmul.f32 %v1896, %v1900
  %v1903 = vpack.c.bf16 %v1901, %v1898
  %v1904 = vpack.c.bf16 %v1902, %v1902
  %v1906 = vsel %vm367, %v1903, 0
  %v1909 = vsel %vm367, %v1904, 0
  %1911 = vmatprep.subr.bf16.mxu0 0
  %1912 = vmatpush1.bf16.msra.mxu0 %v542
  %1913 = vmatprep.subr.bf16.mxu0 0
  %1914 = vmatpush1.bf16.msra.mxu0 %v543
  %1915 = vmatprep.subr.bf16.mxu0 0
  %1916 = vmatpush1.bf16.msra.mxu0 0
  %1917 = vmatprep.subr.bf16.mxu0 0
  %1918 = vmatpush1.bf16.msra.mxu0 0
  %1919 = vmatprep.subr.bf16.mxu0 0
  %1920 = vmatpush1.bf16.msra.mxu0 0
  %1921 = vmatprep.subr.bf16.mxu0 0
  %1922 = vmatpush1.bf16.msra.mxu0 0
  %1923 = vmatprep.subr.bf16.mxu0 0
  %1924 = vmatpush1.bf16.msra.mxu0 0
  %1925 = vmatprep.subr.bf16.mxu0 0
  %1926 = vmatpush1.bf16.msra.mxu0 0
  %1927 = vmatprep.subr.bf16.mxu0 0
  %1928 = vmatpush1.bf16.msra.mxu0 0
  %1929 = vmatprep.subr.bf16.mxu0 0
  %1930 = vmatpush1.bf16.msra.mxu0 0
  %1931 = vmatprep.subr.bf16.mxu0 0
  %1932 = vmatpush1.bf16.msra.mxu0 0
  %1933 = vmatprep.subr.bf16.mxu0 0
  %1934 = vmatpush1.bf16.msra.mxu0 0
  %1935 = vmatprep.subr.bf16.mxu0 0
  %1936 = vmatpush1.bf16.msra.mxu0 0
  %1937 = vmatprep.subr.bf16.mxu0 0
  %1938 = vmatpush1.bf16.msra.mxu0 0
  %1939 = vmatprep.subr.bf16.mxu0 0
  %1940 = vmatpush1.bf16.msra.mxu0 0
  %1941 = vmatprep.subr.bf16.mxu0 0
  %1942 = vmatpush1.bf16.msra.mxu0 0
  %1943 = vmatprep.mubr.bf16.mxu0 0
  %1944 = vmatmul.mubr.bf16.gmra.mrb[0].mxu0 %v1906
  %v1945 = vpop.f32.mrb[0].mxu0
  %v1946 = vadd.f32 0.0, %v1945
  %v1947 = vpop.f32.mrb[0].mxu0
  %v1948 = vpop.f32.mrb[0].mxu0
  %v1949 = vadd.f32 0.0, %v1948
  %v1950 = vpop.f32.mrb[0].mxu0
  %1951 = vmatprep.mubr.bf16.mxu0 0
  %1952 = vmatmul.mubr.bf16.gmra.mrb[0].mxu0 %v1909
  %v1953 = vpop.f32.mrb[0].mxu0
  %v1954 = vadd.f32 0.0, %v1953
  %v1955 = vpop.f32.mrb[0].mxu0
  %v1956 = vpop.f32.mrb[0].mxu0
  %v1957 = vpop.f32.mrb[0].mxu0
  %1958 = vdwg.mxu0
  %v1959 = vmul.f32 %v1946, %v1551
  %v1960 = vmul.f32 %v1949, %v1551
  %v1961 = vmul.f32 %v1954, %v1551
  %v1962 = vadd.f32 %v1959, %v1560
  %1964 = vrot.lane.b32.xlu0 %v1961, 127
  %v1965 = vpop.permute.xlu0 %1964
  %v1967 = vadd.f32 %v1960, %v1965
  %v1968 = vmul.f32 %v1962, %v1962
  %v1969 = vsel %vm114, %v1968, 0.0
  %1970 = vadd.xlane.f32.xlu0 %v1969
  %v1971 = vpop.xlane.xlu0 %1970
  %v1972 = vmul.f32 %v1971, 0.5
  %v1973 = vstv %s1600
  %v1974 = vmul.f32 %v1973, %v1962
  %v1975 = vadd.f32 %v1582, %v1974
  %v1977 = vsel %vm114, %v1975, 0
  %1979 = vmatprep.subr.mxu0 0.0
  %1980 = vmatpush1.msra.mxu0 %v261
  %1981 = vmatprep.subr.mxu0 0.0
  %1982 = vmatpush1.msra.mxu0 0.0
  %1983 = vmatprep.subr.mxu0 0.0
  %1984 = vmatpush1.msra.mxu0 0.0
  %1985 = vmatprep.subr.mxu0 0.0
  %1986 = vmatpush1.msra.mxu0 0.0
  %1987 = vmatprep.subr.mxu0 0.0
  %1988 = vmatpush1.msra.mxu0 0.0
  %1989 = vmatprep.subr.mxu0 0.0
  %1990 = vmatpush1.msra.mxu0 0.0
  %1991 = vmatprep.subr.mxu0 0.0
  %1992 = vmatpush1.msra.mxu0 0.0
  %1993 = vmatprep.subr.mxu0 0.0
  %1994 = vmatpush1.msra.mxu0 0.0
  %1995 = vmatprep.subr.mxu0 0.0
  %1996 = vmatpush1.msra.mxu0 0.0
  %1997 = vmatprep.subr.mxu0 0.0
  %1998 = vmatpush1.msra.mxu0 0.0
  %1999 = vmatprep.subr.mxu0 0.0
  %2000 = vmatpush1.msra.mxu0 0.0
  %2001 = vmatprep.subr.mxu0 0.0
  %2002 = vmatpush1.msra.mxu0 0.0
  %2003 = vmatprep.subr.mxu0 0.0
  %2004 = vmatpush1.msra.mxu0 0.0
  %2005 = vmatprep.subr.mxu0 0.0
  %2006 = vmatpush1.msra.mxu0 0.0
  %2007 = vmatprep.subr.mxu0 0.0
  %2008 = vmatpush1.msra.mxu0 0.0
  %2009 = vmatprep.subr.mxu0 0.0
  %2010 = vmatpush1.msra.mxu0 0.0
  %2011 = vmatprep.subr.mxu0 0.0
  %2012 = vmatpush1.msra.mxu0 0.0
  %2013 = vmatprep.subr.mxu0 0.0
  %2014 = vmatpush1.msra.mxu0 0.0
  %2015 = vmatprep.subr.mxu0 0.0
  %2016 = vmatpush1.msra.mxu0 0.0
  %2017 = vmatprep.subr.mxu0 0.0
  %2018 = vmatpush1.msra.mxu0 0.0
  %2019 = vmatprep.subr.mxu0 0.0
  %2020 = vmatpush1.msra.mxu0 0.0
  %2021 = vmatprep.subr.mxu0 0.0
  %2022 = vmatpush1.msra.mxu0 0.0
  %2023 = vmatprep.subr.mxu0 0.0
  %2024 = vmatpush1.msra.mxu0 0.0
  %2025 = vmatprep.subr.mxu0 0.0
  %2026 = vmatpush1.msra.mxu0 0.0
  %2027 = vmatprep.subr.mxu0 0.0
  %2028 = vmatpush1.msra.mxu0 0.0
  %2029 = vmatprep.subr.mxu0 0.0
  %2030 = vmatpush1.msra.mxu0 0.0
  %2031 = vmatprep.subr.mxu0 0.0
  %2032 = vmatpush1.msra.mxu0 0.0
  %2033 = vmatprep.subr.mxu0 0.0
  %2034 = vmatpush1.msra.mxu0 0.0
  %2035 = vmatprep.subr.mxu0 0.0
  %2036 = vmatpush1.msra.mxu0 0.0
  %2037 = vmatprep.subr.mxu0 0.0
  %2038 = vmatpush1.msra.mxu0 0.0
  %2039 = vmatprep.subr.mxu0 0.0
  %2040 = vmatpush1.msra.mxu0 0.0
  %2041 = vmatprep.subr.mxu0 0.0
  %2042 = vmatpush1.msra.mxu0 0.0
  %2043 = vmatprep.mubr.f32.mxu0 0.0
  %2044 = vmatmul.mubr.f32.gmra.mrb[0].mxu0 %v1977
  %v2045 = vpop.f32.mrb[0].mxu0
  %v2046 = vadd.f32 0.0, %v2045
  %v2047 = vpop.f32.mrb[0].mxu0
  %2048 = vdwg.mxu0
  %v2050 = vlaneseq
  %v2051 = vshrl.u32 %v2050, 7
  %v2052 = vsub.s32 0, %v2051
  %v2053 = vrot.slane %v1610, %v2052
  %v2055 = vmul.f32 %v2046, %v2053
  %v2057 = vlaneseq
  %v2058 = vshrl.u32 %v2057, 7
  %v2059 = vsub.s32 0, %v2058
  %v2060 = vrot.slane %v1613, %v2059
  %v2062 = vadd.f32 %v2055, %v2060
  %v2063 = vtanh.pop %v2062
  %v2064 = vmul.f32 %v2063, %v2063
  %v2065 = vsub.f32 1.0, %v2064
  %v2066 = vmul.f32 %v2053, %v2065
  %v2067 = vmul.f32 %v108, %v2066
  %v2068 = vmul.f32 %v112, %v2066
  %v2069 = vpack.c.bf16 %v2067, %v2063
  %v2070 = vpack.c.bf16 %v2068, %v2068
  %v2072 = vsel %vm367, %v2069, 0
  %v2075 = vsel %vm367, %v2070, 0
  %2077 = vmatprep.subr.bf16.mxu0 0
  %2078 = vmatpush1.bf16.msra.mxu0 %v363
  %2079 = vmatprep.subr.bf16.mxu0 0
  %2080 = vmatpush1.bf16.msra.mxu0 %v364
  %2081 = vmatprep.subr.bf16.mxu0 0
  %2082 = vmatpush1.bf16.msra.mxu0 0
  %2083 = vmatprep.subr.bf16.mxu0 0
  %2084 = vmatpush1.bf16.msra.mxu0 0
  %2085 = vmatprep.subr.bf16.mxu0 0
  %2086 = vmatpush1.bf16.msra.mxu0 0
  %2087 = vmatprep.subr.bf16.mxu0 0
  %2088 = vmatpush1.bf16.msra.mxu0 0
  %2089 = vmatprep.subr.bf16.mxu0 0
  %2090 = vmatpush1.bf16.msra.mxu0 0
  %2091 = vmatprep.subr.bf16.mxu0 0
  %2092 = vmatpush1.bf16.msra.mxu0 0
  %2093 = vmatprep.subr.bf16.mxu0 0
  %2094 = vmatpush1.bf16.msra.mxu0 0
  %2095 = vmatprep.subr.bf16.mxu0 0
  %2096 = vmatpush1.bf16.msra.mxu0 0
  %2097 = vmatprep.subr.bf16.mxu0 0
  %2098 = vmatpush1.bf16.msra.mxu0 0
  %2099 = vmatprep.subr.bf16.mxu0 0
  %2100 = vmatpush1.bf16.msra.mxu0 0
  %2101 = vmatprep.subr.bf16.mxu0 0
  %2102 = vmatpush1.bf16.msra.mxu0 0
  %2103 = vmatprep.subr.bf16.mxu0 0
  %2104 = vmatpush1.bf16.msra.mxu0 0
  %2105 = vmatprep.subr.bf16.mxu0 0
  %2106 = vmatpush1.bf16.msra.mxu0 0
  %2107 = vmatprep.subr.bf16.mxu0 0
  %2108 = vmatpush1.bf16.msra.mxu0 0
  %2109 = vmatprep.mubr.bf16.mxu0 0
  %2110 = vmatmul.mubr.bf16.gmra.mrb[0].mxu0 %v2072
  %v2111 = vpop.f32.mrb[0].mxu0
  %v2112 = vadd.f32 0.0, %v2111
  %v2113 = vpop.f32.mrb[0].mxu0
  %v2114 = vpop.f32.mrb[0].mxu0
  %v2115 = vadd.f32 0.0, %v2114
  %v2116 = vpop.f32.mrb[0].mxu0
  %2117 = vmatprep.mubr.bf16.mxu0 0
  %2118 = vmatmul.mubr.bf16.gmra.mrb[0].mxu0 %v2075
  %v2119 = vpop.f32.mrb[0].mxu0
  %v2120 = vadd.f32 0.0, %v2119
  %v2121 = vpop.f32.mrb[0].mxu0
  %v2122 = vpop.f32.mrb[0].mxu0
  %v2123 = vpop.f32.mrb[0].mxu0
  %2124 = vdwg.mxu0
  %v2126 = vlaneseq
  %v2127 = vshrl.u32 %v2126, 7
  %v2128 = vsub.s32 0, %v2127
  %v2129 = vrot.slane %v1621, %v2128
  %v2131 = vmul.f32 %v2112, %v2129
  %v2132 = vmul.f32 %v2115, %v2129
  %v2133 = vmul.f32 %v2120, %v2129
  %v2135 = vlaneseq
  %v2136 = vshrl.u32 %v2135, 7
  %v2137 = vsub.s32 0, %v2136
  %v2138 = vrot.slane %v1624, %v2137
  %v2140 = vadd.f32 %v2131, %v2138
  %v2141 = vtanh.pop %v2140
  %v2142 = vmul.f32 %v2141, %v2141
  %v2143 = vsub.f32 1.0, %v2142
  %v2144 = vmul.f32 %v2132, %v2143
  %v2145 = vmul.f32 %v2133, %v2143
  %v2146 = vpack.c.bf16 %v2144, %v2141
  %v2147 = vpack.c.bf16 %v2145, %v2145
  %v2149 = vsel %vm367, %v2146, 0
  %v2152 = vsel %vm367, %v2147, 0
  %2154 = vmatprep.subr.bf16.mxu0 0
  %2155 = vmatpush1.bf16.msra.mxu0 %v453
  %2156 = vmatprep.subr.bf16.mxu0 0
  %2157 = vmatpush1.bf16.msra.mxu0 %v454
  %2158 = vmatprep.subr.bf16.mxu0 0
  %2159 = vmatpush1.bf16.msra.mxu0 0
  %2160 = vmatprep.subr.bf16.mxu0 0
  %2161 = vmatpush1.bf16.msra.mxu0 0
  %2162 = vmatprep.subr.bf16.mxu0 0
  %2163 = vmatpush1.bf16.msra.mxu0 0
  %2164 = vmatprep.subr.bf16.mxu0 0
  %2165 = vmatpush1.bf16.msra.mxu0 0
  %2166 = vmatprep.subr.bf16.mxu0 0
  %2167 = vmatpush1.bf16.msra.mxu0 0
  %2168 = vmatprep.subr.bf16.mxu0 0
  %2169 = vmatpush1.bf16.msra.mxu0 0
  %2170 = vmatprep.subr.bf16.mxu0 0
  %2171 = vmatpush1.bf16.msra.mxu0 0
  %2172 = vmatprep.subr.bf16.mxu0 0
  %2173 = vmatpush1.bf16.msra.mxu0 0
  %2174 = vmatprep.subr.bf16.mxu0 0
  %2175 = vmatpush1.bf16.msra.mxu0 0
  %2176 = vmatprep.subr.bf16.mxu0 0
  %2177 = vmatpush1.bf16.msra.mxu0 0
  %2178 = vmatprep.subr.bf16.mxu0 0
  %2179 = vmatpush1.bf16.msra.mxu0 0
  %2180 = vmatprep.subr.bf16.mxu0 0
  %2181 = vmatpush1.bf16.msra.mxu0 0
  %2182 = vmatprep.subr.bf16.mxu0 0
  %2183 = vmatpush1.bf16.msra.mxu0 0
  %2184 = vmatprep.subr.bf16.mxu0 0
  %2185 = vmatpush1.bf16.msra.mxu0 0
  %2186 = vmatprep.mubr.bf16.mxu0 0
  %2187 = vmatmul.mubr.bf16.gmra.mrb[0].mxu0 %v2149
  %v2188 = vpop.f32.mrb[0].mxu0
  %v2189 = vadd.f32 0.0, %v2188
  %v2190 = vpop.f32.mrb[0].mxu0
  %v2191 = vpop.f32.mrb[0].mxu0
  %v2192 = vadd.f32 0.0, %v2191
  %v2193 = vpop.f32.mrb[0].mxu0
  %2194 = vmatprep.mubr.bf16.mxu0 0
  %2195 = vmatmul.mubr.bf16.gmra.mrb[0].mxu0 %v2152
  %v2196 = vpop.f32.mrb[0].mxu0
  %v2197 = vadd.f32 0.0, %v2196
  %v2198 = vpop.f32.mrb[0].mxu0
  %v2199 = vpop.f32.mrb[0].mxu0
  %v2200 = vpop.f32.mrb[0].mxu0
  %2201 = vdwg.mxu0
  %v2203 = vlaneseq
  %v2204 = vshrl.u32 %v2203, 7
  %v2205 = vsub.s32 0, %v2204
  %v2206 = vrot.slane %v1632, %v2205
  %v2208 = vmul.f32 %v2189, %v2206
  %v2209 = vmul.f32 %v2192, %v2206
  %v2210 = vmul.f32 %v2197, %v2206
  %v2212 = vlaneseq
  %v2213 = vshrl.u32 %v2212, 7
  %v2214 = vsub.s32 0, %v2213
  %v2215 = vrot.slane %v1635, %v2214
  %v2217 = vadd.f32 %v2208, %v2215
  %v2218 = vtanh.pop %v2217
  %v2219 = vmul.f32 %v2218, %v2218
  %v2220 = vsub.f32 1.0, %v2219
  %v2221 = vmul.f32 %v2209, %v2220
  %v2222 = vmul.f32 %v2210, %v2220
  %v2223 = vpack.c.bf16 %v2221, %v2218
  %v2224 = vpack.c.bf16 %v2222, %v2222
  %v2226 = vsel %vm367, %v2223, 0
  %v2229 = vsel %vm367, %v2224, 0
  %2231 = vmatprep.subr.bf16.mxu0 0
  %2232 = vmatpush1.bf16.msra.mxu0 %v542
  %2233 = vmatprep.subr.bf16.mxu0 0
  %2234 = vmatpush1.bf16.msra.mxu0 %v543
  %2235 = vmatprep.subr.bf16.mxu0 0
  %2236 = vmatpush1.bf16.msra.mxu0 0
  %2237 = vmatprep.subr.bf16.mxu0 0
  %2238 = vmatpush1.bf16.msra.mxu0 0
  %2239 = vmatprep.subr.bf16.mxu0 0
  %2240 = vmatpush1.bf16.msra.mxu0 0
  %2241 = vmatprep.subr.bf16.mxu0 0
  %2242 = vmatpush1.bf16.msra.mxu0 0
  %2243 = vmatprep.subr.bf16.mxu0 0
  %2244 = vmatpush1.bf16.msra.mxu0 0
  %2245 = vmatprep.subr.bf16.mxu0 0
  %2246 = vmatpush1.bf16.msra.mxu0 0
  %2247 = vmatprep.subr.bf16.mxu0 0
  %2248 = vmatpush1.bf16.msra.mxu0 0
  %2249 = vmatprep.subr.bf16.mxu0 0
  %2250 = vmatpush1.bf16.msra.mxu0 0
  %2251 = vmatprep.subr.bf16.mxu0 0
  %2252 = vmatpush1.bf16.msra.mxu0 0
  %2253 = vmatprep.subr.bf16.mxu0 0
  %2254 = vmatpush1.bf16.msra.mxu0 0
  %2255 = vmatprep.subr.bf16.mxu0 0
  %2256 = vmatpush1.bf16.msra.mxu0 0
  %2257 = vmatprep.subr.bf16.mxu0 0
  %2258 = vmatpush1.bf16.msra.mxu0 0
  %2259 = vmatprep.subr.bf16.mxu0 0
  %2260 = vmatpush1.bf16.msra.mxu0 0
  %2261 = vmatprep.subr.bf16.mxu0 0
  %2262 = vmatpush1.bf16.msra.mxu0 0
  %2263 = vmatprep.mubr.bf16.mxu0 0
  %2264 = vmatmul.mubr.bf16.gmra.mrb[0].mxu0 %v2226
  %v2265 = vpop.f32.mrb[0].mxu0
  %v2266 = vadd.f32 0.0, %v2265
  %v2267 = vpop.f32.mrb[0].mxu0
  %v2268 = vpop.f32.mrb[0].mxu0
  %v2269 = vadd.f32 0.0, %v2268
  %v2270 = vpop.f32.mrb[0].mxu0
  %2271 = vmatprep.mubr.bf16.mxu0 0
  %2272 = vmatmul.mubr.bf16.gmra.mrb[0].mxu0 %v2229
  %v2273 = vpop.f32.mrb[0].mxu0
  %v2274 = vadd.f32 0.0, %v2273
  %v2275 = vpop.f32.mrb[0].mxu0
  %v2276 = vpop.f32.mrb[0].mxu0
  %v2277 = vpop.f32.mrb[0].mxu0
  %2278 = vdwg.mxu0
  %v2280 = vlaneseq
  %v2281 = vshrl.u32 %v2280, 7
  %v2282 = vsub.s32 0, %v2281
  %v2283 = vrot.slane %v1643, %v2282
  %v2285 = vmul.f32 %v2266, %v2283
  %v2286 = vmul.f32 %v2269, %v2283
  %v2287 = vmul.f32 %v2274, %v2283
  %v2289 = vlaneseq
  %v2290 = vshrl.u32 %v2289, 7
  %v2291 = vsub.s32 0, %v2290
  %v2292 = vrot.slane %v1646, %v2291
  %v2294 = vadd.f32 %v2285, %v2292
  %2296 = vrot.lane.b32.xlu0 %v2287, 127
  %v2297 = vpop.permute.xlu0 %2296
  %v2299 = vadd.f32 %v2286, %v2297
  %v2300 = vmul.f32 %v2294, %v2294
  %v2301 = vsel %vm114, %v2300, 0.0
  %2302 = vadd.xlane.f32.xlu0 %v2301
  %v2303 = vpop.xlane.xlu0 %2302
  %v2304 = vmul.f32 %v2303, 0.5
  %v2305 = vmul.f32 %v1973, %v2294
  %v2306 = vadd.f32 %v1582, %v2305
  %v2308 = vsel %vm114, %v2306, 0
  %2310 = vmatprep.subr.mxu0 0.0
  %2311 = vmatpush1.msra.mxu0 %v261
  %2312 = vmatprep.subr.mxu0 0.0
  %2313 = vmatpush1.msra.mxu0 0.0
  %2314 = vmatprep.subr.mxu0 0.0
  %2315 = vmatpush1.msra.mxu0 0.0
  %2316 = vmatprep.subr.mxu0 0.0
  %2317 = vmatpush1.msra.mxu0 0.0
  %2318 = vmatprep.subr.mxu0 0.0
  %2319 = vmatpush1.msra.mxu0 0.0
  %2320 = vmatprep.subr.mxu0 0.0
  %2321 = vmatpush1.msra.mxu0 0.0
  %2322 = vmatprep.subr.mxu0 0.0
  %2323 = vmatpush1.msra.mxu0 0.0
  %2324 = vmatprep.subr.mxu0 0.0
  %2325 = vmatpush1.msra.mxu0 0.0
  %2326 = vmatprep.subr.mxu0 0.0
  %2327 = vmatpush1.msra.mxu0 0.0
  %2328 = vmatprep.subr.mxu0 0.0
  %2329 = vmatpush1.msra.mxu0 0.0
  %2330 = vmatprep.subr.mxu0 0.0
  %2331 = vmatpush1.msra.mxu0 0.0
  %2332 = vmatprep.subr.mxu0 0.0
  %2333 = vmatpush1.msra.mxu0 0.0
  %2334 = vmatprep.subr.mxu0 0.0
  %2335 = vmatpush1.msra.mxu0 0.0
  %2336 = vmatprep.subr.mxu0 0.0
  %2337 = vmatpush1.msra.mxu0 0.0
  %2338 = vmatprep.subr.mxu0 0.0
  %2339 = vmatpush1.msra.mxu0 0.0
  %2340 = vmatprep.subr.mxu0 0.0
  %2341 = vmatpush1.msra.mxu0 0.0
  %2342 = vmatprep.subr.mxu0 0.0
  %2343 = vmatpush1.msra.mxu0 0.0
  %2344 = vmatprep.subr.mxu0 0.0
  %2345 = vmatpush1.msra.mxu0 0.0
  %2346 = vmatprep.subr.mxu0 0.0
  %2347 = vmatpush1.msra.mxu0 0.0
  %2348 = vmatprep.subr.mxu0 0.0
  %2349 = vmatpush1.msra.mxu0 0.0
  %2350 = vmatprep.subr.mxu0 0.0
  %2351 = vmatpush1.msra.mxu0 0.0
  %2352 = vmatprep.subr.mxu0 0.0
  %2353 = vmatpush1.msra.mxu0 0.0
  %2354 = vmatprep.subr.mxu0 0.0
  %2355 = vmatpush1.msra.mxu0 0.0
  %2356 = vmatprep.subr.mxu0 0.0
  %2357 = vmatpush1.msra.mxu0 0.0
  %2358 = vmatprep.subr.mxu0 0.0
  %2359 = vmatpush1.msra.mxu0 0.0
  %2360 = vmatprep.subr.mxu0 0.0
  %2361 = vmatpush1.msra.mxu0 0.0
  %2362 = vmatprep.subr.mxu0 0.0
  %2363 = vmatpush1.msra.mxu0 0.0
  %2364 = vmatprep.subr.mxu0 0.0
  %2365 = vmatpush1.msra.mxu0 0.0
  %2366 = vmatprep.subr.mxu0 0.0
  %2367 = vmatpush1.msra.mxu0 0.0
  %2368 = vmatprep.subr.mxu0 0.0
  %2369 = vmatpush1.msra.mxu0 0.0
  %2370 = vmatprep.subr.mxu0 0.0
  %2371 = vmatpush1.msra.mxu0 0.0
  %2372 = vmatprep.subr.mxu0 0.0
  %2373 = vmatpush1.msra.mxu0 0.0
  %2374 = vmatprep.mubr.f32.mxu0 0.0
  %2375 = vmatmul.mubr.f32.gmra.mrb[0].mxu0 %v2308
  %v2376 = vpop.f32.mrb[0].mxu0
  %v2377 = vadd.f32 0.0, %v2376
  %v2378 = vpop.f32.mrb[0].mxu0
  %2379 = vdwg.mxu0
  %v2380 = vmul.f32 %v2377, %v2053
  %v2381 = vadd.f32 %v2380, %v2060
  %v2382 = vtanh.pop %v2381
  %v2383 = vmul.f32 %v2382, %v2382
  %v2384 = vsub.f32 1.0, %v2383
  %v2385 = vmul.f32 %v2053, %v2384
  %v2386 = vmul.f32 %v108, %v2385
  %v2387 = vmul.f32 %v112, %v2385
  %v2388 = vpack.c.bf16 %v2386, %v2382
  %v2389 = vpack.c.bf16 %v2387, %v2387
  %v2391 = vsel %vm367, %v2388, 0
  %v2394 = vsel %vm367, %v2389, 0
  %2396 = vmatprep.subr.bf16.mxu0 0
  %2397 = vmatpush1.bf16.msra.mxu0 %v363
  %2398 = vmatprep.subr.bf16.mxu0 0
  %2399 = vmatpush1.bf16.msra.mxu0 %v364
  %2400 = vmatprep.subr.bf16.mxu0 0
  %2401 = vmatpush1.bf16.msra.mxu0 0
  %2402 = vmatprep.subr.bf16.mxu0 0
  %2403 = vmatpush1.bf16.msra.mxu0 0
  %2404 = vmatprep.subr.bf16.mxu0 0
  %2405 = vmatpush1.bf16.msra.mxu0 0
  %2406 = vmatprep.subr.bf16.mxu0 0
  %2407 = vmatpush1.bf16.msra.mxu0 0
  %2408 = vmatprep.subr.bf16.mxu0 0
  %2409 = vmatpush1.bf16.msra.mxu0 0
  %2410 = vmatprep.subr.bf16.mxu0 0
  %2411 = vmatpush1.bf16.msra.mxu0 0
  %2412 = vmatprep.subr.bf16.mxu0 0
  %2413 = vmatpush1.bf16.msra.mxu0 0
  %2414 = vmatprep.subr.bf16.mxu0 0
  %2415 = vmatpush1.bf16.msra.mxu0 0
  %2416 = vmatprep.subr.bf16.mxu0 0
  %2417 = vmatpush1.bf16.msra.mxu0 0
  %2418 = vmatprep.subr.bf16.mxu0 0
  %2419 = vmatpush1.bf16.msra.mxu0 0
  %2420 = vmatprep.subr.bf16.mxu0 0
  %2421 = vmatpush1.bf16.msra.mxu0 0
  %2422 = vmatprep.subr.bf16.mxu0 0
  %2423 = vmatpush1.bf16.msra.mxu0 0
  %2424 = vmatprep.subr.bf16.mxu0 0
  %2425 = vmatpush1.bf16.msra.mxu0 0
  %2426 = vmatprep.subr.bf16.mxu0 0
  %2427 = vmatpush1.bf16.msra.mxu0 0
  %2428 = vmatprep.mubr.bf16.mxu0 0
  %2429 = vmatmul.mubr.bf16.gmra.mrb[0].mxu0 %v2391
  %v2430 = vpop.f32.mrb[0].mxu0
  %v2431 = vadd.f32 0.0, %v2430
  %v2432 = vpop.f32.mrb[0].mxu0
  %v2433 = vpop.f32.mrb[0].mxu0
  %v2434 = vadd.f32 0.0, %v2433
  %v2435 = vpop.f32.mrb[0].mxu0
  %2436 = vmatprep.mubr.bf16.mxu0 0
  %2437 = vmatmul.mubr.bf16.gmra.mrb[0].mxu0 %v2394
  %v2438 = vpop.f32.mrb[0].mxu0
  %v2439 = vadd.f32 0.0, %v2438
  %v2440 = vpop.f32.mrb[0].mxu0
  %v2441 = vpop.f32.mrb[0].mxu0
  %v2442 = vpop.f32.mrb[0].mxu0
  %2443 = vdwg.mxu0
  %v2444 = vmul.f32 %v2431, %v2129
  %v2445 = vmul.f32 %v2434, %v2129
  %v2446 = vmul.f32 %v2439, %v2129
  %v2447 = vadd.f32 %v2444, %v2138
  %v2448 = vtanh.pop %v2447
  %v2449 = vmul.f32 %v2448, %v2448
  %v2450 = vsub.f32 1.0, %v2449
  %v2451 = vmul.f32 %v2445, %v2450
  %v2452 = vmul.f32 %v2446, %v2450
  %v2453 = vpack.c.bf16 %v2451, %v2448
  %v2454 = vpack.c.bf16 %v2452, %v2452
  %v2456 = vsel %vm367, %v2453, 0
  %v2459 = vsel %vm367, %v2454, 0
  %2461 = vmatprep.subr.bf16.mxu0 0
  %2462 = vmatpush1.bf16.msra.mxu0 %v453
  %2463 = vmatprep.subr.bf16.mxu0 0
  %2464 = vmatpush1.bf16.msra.mxu0 %v454
  %2465 = vmatprep.subr.bf16.mxu0 0
  %2466 = vmatpush1.bf16.msra.mxu0 0
  %2467 = vmatprep.subr.bf16.mxu0 0
  %2468 = vmatpush1.bf16.msra.mxu0 0
  %2469 = vmatprep.subr.bf16.mxu0 0
  %2470 = vmatpush1.bf16.msra.mxu0 0
  %2471 = vmatprep.subr.bf16.mxu0 0
  %2472 = vmatpush1.bf16.msra.mxu0 0
  %2473 = vmatprep.subr.bf16.mxu0 0
  %2474 = vmatpush1.bf16.msra.mxu0 0
  %2475 = vmatprep.subr.bf16.mxu0 0
  %2476 = vmatpush1.bf16.msra.mxu0 0
  %2477 = vmatprep.subr.bf16.mxu0 0
  %2478 = vmatpush1.bf16.msra.mxu0 0
  %2479 = vmatprep.subr.bf16.mxu0 0
  %2480 = vmatpush1.bf16.msra.mxu0 0
  %2481 = vmatprep.subr.bf16.mxu0 0
  %2482 = vmatpush1.bf16.msra.mxu0 0
  %2483 = vmatprep.subr.bf16.mxu0 0
  %2484 = vmatpush1.bf16.msra.mxu0 0
  %2485 = vmatprep.subr.bf16.mxu0 0
  %2486 = vmatpush1.bf16.msra.mxu0 0
  %2487 = vmatprep.subr.bf16.mxu0 0
  %2488 = vmatpush1.bf16.msra.mxu0 0
  %2489 = vmatprep.subr.bf16.mxu0 0
  %2490 = vmatpush1.bf16.msra.mxu0 0
  %2491 = vmatprep.subr.bf16.mxu0 0
  %2492 = vmatpush1.bf16.msra.mxu0 0
  %2493 = vmatprep.mubr.bf16.mxu0 0
  %2494 = vmatmul.mubr.bf16.gmra.mrb[0].mxu0 %v2456
  %v2495 = vpop.f32.mrb[0].mxu0
  %v2496 = vadd.f32 0.0, %v2495
  %v2497 = vpop.f32.mrb[0].mxu0
  %v2498 = vpop.f32.mrb[0].mxu0
  %v2499 = vadd.f32 0.0, %v2498
  %v2500 = vpop.f32.mrb[0].mxu0
  %2501 = vmatprep.mubr.bf16.mxu0 0
  %2502 = vmatmul.mubr.bf16.gmra.mrb[0].mxu0 %v2459
  %v2503 = vpop.f32.mrb[0].mxu0
  %v2504 = vadd.f32 0.0, %v2503
  %v2505 = vpop.f32.mrb[0].mxu0
  %v2506 = vpop.f32.mrb[0].mxu0
  %v2507 = vpop.f32.mrb[0].mxu0
  %2508 = vdwg.mxu0
  %v2509 = vmul.f32 %v2496, %v2206
  %v2510 = vmul.f32 %v2499, %v2206
  %v2511 = vmul.f32 %v2504, %v2206
  %v2512 = vadd.f32 %v2509, %v2215
  %v2513 = vtanh.pop %v2512
  %v2514 = vmul.f32 %v2513, %v2513
  %v2515 = vsub.f32 1.0, %v2514
  %v2516 = vmul.f32 %v2510, %v2515
  %v2517 = vmul.f32 %v2511, %v2515
  %v2518 = vpack.c.bf16 %v2516, %v2513
  %v2519 = vpack.c.bf16 %v2517, %v2517
  %v2521 = vsel %vm367, %v2518, 0
  %v2524 = vsel %vm367, %v2519, 0
  %2526 = vmatprep.subr.bf16.mxu0 0
  %2527 = vmatpush1.bf16.msra.mxu0 %v542
  %2528 = vmatprep.subr.bf16.mxu0 0
  %2529 = vmatpush1.bf16.msra.mxu0 %v543
  %2530 = vmatprep.subr.bf16.mxu0 0
  %2531 = vmatpush1.bf16.msra.mxu0 0
  %2532 = vmatprep.subr.bf16.mxu0 0
  %2533 = vmatpush1.bf16.msra.mxu0 0
  %2534 = vmatprep.subr.bf16.mxu0 0
  %2535 = vmatpush1.bf16.msra.mxu0 0
  %2536 = vmatprep.subr.bf16.mxu0 0
  %2537 = vmatpush1.bf16.msra.mxu0 0
  %2538 = vmatprep.subr.bf16.mxu0 0
  %2539 = vmatpush1.bf16.msra.mxu0 0
  %2540 = vmatprep.subr.bf16.mxu0 0
  %2541 = vmatpush1.bf16.msra.mxu0 0
  %2542 = vmatprep.subr.bf16.mxu0 0
  %2543 = vmatpush1.bf16.msra.mxu0 0
  %2544 = vmatprep.subr.bf16.mxu0 0
  %2545 = vmatpush1.bf16.msra.mxu0 0
  %2546 = vmatprep.subr.bf16.mxu0 0
  %2547 = vmatpush1.bf16.msra.mxu0 0
  %2548 = vmatprep.subr.bf16.mxu0 0
  %2549 = vmatpush1.bf16.msra.mxu0 0
  %2550 = vmatprep.subr.bf16.mxu0 0
  %2551 = vmatpush1.bf16.msra.mxu0 0
  %2552 = vmatprep.subr.bf16.mxu0 0
  %2553 = vmatpush1.bf16.msra.mxu0 0
  %2554 = vmatprep.subr.bf16.mxu0 0
  %2555 = vmatpush1.bf16.msra.mxu0 0
  %2556 = vmatprep.subr.bf16.mxu0 0
  %2557 = vmatpush1.bf16.msra.mxu0 0
  %2558 = vmatprep.mubr.bf16.mxu0 0
  %2559 = vmatmul.mubr.bf16.gmra.mrb[0].mxu0 %v2521
  %v2560 = vpop.f32.mrb[0].mxu0
  %v2561 = vadd.f32 0.0, %v2560
  %v2562 = vpop.f32.mrb[0].mxu0
  %v2563 = vpop.f32.mrb[0].mxu0
  %v2564 = vadd.f32 0.0, %v2563
  %v2565 = vpop.f32.mrb[0].mxu0
  %2566 = vmatprep.mubr.bf16.mxu0 0
  %2567 = vmatmul.mubr.bf16.gmra.mrb[0].mxu0 %v2524
  %v2568 = vpop.f32.mrb[0].mxu0
  %v2569 = vadd.f32 0.0, %v2568
  %v2570 = vpop.f32.mrb[0].mxu0
  %v2571 = vpop.f32.mrb[0].mxu0
  %v2572 = vpop.f32.mrb[0].mxu0
  %2573 = vdwg.mxu0
  %v2574 = vmul.f32 %v2561, %v2283
  %v2575 = vmul.f32 %v2564, %v2283
  %v2576 = vmul.f32 %v2569, %v2283
  %v2577 = vadd.f32 %v2574, %v2292
  %2579 = vrot.lane.b32.xlu0 %v2576, 127
  %v2580 = vpop.permute.xlu0 %2579
  %v2582 = vadd.f32 %v2575, %v2580
  %v2583 = vmul.f32 %v2577, %v2577
  %v2584 = vsel %vm114, %v2583, 0.0
  %2585 = vadd.xlane.f32.xlu0 %v2584
  %v2586 = vpop.xlane.xlu0 %2585
  %v2587 = vmul.f32 %v2586, 0.5
  %v2588 = vstv %s1599
  %v2589 = vmul.f32 %v2588, %v2577
  %v2590 = vadd.f32 %v1582, %v2589
  %v2592 = vsel %vm114, %v2590, 0
  %2594 = vmatprep.subr.mxu0 0.0
  %2595 = vmatpush1.msra.mxu0 %v261
  %2596 = vmatprep.subr.mxu0 0.0
  %2597 = vmatpush1.msra.mxu0 0.0
  %2598 = vmatprep.subr.mxu0 0.0
  %2599 = vmatpush1.msra.mxu0 0.0
  %2600 = vmatprep.subr.mxu0 0.0
  %2601 = vmatpush1.msra.mxu0 0.0
  %2602 = vmatprep.subr.mxu0 0.0
  %2603 = vmatpush1.msra.mxu0 0.0
  %2604 = vmatprep.subr.mxu0 0.0
  %2605 = vmatpush1.msra.mxu0 0.0
  %2606 = vmatprep.subr.mxu0 0.0
  %2607 = vmatpush1.msra.mxu0 0.0
  %2608 = vmatprep.subr.mxu0 0.0
  %2609 = vmatpush1.msra.mxu0 0.0
  %2610 = vmatprep.subr.mxu0 0.0
  %2611 = vmatpush1.msra.mxu0 0.0
  %2612 = vmatprep.subr.mxu0 0.0
  %2613 = vmatpush1.msra.mxu0 0.0
  %2614 = vmatprep.subr.mxu0 0.0
  %2615 = vmatpush1.msra.mxu0 0.0
  %2616 = vmatprep.subr.mxu0 0.0
  %2617 = vmatpush1.msra.mxu0 0.0
  %2618 = vmatprep.subr.mxu0 0.0
  %2619 = vmatpush1.msra.mxu0 0.0
  %2620 = vmatprep.subr.mxu0 0.0
  %2621 = vmatpush1.msra.mxu0 0.0
  %2622 = vmatprep.subr.mxu0 0.0
  %2623 = vmatpush1.msra.mxu0 0.0
  %2624 = vmatprep.subr.mxu0 0.0
  %2625 = vmatpush1.msra.mxu0 0.0
  %2626 = vmatprep.subr.mxu0 0.0
  %2627 = vmatpush1.msra.mxu0 0.0
  %2628 = vmatprep.subr.mxu0 0.0
  %2629 = vmatpush1.msra.mxu0 0.0
  %2630 = vmatprep.subr.mxu0 0.0
  %2631 = vmatpush1.msra.mxu0 0.0
  %2632 = vmatprep.subr.mxu0 0.0
  %2633 = vmatpush1.msra.mxu0 0.0
  %2634 = vmatprep.subr.mxu0 0.0
  %2635 = vmatpush1.msra.mxu0 0.0
  %2636 = vmatprep.subr.mxu0 0.0
  %2637 = vmatpush1.msra.mxu0 0.0
  %2638 = vmatprep.subr.mxu0 0.0
  %2639 = vmatpush1.msra.mxu0 0.0
  %2640 = vmatprep.subr.mxu0 0.0
  %2641 = vmatpush1.msra.mxu0 0.0
  %2642 = vmatprep.subr.mxu0 0.0
  %2643 = vmatpush1.msra.mxu0 0.0
  %2644 = vmatprep.subr.mxu0 0.0
  %2645 = vmatpush1.msra.mxu0 0.0
  %2646 = vmatprep.subr.mxu0 0.0
  %2647 = vmatpush1.msra.mxu0 0.0
  %2648 = vmatprep.subr.mxu0 0.0
  %2649 = vmatpush1.msra.mxu0 0.0
  %2650 = vmatprep.subr.mxu0 0.0
  %2651 = vmatpush1.msra.mxu0 0.0
  %2652 = vmatprep.subr.mxu0 0.0
  %2653 = vmatpush1.msra.mxu0 0.0
  %2654 = vmatprep.subr.mxu0 0.0
  %2655 = vmatpush1.msra.mxu0 0.0
  %2656 = vmatprep.subr.mxu0 0.0
  %2657 = vmatpush1.msra.mxu0 0.0
  %2658 = vmatprep.mubr.f32.mxu0 0.0
  %2659 = vmatmul.mubr.f32.gmra.mrb[0].mxu0 %v2592
  %v2660 = vpop.f32.mrb[0].mxu0
  %v2661 = vadd.f32 0.0, %v2660
  %v2662 = vpop.f32.mrb[0].mxu0
  %2663 = vdwg.mxu0
  %v2665 = vlaneseq
  %v2666 = vshrl.u32 %v2665, 7
  %v2667 = vsub.s32 0, %v2666
  %v2668 = vrot.slane %v1655, %v2667
  %v2670 = vmul.f32 %v2661, %v2668
  %v2672 = vlaneseq
  %v2673 = vshrl.u32 %v2672, 7
  %v2674 = vsub.s32 0, %v2673
  %v2675 = vrot.slane %v1658, %v2674
  %v2677 = vadd.f32 %v2670, %v2675
  %v2678 = vtanh.pop %v2677
  %v2679 = vmul.f32 %v2678, %v2678
  %v2680 = vsub.f32 1.0, %v2679
  %v2681 = vmul.f32 %v2668, %v2680
  %v2682 = vmul.f32 %v108, %v2681
  %v2683 = vmul.f32 %v112, %v2681
  %v2684 = vpack.c.bf16 %v2682, %v2678
  %v2685 = vpack.c.bf16 %v2683, %v2683
  %v2687 = vsel %vm367, %v2684, 0
  %v2690 = vsel %vm367, %v2685, 0
  %2692 = vmatprep.subr.bf16.mxu0 0
  %2693 = vmatpush1.bf16.msra.mxu0 %v363
  %2694 = vmatprep.subr.bf16.mxu0 0
  %2695 = vmatpush1.bf16.msra.mxu0 %v364
  %2696 = vmatprep.subr.bf16.mxu0 0
  %2697 = vmatpush1.bf16.msra.mxu0 0
  %2698 = vmatprep.subr.bf16.mxu0 0
  %2699 = vmatpush1.bf16.msra.mxu0 0
  %2700 = vmatprep.subr.bf16.mxu0 0
  %2701 = vmatpush1.bf16.msra.mxu0 0
  %2702 = vmatprep.subr.bf16.mxu0 0
  %2703 = vmatpush1.bf16.msra.mxu0 0
  %2704 = vmatprep.subr.bf16.mxu0 0
  %2705 = vmatpush1.bf16.msra.mxu0 0
  %2706 = vmatprep.subr.bf16.mxu0 0
  %2707 = vmatpush1.bf16.msra.mxu0 0
  %2708 = vmatprep.subr.bf16.mxu0 0
  %2709 = vmatpush1.bf16.msra.mxu0 0
  %2710 = vmatprep.subr.bf16.mxu0 0
  %2711 = vmatpush1.bf16.msra.mxu0 0
  %2712 = vmatprep.subr.bf16.mxu0 0
  %2713 = vmatpush1.bf16.msra.mxu0 0
  %2714 = vmatprep.subr.bf16.mxu0 0
  %2715 = vmatpush1.bf16.msra.mxu0 0
  %2716 = vmatprep.subr.bf16.mxu0 0
  %2717 = vmatpush1.bf16.msra.mxu0 0
  %2718 = vmatprep.subr.bf16.mxu0 0
  %2719 = vmatpush1.bf16.msra.mxu0 0
  %2720 = vmatprep.subr.bf16.mxu0 0
  %2721 = vmatpush1.bf16.msra.mxu0 0
  %2722 = vmatprep.subr.bf16.mxu0 0
  %2723 = vmatpush1.bf16.msra.mxu0 0
  %2724 = vmatprep.mubr.bf16.mxu0 0
  %2725 = vmatmul.mubr.bf16.gmra.mrb[0].mxu0 %v2687
  %v2726 = vpop.f32.mrb[0].mxu0
  %v2727 = vadd.f32 0.0, %v2726
  %v2728 = vpop.f32.mrb[0].mxu0
  %v2729 = vpop.f32.mrb[0].mxu0
  %v2730 = vadd.f32 0.0, %v2729
  %v2731 = vpop.f32.mrb[0].mxu0
  %2732 = vmatprep.mubr.bf16.mxu0 0
  %2733 = vmatmul.mubr.bf16.gmra.mrb[0].mxu0 %v2690
  %v2734 = vpop.f32.mrb[0].mxu0
  %v2735 = vadd.f32 0.0, %v2734
  %v2736 = vpop.f32.mrb[0].mxu0
  %v2737 = vpop.f32.mrb[0].mxu0
  %v2738 = vpop.f32.mrb[0].mxu0
  %2739 = vdwg.mxu0
  %v2741 = vlaneseq
  %v2742 = vshrl.u32 %v2741, 7
  %v2743 = vsub.s32 0, %v2742
  %v2744 = vrot.slane %v1666, %v2743
  %v2746 = vmul.f32 %v2727, %v2744
  %v2747 = vmul.f32 %v2730, %v2744
  %v2748 = vmul.f32 %v2735, %v2744
  %v2750 = vlaneseq
  %v2751 = vshrl.u32 %v2750, 7
  %v2752 = vsub.s32 0, %v2751
  %v2753 = vrot.slane %v1669, %v2752
  %v2755 = vadd.f32 %v2746, %v2753
  %v2756 = vtanh.pop %v2755
  %v2757 = vmul.f32 %v2756, %v2756
  %v2758 = vsub.f32 1.0, %v2757
  %v2759 = vmul.f32 %v2747, %v2758
  %v2760 = vmul.f32 %v2748, %v2758
  %v2761 = vpack.c.bf16 %v2759, %v2756
  %v2762 = vpack.c.bf16 %v2760, %v2760
  %v2764 = vsel %vm367, %v2761, 0
  %v2767 = vsel %vm367, %v2762, 0
  %2769 = vmatprep.subr.bf16.mxu0 0
  %2770 = vmatpush1.bf16.msra.mxu0 %v453
  %2771 = vmatprep.subr.bf16.mxu0 0
  %2772 = vmatpush1.bf16.msra.mxu0 %v454
  %2773 = vmatprep.subr.bf16.mxu0 0
  %2774 = vmatpush1.bf16.msra.mxu0 0
  %2775 = vmatprep.subr.bf16.mxu0 0
  %2776 = vmatpush1.bf16.msra.mxu0 0
  %2777 = vmatprep.subr.bf16.mxu0 0
  %2778 = vmatpush1.bf16.msra.mxu0 0
  %2779 = vmatprep.subr.bf16.mxu0 0
  %2780 = vmatpush1.bf16.msra.mxu0 0
  %2781 = vmatprep.subr.bf16.mxu0 0
  %2782 = vmatpush1.bf16.msra.mxu0 0
  %2783 = vmatprep.subr.bf16.mxu0 0
  %2784 = vmatpush1.bf16.msra.mxu0 0
  %2785 = vmatprep.subr.bf16.mxu0 0
  %2786 = vmatpush1.bf16.msra.mxu0 0
  %2787 = vmatprep.subr.bf16.mxu0 0
  %2788 = vmatpush1.bf16.msra.mxu0 0
  %2789 = vmatprep.subr.bf16.mxu0 0
  %2790 = vmatpush1.bf16.msra.mxu0 0
  %2791 = vmatprep.subr.bf16.mxu0 0
  %2792 = vmatpush1.bf16.msra.mxu0 0
  %2793 = vmatprep.subr.bf16.mxu0 0
  %2794 = vmatpush1.bf16.msra.mxu0 0
  %2795 = vmatprep.subr.bf16.mxu0 0
  %2796 = vmatpush1.bf16.msra.mxu0 0
  %2797 = vmatprep.subr.bf16.mxu0 0
  %2798 = vmatpush1.bf16.msra.mxu0 0
  %2799 = vmatprep.subr.bf16.mxu0 0
  %2800 = vmatpush1.bf16.msra.mxu0 0
  %2801 = vmatprep.mubr.bf16.mxu0 0
  %2802 = vmatmul.mubr.bf16.gmra.mrb[0].mxu0 %v2764
  %v2803 = vpop.f32.mrb[0].mxu0
  %v2804 = vadd.f32 0.0, %v2803
  %v2805 = vpop.f32.mrb[0].mxu0
  %v2806 = vpop.f32.mrb[0].mxu0
  %v2807 = vadd.f32 0.0, %v2806
  %v2808 = vpop.f32.mrb[0].mxu0
  %2809 = vmatprep.mubr.bf16.mxu0 0
  %2810 = vmatmul.mubr.bf16.gmra.mrb[0].mxu0 %v2767
  %v2811 = vpop.f32.mrb[0].mxu0
  %v2812 = vadd.f32 0.0, %v2811
  %v2813 = vpop.f32.mrb[0].mxu0
  %v2814 = vpop.f32.mrb[0].mxu0
  %v2815 = vpop.f32.mrb[0].mxu0
  %2816 = vdwg.mxu0
  %v2818 = vlaneseq
  %v2819 = vshrl.u32 %v2818, 7
  %v2820 = vsub.s32 0, %v2819
  %v2821 = vrot.slane %v1677, %v2820
  %v2823 = vmul.f32 %v2804, %v2821
  %v2824 = vmul.f32 %v2807, %v2821
  %v2825 = vmul.f32 %v2812, %v2821
  %v2827 = vlaneseq
  %v2828 = vshrl.u32 %v2827, 7
  %v2829 = vsub.s32 0, %v2828
  %v2830 = vrot.slane %v1680, %v2829
  %v2832 = vadd.f32 %v2823, %v2830
  %v2833 = vtanh.pop %v2832
  %v2834 = vmul.f32 %v2833, %v2833
  %v2835 = vsub.f32 1.0, %v2834
  %v2836 = vmul.f32 %v2824, %v2835
  %v2837 = vmul.f32 %v2825, %v2835
  %v2838 = vpack.c.bf16 %v2836, %v2833
  %v2839 = vpack.c.bf16 %v2837, %v2837
  %v2841 = vsel %vm367, %v2838, 0
  %v2844 = vsel %vm367, %v2839, 0
  %2846 = vmatprep.subr.bf16.mxu0 0
  %2847 = vmatpush1.bf16.msra.mxu0 %v542
  %2848 = vmatprep.subr.bf16.mxu0 0
  %2849 = vmatpush1.bf16.msra.mxu0 %v543
  %2850 = vmatprep.subr.bf16.mxu0 0
  %2851 = vmatpush1.bf16.msra.mxu0 0
  %2852 = vmatprep.subr.bf16.mxu0 0
  %2853 = vmatpush1.bf16.msra.mxu0 0
  %2854 = vmatprep.subr.bf16.mxu0 0
  %2855 = vmatpush1.bf16.msra.mxu0 0
  %2856 = vmatprep.subr.bf16.mxu0 0
  %2857 = vmatpush1.bf16.msra.mxu0 0
  %2858 = vmatprep.subr.bf16.mxu0 0
  %2859 = vmatpush1.bf16.msra.mxu0 0
  %2860 = vmatprep.subr.bf16.mxu0 0
  %2861 = vmatpush1.bf16.msra.mxu0 0
  %2862 = vmatprep.subr.bf16.mxu0 0
  %2863 = vmatpush1.bf16.msra.mxu0 0
  %2864 = vmatprep.subr.bf16.mxu0 0
  %2865 = vmatpush1.bf16.msra.mxu0 0
  %2866 = vmatprep.subr.bf16.mxu0 0
  %2867 = vmatpush1.bf16.msra.mxu0 0
  %2868 = vmatprep.subr.bf16.mxu0 0
  %2869 = vmatpush1.bf16.msra.mxu0 0
  %2870 = vmatprep.subr.bf16.mxu0 0
  %2871 = vmatpush1.bf16.msra.mxu0 0
  %2872 = vmatprep.subr.bf16.mxu0 0
  %2873 = vmatpush1.bf16.msra.mxu0 0
  %2874 = vmatprep.subr.bf16.mxu0 0
  %2875 = vmatpush1.bf16.msra.mxu0 0
  %2876 = vmatprep.subr.bf16.mxu0 0
  %2877 = vmatpush1.bf16.msra.mxu0 0
  %2878 = vmatprep.mubr.bf16.mxu0 0
  %2879 = vmatmul.mubr.bf16.gmra.mrb[0].mxu0 %v2841
  %v2880 = vpop.f32.mrb[0].mxu0
  %v2881 = vadd.f32 0.0, %v2880
  %v2882 = vpop.f32.mrb[0].mxu0
  %v2883 = vpop.f32.mrb[0].mxu0
  %v2884 = vadd.f32 0.0, %v2883
  %v2885 = vpop.f32.mrb[0].mxu0
  %2886 = vmatprep.mubr.bf16.mxu0 0
  %2887 = vmatmul.mubr.bf16.gmra.mrb[0].mxu0 %v2844
  %v2888 = vpop.f32.mrb[0].mxu0
  %v2889 = vadd.f32 0.0, %v2888
  %v2890 = vpop.f32.mrb[0].mxu0
  %v2891 = vpop.f32.mrb[0].mxu0
  %v2892 = vpop.f32.mrb[0].mxu0
  %2893 = vdwg.mxu0
  %v2895 = vlaneseq
  %v2896 = vshrl.u32 %v2895, 7
  %v2897 = vsub.s32 0, %v2896
  %v2898 = vrot.slane %v1688, %v2897
  %v2900 = vmul.f32 %v2881, %v2898
  %v2901 = vmul.f32 %v2884, %v2898
  %v2902 = vmul.f32 %v2889, %v2898
  %v2904 = vlaneseq
  %v2905 = vshrl.u32 %v2904, 7
  %v2906 = vsub.s32 0, %v2905
  %v2907 = vrot.slane %v1691, %v2906
  %v2909 = vadd.f32 %v2900, %v2907
  %2911 = vrot.lane.b32.xlu0 %v2902, 127
  %v2912 = vpop.permute.xlu0 %2911
  %v2914 = vadd.f32 %v2901, %v2912
  %v2915 = vmul.f32 %v2909, %v2909
  %v2916 = vsel %vm114, %v2915, 0.0
  %2917 = vadd.xlane.f32.xlu0 %v2916
  %v2918 = vpop.xlane.xlu0 %2917
  %v2919 = vmul.f32 %v2918, 0.5
  %v2920 = vrcp.pop 6.0
  %s2921 = vtos %v2920
  %s2922 = smul.f32 %s1599, %s2921
  %v2923 = vadd.f32 %v2294, %v2577
  %v2924 = vmul.f32 %v2923, 2.0
  %v2925 = vadd.f32 %v1962, %v2924
  %v2926 = vadd.f32 %v2925, %v2909
  %v2927 = vstv %s2922
  %v2928 = vmul.f32 %v2927, %v2926
  %v2929 = vadd.f32 %v1582, %v2928
  %v2930 = vadd.f32 %v2299, %v2582
  %v2931 = vmul.f32 %v2930, 2.0
  %v2932 = vadd.f32 %v1967, %v2931
  %v2933 = vadd.f32 %v2932, %v2914
  %v2934 = vmul.f32 %v2927, %v2933
  %v2935 = vadd.f32 %v1588, %v2934
  %v2936 = vadd.f32 %v2304, %v2587
  %v2937 = vmul.f32 %v2936, 2.0
  %v2938 = vadd.f32 %v1972, %v2937
  %v2939 = vadd.f32 %v2938, %v2919
  %v2940 = vmul.f32 %v2927, %v2939
  %v2941 = vadd.f32 %v1594, %v2940
  %s2942 = scalar_lea.vmem %s22, 16
  %2943 = vst.msk [vmem:[%s2942] sm:$0xff] %vm114, %v2929
  %s2944 = sld [smem:[#allocation3 + $0x2]]
  %s2945 = sld [smem:[#allocation3 + $0x3]]
  %s2946 = ssub.f32 %s2945, %s2944
  %s2947 = smul.f32 %s2946, 0.5
  %s2948 = sadd.f32 %s2944, %s2947
  %v2949 = vstv %s2948
  %v2950 = vmul.f32 %v2949, %v78
  %v2951 = vadd.f32 %v2950, %v79
  %v2952 = vxor.u32 %v2951, 2147483648
  %v2953 = vmul.f32 %v2952, 1.442695
  %v2954 = vpow.pop %v2953
  %v2955 = vadd.f32 %v2954, 1.0
  %v2956 = vrcp.pop %v2955
  %v2957 = vmul.f32 1.0, %v2956
  %v2958 = vmul.f32 %v77, %v2957
  %v2959 = vmul.f32 %v2949, %v80
  %v2960 = vadd.f32 %v2958, %v2959
  %v2961 = vmul.f32 %v2949, %v86
  %v2962 = vadd.f32 %v2961, %v87
  %v2963 = vxor.u32 %v2962, 2147483648
  %v2964 = vmul.f32 %v2963, 1.442695
  %v2965 = vpow.pop %v2964
  %v2966 = vadd.f32 %v2965, 1.0
  %v2967 = vrcp.pop %v2966
  %v2968 = vmul.f32 1.0, %v2967
  %v2969 = vmul.f32 %v85, %v2968
  %v2970 = vmul.f32 %v2949, %v88
  %v2971 = vadd.f32 %v2969, %v2970
  %v2972 = vmul.f32 %v2949, %v94
  %v2973 = vadd.f32 %v2972, %v95
  %v2974 = vxor.u32 %v2973, 2147483648
  %v2975 = vmul.f32 %v2974, 1.442695
  %v2976 = vpow.pop %v2975
  %v2977 = vadd.f32 %v2976, 1.0
  %v2978 = vrcp.pop %v2977
  %v2979 = vmul.f32 1.0, %v2978
  %v2980 = vmul.f32 %v93, %v2979
  %v2981 = vmul.f32 %v2949, %v96
  %v2982 = vadd.f32 %v2980, %v2981
  %v2983 = vmul.f32 %v2949, %v102
  %v2984 = vadd.f32 %v2983, %v103
  %v2985 = vxor.u32 %v2984, 2147483648
  %v2986 = vmul.f32 %v2985, 1.442695
  %v2987 = vpow.pop %v2986
  %v2988 = vadd.f32 %v2987, 1.0
  %v2989 = vrcp.pop %v2988
  %v2990 = vmul.f32 1.0, %v2989
  %v2991 = vmul.f32 %v101, %v2990
  %v2992 = vmul.f32 %v2949, %v104
  %v2993 = vadd.f32 %v2991, %v2992
  %v2994 = vstv %s2945
  %v2995 = vmul.f32 %v2994, %v78
  %v2996 = vadd.f32 %v2995, %v79
  %v2997 = vxor.u32 %v2996, 2147483648
  %v2998 = vmul.f32 %v2997, 1.442695
  %v2999 = vpow.pop %v2998
  %v3000 = vadd.f32 %v2999, 1.0
  %v3001 = vrcp.pop %v3000
  %v3002 = vmul.f32 1.0, %v3001
  %v3003 = vmul.f32 %v77, %v3002
  %v3004 = vmul.f32 %v2994, %v80
  %v3005 = vadd.f32 %v3003, %v3004
  %v3006 = vmul.f32 %v2994, %v86
  %v3007 = vadd.f32 %v3006, %v87
  %v3008 = vxor.u32 %v3007, 2147483648
  %v3009 = vmul.f32 %v3008, 1.442695
  %v3010 = vpow.pop %v3009
  %v3011 = vadd.f32 %v3010, 1.0
  %v3012 = vrcp.pop %v3011
  %v3013 = vmul.f32 1.0, %v3012
  %v3014 = vmul.f32 %v85, %v3013
  %v3015 = vmul.f32 %v2994, %v88
  %v3016 = vadd.f32 %v3014, %v3015
  %v3017 = vmul.f32 %v2994, %v94
  %v3018 = vadd.f32 %v3017, %v95
  %v3019 = vxor.u32 %v3018, 2147483648
  %v3020 = vmul.f32 %v3019, 1.442695
  %v3021 = vpow.pop %v3020
  %v3022 = vadd.f32 %v3021, 1.0
  %v3023 = vrcp.pop %v3022
  %v3024 = vmul.f32 1.0, %v3023
  %v3025 = vmul.f32 %v93, %v3024
  %v3026 = vmul.f32 %v2994, %v96
  %v3027 = vadd.f32 %v3025, %v3026
  %v3028 = vmul.f32 %v2994, %v102
  %v3029 = vadd.f32 %v3028, %v103
  %v3030 = vxor.u32 %v3029, 2147483648
  %v3031 = vmul.f32 %v3030, 1.442695
  %v3032 = vpow.pop %v3031
  %v3033 = vadd.f32 %v3032, 1.0
  %v3034 = vrcp.pop %v3033
  %v3035 = vmul.f32 1.0, %v3034
  %v3036 = vmul.f32 %v101, %v3035
  %v3037 = vmul.f32 %v2994, %v104
  %v3038 = vadd.f32 %v3036, %v3037
  %v3040 = vsel %vm114, %v2929, 0
  %3042 = vmatprep.subr.mxu0 0.0
  %3043 = vmatpush1.msra.mxu0 %v261
  %3044 = vmatprep.subr.mxu0 0.0
  %3045 = vmatpush1.msra.mxu0 0.0
  %3046 = vmatprep.subr.mxu0 0.0
  %3047 = vmatpush1.msra.mxu0 0.0
  %3048 = vmatprep.subr.mxu0 0.0
  %3049 = vmatpush1.msra.mxu0 0.0
  %3050 = vmatprep.subr.mxu0 0.0
  %3051 = vmatpush1.msra.mxu0 0.0
  %3052 = vmatprep.subr.mxu0 0.0
  %3053 = vmatpush1.msra.mxu0 0.0
  %3054 = vmatprep.subr.mxu0 0.0
  %3055 = vmatpush1.msra.mxu0 0.0
  %3056 = vmatprep.subr.mxu0 0.0
  %3057 = vmatpush1.msra.mxu0 0.0
  %3058 = vmatprep.subr.mxu0 0.0
  %3059 = vmatpush1.msra.mxu0 0.0
  %3060 = vmatprep.subr.mxu0 0.0
  %3061 = vmatpush1.msra.mxu0 0.0
  %3062 = vmatprep.subr.mxu0 0.0
  %3063 = vmatpush1.msra.mxu0 0.0
  %3064 = vmatprep.subr.mxu0 0.0
  %3065 = vmatpush1.msra.mxu0 0.0
  %3066 = vmatprep.subr.mxu0 0.0
  %3067 = vmatpush1.msra.mxu0 0.0
  %3068 = vmatprep.subr.mxu0 0.0
  %3069 = vmatpush1.msra.mxu0 0.0
  %3070 = vmatprep.subr.mxu0 0.0
  %3071 = vmatpush1.msra.mxu0 0.0
  %3072 = vmatprep.subr.mxu0 0.0
  %3073 = vmatpush1.msra.mxu0 0.0
  %3074 = vmatprep.subr.mxu0 0.0
  %3075 = vmatpush1.msra.mxu0 0.0
  %3076 = vmatprep.subr.mxu0 0.0
  %3077 = vmatpush1.msra.mxu0 0.0
  %3078 = vmatprep.subr.mxu0 0.0
  %3079 = vmatpush1.msra.mxu0 0.0
  %3080 = vmatprep.subr.mxu0 0.0
  %3081 = vmatpush1.msra.mxu0 0.0
  %3082 = vmatprep.subr.mxu0 0.0
  %3083 = vmatpush1.msra.mxu0 0.0
  %3084 = vmatprep.subr.mxu0 0.0
  %3085 = vmatpush1.msra.mxu0 0.0
  %3086 = vmatprep.subr.mxu0 0.0
  %3087 = vmatpush1.msra.mxu0 0.0
  %3088 = vmatprep.subr.mxu0 0.0
  %3089 = vmatpush1.msra.mxu0 0.0
  %3090 = vmatprep.subr.mxu0 0.0
  %3091 = vmatpush1.msra.mxu0 0.0
  %3092 = vmatprep.subr.mxu0 0.0
  %3093 = vmatpush1.msra.mxu0 0.0
  %3094 = vmatprep.subr.mxu0 0.0
  %3095 = vmatpush1.msra.mxu0 0.0
  %3096 = vmatprep.subr.mxu0 0.0
  %3097 = vmatpush1.msra.mxu0 0.0
  %3098 = vmatprep.subr.mxu0 0.0
  %3099 = vmatpush1.msra.mxu0 0.0
  %3100 = vmatprep.subr.mxu0 0.0
  %3101 = vmatpush1.msra.mxu0 0.0
  %3102 = vmatprep.subr.mxu0 0.0
  %3103 = vmatpush1.msra.mxu0 0.0
  %3104 = vmatprep.subr.mxu0 0.0
  %3105 = vmatpush1.msra.mxu0 0.0
  %3106 = vmatprep.mubr.f32.mxu0 0.0
  %3107 = vmatmul.mubr.f32.gmra.mrb[0].mxu0 %v3040
  %v3108 = vpop.f32.mrb[0].mxu0
  %v3109 = vadd.f32 0.0, %v3108
  %v3110 = vpop.f32.mrb[0].mxu0
  %3111 = vdwg.mxu0
  %v3112 = vmul.f32 %v3109, %v2668
  %v3113 = vadd.f32 %v3112, %v2675
  %v3114 = vtanh.pop %v3113
  %v3115 = vmul.f32 %v3114, %v3114
  %v3116 = vsub.f32 1.0, %v3115
  %v3117 = vmul.f32 %v2668, %v3116
  %v3118 = vmul.f32 %v108, %v3117
  %v3119 = vmul.f32 %v112, %v3117
  %v3120 = vpack.c.bf16 %v3118, %v3114
  %v3121 = vpack.c.bf16 %v3119, %v3119
  %v3123 = vsel %vm367, %v3120, 0
  %v3126 = vsel %vm367, %v3121, 0
  %3128 = vmatprep.subr.bf16.mxu0 0
  %3129 = vmatpush1.bf16.msra.mxu0 %v363
  %3130 = vmatprep.subr.bf16.mxu0 0
  %3131 = vmatpush1.bf16.msra.mxu0 %v364
  %3132 = vmatprep.subr.bf16.mxu0 0
  %3133 = vmatpush1.bf16.msra.mxu0 0
  %3134 = vmatprep.subr.bf16.mxu0 0
  %3135 = vmatpush1.bf16.msra.mxu0 0
  %3136 = vmatprep.subr.bf16.mxu0 0
  %3137 = vmatpush1.bf16.msra.mxu0 0
  %3138 = vmatprep.subr.bf16.mxu0 0
  %3139 = vmatpush1.bf16.msra.mxu0 0
  %3140 = vmatprep.subr.bf16.mxu0 0
  %3141 = vmatpush1.bf16.msra.mxu0 0
  %3142 = vmatprep.subr.bf16.mxu0 0
  %3143 = vmatpush1.bf16.msra.mxu0 0
  %3144 = vmatprep.subr.bf16.mxu0 0
  %3145 = vmatpush1.bf16.msra.mxu0 0
  %3146 = vmatprep.subr.bf16.mxu0 0
  %3147 = vmatpush1.bf16.msra.mxu0 0
  %3148 = vmatprep.subr.bf16.mxu0 0
  %3149 = vmatpush1.bf16.msra.mxu0 0
  %3150 = vmatprep.subr.bf16.mxu0 0
  %3151 = vmatpush1.bf16.msra.mxu0 0
  %3152 = vmatprep.subr.bf16.mxu0 0
  %3153 = vmatpush1.bf16.msra.mxu0 0
  %3154 = vmatprep.subr.bf16.mxu0 0
  %3155 = vmatpush1.bf16.msra.mxu0 0
  %3156 = vmatprep.subr.bf16.mxu0 0
  %3157 = vmatpush1.bf16.msra.mxu0 0
  %3158 = vmatprep.subr.bf16.mxu0 0
  %3159 = vmatpush1.bf16.msra.mxu0 0
  %3160 = vmatprep.mubr.bf16.mxu0 0
  %3161 = vmatmul.mubr.bf16.gmra.mrb[0].mxu0 %v3123
  %v3162 = vpop.f32.mrb[0].mxu0
  %v3163 = vadd.f32 0.0, %v3162
  %v3164 = vpop.f32.mrb[0].mxu0
  %v3165 = vpop.f32.mrb[0].mxu0
  %v3166 = vadd.f32 0.0, %v3165
  %v3167 = vpop.f32.mrb[0].mxu0
  %3168 = vmatprep.mubr.bf16.mxu0 0
  %3169 = vmatmul.mubr.bf16.gmra.mrb[0].mxu0 %v3126
  %v3170 = vpop.f32.mrb[0].mxu0
  %v3171 = vadd.f32 0.0, %v3170
  %v3172 = vpop.f32.mrb[0].mxu0
  %v3173 = vpop.f32.mrb[0].mxu0
  %v3174 = vpop.f32.mrb[0].mxu0
  %3175 = vdwg.mxu0
  %v3176 = vmul.f32 %v3163, %v2744
  %v3177 = vmul.f32 %v3166, %v2744
  %v3178 = vmul.f32 %v3171, %v2744
  %v3179 = vadd.f32 %v3176, %v2753
  %v3180 = vtanh.pop %v3179
  %v3181 = vmul.f32 %v3180, %v3180
  %v3182 = vsub.f32 1.0, %v3181
  %v3183 = vmul.f32 %v3177, %v3182
  %v3184 = vmul.f32 %v3178, %v3182
  %v3185 = vpack.c.bf16 %v3183, %v3180
  %v3186 = vpack.c.bf16 %v3184, %v3184
  %v3188 = vsel %vm367, %v3185, 0
  %v3191 = vsel %vm367, %v3186, 0
  %3193 = vmatprep.subr.bf16.mxu0 0
  %3194 = vmatpush1.bf16.msra.mxu0 %v453
  %3195 = vmatprep.subr.bf16.mxu0 0
  %3196 = vmatpush1.bf16.msra.mxu0 %v454
  %3197 = vmatprep.subr.bf16.mxu0 0
  %3198 = vmatpush1.bf16.msra.mxu0 0
  %3199 = vmatprep.subr.bf16.mxu0 0
  %3200 = vmatpush1.bf16.msra.mxu0 0
  %3201 = vmatprep.subr.bf16.mxu0 0
  %3202 = vmatpush1.bf16.msra.mxu0 0
  %3203 = vmatprep.subr.bf16.mxu0 0
  %3204 = vmatpush1.bf16.msra.mxu0 0
  %3205 = vmatprep.subr.bf16.mxu0 0
  %3206 = vmatpush1.bf16.msra.mxu0 0
  %3207 = vmatprep.subr.bf16.mxu0 0
  %3208 = vmatpush1.bf16.msra.mxu0 0
  %3209 = vmatprep.subr.bf16.mxu0 0
  %3210 = vmatpush1.bf16.msra.mxu0 0
  %3211 = vmatprep.subr.bf16.mxu0 0
  %3212 = vmatpush1.bf16.msra.mxu0 0
  %3213 = vmatprep.subr.bf16.mxu0 0
  %3214 = vmatpush1.bf16.msra.mxu0 0
  %3215 = vmatprep.subr.bf16.mxu0 0
  %3216 = vmatpush1.bf16.msra.mxu0 0
  %3217 = vmatprep.subr.bf16.mxu0 0
  %3218 = vmatpush1.bf16.msra.mxu0 0
  %3219 = vmatprep.subr.bf16.mxu0 0
  %3220 = vmatpush1.bf16.msra.mxu0 0
  %3221 = vmatprep.subr.bf16.mxu0 0
  %3222 = vmatpush1.bf16.msra.mxu0 0
  %3223 = vmatprep.subr.bf16.mxu0 0
  %3224 = vmatpush1.bf16.msra.mxu0 0
  %3225 = vmatprep.mubr.bf16.mxu0 0
  %3226 = vmatmul.mubr.bf16.gmra.mrb[0].mxu0 %v3188
  %v3227 = vpop.f32.mrb[0].mxu0
  %v3228 = vadd.f32 0.0, %v3227
  %v3229 = vpop.f32.mrb[0].mxu0
  %v3230 = vpop.f32.mrb[0].mxu0
  %v3231 = vadd.f32 0.0, %v3230
  %v3232 = vpop.f32.mrb[0].mxu0
  %3233 = vmatprep.mubr.bf16.mxu0 0
  %3234 = vmatmul.mubr.bf16.gmra.mrb[0].mxu0 %v3191
  %v3235 = vpop.f32.mrb[0].mxu0
  %v3236 = vadd.f32 0.0, %v3235
  %v3237 = vpop.f32.mrb[0].mxu0
  %v3238 = vpop.f32.mrb[0].mxu0
  %v3239 = vpop.f32.mrb[0].mxu0
  %3240 = vdwg.mxu0
  %v3241 = vmul.f32 %v3228, %v2821
  %v3242 = vmul.f32 %v3231, %v2821
  %v3243 = vmul.f32 %v3236, %v2821
  %v3244 = vadd.f32 %v3241, %v2830
  %v3245 = vtanh.pop %v3244
  %v3246 = vmul.f32 %v3245, %v3245
  %v3247 = vsub.f32 1.0, %v3246
  %v3248 = vmul.f32 %v3242, %v3247
  %v3249 = vmul.f32 %v3243, %v3247
  %v3250 = vpack.c.bf16 %v3248, %v3245
  %v3251 = vpack.c.bf16 %v3249, %v3249
  %v3253 = vsel %vm367, %v3250, 0
  %v3256 = vsel %vm367, %v3251, 0
  %3258 = vmatprep.subr.bf16.mxu0 0
  %3259 = vmatpush1.bf16.msra.mxu0 %v542
  %3260 = vmatprep.subr.bf16.mxu0 0
  %3261 = vmatpush1.bf16.msra.mxu0 %v543
  %3262 = vmatprep.subr.bf16.mxu0 0
  %3263 = vmatpush1.bf16.msra.mxu0 0
  %3264 = vmatprep.subr.bf16.mxu0 0
  %3265 = vmatpush1.bf16.msra.mxu0 0
  %3266 = vmatprep.subr.bf16.mxu0 0
  %3267 = vmatpush1.bf16.msra.mxu0 0
  %3268 = vmatprep.subr.bf16.mxu0 0
  %3269 = vmatpush1.bf16.msra.mxu0 0
  %3270 = vmatprep.subr.bf16.mxu0 0
  %3271 = vmatpush1.bf16.msra.mxu0 0
  %3272 = vmatprep.subr.bf16.mxu0 0
  %3273 = vmatpush1.bf16.msra.mxu0 0
  %3274 = vmatprep.subr.bf16.mxu0 0
  %3275 = vmatpush1.bf16.msra.mxu0 0
  %3276 = vmatprep.subr.bf16.mxu0 0
  %3277 = vmatpush1.bf16.msra.mxu0 0
  %3278 = vmatprep.subr.bf16.mxu0 0
  %3279 = vmatpush1.bf16.msra.mxu0 0
  %3280 = vmatprep.subr.bf16.mxu0 0
  %3281 = vmatpush1.bf16.msra.mxu0 0
  %3282 = vmatprep.subr.bf16.mxu0 0
  %3283 = vmatpush1.bf16.msra.mxu0 0
  %3284 = vmatprep.subr.bf16.mxu0 0
  %3285 = vmatpush1.bf16.msra.mxu0 0
  %3286 = vmatprep.subr.bf16.mxu0 0
  %3287 = vmatpush1.bf16.msra.mxu0 0
  %3288 = vmatprep.subr.bf16.mxu0 0
  %3289 = vmatpush1.bf16.msra.mxu0 0
  %3290 = vmatprep.mubr.bf16.mxu0 0
  %3291 = vmatmul.mubr.bf16.gmra.mrb[0].mxu0 %v3253
  %v3292 = vpop.f32.mrb[0].mxu0
  %v3293 = vadd.f32 0.0, %v3292
  %v3294 = vpop.f32.mrb[0].mxu0
  %v3295 = vpop.f32.mrb[0].mxu0
  %v3296 = vadd.f32 0.0, %v3295
  %v3297 = vpop.f32.mrb[0].mxu0
  %3298 = vmatprep.mubr.bf16.mxu0 0
  %3299 = vmatmul.mubr.bf16.gmra.mrb[0].mxu0 %v3256
  %v3300 = vpop.f32.mrb[0].mxu0
  %v3301 = vadd.f32 0.0, %v3300
  %v3302 = vpop.f32.mrb[0].mxu0
  %v3303 = vpop.f32.mrb[0].mxu0
  %v3304 = vpop.f32.mrb[0].mxu0
  %3305 = vdwg.mxu0
  %v3306 = vmul.f32 %v3293, %v2898
  %v3307 = vmul.f32 %v3296, %v2898
  %v3308 = vmul.f32 %v3301, %v2898
  %v3309 = vadd.f32 %v3306, %v2907
  %3311 = vrot.lane.b32.xlu0 %v3308, 127
  %v3312 = vpop.permute.xlu0 %3311
  %v3314 = vadd.f32 %v3307, %v3312
  %v3315 = vmul.f32 %v3309, %v3309
  %v3316 = vsel %vm114, %v3315, 0.0
  %3317 = vadd.xlane.f32.xlu0 %v3316
  %v3318 = vpop.xlane.xlu0 %3317
  %v3319 = vmul.f32 %v3318, 0.5
  %v3320 = vstv %s2947
  %v3321 = vmul.f32 %v3320, %v3309
  %v3322 = vadd.f32 %v2929, %v3321
  %v3324 = vsel %vm114, %v3322, 0
  %3326 = vmatprep.subr.mxu0 0.0
  %3327 = vmatpush1.msra.mxu0 %v261
  %3328 = vmatprep.subr.mxu0 0.0
  %3329 = vmatpush1.msra.mxu0 0.0
  %3330 = vmatprep.subr.mxu0 0.0
  %3331 = vmatpush1.msra.mxu0 0.0
  %3332 = vmatprep.subr.mxu0 0.0
  %3333 = vmatpush1.msra.mxu0 0.0
  %3334 = vmatprep.subr.mxu0 0.0
  %3335 = vmatpush1.msra.mxu0 0.0
  %3336 = vmatprep.subr.mxu0 0.0
  %3337 = vmatpush1.msra.mxu0 0.0
  %3338 = vmatprep.subr.mxu0 0.0
  %3339 = vmatpush1.msra.mxu0 0.0
  %3340 = vmatprep.subr.mxu0 0.0
  %3341 = vmatpush1.msra.mxu0 0.0
  %3342 = vmatprep.subr.mxu0 0.0
  %3343 = vmatpush1.msra.mxu0 0.0
  %3344 = vmatprep.subr.mxu0 0.0
  %3345 = vmatpush1.msra.mxu0 0.0
  %3346 = vmatprep.subr.mxu0 0.0
  %3347 = vmatpush1.msra.mxu0 0.0
  %3348 = vmatprep.subr.mxu0 0.0
  %3349 = vmatpush1.msra.mxu0 0.0
  %3350 = vmatprep.subr.mxu0 0.0
  %3351 = vmatpush1.msra.mxu0 0.0
  %3352 = vmatprep.subr.mxu0 0.0
  %3353 = vmatpush1.msra.mxu0 0.0
  %3354 = vmatprep.subr.mxu0 0.0
  %3355 = vmatpush1.msra.mxu0 0.0
  %3356 = vmatprep.subr.mxu0 0.0
  %3357 = vmatpush1.msra.mxu0 0.0
  %3358 = vmatprep.subr.mxu0 0.0
  %3359 = vmatpush1.msra.mxu0 0.0
  %3360 = vmatprep.subr.mxu0 0.0
  %3361 = vmatpush1.msra.mxu0 0.0
  %3362 = vmatprep.subr.mxu0 0.0
  %3363 = vmatpush1.msra.mxu0 0.0
  %3364 = vmatprep.subr.mxu0 0.0
  %3365 = vmatpush1.msra.mxu0 0.0
  %3366 = vmatprep.subr.mxu0 0.0
  %3367 = vmatpush1.msra.mxu0 0.0
  %3368 = vmatprep.subr.mxu0 0.0
  %3369 = vmatpush1.msra.mxu0 0.0
  %3370 = vmatprep.subr.mxu0 0.0
  %3371 = vmatpush1.msra.mxu0 0.0
  %3372 = vmatprep.subr.mxu0 0.0
  %3373 = vmatpush1.msra.mxu0 0.0
  %3374 = vmatprep.subr.mxu0 0.0
  %3375 = vmatpush1.msra.mxu0 0.0
  %3376 = vmatprep.subr.mxu0 0.0
  %3377 = vmatpush1.msra.mxu0 0.0
  %3378 = vmatprep.subr.mxu0 0.0
  %3379 = vmatpush1.msra.mxu0 0.0
  %3380 = vmatprep.subr.mxu0 0.0
  %3381 = vmatpush1.msra.mxu0 0.0
  %3382 = vmatprep.subr.mxu0 0.0
  %3383 = vmatpush1.msra.mxu0 0.0
  %3384 = vmatprep.subr.mxu0 0.0
  %3385 = vmatpush1.msra.mxu0 0.0
  %3386 = vmatprep.subr.mxu0 0.0
  %3387 = vmatpush1.msra.mxu0 0.0
  %3388 = vmatprep.subr.mxu0 0.0
  %3389 = vmatpush1.msra.mxu0 0.0
  %3390 = vmatprep.mubr.f32.mxu0 0.0
  %3391 = vmatmul.mubr.f32.gmra.mrb[0].mxu0 %v3324
  %v3392 = vpop.f32.mrb[0].mxu0
  %v3393 = vadd.f32 0.0, %v3392
  %v3394 = vpop.f32.mrb[0].mxu0
  %3395 = vdwg.mxu0
  %v3397 = vlaneseq
  %v3398 = vshrl.u32 %v3397, 7
  %v3399 = vsub.s32 0, %v3398
  %v3400 = vrot.slane %v2957, %v3399
  %v3402 = vmul.f32 %v3393, %v3400
  %v3404 = vlaneseq
  %v3405 = vshrl.u32 %v3404, 7
  %v3406 = vsub.s32 0, %v3405
  %v3407 = vrot.slane %v2960, %v3406
  %v3409 = vadd.f32 %v3402, %v3407
  %v3410 = vtanh.pop %v3409
  %v3411 = vmul.f32 %v3410, %v3410
  %v3412 = vsub.f32 1.0, %v3411
  %v3413 = vmul.f32 %v3400, %v3412
  %v3414 = vmul.f32 %v108, %v3413
  %v3415 = vmul.f32 %v112, %v3413
  %v3416 = vpack.c.bf16 %v3414, %v3410
  %v3417 = vpack.c.bf16 %v3415, %v3415
  %v3419 = vsel %vm367, %v3416, 0
  %v3422 = vsel %vm367, %v3417, 0
  %3424 = vmatprep.subr.bf16.mxu0 0
  %3425 = vmatpush1.bf16.msra.mxu0 %v363
  %3426 = vmatprep.subr.bf16.mxu0 0
  %3427 = vmatpush1.bf16.msra.mxu0 %v364
  %3428 = vmatprep.subr.bf16.mxu0 0
  %3429 = vmatpush1.bf16.msra.mxu0 0
  %3430 = vmatprep.subr.bf16.mxu0 0
  %3431 = vmatpush1.bf16.msra.mxu0 0
  %3432 = vmatprep.subr.bf16.mxu0 0
  %3433 = vmatpush1.bf16.msra.mxu0 0
  %3434 = vmatprep.subr.bf16.mxu0 0
  %3435 = vmatpush1.bf16.msra.mxu0 0
  %3436 = vmatprep.subr.bf16.mxu0 0
  %3437 = vmatpush1.bf16.msra.mxu0 0
  %3438 = vmatprep.subr.bf16.mxu0 0
  %3439 = vmatpush1.bf16.msra.mxu0 0
  %3440 = vmatprep.subr.bf16.mxu0 0
  %3441 = vmatpush1.bf16.msra.mxu0 0
  %3442 = vmatprep.subr.bf16.mxu0 0
  %3443 = vmatpush1.bf16.msra.mxu0 0
  %3444 = vmatprep.subr.bf16.mxu0 0
  %3445 = vmatpush1.bf16.msra.mxu0 0
  %3446 = vmatprep.subr.bf16.mxu0 0
  %3447 = vmatpush1.bf16.msra.mxu0 0
  %3448 = vmatprep.subr.bf16.mxu0 0
  %3449 = vmatpush1.bf16.msra.mxu0 0
  %3450 = vmatprep.subr.bf16.mxu0 0
  %3451 = vmatpush1.bf16.msra.mxu0 0
  %3452 = vmatprep.subr.bf16.mxu0 0
  %3453 = vmatpush1.bf16.msra.mxu0 0
  %3454 = vmatprep.subr.bf16.mxu0 0
  %3455 = vmatpush1.bf16.msra.mxu0 0
  %3456 = vmatprep.mubr.bf16.mxu0 0
  %3457 = vmatmul.mubr.bf16.gmra.mrb[0].mxu0 %v3419
  %v3458 = vpop.f32.mrb[0].mxu0
  %v3459 = vadd.f32 0.0, %v3458
  %v3460 = vpop.f32.mrb[0].mxu0
  %v3461 = vpop.f32.mrb[0].mxu0
  %v3462 = vadd.f32 0.0, %v3461
  %v3463 = vpop.f32.mrb[0].mxu0
  %3464 = vmatprep.mubr.bf16.mxu0 0
  %3465 = vmatmul.mubr.bf16.gmra.mrb[0].mxu0 %v3422
  %v3466 = vpop.f32.mrb[0].mxu0
  %v3467 = vadd.f32 0.0, %v3466
  %v3468 = vpop.f32.mrb[0].mxu0
  %v3469 = vpop.f32.mrb[0].mxu0
  %v3470 = vpop.f32.mrb[0].mxu0
  %3471 = vdwg.mxu0
  %v3473 = vlaneseq
  %v3474 = vshrl.u32 %v3473, 7
  %v3475 = vsub.s32 0, %v3474
  %v3476 = vrot.slane %v2968, %v3475
  %v3478 = vmul.f32 %v3459, %v3476
  %v3479 = vmul.f32 %v3462, %v3476
  %v3480 = vmul.f32 %v3467, %v3476
  %v3482 = vlaneseq
  %v3483 = vshrl.u32 %v3482, 7
  %v3484 = vsub.s32 0, %v3483
  %v3485 = vrot.slane %v2971, %v3484
  %v3487 = vadd.f32 %v3478, %v3485
  %v3488 = vtanh.pop %v3487
  %v3489 = vmul.f32 %v3488, %v3488
  %v3490 = vsub.f32 1.0, %v3489
  %v3491 = vmul.f32 %v3479, %v3490
  %v3492 = vmul.f32 %v3480, %v3490
  %v3493 = vpack.c.bf16 %v3491, %v3488
  %v3494 = vpack.c.bf16 %v3492, %v3492
  %v3496 = vsel %vm367, %v3493, 0
  %v3499 = vsel %vm367, %v3494, 0
  %3501 = vmatprep.subr.bf16.mxu0 0
  %3502 = vmatpush1.bf16.msra.mxu0 %v453
  %3503 = vmatprep.subr.bf16.mxu0 0
  %3504 = vmatpush1.bf16.msra.mxu0 %v454
  %3505 = vmatprep.subr.bf16.mxu0 0
  %3506 = vmatpush1.bf16.msra.mxu0 0
  %3507 = vmatprep.subr.bf16.mxu0 0
  %3508 = vmatpush1.bf16.msra.mxu0 0
  %3509 = vmatprep.subr.bf16.mxu0 0
  %3510 = vmatpush1.bf16.msra.mxu0 0
  %3511 = vmatprep.subr.bf16.mxu0 0
  %3512 = vmatpush1.bf16.msra.mxu0 0
  %3513 = vmatprep.subr.bf16.mxu0 0
  %3514 = vmatpush1.bf16.msra.mxu0 0
  %3515 = vmatprep.subr.bf16.mxu0 0
  %3516 = vmatpush1.bf16.msra.mxu0 0
  %3517 = vmatprep.subr.bf16.mxu0 0
  %3518 = vmatpush1.bf16.msra.mxu0 0
  %3519 = vmatprep.subr.bf16.mxu0 0
  %3520 = vmatpush1.bf16.msra.mxu0 0
  %3521 = vmatprep.subr.bf16.mxu0 0
  %3522 = vmatpush1.bf16.msra.mxu0 0
  %3523 = vmatprep.subr.bf16.mxu0 0
  %3524 = vmatpush1.bf16.msra.mxu0 0
  %3525 = vmatprep.subr.bf16.mxu0 0
  %3526 = vmatpush1.bf16.msra.mxu0 0
  %3527 = vmatprep.subr.bf16.mxu0 0
  %3528 = vmatpush1.bf16.msra.mxu0 0
  %3529 = vmatprep.subr.bf16.mxu0 0
  %3530 = vmatpush1.bf16.msra.mxu0 0
  %3531 = vmatprep.subr.bf16.mxu0 0
  %3532 = vmatpush1.bf16.msra.mxu0 0
  %3533 = vmatprep.mubr.bf16.mxu0 0
  %3534 = vmatmul.mubr.bf16.gmra.mrb[0].mxu0 %v3496
  %v3535 = vpop.f32.mrb[0].mxu0
  %v3536 = vadd.f32 0.0, %v3535
  %v3537 = vpop.f32.mrb[0].mxu0
  %v3538 = vpop.f32.mrb[0].mxu0
  %v3539 = vadd.f32 0.0, %v3538
  %v3540 = vpop.f32.mrb[0].mxu0
  %3541 = vmatprep.mubr.bf16.mxu0 0
  %3542 = vmatmul.mubr.bf16.gmra.mrb[0].mxu0 %v3499
  %v3543 = vpop.f32.mrb[0].mxu0
  %v3544 = vadd.f32 0.0, %v3543
  %v3545 = vpop.f32.mrb[0].mxu0
  %v3546 = vpop.f32.mrb[0].mxu0
  %v3547 = vpop.f32.mrb[0].mxu0
  %3548 = vdwg.mxu0
  %v3550 = vlaneseq
  %v3551 = vshrl.u32 %v3550, 7
  %v3552 = vsub.s32 0, %v3551
  %v3553 = vrot.slane %v2979, %v3552
  %v3555 = vmul.f32 %v3536, %v3553
  %v3556 = vmul.f32 %v3539, %v3553
  %v3557 = vmul.f32 %v3544, %v3553
  %v3559 = vlaneseq
  %v3560 = vshrl.u32 %v3559, 7
  %v3561 = vsub.s32 0, %v3560
  %v3562 = vrot.slane %v2982, %v3561
  %v3564 = vadd.f32 %v3555, %v3562
  %v3565 = vtanh.pop %v3564
  %v3566 = vmul.f32 %v3565, %v3565
  %v3567 = vsub.f32 1.0, %v3566
  %v3568 = vmul.f32 %v3556, %v3567
  %v3569 = vmul.f32 %v3557, %v3567
  %v3570 = vpack.c.bf16 %v3568, %v3565
  %v3571 = vpack.c.bf16 %v3569, %v3569
  %v3573 = vsel %vm367, %v3570, 0
  %v3576 = vsel %vm367, %v3571, 0
  %3578 = vmatprep.subr.bf16.mxu0 0
  %3579 = vmatpush1.bf16.msra.mxu0 %v542
  %3580 = vmatprep.subr.bf16.mxu0 0
  %3581 = vmatpush1.bf16.msra.mxu0 %v543
  %3582 = vmatprep.subr.bf16.mxu0 0
  %3583 = vmatpush1.bf16.msra.mxu0 0
  %3584 = vmatprep.subr.bf16.mxu0 0
  %3585 = vmatpush1.bf16.msra.mxu0 0
  %3586 = vmatprep.subr.bf16.mxu0 0
  %3587 = vmatpush1.bf16.msra.mxu0 0
  %3588 = vmatprep.subr.bf16.mxu0 0
  %3589 = vmatpush1.bf16.msra.mxu0 0
  %3590 = vmatprep.subr.bf16.mxu0 0
  %3591 = vmatpush1.bf16.msra.mxu0 0
  %3592 = vmatprep.subr.bf16.mxu0 0
  %3593 = vmatpush1.bf16.msra.mxu0 0
  %3594 = vmatprep.subr.bf16.mxu0 0
  %3595 = vmatpush1.bf16.msra.mxu0 0
  %3596 = vmatprep.subr.bf16.mxu0 0
  %3597 = vmatpush1.bf16.msra.mxu0 0
  %3598 = vmatprep.subr.bf16.mxu0 0
  %3599 = vmatpush1.bf16.msra.mxu0 0
  %3600 = vmatprep.subr.bf16.mxu0 0
  %3601 = vmatpush1.bf16.msra.mxu0 0
  %3602 = vmatprep.subr.bf16.mxu0 0
  %3603 = vmatpush1.bf16.msra.mxu0 0
  %3604 = vmatprep.subr.bf16.mxu0 0
  %3605 = vmatpush1.bf16.msra.mxu0 0
  %3606 = vmatprep.subr.bf16.mxu0 0
  %3607 = vmatpush1.bf16.msra.mxu0 0
  %3608 = vmatprep.subr.bf16.mxu0 0
  %3609 = vmatpush1.bf16.msra.mxu0 0
  %3610 = vmatprep.mubr.bf16.mxu0 0
  %3611 = vmatmul.mubr.bf16.gmra.mrb[0].mxu0 %v3573
  %v3612 = vpop.f32.mrb[0].mxu0
  %v3613 = vadd.f32 0.0, %v3612
  %v3614 = vpop.f32.mrb[0].mxu0
  %v3615 = vpop.f32.mrb[0].mxu0
  %v3616 = vadd.f32 0.0, %v3615
  %v3617 = vpop.f32.mrb[0].mxu0
  %3618 = vmatprep.mubr.bf16.mxu0 0
  %3619 = vmatmul.mubr.bf16.gmra.mrb[0].mxu0 %v3576
  %v3620 = vpop.f32.mrb[0].mxu0
  %v3621 = vadd.f32 0.0, %v3620
  %v3622 = vpop.f32.mrb[0].mxu0
  %v3623 = vpop.f32.mrb[0].mxu0
  %v3624 = vpop.f32.mrb[0].mxu0
  %3625 = vdwg.mxu0
  %v3627 = vlaneseq
  %v3628 = vshrl.u32 %v3627, 7
  %v3629 = vsub.s32 0, %v3628
  %v3630 = vrot.slane %v2990, %v3629
  %v3632 = vmul.f32 %v3613, %v3630
  %v3633 = vmul.f32 %v3616, %v3630
  %v3634 = vmul.f32 %v3621, %v3630
  %v3636 = vlaneseq
  %v3637 = vshrl.u32 %v3636, 7
  %v3638 = vsub.s32 0, %v3637
  %v3639 = vrot.slane %v2993, %v3638
  %v3641 = vadd.f32 %v3632, %v3639
  %3643 = vrot.lane.b32.xlu0 %v3634, 127
  %v3644 = vpop.permute.xlu0 %3643
  %v3646 = vadd.f32 %v3633, %v3644
  %v3647 = vmul.f32 %v3641, %v3641
  %v3648 = vsel %vm114, %v3647, 0.0
  %3649 = vadd.xlane.f32.xlu0 %v3648
  %v3650 = vpop.xlane.xlu0 %3649
  %v3651 = vmul.f32 %v3650, 0.5
  %v3652 = vmul.f32 %v3320, %v3641
  %v3653 = vadd.f32 %v2929, %v3652
  %v3655 = vsel %vm114, %v3653, 0
  %3657 = vmatprep.subr.mxu0 0.0
  %3658 = vmatpush1.msra.mxu0 %v261
  %3659 = vmatprep.subr.mxu0 0.0
  %3660 = vmatpush1.msra.mxu0 0.0
  %3661 = vmatprep.subr.mxu0 0.0
  %3662 = vmatpush1.msra.mxu0 0.0
  %3663 = vmatprep.subr.mxu0 0.0
  %3664 = vmatpush1.msra.mxu0 0.0
  %3665 = vmatprep.subr.mxu0 0.0
  %3666 = vmatpush1.msra.mxu0 0.0
  %3667 = vmatprep.subr.mxu0 0.0
  %3668 = vmatpush1.msra.mxu0 0.0
  %3669 = vmatprep.subr.mxu0 0.0
  %3670 = vmatpush1.msra.mxu0 0.0
  %3671 = vmatprep.subr.mxu0 0.0
  %3672 = vmatpush1.msra.mxu0 0.0
  %3673 = vmatprep.subr.mxu0 0.0
  %3674 = vmatpush1.msra.mxu0 0.0
  %3675 = vmatprep.subr.mxu0 0.0
  %3676 = vmatpush1.msra.mxu0 0.0
  %3677 = vmatprep.subr.mxu0 0.0
  %3678 = vmatpush1.msra.mxu0 0.0
  %3679 = vmatprep.subr.mxu0 0.0
  %3680 = vmatpush1.msra.mxu0 0.0
  %3681 = vmatprep.subr.mxu0 0.0
  %3682 = vmatpush1.msra.mxu0 0.0
  %3683 = vmatprep.subr.mxu0 0.0
  %3684 = vmatpush1.msra.mxu0 0.0
  %3685 = vmatprep.subr.mxu0 0.0
  %3686 = vmatpush1.msra.mxu0 0.0
  %3687 = vmatprep.subr.mxu0 0.0
  %3688 = vmatpush1.msra.mxu0 0.0
  %3689 = vmatprep.subr.mxu0 0.0
  %3690 = vmatpush1.msra.mxu0 0.0
  %3691 = vmatprep.subr.mxu0 0.0
  %3692 = vmatpush1.msra.mxu0 0.0
  %3693 = vmatprep.subr.mxu0 0.0
  %3694 = vmatpush1.msra.mxu0 0.0
  %3695 = vmatprep.subr.mxu0 0.0
  %3696 = vmatpush1.msra.mxu0 0.0
  %3697 = vmatprep.subr.mxu0 0.0
  %3698 = vmatpush1.msra.mxu0 0.0
  %3699 = vmatprep.subr.mxu0 0.0
  %3700 = vmatpush1.msra.mxu0 0.0
  %3701 = vmatprep.subr.mxu0 0.0
  %3702 = vmatpush1.msra.mxu0 0.0
  %3703 = vmatprep.subr.mxu0 0.0
  %3704 = vmatpush1.msra.mxu0 0.0
  %3705 = vmatprep.subr.mxu0 0.0
  %3706 = vmatpush1.msra.mxu0 0.0
  %3707 = vmatprep.subr.mxu0 0.0
  %3708 = vmatpush1.msra.mxu0 0.0
  %3709 = vmatprep.subr.mxu0 0.0
  %3710 = vmatpush1.msra.mxu0 0.0
  %3711 = vmatprep.subr.mxu0 0.0
  %3712 = vmatpush1.msra.mxu0 0.0
  %3713 = vmatprep.subr.mxu0 0.0
  %3714 = vmatpush1.msra.mxu0 0.0
  %3715 = vmatprep.subr.mxu0 0.0
  %3716 = vmatpush1.msra.mxu0 0.0
  %3717 = vmatprep.subr.mxu0 0.0
  %3718 = vmatpush1.msra.mxu0 0.0
  %3719 = vmatprep.subr.mxu0 0.0
  %3720 = vmatpush1.msra.mxu0 0.0
  %3721 = vmatprep.mubr.f32.mxu0 0.0
  %3722 = vmatmul.mubr.f32.gmra.mrb[0].mxu0 %v3655
  %v3723 = vpop.f32.mrb[0].mxu0
  %v3724 = vadd.f32 0.0, %v3723
  %v3725 = vpop.f32.mrb[0].mxu0
  %3726 = vdwg.mxu0
  %v3727 = vmul.f32 %v3724, %v3400
  %v3728 = vadd.f32 %v3727, %v3407
  %v3729 = vtanh.pop %v3728
  %v3730 = vmul.f32 %v3729, %v3729
  %v3731 = vsub.f32 1.0, %v3730
  %v3732 = vmul.f32 %v3400, %v3731
  %v3733 = vmul.f32 %v108, %v3732
  %v3734 = vmul.f32 %v112, %v3732
  %v3735 = vpack.c.bf16 %v3733, %v3729
  %v3736 = vpack.c.bf16 %v3734, %v3734
  %v3738 = vsel %vm367, %v3735, 0
  %v3741 = vsel %vm367, %v3736, 0
  %3743 = vmatprep.subr.bf16.mxu0 0
  %3744 = vmatpush1.bf16.msra.mxu0 %v363
  %3745 = vmatprep.subr.bf16.mxu0 0
  %3746 = vmatpush1.bf16.msra.mxu0 %v364
  %3747 = vmatprep.subr.bf16.mxu0 0
  %3748 = vmatpush1.bf16.msra.mxu0 0
  %3749 = vmatprep.subr.bf16.mxu0 0
  %3750 = vmatpush1.bf16.msra.mxu0 0
  %3751 = vmatprep.subr.bf16.mxu0 0
  %3752 = vmatpush1.bf16.msra.mxu0 0
  %3753 = vmatprep.subr.bf16.mxu0 0
  %3754 = vmatpush1.bf16.msra.mxu0 0
  %3755 = vmatprep.subr.bf16.mxu0 0
  %3756 = vmatpush1.bf16.msra.mxu0 0
  %3757 = vmatprep.subr.bf16.mxu0 0
  %3758 = vmatpush1.bf16.msra.mxu0 0
  %3759 = vmatprep.subr.bf16.mxu0 0
  %3760 = vmatpush1.bf16.msra.mxu0 0
  %3761 = vmatprep.subr.bf16.mxu0 0
  %3762 = vmatpush1.bf16.msra.mxu0 0
  %3763 = vmatprep.subr.bf16.mxu0 0
  %3764 = vmatpush1.bf16.msra.mxu0 0
  %3765 = vmatprep.subr.bf16.mxu0 0
  %3766 = vmatpush1.bf16.msra.mxu0 0
  %3767 = vmatprep.subr.bf16.mxu0 0
  %3768 = vmatpush1.bf16.msra.mxu0 0
  %3769 = vmatprep.subr.bf16.mxu0 0
  %3770 = vmatpush1.bf16.msra.mxu0 0
  %3771 = vmatprep.subr.bf16.mxu0 0
  %3772 = vmatpush1.bf16.msra.mxu0 0
  %3773 = vmatprep.subr.bf16.mxu0 0
  %3774 = vmatpush1.bf16.msra.mxu0 0
  %3775 = vmatprep.mubr.bf16.mxu0 0
  %3776 = vmatmul.mubr.bf16.gmra.mrb[0].mxu0 %v3738
  %v3777 = vpop.f32.mrb[0].mxu0
  %v3778 = vadd.f32 0.0, %v3777
  %v3779 = vpop.f32.mrb[0].mxu0
  %v3780 = vpop.f32.mrb[0].mxu0
  %v3781 = vadd.f32 0.0, %v3780
  %v3782 = vpop.f32.mrb[0].mxu0
  %3783 = vmatprep.mubr.bf16.mxu0 0
  %3784 = vmatmul.mubr.bf16.gmra.mrb[0].mxu0 %v3741
  %v3785 = vpop.f32.mrb[0].mxu0
  %v3786 = vadd.f32 0.0, %v3785
  %v3787 = vpop.f32.mrb[0].mxu0
  %v3788 = vpop.f32.mrb[0].mxu0
  %v3789 = vpop.f32.mrb[0].mxu0
  %3790 = vdwg.mxu0
  %v3791 = vmul.f32 %v3778, %v3476
  %v3792 = vmul.f32 %v3781, %v3476
  %v3793 = vmul.f32 %v3786, %v3476
  %v3794 = vadd.f32 %v3791, %v3485
  %v3795 = vtanh.pop %v3794
  %v3796 = vmul.f32 %v3795, %v3795
  %v3797 = vsub.f32 1.0, %v3796
  %v3798 = vmul.f32 %v3792, %v3797
  %v3799 = vmul.f32 %v3793, %v3797
  %v3800 = vpack.c.bf16 %v3798, %v3795
  %v3801 = vpack.c.bf16 %v3799, %v3799
  %v3803 = vsel %vm367, %v3800, 0
  %v3806 = vsel %vm367, %v3801, 0
  %3808 = vmatprep.subr.bf16.mxu0 0
  %3809 = vmatpush1.bf16.msra.mxu0 %v453
  %3810 = vmatprep.subr.bf16.mxu0 0
  %3811 = vmatpush1.bf16.msra.mxu0 %v454
  %3812 = vmatprep.subr.bf16.mxu0 0
  %3813 = vmatpush1.bf16.msra.mxu0 0
  %3814 = vmatprep.subr.bf16.mxu0 0
  %3815 = vmatpush1.bf16.msra.mxu0 0
  %3816 = vmatprep.subr.bf16.mxu0 0
  %3817 = vmatpush1.bf16.msra.mxu0 0
  %3818 = vmatprep.subr.bf16.mxu0 0
  %3819 = vmatpush1.bf16.msra.mxu0 0
  %3820 = vmatprep.subr.bf16.mxu0 0
  %3821 = vmatpush1.bf16.msra.mxu0 0
  %3822 = vmatprep.subr.bf16.mxu0 0
  %3823 = vmatpush1.bf16.msra.mxu0 0
  %3824 = vmatprep.subr.bf16.mxu0 0
  %3825 = vmatpush1.bf16.msra.mxu0 0
  %3826 = vmatprep.subr.bf16.mxu0 0
  %3827 = vmatpush1.bf16.msra.mxu0 0
  %3828 = vmatprep.subr.bf16.mxu0 0
  %3829 = vmatpush1.bf16.msra.mxu0 0
  %3830 = vmatprep.subr.bf16.mxu0 0
  %3831 = vmatpush1.bf16.msra.mxu0 0
  %3832 = vmatprep.subr.bf16.mxu0 0
  %3833 = vmatpush1.bf16.msra.mxu0 0
  %3834 = vmatprep.subr.bf16.mxu0 0
  %3835 = vmatpush1.bf16.msra.mxu0 0
  %3836 = vmatprep.subr.bf16.mxu0 0
  %3837 = vmatpush1.bf16.msra.mxu0 0
  %3838 = vmatprep.subr.bf16.mxu0 0
  %3839 = vmatpush1.bf16.msra.mxu0 0
  %3840 = vmatprep.mubr.bf16.mxu0 0
  %3841 = vmatmul.mubr.bf16.gmra.mrb[0].mxu0 %v3803
  %v3842 = vpop.f32.mrb[0].mxu0
  %v3843 = vadd.f32 0.0, %v3842
  %v3844 = vpop.f32.mrb[0].mxu0
  %v3845 = vpop.f32.mrb[0].mxu0
  %v3846 = vadd.f32 0.0, %v3845
  %v3847 = vpop.f32.mrb[0].mxu0
  %3848 = vmatprep.mubr.bf16.mxu0 0
  %3849 = vmatmul.mubr.bf16.gmra.mrb[0].mxu0 %v3806
  %v3850 = vpop.f32.mrb[0].mxu0
  %v3851 = vadd.f32 0.0, %v3850
  %v3852 = vpop.f32.mrb[0].mxu0
  %v3853 = vpop.f32.mrb[0].mxu0
  %v3854 = vpop.f32.mrb[0].mxu0
  %3855 = vdwg.mxu0
  %v3856 = vmul.f32 %v3843, %v3553
  %v3857 = vmul.f32 %v3846, %v3553
  %v3858 = vmul.f32 %v3851, %v3553
  %v3859 = vadd.f32 %v3856, %v3562
  %v3860 = vtanh.pop %v3859
  %v3861 = vmul.f32 %v3860, %v3860
  %v3862 = vsub.f32 1.0, %v3861
  %v3863 = vmul.f32 %v3857, %v3862
  %v3864 = vmul.f32 %v3858, %v3862
  %v3865 = vpack.c.bf16 %v3863, %v3860
  %v3866 = vpack.c.bf16 %v3864, %v3864
  %v3868 = vsel %vm367, %v3865, 0
  %v3871 = vsel %vm367, %v3866, 0
  %3873 = vmatprep.subr.bf16.mxu0 0
  %3874 = vmatpush1.bf16.msra.mxu0 %v542
  %3875 = vmatprep.subr.bf16.mxu0 0
  %3876 = vmatpush1.bf16.msra.mxu0 %v543
  %3877 = vmatprep.subr.bf16.mxu0 0
  %3878 = vmatpush1.bf16.msra.mxu0 0
  %3879 = vmatprep.subr.bf16.mxu0 0
  %3880 = vmatpush1.bf16.msra.mxu0 0
  %3881 = vmatprep.subr.bf16.mxu0 0
  %3882 = vmatpush1.bf16.msra.mxu0 0
  %3883 = vmatprep.subr.bf16.mxu0 0
  %3884 = vmatpush1.bf16.msra.mxu0 0
  %3885 = vmatprep.subr.bf16.mxu0 0
  %3886 = vmatpush1.bf16.msra.mxu0 0
  %3887 = vmatprep.subr.bf16.mxu0 0
  %3888 = vmatpush1.bf16.msra.mxu0 0
  %3889 = vmatprep.subr.bf16.mxu0 0
  %3890 = vmatpush1.bf16.msra.mxu0 0
  %3891 = vmatprep.subr.bf16.mxu0 0
  %3892 = vmatpush1.bf16.msra.mxu0 0
  %3893 = vmatprep.subr.bf16.mxu0 0
  %3894 = vmatpush1.bf16.msra.mxu0 0
  %3895 = vmatprep.subr.bf16.mxu0 0
  %3896 = vmatpush1.bf16.msra.mxu0 0
  %3897 = vmatprep.subr.bf16.mxu0 0
  %3898 = vmatpush1.bf16.msra.mxu0 0
  %3899 = vmatprep.subr.bf16.mxu0 0
  %3900 = vmatpush1.bf16.msra.mxu0 0
  %3901 = vmatprep.subr.bf16.mxu0 0
  %3902 = vmatpush1.bf16.msra.mxu0 0
  %3903 = vmatprep.subr.bf16.mxu0 0
  %3904 = vmatpush1.bf16.msra.mxu0 0
  %3905 = vmatprep.mubr.bf16.mxu0 0
  %3906 = vmatmul.mubr.bf16.gmra.mrb[0].mxu0 %v3868
  %v3907 = vpop.f32.mrb[0].mxu0
  %v3908 = vadd.f32 0.0, %v3907
  %v3909 = vpop.f32.mrb[0].mxu0
  %v3910 = vpop.f32.mrb[0].mxu0
  %v3911 = vadd.f32 0.0, %v3910
  %v3912 = vpop.f32.mrb[0].mxu0
  %3913 = vmatprep.mubr.bf16.mxu0 0
  %3914 = vmatmul.mubr.bf16.gmra.mrb[0].mxu0 %v3871
  %v3915 = vpop.f32.mrb[0].mxu0
  %v3916 = vadd.f32 0.0, %v3915
  %v3917 = vpop.f32.mrb[0].mxu0
  %v3918 = vpop.f32.mrb[0].mxu0
  %v3919 = vpop.f32.mrb[0].mxu0
  %3920 = vdwg.mxu0
  %v3921 = vmul.f32 %v3908, %v3630
  %v3922 = vmul.f32 %v3911, %v3630
  %v3923 = vmul.f32 %v3916, %v3630
  %v3924 = vadd.f32 %v3921, %v3639
  %3926 = vrot.lane.b32.xlu0 %v3923, 127
  %v3927 = vpop.permute.xlu0 %3926
  %v3929 = vadd.f32 %v3922, %v3927
  %v3930 = vmul.f32 %v3924, %v3924
  %v3931 = vsel %vm114, %v3930, 0.0
  %3932 = vadd.xlane.f32.xlu0 %v3931
  %v3933 = vpop.xlane.xlu0 %3932
  %v3934 = vmul.f32 %v3933, 0.5
  %v3935 = vstv %s2946
  %v3936 = vmul.f32 %v3935, %v3924
  %v3937 = vadd.f32 %v2929, %v3936
  %v3939 = vsel %vm114, %v3937, 0
  %3941 = vmatprep.subr.mxu0 0.0
  %3942 = vmatpush1.msra.mxu0 %v261
  %3943 = vmatprep.subr.mxu0 0.0
  %3944 = vmatpush1.msra.mxu0 0.0
  %3945 = vmatprep.subr.mxu0 0.0
  %3946 = vmatpush1.msra.mxu0 0.0
  %3947 = vmatprep.subr.mxu0 0.0
  %3948 = vmatpush1.msra.mxu0 0.0
  %3949 = vmatprep.subr.mxu0 0.0
  %3950 = vmatpush1.msra.mxu0 0.0
  %3951 = vmatprep.subr.mxu0 0.0
  %3952 = vmatpush1.msra.mxu0 0.0
  %3953 = vmatprep.subr.mxu0 0.0
  %3954 = vmatpush1.msra.mxu0 0.0
  %3955 = vmatprep.subr.mxu0 0.0
  %3956 = vmatpush1.msra.mxu0 0.0
  %3957 = vmatprep.subr.mxu0 0.0
  %3958 = vmatpush1.msra.mxu0 0.0
  %3959 = vmatprep.subr.mxu0 0.0
  %3960 = vmatpush1.msra.mxu0 0.0
  %3961 = vmatprep.subr.mxu0 0.0
  %3962 = vmatpush1.msra.mxu0 0.0
  %3963 = vmatprep.subr.mxu0 0.0
  %3964 = vmatpush1.msra.mxu0 0.0
  %3965 = vmatprep.subr.mxu0 0.0
  %3966 = vmatpush1.msra.mxu0 0.0
  %3967 = vmatprep.subr.mxu0 0.0
  %3968 = vmatpush1.msra.mxu0 0.0
  %3969 = vmatprep.subr.mxu0 0.0
  %3970 = vmatpush1.msra.mxu0 0.0
  %3971 = vmatprep.subr.mxu0 0.0
  %3972 = vmatpush1.msra.mxu0 0.0
  %3973 = vmatprep.subr.mxu0 0.0
  %3974 = vmatpush1.msra.mxu0 0.0
  %3975 = vmatprep.subr.mxu0 0.0
  %3976 = vmatpush1.msra.mxu0 0.0
  %3977 = vmatprep.subr.mxu0 0.0
  %3978 = vmatpush1.msra.mxu0 0.0
  %3979 = vmatprep.subr.mxu0 0.0
  %3980 = vmatpush1.msra.mxu0 0.0
  %3981 = vmatprep.subr.mxu0 0.0
  %3982 = vmatpush1.msra.mxu0 0.0
  %3983 = vmatprep.subr.mxu0 0.0
  %3984 = vmatpush1.msra.mxu0 0.0
  %3985 = vmatprep.subr.mxu0 0.0
  %3986 = vmatpush1.msra.mxu0 0.0
  %3987 = vmatprep.subr.mxu0 0.0
  %3988 = vmatpush1.msra.mxu0 0.0
  %3989 = vmatprep.subr.mxu0 0.0
  %3990 = vmatpush1.msra.mxu0 0.0
  %3991 = vmatprep.subr.mxu0 0.0
  %3992 = vmatpush1.msra.mxu0 0.0
  %3993 = vmatprep.subr.mxu0 0.0
  %3994 = vmatpush1.msra.mxu0 0.0
  %3995 = vmatprep.subr.mxu0 0.0
  %3996 = vmatpush1.msra.mxu0 0.0
  %3997 = vmatprep.subr.mxu0 0.0
  %3998 = vmatpush1.msra.mxu0 0.0
  %3999 = vmatprep.subr.mxu0 0.0
  %4000 = vmatpush1.msra.mxu0 0.0
  %4001 = vmatprep.subr.mxu0 0.0
  %4002 = vmatpush1.msra.mxu0 0.0
  %4003 = vmatprep.subr.mxu0 0.0
  %4004 = vmatpush1.msra.mxu0 0.0
  %4005 = vmatprep.mubr.f32.mxu0 0.0
  %4006 = vmatmul.mubr.f32.gmra.mrb[0].mxu0 %v3939
  %v4007 = vpop.f32.mrb[0].mxu0
  %v4008 = vadd.f32 0.0, %v4007
  %v4009 = vpop.f32.mrb[0].mxu0
  %4010 = vdwg.mxu0
  %v4012 = vlaneseq
  %v4013 = vshrl.u32 %v4012, 7
  %v4014 = vsub.s32 0, %v4013
  %v4015 = vrot.slane %v3002, %v4014
  %v4017 = vmul.f32 %v4008, %v4015
  %v4019 = vlaneseq
  %v4020 = vshrl.u32 %v4019, 7
  %v4021 = vsub.s32 0, %v4020
  %v4022 = vrot.slane %v3005, %v4021
  %v4024 = vadd.f32 %v4017, %v4022
  %v4025 = vtanh.pop %v4024
  %v4026 = vmul.f32 %v4025, %v4025
  %v4027 = vsub.f32 1.0, %v4026
  %v4028 = vmul.f32 %v4015, %v4027
  %v4029 = vmul.f32 %v108, %v4028
  %v4030 = vmul.f32 %v112, %v4028
  %v4031 = vpack.c.bf16 %v4029, %v4025
  %v4032 = vpack.c.bf16 %v4030, %v4030
  %v4034 = vsel %vm367, %v4031, 0
  %v4037 = vsel %vm367, %v4032, 0
  %4039 = vmatprep.subr.bf16.mxu0 0
  %4040 = vmatpush1.bf16.msra.mxu0 %v363
  %4041 = vmatprep.subr.bf16.mxu0 0
  %4042 = vmatpush1.bf16.msra.mxu0 %v364
  %4043 = vmatprep.subr.bf16.mxu0 0
  %4044 = vmatpush1.bf16.msra.mxu0 0
  %4045 = vmatprep.subr.bf16.mxu0 0
  %4046 = vmatpush1.bf16.msra.mxu0 0
  %4047 = vmatprep.subr.bf16.mxu0 0
  %4048 = vmatpush1.bf16.msra.mxu0 0
  %4049 = vmatprep.subr.bf16.mxu0 0
  %4050 = vmatpush1.bf16.msra.mxu0 0
  %4051 = vmatprep.subr.bf16.mxu0 0
  %4052 = vmatpush1.bf16.msra.mxu0 0
  %4053 = vmatprep.subr.bf16.mxu0 0
  %4054 = vmatpush1.bf16.msra.mxu0 0
  %4055 = vmatprep.subr.bf16.mxu0 0
  %4056 = vmatpush1.bf16.msra.mxu0 0
  %4057 = vmatprep.subr.bf16.mxu0 0
  %4058 = vmatpush1.bf16.msra.mxu0 0
  %4059 = vmatprep.subr.bf16.mxu0 0
  %4060 = vmatpush1.bf16.msra.mxu0 0
  %4061 = vmatprep.subr.bf16.mxu0 0
  %4062 = vmatpush1.bf16.msra.mxu0 0
  %4063 = vmatprep.subr.bf16.mxu0 0
  %4064 = vmatpush1.bf16.msra.mxu0 0
  %4065 = vmatprep.subr.bf16.mxu0 0
  %4066 = vmatpush1.bf16.msra.mxu0 0
  %4067 = vmatprep.subr.bf16.mxu0 0
  %4068 = vmatpush1.bf16.msra.mxu0 0
  %4069 = vmatprep.subr.bf16.mxu0 0
  %4070 = vmatpush1.bf16.msra.mxu0 0
  %4071 = vmatprep.mubr.bf16.mxu0 0
  %4072 = vmatmul.mubr.bf16.gmra.mrb[0].mxu0 %v4034
  %v4073 = vpop.f32.mrb[0].mxu0
  %v4074 = vadd.f32 0.0, %v4073
  %v4075 = vpop.f32.mrb[0].mxu0
  %v4076 = vpop.f32.mrb[0].mxu0
  %v4077 = vadd.f32 0.0, %v4076
  %v4078 = vpop.f32.mrb[0].mxu0
  %4079 = vmatprep.mubr.bf16.mxu0 0
  %4080 = vmatmul.mubr.bf16.gmra.mrb[0].mxu0 %v4037
  %v4081 = vpop.f32.mrb[0].mxu0
  %v4082 = vadd.f32 0.0, %v4081
  %v4083 = vpop.f32.mrb[0].mxu0
  %v4084 = vpop.f32.mrb[0].mxu0
  %v4085 = vpop.f32.mrb[0].mxu0
  %4086 = vdwg.mxu0
  %v4088 = vlaneseq
  %v4089 = vshrl.u32 %v4088, 7
  %v4090 = vsub.s32 0, %v4089
  %v4091 = vrot.slane %v3013, %v4090
  %v4093 = vmul.f32 %v4074, %v4091
  %v4094 = vmul.f32 %v4077, %v4091
  %v4095 = vmul.f32 %v4082, %v4091
  %v4097 = vlaneseq
  %v4098 = vshrl.u32 %v4097, 7
  %v4099 = vsub.s32 0, %v4098
  %v4100 = vrot.slane %v3016, %v4099
  %v4102 = vadd.f32 %v4093, %v4100
  %v4103 = vtanh.pop %v4102
  %v4104 = vmul.f32 %v4103, %v4103
  %v4105 = vsub.f32 1.0, %v4104
  %v4106 = vmul.f32 %v4094, %v4105
  %v4107 = vmul.f32 %v4095, %v4105
  %v4108 = vpack.c.bf16 %v4106, %v4103
  %v4109 = vpack.c.bf16 %v4107, %v4107
  %v4111 = vsel %vm367, %v4108, 0
  %v4114 = vsel %vm367, %v4109, 0
  %4116 = vmatprep.subr.bf16.mxu0 0
  %4117 = vmatpush1.bf16.msra.mxu0 %v453
  %4118 = vmatprep.subr.bf16.mxu0 0
  %4119 = vmatpush1.bf16.msra.mxu0 %v454
  %4120 = vmatprep.subr.bf16.mxu0 0
  %4121 = vmatpush1.bf16.msra.mxu0 0
  %4122 = vmatprep.subr.bf16.mxu0 0
  %4123 = vmatpush1.bf16.msra.mxu0 0
  %4124 = vmatprep.subr.bf16.mxu0 0
  %4125 = vmatpush1.bf16.msra.mxu0 0
  %4126 = vmatprep.subr.bf16.mxu0 0
  %4127 = vmatpush1.bf16.msra.mxu0 0
  %4128 = vmatprep.subr.bf16.mxu0 0
  %4129 = vmatpush1.bf16.msra.mxu0 0
  %4130 = vmatprep.subr.bf16.mxu0 0
  %4131 = vmatpush1.bf16.msra.mxu0 0
  %4132 = vmatprep.subr.bf16.mxu0 0
  %4133 = vmatpush1.bf16.msra.mxu0 0
  %4134 = vmatprep.subr.bf16.mxu0 0
  %4135 = vmatpush1.bf16.msra.mxu0 0
  %4136 = vmatprep.subr.bf16.mxu0 0
  %4137 = vmatpush1.bf16.msra.mxu0 0
  %4138 = vmatprep.subr.bf16.mxu0 0
  %4139 = vmatpush1.bf16.msra.mxu0 0
  %4140 = vmatprep.subr.bf16.mxu0 0
  %4141 = vmatpush1.bf16.msra.mxu0 0
  %4142 = vmatprep.subr.bf16.mxu0 0
  %4143 = vmatpush1.bf16.msra.mxu0 0
  %4144 = vmatprep.subr.bf16.mxu0 0
  %4145 = vmatpush1.bf16.msra.mxu0 0
  %4146 = vmatprep.subr.bf16.mxu0 0
  %4147 = vmatpush1.bf16.msra.mxu0 0
  %4148 = vmatprep.mubr.bf16.mxu0 0
  %4149 = vmatmul.mubr.bf16.gmra.mrb[0].mxu0 %v4111
  %v4150 = vpop.f32.mrb[0].mxu0
  %v4151 = vadd.f32 0.0, %v4150
  %v4152 = vpop.f32.mrb[0].mxu0
  %v4153 = vpop.f32.mrb[0].mxu0
  %v4154 = vadd.f32 0.0, %v4153
  %v4155 = vpop.f32.mrb[0].mxu0
  %4156 = vmatprep.mubr.bf16.mxu0 0
  %4157 = vmatmul.mubr.bf16.gmra.mrb[0].mxu0 %v4114
  %v4158 = vpop.f32.mrb[0].mxu0
  %v4159 = vadd.f32 0.0, %v4158
  %v4160 = vpop.f32.mrb[0].mxu0
  %v4161 = vpop.f32.mrb[0].mxu0
  %v4162 = vpop.f32.mrb[0].mxu0
  %4163 = vdwg.mxu0
  %v4165 = vlaneseq
  %v4166 = vshrl.u32 %v4165, 7
  %v4167 = vsub.s32 0, %v4166
  %v4168 = vrot.slane %v3024, %v4167
  %v4170 = vmul.f32 %v4151, %v4168
  %v4171 = vmul.f32 %v4154, %v4168
  %v4172 = vmul.f32 %v4159, %v4168
  %v4174 = vlaneseq
  %v4175 = vshrl.u32 %v4174, 7
  %v4176 = vsub.s32 0, %v4175
  %v4177 = vrot.slane %v3027, %v4176
  %v4179 = vadd.f32 %v4170, %v4177
  %v4180 = vtanh.pop %v4179
  %v4181 = vmul.f32 %v4180, %v4180
  %v4182 = vsub.f32 1.0, %v4181
  %v4183 = vmul.f32 %v4171, %v4182
  %v4184 = vmul.f32 %v4172, %v4182
  %v4185 = vpack.c.bf16 %v4183, %v4180
  %v4186 = vpack.c.bf16 %v4184, %v4184
  %v4188 = vsel %vm367, %v4185, 0
  %v4191 = vsel %vm367, %v4186, 0
  %4193 = vmatprep.subr.bf16.mxu0 0
  %4194 = vmatpush1.bf16.msra.mxu0 %v542
  %4195 = vmatprep.subr.bf16.mxu0 0
  %4196 = vmatpush1.bf16.msra.mxu0 %v543
  %4197 = vmatprep.subr.bf16.mxu0 0
  %4198 = vmatpush1.bf16.msra.mxu0 0
  %4199 = vmatprep.subr.bf16.mxu0 0
  %4200 = vmatpush1.bf16.msra.mxu0 0
  %4201 = vmatprep.subr.bf16.mxu0 0
  %4202 = vmatpush1.bf16.msra.mxu0 0
  %4203 = vmatprep.subr.bf16.mxu0 0
  %4204 = vmatpush1.bf16.msra.mxu0 0
  %4205 = vmatprep.subr.bf16.mxu0 0
  %4206 = vmatpush1.bf16.msra.mxu0 0
  %4207 = vmatprep.subr.bf16.mxu0 0
  %4208 = vmatpush1.bf16.msra.mxu0 0
  %4209 = vmatprep.subr.bf16.mxu0 0
  %4210 = vmatpush1.bf16.msra.mxu0 0
  %4211 = vmatprep.subr.bf16.mxu0 0
  %4212 = vmatpush1.bf16.msra.mxu0 0
  %4213 = vmatprep.subr.bf16.mxu0 0
  %4214 = vmatpush1.bf16.msra.mxu0 0
  %4215 = vmatprep.subr.bf16.mxu0 0
  %4216 = vmatpush1.bf16.msra.mxu0 0
  %4217 = vmatprep.subr.bf16.mxu0 0
  %4218 = vmatpush1.bf16.msra.mxu0 0
  %4219 = vmatprep.subr.bf16.mxu0 0
  %4220 = vmatpush1.bf16.msra.mxu0 0
  %4221 = vmatprep.subr.bf16.mxu0 0
  %4222 = vmatpush1.bf16.msra.mxu0 0
  %4223 = vmatprep.subr.bf16.mxu0 0
  %4224 = vmatpush1.bf16.msra.mxu0 0
  %4225 = vmatprep.mubr.bf16.mxu0 0
  %4226 = vmatmul.mubr.bf16.gmra.mrb[0].mxu0 %v4188
  %v4227 = vpop.f32.mrb[0].mxu0
  %v4228 = vadd.f32 0.0, %v4227
  %v4229 = vpop.f32.mrb[0].mxu0
  %v4230 = vpop.f32.mrb[0].mxu0
  %v4231 = vadd.f32 0.0, %v4230
  %v4232 = vpop.f32.mrb[0].mxu0
  %4233 = vmatprep.mubr.bf16.mxu0 0
  %4234 = vmatmul.mubr.bf16.gmra.mrb[0].mxu0 %v4191
  %v4235 = vpop.f32.mrb[0].mxu0
  %v4236 = vadd.f32 0.0, %v4235
  %v4237 = vpop.f32.mrb[0].mxu0
  %v4238 = vpop.f32.mrb[0].mxu0
  %v4239 = vpop.f32.mrb[0].mxu0
  %4240 = vdwg.mxu0
  %v4242 = vlaneseq
  %v4243 = vshrl.u32 %v4242, 7
  %v4244 = vsub.s32 0, %v4243
  %v4245 = vrot.slane %v3035, %v4244
  %v4247 = vmul.f32 %v4228, %v4245
  %v4248 = vmul.f32 %v4231, %v4245
  %v4249 = vmul.f32 %v4236, %v4245
  %v4251 = vlaneseq
  %v4252 = vshrl.u32 %v4251, 7
  %v4253 = vsub.s32 0, %v4252
  %v4254 = vrot.slane %v3038, %v4253
  %v4256 = vadd.f32 %v4247, %v4254
  %4258 = vrot.lane.b32.xlu0 %v4249, 127
  %v4259 = vpop.permute.xlu0 %4258
  %v4261 = vadd.f32 %v4248, %v4259
  %v4262 = vmul.f32 %v4256, %v4256
  %v4263 = vsel %vm114, %v4262, 0.0
  %4264 = vadd.xlane.f32.xlu0 %v4263
  %v4265 = vpop.xlane.xlu0 %4264
  %v4266 = vmul.f32 %v4265, 0.5
  %v4267 = vrcp.pop 6.0
  %s4268 = vtos %v4267
  %s4269 = smul.f32 %s2946, %s4268
  %v4270 = vadd.f32 %v3641, %v3924
  %v4271 = vmul.f32 %v4270, 2.0
  %v4272 = vadd.f32 %v3309, %v4271
  %v4273 = vadd.f32 %v4272, %v4256
  %v4274 = vstv %s4269
  %v4275 = vmul.f32 %v4274, %v4273
  %v4276 = vadd.f32 %v2929, %v4275
  %v4277 = vadd.f32 %v3646, %v3929
  %v4278 = vmul.f32 %v4277, 2.0
  %v4279 = vadd.f32 %v3314, %v4278
  %v4280 = vadd.f32 %v4279, %v4261
  %v4281 = vmul.f32 %v4274, %v4280
  %v4282 = vadd.f32 %v2935, %v4281
  %v4283 = vadd.f32 %v3651, %v3934
  %v4284 = vmul.f32 %v4283, 2.0
  %v4285 = vadd.f32 %v3319, %v4284
  %v4286 = vadd.f32 %v4285, %v4266
  %v4287 = vmul.f32 %v4274, %v4286
  %v4288 = vadd.f32 %v2941, %v4287
  %s4289 = scalar_lea.vmem %s22, 24
  %4290 = vst.msk [vmem:[%s4289] sm:$0xff] %vm114, %v4276
  %s4291 = sld [smem:[#allocation3 + $0x3]]
  %s4292 = sld [smem:[#allocation3 + $0x4]]
  %s4293 = ssub.f32 %s4292, %s4291
  %s4294 = smul.f32 %s4293, 0.5
  %s4295 = sadd.f32 %s4291, %s4294
  %v4296 = vstv %s4295
  %v4297 = vmul.f32 %v4296, %v78
  %v4298 = vadd.f32 %v4297, %v79
  %v4299 = vxor.u32 %v4298, 2147483648
  %v4300 = vmul.f32 %v4299, 1.442695
  %v4301 = vpow.pop %v4300
  %v4302 = vadd.f32 %v4301, 1.0
  %v4303 = vrcp.pop %v4302
  %v4304 = vmul.f32 1.0, %v4303
  %v4305 = vmul.f32 %v77, %v4304
  %v4306 = vmul.f32 %v4296, %v80
  %v4307 = vadd.f32 %v4305, %v4306
  %v4308 = vmul.f32 %v4296, %v86
  %v4309 = vadd.f32 %v4308, %v87
  %v4310 = vxor.u32 %v4309, 2147483648
  %v4311 = vmul.f32 %v4310, 1.442695
  %v4312 = vpow.pop %v4311
  %v4313 = vadd.f32 %v4312, 1.0
  %v4314 = vrcp.pop %v4313
  %v4315 = vmul.f32 1.0, %v4314
  %v4316 = vmul.f32 %v85, %v4315
  %v4317 = vmul.f32 %v4296, %v88
  %v4318 = vadd.f32 %v4316, %v4317
  %v4319 = vmul.f32 %v4296, %v94
  %v4320 = vadd.f32 %v4319, %v95
  %v4321 = vxor.u32 %v4320, 2147483648
  %v4322 = vmul.f32 %v4321, 1.442695
  %v4323 = vpow.pop %v4322
  %v4324 = vadd.f32 %v4323, 1.0
  %v4325 = vrcp.pop %v4324
  %v4326 = vmul.f32 1.0, %v4325
  %v4327 = vmul.f32 %v93, %v4326
  %v4328 = vmul.f32 %v4296, %v96
  %v4329 = vadd.f32 %v4327, %v4328
  %v4330 = vmul.f32 %v4296, %v102
  %v4331 = vadd.f32 %v4330, %v103
  %v4332 = vxor.u32 %v4331, 2147483648
  %v4333 = vmul.f32 %v4332, 1.442695
  %v4334 = vpow.pop %v4333
  %v4335 = vadd.f32 %v4334, 1.0
  %v4336 = vrcp.pop %v4335
  %v4337 = vmul.f32 1.0, %v4336
  %v4338 = vmul.f32 %v101, %v4337
  %v4339 = vmul.f32 %v4296, %v104
  %v4340 = vadd.f32 %v4338, %v4339
  %v4341 = vstv %s4292
  %v4342 = vmul.f32 %v4341, %v78
  %v4343 = vadd.f32 %v4342, %v79
  %v4344 = vxor.u32 %v4343, 2147483648
  %v4345 = vmul.f32 %v4344, 1.442695
  %v4346 = vpow.pop %v4345
  %v4347 = vadd.f32 %v4346, 1.0
  %v4348 = vrcp.pop %v4347
  %v4349 = vmul.f32 1.0, %v4348
  %v4350 = vmul.f32 %v77, %v4349
  %v4351 = vmul.f32 %v4341, %v80
  %v4352 = vadd.f32 %v4350, %v4351
  %v4353 = vmul.f32 %v4341, %v86
  %v4354 = vadd.f32 %v4353, %v87
  %v4355 = vxor.u32 %v4354, 2147483648
  %v4356 = vmul.f32 %v4355, 1.442695
  %v4357 = vpow.pop %v4356
  %v4358 = vadd.f32 %v4357, 1.0
  %v4359 = vrcp.pop %v4358
  %v4360 = vmul.f32 1.0, %v4359
  %v4361 = vmul.f32 %v85, %v4360
  %v4362 = vmul.f32 %v4341, %v88
  %v4363 = vadd.f32 %v4361, %v4362
  %v4364 = vmul.f32 %v4341, %v94
  %v4365 = vadd.f32 %v4364, %v95
  %v4366 = vxor.u32 %v4365, 2147483648
  %v4367 = vmul.f32 %v4366, 1.442695
  %v4368 = vpow.pop %v4367
  %v4369 = vadd.f32 %v4368, 1.0
  %v4370 = vrcp.pop %v4369
  %v4371 = vmul.f32 1.0, %v4370
  %v4372 = vmul.f32 %v93, %v4371
  %v4373 = vmul.f32 %v4341, %v96
  %v4374 = vadd.f32 %v4372, %v4373
  %v4375 = vmul.f32 %v4341, %v102
  %v4376 = vadd.f32 %v4375, %v103
  %v4377 = vxor.u32 %v4376, 2147483648
  %v4378 = vmul.f32 %v4377, 1.442695
  %v4379 = vpow.pop %v4378
  %v4380 = vadd.f32 %v4379, 1.0
  %v4381 = vrcp.pop %v4380
  %v4382 = vmul.f32 1.0, %v4381
  %v4383 = vmul.f32 %v101, %v4382
  %v4384 = vmul.f32 %v4341, %v104
  %v4385 = vadd.f32 %v4383, %v4384
  %v4387 = vsel %vm114, %v4276, 0
  %4389 = vmatprep.subr.mxu0 0.0
  %4390 = vmatpush1.msra.mxu0 %v261
  %4391 = vmatprep.subr.mxu0 0.0
  %4392 = vmatpush1.msra.mxu0 0.0
  %4393 = vmatprep.subr.mxu0 0.0
  %4394 = vmatpush1.msra.mxu0 0.0
  %4395 = vmatprep.subr.mxu0 0.0
  %4396 = vmatpush1.msra.mxu0 0.0
  %4397 = vmatprep.subr.mxu0 0.0
  %4398 = vmatpush1.msra.mxu0 0.0
  %4399 = vmatprep.subr.mxu0 0.0
  %4400 = vmatpush1.msra.mxu0 0.0
  %4401 = vmatprep.subr.mxu0 0.0
  %4402 = vmatpush1.msra.mxu0 0.0
  %4403 = vmatprep.subr.mxu0 0.0
  %4404 = vmatpush1.msra.mxu0 0.0
  %4405 = vmatprep.subr.mxu0 0.0
  %4406 = vmatpush1.msra.mxu0 0.0
  %4407 = vmatprep.subr.mxu0 0.0
  %4408 = vmatpush1.msra.mxu0 0.0
  %4409 = vmatprep.subr.mxu0 0.0
  %4410 = vmatpush1.msra.mxu0 0.0
  %4411 = vmatprep.subr.mxu0 0.0
  %4412 = vmatpush1.msra.mxu0 0.0
  %4413 = vmatprep.subr.mxu0 0.0
  %4414 = vmatpush1.msra.mxu0 0.0
  %4415 = vmatprep.subr.mxu0 0.0
  %4416 = vmatpush1.msra.mxu0 0.0
  %4417 = vmatprep.subr.mxu0 0.0
  %4418 = vmatpush1.msra.mxu0 0.0
  %4419 = vmatprep.subr.mxu0 0.0
  %4420 = vmatpush1.msra.mxu0 0.0
  %4421 = vmatprep.subr.mxu0 0.0
  %4422 = vmatpush1.msra.mxu0 0.0
  %4423 = vmatprep.subr.mxu0 0.0
  %4424 = vmatpush1.msra.mxu0 0.0
  %4425 = vmatprep.subr.mxu0 0.0
  %4426 = vmatpush1.msra.mxu0 0.0
  %4427 = vmatprep.subr.mxu0 0.0
  %4428 = vmatpush1.msra.mxu0 0.0
  %4429 = vmatprep.subr.mxu0 0.0
  %4430 = vmatpush1.msra.mxu0 0.0
  %4431 = vmatprep.subr.mxu0 0.0
  %4432 = vmatpush1.msra.mxu0 0.0
  %4433 = vmatprep.subr.mxu0 0.0
  %4434 = vmatpush1.msra.mxu0 0.0
  %4435 = vmatprep.subr.mxu0 0.0
  %4436 = vmatpush1.msra.mxu0 0.0
  %4437 = vmatprep.subr.mxu0 0.0
  %4438 = vmatpush1.msra.mxu0 0.0
  %4439 = vmatprep.subr.mxu0 0.0
  %4440 = vmatpush1.msra.mxu0 0.0
  %4441 = vmatprep.subr.mxu0 0.0
  %4442 = vmatpush1.msra.mxu0 0.0
  %4443 = vmatprep.subr.mxu0 0.0
  %4444 = vmatpush1.msra.mxu0 0.0
  %4445 = vmatprep.subr.mxu0 0.0
  %4446 = vmatpush1.msra.mxu0 0.0
  %4447 = vmatprep.subr.mxu0 0.0
  %4448 = vmatpush1.msra.mxu0 0.0
  %4449 = vmatprep.subr.mxu0 0.0
  %4450 = vmatpush1.msra.mxu0 0.0
  %4451 = vmatprep.subr.mxu0 0.0
  %4452 = vmatpush1.msra.mxu0 0.0
  %4453 = vmatprep.mubr.f32.mxu0 0.0
  %4454 = vmatmul.mubr.f32.gmra.mrb[0].mxu0 %v4387
  %v4455 = vpop.f32.mrb[0].mxu0
  %v4456 = vadd.f32 0.0, %v4455
  %v4457 = vpop.f32.mrb[0].mxu0
  %4458 = vdwg.mxu0
  %v4459 = vmul.f32 %v4456, %v4015
  %v4460 = vadd.f32 %v4459, %v4022
  %v4461 = vtanh.pop %v4460
  %v4462 = vmul.f32 %v4461, %v4461
  %v4463 = vsub.f32 1.0, %v4462
  %v4464 = vmul.f32 %v4015, %v4463
  %v4465 = vmul.f32 %v108, %v4464
  %v4466 = vmul.f32 %v112, %v4464
  %v4467 = vpack.c.bf16 %v4465, %v4461
  %v4468 = vpack.c.bf16 %v4466, %v4466
  %v4470 = vsel %vm367, %v4467, 0
  %v4473 = vsel %vm367, %v4468, 0
  %4475 = vmatprep.subr.bf16.mxu0 0
  %4476 = vmatpush1.bf16.msra.mxu0 %v363
  %4477 = vmatprep.subr.bf16.mxu0 0
  %4478 = vmatpush1.bf16.msra.mxu0 %v364
  %4479 = vmatprep.subr.bf16.mxu0 0
  %4480 = vmatpush1.bf16.msra.mxu0 0
  %4481 = vmatprep.subr.bf16.mxu0 0
  %4482 = vmatpush1.bf16.msra.mxu0 0
  %4483 = vmatprep.subr.bf16.mxu0 0
  %4484 = vmatpush1.bf16.msra.mxu0 0
  %4485 = vmatprep.subr.bf16.mxu0 0
  %4486 = vmatpush1.bf16.msra.mxu0 0
  %4487 = vmatprep.subr.bf16.mxu0 0
  %4488 = vmatpush1.bf16.msra.mxu0 0
  %4489 = vmatprep.subr.bf16.mxu0 0
  %4490 = vmatpush1.bf16.msra.mxu0 0
  %4491 = vmatprep.subr.bf16.mxu0 0
  %4492 = vmatpush1.bf16.msra.mxu0 0
  %4493 = vmatprep.subr.bf16.mxu0 0
  %4494 = vmatpush1.bf16.msra.mxu0 0
  %4495 = vmatprep.subr.bf16.mxu0 0
  %4496 = vmatpush1.bf16.msra.mxu0 0
  %4497 = vmatprep.subr.bf16.mxu0 0
  %4498 = vmatpush1.bf16.msra.mxu0 0
  %4499 = vmatprep.subr.bf16.mxu0 0
  %4500 = vmatpush1.bf16.msra.mxu0 0
  %4501 = vmatprep.subr.bf16.mxu0 0
  %4502 = vmatpush1.bf16.msra.mxu0 0
  %4503 = vmatprep.subr.bf16.mxu0 0
  %4504 = vmatpush1.bf16.msra.mxu0 0
  %4505 = vmatprep.subr.bf16.mxu0 0
  %4506 = vmatpush1.bf16.msra.mxu0 0
  %4507 = vmatprep.mubr.bf16.mxu0 0
  %4508 = vmatmul.mubr.bf16.gmra.mrb[0].mxu0 %v4470
  %v4509 = vpop.f32.mrb[0].mxu0
  %v4510 = vadd.f32 0.0, %v4509
  %v4511 = vpop.f32.mrb[0].mxu0
  %v4512 = vpop.f32.mrb[0].mxu0
  %v4513 = vadd.f32 0.0, %v4512
  %v4514 = vpop.f32.mrb[0].mxu0
  %4515 = vmatprep.mubr.bf16.mxu0 0
  %4516 = vmatmul.mubr.bf16.gmra.mrb[0].mxu0 %v4473
  %v4517 = vpop.f32.mrb[0].mxu0
  %v4518 = vadd.f32 0.0, %v4517
  %v4519 = vpop.f32.mrb[0].mxu0
  %v4520 = vpop.f32.mrb[0].mxu0
  %v4521 = vpop.f32.mrb[0].mxu0
  %4522 = vdwg.mxu0
  %v4523 = vmul.f32 %v4510, %v4091
  %v4524 = vmul.f32 %v4513, %v4091
  %v4525 = vmul.f32 %v4518, %v4091
  %v4526 = vadd.f32 %v4523, %v4100
  %v4527 = vtanh.pop %v4526
  %v4528 = vmul.f32 %v4527, %v4527
  %v4529 = vsub.f32 1.0, %v4528
  %v4530 = vmul.f32 %v4524, %v4529
  %v4531 = vmul.f32 %v4525, %v4529
  %v4532 = vpack.c.bf16 %v4530, %v4527
  %v4533 = vpack.c.bf16 %v4531, %v4531
  %v4535 = vsel %vm367, %v4532, 0
  %v4538 = vsel %vm367, %v4533, 0
  %4540 = vmatprep.subr.bf16.mxu0 0
  %4541 = vmatpush1.bf16.msra.mxu0 %v453
  %4542 = vmatprep.subr.bf16.mxu0 0
  %4543 = vmatpush1.bf16.msra.mxu0 %v454
  %4544 = vmatprep.subr.bf16.mxu0 0
  %4545 = vmatpush1.bf16.msra.mxu0 0
  %4546 = vmatprep.subr.bf16.mxu0 0
  %4547 = vmatpush1.bf16.msra.mxu0 0
  %4548 = vmatprep.subr.bf16.mxu0 0
  %4549 = vmatpush1.bf16.msra.mxu0 0
  %4550 = vmatprep.subr.bf16.mxu0 0
  %4551 = vmatpush1.bf16.msra.mxu0 0
  %4552 = vmatprep.subr.bf16.mxu0 0
  %4553 = vmatpush1.bf16.msra.mxu0 0
  %4554 = vmatprep.subr.bf16.mxu0 0
  %4555 = vmatpush1.bf16.msra.mxu0 0
  %4556 = vmatprep.subr.bf16.mxu0 0
  %4557 = vmatpush1.bf16.msra.mxu0 0
  %4558 = vmatprep.subr.bf16.mxu0 0
  %4559 = vmatpush1.bf16.msra.mxu0 0
  %4560 = vmatprep.subr.bf16.mxu0 0
  %4561 = vmatpush1.bf16.msra.mxu0 0
  %4562 = vmatprep.subr.bf16.mxu0 0
  %4563 = vmatpush1.bf16.msra.mxu0 0
  %4564 = vmatprep.subr.bf16.mxu0 0
  %4565 = vmatpush1.bf16.msra.mxu0 0
  %4566 = vmatprep.subr.bf16.mxu0 0
  %4567 = vmatpush1.bf16.msra.mxu0 0
  %4568 = vmatprep.subr.bf16.mxu0 0
  %4569 = vmatpush1.bf16.msra.mxu0 0
  %4570 = vmatprep.subr.bf16.mxu0 0
  %4571 = vmatpush1.bf16.msra.mxu0 0
  %4572 = vmatprep.mubr.bf16.mxu0 0
  %4573 = vmatmul.mubr.bf16.gmra.mrb[0].mxu0 %v4535
  %v4574 = vpop.f32.mrb[0].mxu0
  %v4575 = vadd.f32 0.0, %v4574
  %v4576 = vpop.f32.mrb[0].mxu0
  %v4577 = vpop.f32.mrb[0].mxu0
  %v4578 = vadd.f32 0.0, %v4577
  %v4579 = vpop.f32.mrb[0].mxu0
  %4580 = vmatprep.mubr.bf16.mxu0 0
  %4581 = vmatmul.mubr.bf16.gmra.mrb[0].mxu0 %v4538
  %v4582 = vpop.f32.mrb[0].mxu0
  %v4583 = vadd.f32 0.0, %v4582
  %v4584 = vpop.f32.mrb[0].mxu0
  %v4585 = vpop.f32.mrb[0].mxu0
  %v4586 = vpop.f32.mrb[0].mxu0
  %4587 = vdwg.mxu0
  %v4588 = vmul.f32 %v4575, %v4168
  %v4589 = vmul.f32 %v4578, %v4168
  %v4590 = vmul.f32 %v4583, %v4168
  %v4591 = vadd.f32 %v4588, %v4177
  %v4592 = vtanh.pop %v4591
  %v4593 = vmul.f32 %v4592, %v4592
  %v4594 = vsub.f32 1.0, %v4593
  %v4595 = vmul.f32 %v4589, %v4594
  %v4596 = vmul.f32 %v4590, %v4594
  %v4597 = vpack.c.bf16 %v4595, %v4592
  %v4598 = vpack.c.bf16 %v4596, %v4596
  %v4600 = vsel %vm367, %v4597, 0
  %v4603 = vsel %vm367, %v4598, 0
  %4605 = vmatprep.subr.bf16.mxu0 0
  %4606 = vmatpush1.bf16.msra.mxu0 %v542
  %4607 = vmatprep.subr.bf16.mxu0 0
  %4608 = vmatpush1.bf16.msra.mxu0 %v543
  %4609 = vmatprep.subr.bf16.mxu0 0
  %4610 = vmatpush1.bf16.msra.mxu0 0
  %4611 = vmatprep.subr.bf16.mxu0 0
  %4612 = vmatpush1.bf16.msra.mxu0 0
  %4613 = vmatprep.subr.bf16.mxu0 0
  %4614 = vmatpush1.bf16.msra.mxu0 0
  %4615 = vmatprep.subr.bf16.mxu0 0
  %4616 = vmatpush1.bf16.msra.mxu0 0
  %4617 = vmatprep.subr.bf16.mxu0 0
  %4618 = vmatpush1.bf16.msra.mxu0 0
  %4619 = vmatprep.subr.bf16.mxu0 0
  %4620 = vmatpush1.bf16.msra.mxu0 0
  %4621 = vmatprep.subr.bf16.mxu0 0
  %4622 = vmatpush1.bf16.msra.mxu0 0
  %4623 = vmatprep.subr.bf16.mxu0 0
  %4624 = vmatpush1.bf16.msra.mxu0 0
  %4625 = vmatprep.subr.bf16.mxu0 0
  %4626 = vmatpush1.bf16.msra.mxu0 0
  %4627 = vmatprep.subr.bf16.mxu0 0
  %4628 = vmatpush1.bf16.msra.mxu0 0
  %4629 = vmatprep.subr.bf16.mxu0 0
  %4630 = vmatpush1.bf16.msra.mxu0 0
  %4631 = vmatprep.subr.bf16.mxu0 0
  %4632 = vmatpush1.bf16.msra.mxu0 0
  %4633 = vmatprep.subr.bf16.mxu0 0
  %4634 = vmatpush1.bf16.msra.mxu0 0
  %4635 = vmatprep.subr.bf16.mxu0 0
  %4636 = vmatpush1.bf16.msra.mxu0 0
  %4637 = vmatprep.mubr.bf16.mxu0 0
  %4638 = vmatmul.mubr.bf16.gmra.mrb[0].mxu0 %v4600
  %v4639 = vpop.f32.mrb[0].mxu0
  %v4640 = vadd.f32 0.0, %v4639
  %v4641 = vpop.f32.mrb[0].mxu0
  %v4642 = vpop.f32.mrb[0].mxu0
  %v4643 = vadd.f32 0.0, %v4642
  %v4644 = vpop.f32.mrb[0].mxu0
  %4645 = vmatprep.mubr.bf16.mxu0 0
  %4646 = vmatmul.mubr.bf16.gmra.mrb[0].mxu0 %v4603
  %v4647 = vpop.f32.mrb[0].mxu0
  %v4648 = vadd.f32 0.0, %v4647
  %v4649 = vpop.f32.mrb[0].mxu0
  %v4650 = vpop.f32.mrb[0].mxu0
  %v4651 = vpop.f32.mrb[0].mxu0
  %4652 = vdwg.mxu0
  %v4653 = vmul.f32 %v4640, %v4245
  %v4654 = vmul.f32 %v4643, %v4245
  %v4655 = vmul.f32 %v4648, %v4245
  %v4656 = vadd.f32 %v4653, %v4254
  %4658 = vrot.lane.b32.xlu0 %v4655, 127
  %v4659 = vpop.permute.xlu0 %4658
  %v4661 = vadd.f32 %v4654, %v4659
  %v4662 = vmul.f32 %v4656, %v4656
  %v4663 = vsel %vm114, %v4662, 0.0
  %4664 = vadd.xlane.f32.xlu0 %v4663
  %v4665 = vpop.xlane.xlu0 %4664
  %v4666 = vmul.f32 %v4665, 0.5
  %v4667 = vstv %s4294
  %v4668 = vmul.f32 %v4667, %v4656
  %v4669 = vadd.f32 %v4276, %v4668
  %v4671 = vsel %vm114, %v4669, 0
  %4673 = vmatprep.subr.mxu0 0.0
  %4674 = vmatpush1.msra.mxu0 %v261
  %4675 = vmatprep.subr.mxu0 0.0
  %4676 = vmatpush1.msra.mxu0 0.0
  %4677 = vmatprep.subr.mxu0 0.0
  %4678 = vmatpush1.msra.mxu0 0.0
  %4679 = vmatprep.subr.mxu0 0.0
  %4680 = vmatpush1.msra.mxu0 0.0
  %4681 = vmatprep.subr.mxu0 0.0
  %4682 = vmatpush1.msra.mxu0 0.0
  %4683 = vmatprep.subr.mxu0 0.0
  %4684 = vmatpush1.msra.mxu0 0.0
  %4685 = vmatprep.subr.mxu0 0.0
  %4686 = vmatpush1.msra.mxu0 0.0
  %4687 = vmatprep.subr.mxu0 0.0
  %4688 = vmatpush1.msra.mxu0 0.0
  %4689 = vmatprep.subr.mxu0 0.0
  %4690 = vmatpush1.msra.mxu0 0.0
  %4691 = vmatprep.subr.mxu0 0.0
  %4692 = vmatpush1.msra.mxu0 0.0
  %4693 = vmatprep.subr.mxu0 0.0
  %4694 = vmatpush1.msra.mxu0 0.0
  %4695 = vmatprep.subr.mxu0 0.0
  %4696 = vmatpush1.msra.mxu0 0.0
  %4697 = vmatprep.subr.mxu0 0.0
  %4698 = vmatpush1.msra.mxu0 0.0
  %4699 = vmatprep.subr.mxu0 0.0
  %4700 = vmatpush1.msra.mxu0 0.0
  %4701 = vmatprep.subr.mxu0 0.0
  %4702 = vmatpush1.msra.mxu0 0.0
  %4703 = vmatprep.subr.mxu0 0.0
  %4704 = vmatpush1.msra.mxu0 0.0
  %4705 = vmatprep.subr.mxu0 0.0
  %4706 = vmatpush1.msra.mxu0 0.0
  %4707 = vmatprep.subr.mxu0 0.0
  %4708 = vmatpush1.msra.mxu0 0.0
  %4709 = vmatprep.subr.mxu0 0.0
  %4710 = vmatpush1.msra.mxu0 0.0
  %4711 = vmatprep.subr.mxu0 0.0
  %4712 = vmatpush1.msra.mxu0 0.0
  %4713 = vmatprep.subr.mxu0 0.0
  %4714 = vmatpush1.msra.mxu0 0.0
  %4715 = vmatprep.subr.mxu0 0.0
  %4716 = vmatpush1.msra.mxu0 0.0
  %4717 = vmatprep.subr.mxu0 0.0
  %4718 = vmatpush1.msra.mxu0 0.0
  %4719 = vmatprep.subr.mxu0 0.0
  %4720 = vmatpush1.msra.mxu0 0.0
  %4721 = vmatprep.subr.mxu0 0.0
  %4722 = vmatpush1.msra.mxu0 0.0
  %4723 = vmatprep.subr.mxu0 0.0
  %4724 = vmatpush1.msra.mxu0 0.0
  %4725 = vmatprep.subr.mxu0 0.0
  %4726 = vmatpush1.msra.mxu0 0.0
  %4727 = vmatprep.subr.mxu0 0.0
  %4728 = vmatpush1.msra.mxu0 0.0
  %4729 = vmatprep.subr.mxu0 0.0
  %4730 = vmatpush1.msra.mxu0 0.0
  %4731 = vmatprep.subr.mxu0 0.0
  %4732 = vmatpush1.msra.mxu0 0.0
  %4733 = vmatprep.subr.mxu0 0.0
  %4734 = vmatpush1.msra.mxu0 0.0
  %4735 = vmatprep.subr.mxu0 0.0
  %4736 = vmatpush1.msra.mxu0 0.0
  %4737 = vmatprep.mubr.f32.mxu0 0.0
  %4738 = vmatmul.mubr.f32.gmra.mrb[0].mxu0 %v4671
  %v4739 = vpop.f32.mrb[0].mxu0
  %v4740 = vadd.f32 0.0, %v4739
  %v4741 = vpop.f32.mrb[0].mxu0
  %4742 = vdwg.mxu0
  %v4744 = vlaneseq
  %v4745 = vshrl.u32 %v4744, 7
  %v4746 = vsub.s32 0, %v4745
  %v4747 = vrot.slane %v4304, %v4746
  %v4749 = vmul.f32 %v4740, %v4747
  %v4751 = vlaneseq
  %v4752 = vshrl.u32 %v4751, 7
  %v4753 = vsub.s32 0, %v4752
  %v4754 = vrot.slane %v4307, %v4753
  %v4756 = vadd.f32 %v4749, %v4754
  %v4757 = vtanh.pop %v4756
  %v4758 = vmul.f32 %v4757, %v4757
  %v4759 = vsub.f32 1.0, %v4758
  %v4760 = vmul.f32 %v4747, %v4759
  %v4761 = vmul.f32 %v108, %v4760
  %v4762 = vmul.f32 %v112, %v4760
  %v4763 = vpack.c.bf16 %v4761, %v4757
  %v4764 = vpack.c.bf16 %v4762, %v4762
  %v4766 = vsel %vm367, %v4763, 0
  %v4769 = vsel %vm367, %v4764, 0
  %4771 = vmatprep.subr.bf16.mxu0 0
  %4772 = vmatpush1.bf16.msra.mxu0 %v363
  %4773 = vmatprep.subr.bf16.mxu0 0
  %4774 = vmatpush1.bf16.msra.mxu0 %v364
  %4775 = vmatprep.subr.bf16.mxu0 0
  %4776 = vmatpush1.bf16.msra.mxu0 0
  %4777 = vmatprep.subr.bf16.mxu0 0
  %4778 = vmatpush1.bf16.msra.mxu0 0
  %4779 = vmatprep.subr.bf16.mxu0 0
  %4780 = vmatpush1.bf16.msra.mxu0 0
  %4781 = vmatprep.subr.bf16.mxu0 0
  %4782 = vmatpush1.bf16.msra.mxu0 0
  %4783 = vmatprep.subr.bf16.mxu0 0
  %4784 = vmatpush1.bf16.msra.mxu0 0
  %4785 = vmatprep.subr.bf16.mxu0 0
  %4786 = vmatpush1.bf16.msra.mxu0 0
  %4787 = vmatprep.subr.bf16.mxu0 0
  %4788 = vmatpush1.bf16.msra.mxu0 0
  %4789 = vmatprep.subr.bf16.mxu0 0
  %4790 = vmatpush1.bf16.msra.mxu0 0
  %4791 = vmatprep.subr.bf16.mxu0 0
  %4792 = vmatpush1.bf16.msra.mxu0 0
  %4793 = vmatprep.subr.bf16.mxu0 0
  %4794 = vmatpush1.bf16.msra.mxu0 0
  %4795 = vmatprep.subr.bf16.mxu0 0
  %4796 = vmatpush1.bf16.msra.mxu0 0
  %4797 = vmatprep.subr.bf16.mxu0 0
  %4798 = vmatpush1.bf16.msra.mxu0 0
  %4799 = vmatprep.subr.bf16.mxu0 0
  %4800 = vmatpush1.bf16.msra.mxu0 0
  %4801 = vmatprep.subr.bf16.mxu0 0
  %4802 = vmatpush1.bf16.msra.mxu0 0
  %4803 = vmatprep.mubr.bf16.mxu0 0
  %4804 = vmatmul.mubr.bf16.gmra.mrb[0].mxu0 %v4766
  %v4805 = vpop.f32.mrb[0].mxu0
  %v4806 = vadd.f32 0.0, %v4805
  %v4807 = vpop.f32.mrb[0].mxu0
  %v4808 = vpop.f32.mrb[0].mxu0
  %v4809 = vadd.f32 0.0, %v4808
  %v4810 = vpop.f32.mrb[0].mxu0
  %4811 = vmatprep.mubr.bf16.mxu0 0
  %4812 = vmatmul.mubr.bf16.gmra.mrb[0].mxu0 %v4769
  %v4813 = vpop.f32.mrb[0].mxu0
  %v4814 = vadd.f32 0.0, %v4813
  %v4815 = vpop.f32.mrb[0].mxu0
  %v4816 = vpop.f32.mrb[0].mxu0
  %v4817 = vpop.f32.mrb[0].mxu0
  %4818 = vdwg.mxu0
  %v4820 = vlaneseq
  %v4821 = vshrl.u32 %v4820, 7
  %v4822 = vsub.s32 0, %v4821
  %v4823 = vrot.slane %v4315, %v4822
  %v4825 = vmul.f32 %v4806, %v4823
  %v4826 = vmul.f32 %v4809, %v4823
  %v4827 = vmul.f32 %v4814, %v4823
  %v4829 = vlaneseq
  %v4830 = vshrl.u32 %v4829, 7
  %v4831 = vsub.s32 0, %v4830
  %v4832 = vrot.slane %v4318, %v4831
  %v4834 = vadd.f32 %v4825, %v4832
  %v4835 = vtanh.pop %v4834
  %v4836 = vmul.f32 %v4835, %v4835
  %v4837 = vsub.f32 1.0, %v4836
  %v4838 = vmul.f32 %v4826, %v4837
  %v4839 = vmul.f32 %v4827, %v4837
  %v4840 = vpack.c.bf16 %v4838, %v4835
  %v4841 = vpack.c.bf16 %v4839, %v4839
  %v4843 = vsel %vm367, %v4840, 0
  %v4846 = vsel %vm367, %v4841, 0
  %4848 = vmatprep.subr.bf16.mxu0 0
  %4849 = vmatpush1.bf16.msra.mxu0 %v453
  %4850 = vmatprep.subr.bf16.mxu0 0
  %4851 = vmatpush1.bf16.msra.mxu0 %v454
  %4852 = vmatprep.subr.bf16.mxu0 0
  %4853 = vmatpush1.bf16.msra.mxu0 0
  %4854 = vmatprep.subr.bf16.mxu0 0
  %4855 = vmatpush1.bf16.msra.mxu0 0
  %4856 = vmatprep.subr.bf16.mxu0 0
  %4857 = vmatpush1.bf16.msra.mxu0 0
  %4858 = vmatprep.subr.bf16.mxu0 0
  %4859 = vmatpush1.bf16.msra.mxu0 0
  %4860 = vmatprep.subr.bf16.mxu0 0
  %4861 = vmatpush1.bf16.msra.mxu0 0
  %4862 = vmatprep.subr.bf16.mxu0 0
  %4863 = vmatpush1.bf16.msra.mxu0 0
  %4864 = vmatprep.subr.bf16.mxu0 0
  %4865 = vmatpush1.bf16.msra.mxu0 0
  %4866 = vmatprep.subr.bf16.mxu0 0
  %4867 = vmatpush1.bf16.msra.mxu0 0
  %4868 = vmatprep.subr.bf16.mxu0 0
  %4869 = vmatpush1.bf16.msra.mxu0 0
  %4870 = vmatprep.subr.bf16.mxu0 0
  %4871 = vmatpush1.bf16.msra.mxu0 0
  %4872 = vmatprep.subr.bf16.mxu0 0
  %4873 = vmatpush1.bf16.msra.mxu0 0
  %4874 = vmatprep.subr.bf16.mxu0 0
  %4875 = vmatpush1.bf16.msra.mxu0 0
  %4876 = vmatprep.subr.bf16.mxu0 0
  %4877 = vmatpush1.bf16.msra.mxu0 0
  %4878 = vmatprep.subr.bf16.mxu0 0
  %4879 = vmatpush1.bf16.msra.mxu0 0
  %4880 = vmatprep.mubr.bf16.mxu0 0
  %4881 = vmatmul.mubr.bf16.gmra.mrb[0].mxu0 %v4843
  %v4882 = vpop.f32.mrb[0].mxu0
  %v4883 = vadd.f32 0.0, %v4882
  %v4884 = vpop.f32.mrb[0].mxu0
  %v4885 = vpop.f32.mrb[0].mxu0
  %v4886 = vadd.f32 0.0, %v4885
  %v4887 = vpop.f32.mrb[0].mxu0
  %4888 = vmatprep.mubr.bf16.mxu0 0
  %4889 = vmatmul.mubr.bf16.gmra.mrb[0].mxu0 %v4846
  %v4890 = vpop.f32.mrb[0].mxu0
  %v4891 = vadd.f32 0.0, %v4890
  %v4892 = vpop.f32.mrb[0].mxu0
  %v4893 = vpop.f32.mrb[0].mxu0
  %v4894 = vpop.f32.mrb[0].mxu0
  %4895 = vdwg.mxu0
  %v4897 = vlaneseq
  %v4898 = vshrl.u32 %v4897, 7
  %v4899 = vsub.s32 0, %v4898
  %v4900 = vrot.slane %v4326, %v4899
  %v4902 = vmul.f32 %v4883, %v4900
  %v4903 = vmul.f32 %v4886, %v4900
  %v4904 = vmul.f32 %v4891, %v4900
  %v4906 = vlaneseq
  %v4907 = vshrl.u32 %v4906, 7
  %v4908 = vsub.s32 0, %v4907
  %v4909 = vrot.slane %v4329, %v4908
  %v4911 = vadd.f32 %v4902, %v4909
  %v4912 = vtanh.pop %v4911
  %v4913 = vmul.f32 %v4912, %v4912
  %v4914 = vsub.f32 1.0, %v4913
  %v4915 = vmul.f32 %v4903, %v4914
  %v4916 = vmul.f32 %v4904, %v4914
  %v4917 = vpack.c.bf16 %v4915, %v4912
  %v4918 = vpack.c.bf16 %v4916, %v4916
  %v4920 = vsel %vm367, %v4917, 0
  %v4923 = vsel %vm367, %v4918, 0
  %4925 = vmatprep.subr.bf16.mxu0 0
  %4926 = vmatpush1.bf16.msra.mxu0 %v542
  %4927 = vmatprep.subr.bf16.mxu0 0
  %4928 = vmatpush1.bf16.msra.mxu0 %v543
  %4929 = vmatprep.subr.bf16.mxu0 0
  %4930 = vmatpush1.bf16.msra.mxu0 0
  %4931 = vmatprep.subr.bf16.mxu0 0
  %4932 = vmatpush1.bf16.msra.mxu0 0
  %4933 = vmatprep.subr.bf16.mxu0 0
  %4934 = vmatpush1.bf16.msra.mxu0 0
  %4935 = vmatprep.subr.bf16.mxu0 0
  %4936 = vmatpush1.bf16.msra.mxu0 0
  %4937 = vmatprep.subr.bf16.mxu0 0
  %4938 = vmatpush1.bf16.msra.mxu0 0
  %4939 = vmatprep.subr.bf16.mxu0 0
  %4940 = vmatpush1.bf16.msra.mxu0 0
  %4941 = vmatprep.subr.bf16.mxu0 0
  %4942 = vmatpush1.bf16.msra.mxu0 0
  %4943 = vmatprep.subr.bf16.mxu0 0
  %4944 = vmatpush1.bf16.msra.mxu0 0
  %4945 = vmatprep.subr.bf16.mxu0 0
  %4946 = vmatpush1.bf16.msra.mxu0 0
  %4947 = vmatprep.subr.bf16.mxu0 0
  %4948 = vmatpush1.bf16.msra.mxu0 0
  %4949 = vmatprep.subr.bf16.mxu0 0
  %4950 = vmatpush1.bf16.msra.mxu0 0
  %4951 = vmatprep.subr.bf16.mxu0 0
  %4952 = vmatpush1.bf16.msra.mxu0 0
  %4953 = vmatprep.subr.bf16.mxu0 0
  %4954 = vmatpush1.bf16.msra.mxu0 0
  %4955 = vmatprep.subr.bf16.mxu0 0
  %4956 = vmatpush1.bf16.msra.mxu0 0
  %4957 = vmatprep.mubr.bf16.mxu0 0
  %4958 = vmatmul.mubr.bf16.gmra.mrb[0].mxu0 %v4920
  %v4959 = vpop.f32.mrb[0].mxu0
  %v4960 = vadd.f32 0.0, %v4959
  %v4961 = vpop.f32.mrb[0].mxu0
  %v4962 = vpop.f32.mrb[0].mxu0
  %v4963 = vadd.f32 0.0, %v4962
  %v4964 = vpop.f32.mrb[0].mxu0
  %4965 = vmatprep.mubr.bf16.mxu0 0
  %4966 = vmatmul.mubr.bf16.gmra.mrb[0].mxu0 %v4923
  %v4967 = vpop.f32.mrb[0].mxu0
  %v4968 = vadd.f32 0.0, %v4967
  %v4969 = vpop.f32.mrb[0].mxu0
  %v4970 = vpop.f32.mrb[0].mxu0
  %v4971 = vpop.f32.mrb[0].mxu0
  %4972 = vdwg.mxu0
  %v4974 = vlaneseq
  %v4975 = vshrl.u32 %v4974, 7
  %v4976 = vsub.s32 0, %v4975
  %v4977 = vrot.slane %v4337, %v4976
  %v4979 = vmul.f32 %v4960, %v4977
  %v4980 = vmul.f32 %v4963, %v4977
  %v4981 = vmul.f32 %v4968, %v4977
  %v4983 = vlaneseq
  %v4984 = vshrl.u32 %v4983, 7
  %v4985 = vsub.s32 0, %v4984
  %v4986 = vrot.slane %v4340, %v4985
  %v4988 = vadd.f32 %v4979, %v4986
  %4990 = vrot.lane.b32.xlu0 %v4981, 127
  %v4991 = vpop.permute.xlu0 %4990
  %v4993 = vadd.f32 %v4980, %v4991
  %v4994 = vmul.f32 %v4988, %v4988
  %v4995 = vsel %vm114, %v4994, 0.0
  %4996 = vadd.xlane.f32.xlu0 %v4995
  %v4997 = vpop.xlane.xlu0 %4996
  %v4998 = vmul.f32 %v4997, 0.5
  %v4999 = vmul.f32 %v4667, %v4988
  %v5000 = vadd.f32 %v4276, %v4999
  %v5002 = vsel %vm114, %v5000, 0
  %5004 = vmatprep.subr.mxu0 0.0
  %5005 = vmatpush1.msra.mxu0 %v261
  %5006 = vmatprep.subr.mxu0 0.0
  %5007 = vmatpush1.msra.mxu0 0.0
  %5008 = vmatprep.subr.mxu0 0.0
  %5009 = vmatpush1.msra.mxu0 0.0
  %5010 = vmatprep.subr.mxu0 0.0
  %5011 = vmatpush1.msra.mxu0 0.0
  %5012 = vmatprep.subr.mxu0 0.0
  %5013 = vmatpush1.msra.mxu0 0.0
  %5014 = vmatprep.subr.mxu0 0.0
  %5015 = vmatpush1.msra.mxu0 0.0
  %5016 = vmatprep.subr.mxu0 0.0
  %5017 = vmatpush1.msra.mxu0 0.0
  %5018 = vmatprep.subr.mxu0 0.0
  %5019 = vmatpush1.msra.mxu0 0.0
  %5020 = vmatprep.subr.mxu0 0.0
  %5021 = vmatpush1.msra.mxu0 0.0
  %5022 = vmatprep.subr.mxu0 0.0
  %5023 = vmatpush1.msra.mxu0 0.0
  %5024 = vmatprep.subr.mxu0 0.0
  %5025 = vmatpush1.msra.mxu0 0.0
  %5026 = vmatprep.subr.mxu0 0.0
  %5027 = vmatpush1.msra.mxu0 0.0
  %5028 = vmatprep.subr.mxu0 0.0
  %5029 = vmatpush1.msra.mxu0 0.0
  %5030 = vmatprep.subr.mxu0 0.0
  %5031 = vmatpush1.msra.mxu0 0.0
  %5032 = vmatprep.subr.mxu0 0.0
  %5033 = vmatpush1.msra.mxu0 0.0
  %5034 = vmatprep.subr.mxu0 0.0
  %5035 = vmatpush1.msra.mxu0 0.0
  %5036 = vmatprep.subr.mxu0 0.0
  %5037 = vmatpush1.msra.mxu0 0.0
  %5038 = vmatprep.subr.mxu0 0.0
  %5039 = vmatpush1.msra.mxu0 0.0
  %5040 = vmatprep.subr.mxu0 0.0
  %5041 = vmatpush1.msra.mxu0 0.0
  %5042 = vmatprep.subr.mxu0 0.0
  %5043 = vmatpush1.msra.mxu0 0.0
  %5044 = vmatprep.subr.mxu0 0.0
  %5045 = vmatpush1.msra.mxu0 0.0
  %5046 = vmatprep.subr.mxu0 0.0
  %5047 = vmatpush1.msra.mxu0 0.0
  %5048 = vmatprep.subr.mxu0 0.0
  %5049 = vmatpush1.msra.mxu0 0.0
  %5050 = vmatprep.subr.mxu0 0.0
  %5051 = vmatpush1.msra.mxu0 0.0
  %5052 = vmatprep.subr.mxu0 0.0
  %5053 = vmatpush1.msra.mxu0 0.0
  %5054 = vmatprep.subr.mxu0 0.0
  %5055 = vmatpush1.msra.mxu0 0.0
  %5056 = vmatprep.subr.mxu0 0.0
  %5057 = vmatpush1.msra.mxu0 0.0
  %5058 = vmatprep.subr.mxu0 0.0
  %5059 = vmatpush1.msra.mxu0 0.0
  %5060 = vmatprep.subr.mxu0 0.0
  %5061 = vmatpush1.msra.mxu0 0.0
  %5062 = vmatprep.subr.mxu0 0.0
  %5063 = vmatpush1.msra.mxu0 0.0
  %5064 = vmatprep.subr.mxu0 0.0
  %5065 = vmatpush1.msra.mxu0 0.0
  %5066 = vmatprep.subr.mxu0 0.0
  %5067 = vmatpush1.msra.mxu0 0.0
  %5068 = vmatprep.mubr.f32.mxu0 0.0
  %5069 = vmatmul.mubr.f32.gmra.mrb[0].mxu0 %v5002
  %v5070 = vpop.f32.mrb[0].mxu0
  %v5071 = vadd.f32 0.0, %v5070
  %v5072 = vpop.f32.mrb[0].mxu0
  %5073 = vdwg.mxu0
  %v5074 = vmul.f32 %v5071, %v4747
  %v5075 = vadd.f32 %v5074, %v4754
  %v5076 = vtanh.pop %v5075
  %v5077 = vmul.f32 %v5076, %v5076
  %v5078 = vsub.f32 1.0, %v5077
  %v5079 = vmul.f32 %v4747, %v5078
  %v5080 = vmul.f32 %v108, %v5079
  %v5081 = vmul.f32 %v112, %v5079
  %v5082 = vpack.c.bf16 %v5080, %v5076
  %v5083 = vpack.c.bf16 %v5081, %v5081
  %v5085 = vsel %vm367, %v5082, 0
  %v5088 = vsel %vm367, %v5083, 0
  %5090 = vmatprep.subr.bf16.mxu0 0
  %5091 = vmatpush1.bf16.msra.mxu0 %v363
  %5092 = vmatprep.subr.bf16.mxu0 0
  %5093 = vmatpush1.bf16.msra.mxu0 %v364
  %5094 = vmatprep.subr.bf16.mxu0 0
  %5095 = vmatpush1.bf16.msra.mxu0 0
  %5096 = vmatprep.subr.bf16.mxu0 0
  %5097 = vmatpush1.bf16.msra.mxu0 0
  %5098 = vmatprep.subr.bf16.mxu0 0
  %5099 = vmatpush1.bf16.msra.mxu0 0
  %5100 = vmatprep.subr.bf16.mxu0 0
  %5101 = vmatpush1.bf16.msra.mxu0 0
  %5102 = vmatprep.subr.bf16.mxu0 0
  %5103 = vmatpush1.bf16.msra.mxu0 0
  %5104 = vmatprep.subr.bf16.mxu0 0
  %5105 = vmatpush1.bf16.msra.mxu0 0
  %5106 = vmatprep.subr.bf16.mxu0 0
  %5107 = vmatpush1.bf16.msra.mxu0 0
  %5108 = vmatprep.subr.bf16.mxu0 0
  %5109 = vmatpush1.bf16.msra.mxu0 0
  %5110 = vmatprep.subr.bf16.mxu0 0
  %5111 = vmatpush1.bf16.msra.mxu0 0
  %5112 = vmatprep.subr.bf16.mxu0 0
  %5113 = vmatpush1.bf16.msra.mxu0 0
  %5114 = vmatprep.subr.bf16.mxu0 0
  %5115 = vmatpush1.bf16.msra.mxu0 0
  %5116 = vmatprep.subr.bf16.mxu0 0
  %5117 = vmatpush1.bf16.msra.mxu0 0
  %5118 = vmatprep.subr.bf16.mxu0 0
  %5119 = vmatpush1.bf16.msra.mxu0 0
  %5120 = vmatprep.subr.bf16.mxu0 0
  %5121 = vmatpush1.bf16.msra.mxu0 0
  %5122 = vmatprep.mubr.bf16.mxu0 0
  %5123 = vmatmul.mubr.bf16.gmra.mrb[0].mxu0 %v5085
  %v5124 = vpop.f32.mrb[0].mxu0
  %v5125 = vadd.f32 0.0, %v5124
  %v5126 = vpop.f32.mrb[0].mxu0
  %v5127 = vpop.f32.mrb[0].mxu0
  %v5128 = vadd.f32 0.0, %v5127
  %v5129 = vpop.f32.mrb[0].mxu0
  %5130 = vmatprep.mubr.bf16.mxu0 0
  %5131 = vmatmul.mubr.bf16.gmra.mrb[0].mxu0 %v5088
  %v5132 = vpop.f32.mrb[0].mxu0
  %v5133 = vadd.f32 0.0, %v5132
  %v5134 = vpop.f32.mrb[0].mxu0
  %v5135 = vpop.f32.mrb[0].mxu0
  %v5136 = vpop.f32.mrb[0].mxu0
  %5137 = vdwg.mxu0
  %v5138 = vmul.f32 %v5125, %v4823
  %v5139 = vmul.f32 %v5128, %v4823
  %v5140 = vmul.f32 %v5133, %v4823
  %v5141 = vadd.f32 %v5138, %v4832
  %v5142 = vtanh.pop %v5141
  %v5143 = vmul.f32 %v5142, %v5142
  %v5144 = vsub.f32 1.0, %v5143
  %v5145 = vmul.f32 %v5139, %v5144
  %v5146 = vmul.f32 %v5140, %v5144
  %v5147 = vpack.c.bf16 %v5145, %v5142
  %v5148 = vpack.c.bf16 %v5146, %v5146
  %v5150 = vsel %vm367, %v5147, 0
  %v5153 = vsel %vm367, %v5148, 0
  %5155 = vmatprep.subr.bf16.mxu0 0
  %5156 = vmatpush1.bf16.msra.mxu0 %v453
  %5157 = vmatprep.subr.bf16.mxu0 0
  %5158 = vmatpush1.bf16.msra.mxu0 %v454
  %5159 = vmatprep.subr.bf16.mxu0 0
  %5160 = vmatpush1.bf16.msra.mxu0 0
  %5161 = vmatprep.subr.bf16.mxu0 0
  %5162 = vmatpush1.bf16.msra.mxu0 0
  %5163 = vmatprep.subr.bf16.mxu0 0
  %5164 = vmatpush1.bf16.msra.mxu0 0
  %5165 = vmatprep.subr.bf16.mxu0 0
  %5166 = vmatpush1.bf16.msra.mxu0 0
  %5167 = vmatprep.subr.bf16.mxu0 0
  %5168 = vmatpush1.bf16.msra.mxu0 0
  %5169 = vmatprep.subr.bf16.mxu0 0
  %5170 = vmatpush1.bf16.msra.mxu0 0
  %5171 = vmatprep.subr.bf16.mxu0 0
  %5172 = vmatpush1.bf16.msra.mxu0 0
  %5173 = vmatprep.subr.bf16.mxu0 0
  %5174 = vmatpush1.bf16.msra.mxu0 0
  %5175 = vmatprep.subr.bf16.mxu0 0
  %5176 = vmatpush1.bf16.msra.mxu0 0
  %5177 = vmatprep.subr.bf16.mxu0 0
  %5178 = vmatpush1.bf16.msra.mxu0 0
  %5179 = vmatprep.subr.bf16.mxu0 0
  %5180 = vmatpush1.bf16.msra.mxu0 0
  %5181 = vmatprep.subr.bf16.mxu0 0
  %5182 = vmatpush1.bf16.msra.mxu0 0
  %5183 = vmatprep.subr.bf16.mxu0 0
  %5184 = vmatpush1.bf16.msra.mxu0 0
  %5185 = vmatprep.subr.bf16.mxu0 0
  %5186 = vmatpush1.bf16.msra.mxu0 0
  %5187 = vmatprep.mubr.bf16.mxu0 0
  %5188 = vmatmul.mubr.bf16.gmra.mrb[0].mxu0 %v5150
  %v5189 = vpop.f32.mrb[0].mxu0
  %v5190 = vadd.f32 0.0, %v5189
  %v5191 = vpop.f32.mrb[0].mxu0
  %v5192 = vpop.f32.mrb[0].mxu0
  %v5193 = vadd.f32 0.0, %v5192
  %v5194 = vpop.f32.mrb[0].mxu0
  %5195 = vmatprep.mubr.bf16.mxu0 0
  %5196 = vmatmul.mubr.bf16.gmra.mrb[0].mxu0 %v5153
  %v5197 = vpop.f32.mrb[0].mxu0
  %v5198 = vadd.f32 0.0, %v5197
  %v5199 = vpop.f32.mrb[0].mxu0
  %v5200 = vpop.f32.mrb[0].mxu0
  %v5201 = vpop.f32.mrb[0].mxu0
  %5202 = vdwg.mxu0
  %v5203 = vmul.f32 %v5190, %v4900
  %v5204 = vmul.f32 %v5193, %v4900
  %v5205 = vmul.f32 %v5198, %v4900
  %v5206 = vadd.f32 %v5203, %v4909
  %v5207 = vtanh.pop %v5206
  %v5208 = vmul.f32 %v5207, %v5207
  %v5209 = vsub.f32 1.0, %v5208
  %v5210 = vmul.f32 %v5204, %v5209
  %v5211 = vmul.f32 %v5205, %v5209
  %v5212 = vpack.c.bf16 %v5210, %v5207
  %v5213 = vpack.c.bf16 %v5211, %v5211
  %v5215 = vsel %vm367, %v5212, 0
  %v5218 = vsel %vm367, %v5213, 0
  %5220 = vmatprep.subr.bf16.mxu0 0
  %5221 = vmatpush1.bf16.msra.mxu0 %v542
  %5222 = vmatprep.subr.bf16.mxu0 0
  %5223 = vmatpush1.bf16.msra.mxu0 %v543
  %5224 = vmatprep.subr.bf16.mxu0 0
  %5225 = vmatpush1.bf16.msra.mxu0 0
  %5226 = vmatprep.subr.bf16.mxu0 0
  %5227 = vmatpush1.bf16.msra.mxu0 0
  %5228 = vmatprep.subr.bf16.mxu0 0
  %5229 = vmatpush1.bf16.msra.mxu0 0
  %5230 = vmatprep.subr.bf16.mxu0 0
  %5231 = vmatpush1.bf16.msra.mxu0 0
  %5232 = vmatprep.subr.bf16.mxu0 0
  %5233 = vmatpush1.bf16.msra.mxu0 0
  %5234 = vmatprep.subr.bf16.mxu0 0
  %5235 = vmatpush1.bf16.msra.mxu0 0
  %5236 = vmatprep.subr.bf16.mxu0 0
  %5237 = vmatpush1.bf16.msra.mxu0 0
  %5238 = vmatprep.subr.bf16.mxu0 0
  %5239 = vmatpush1.bf16.msra.mxu0 0
  %5240 = vmatprep.subr.bf16.mxu0 0
  %5241 = vmatpush1.bf16.msra.mxu0 0
  %5242 = vmatprep.subr.bf16.mxu0 0
  %5243 = vmatpush1.bf16.msra.mxu0 0
  %5244 = vmatprep.subr.bf16.mxu0 0
  %5245 = vmatpush1.bf16.msra.mxu0 0
  %5246 = vmatprep.subr.bf16.mxu0 0
  %5247 = vmatpush1.bf16.msra.mxu0 0
  %5248 = vmatprep.subr.bf16.mxu0 0
  %5249 = vmatpush1.bf16.msra.mxu0 0
  %5250 = vmatprep.subr.bf16.mxu0 0
  %5251 = vmatpush1.bf16.msra.mxu0 0
  %5252 = vmatprep.mubr.bf16.mxu0 0
  %5253 = vmatmul.mubr.bf16.gmra.mrb[0].mxu0 %v5215
  %v5254 = vpop.f32.mrb[0].mxu0
  %v5255 = vadd.f32 0.0, %v5254
  %v5256 = vpop.f32.mrb[0].mxu0
  %v5257 = vpop.f32.mrb[0].mxu0
  %v5258 = vadd.f32 0.0, %v5257
  %v5259 = vpop.f32.mrb[0].mxu0
  %5260 = vmatprep.mubr.bf16.mxu0 0
  %5261 = vmatmul.mubr.bf16.gmra.mrb[0].mxu0 %v5218
  %v5262 = vpop.f32.mrb[0].mxu0
  %v5263 = vadd.f32 0.0, %v5262
  %v5264 = vpop.f32.mrb[0].mxu0
  %v5265 = vpop.f32.mrb[0].mxu0
  %v5266 = vpop.f32.mrb[0].mxu0
  %5267 = vdwg.mxu0
  %v5268 = vmul.f32 %v5255, %v4977
  %v5269 = vmul.f32 %v5258, %v4977
  %v5270 = vmul.f32 %v5263, %v4977
  %v5271 = vadd.f32 %v5268, %v4986
  %5273 = vrot.lane.b32.xlu0 %v5270, 127
  %v5274 = vpop.permute.xlu0 %5273
  %v5276 = vadd.f32 %v5269, %v5274
  %v5277 = vmul.f32 %v5271, %v5271
  %v5278 = vsel %vm114, %v5277, 0.0
  %5279 = vadd.xlane.f32.xlu0 %v5278
  %v5280 = vpop.xlane.xlu0 %5279
  %v5281 = vmul.f32 %v5280, 0.5
  %v5282 = vstv %s4293
  %v5283 = vmul.f32 %v5282, %v5271
  %v5284 = vadd.f32 %v4276, %v5283
  %v5286 = vsel %vm114, %v5284, 0
  %5288 = vmatprep.subr.mxu0 0.0
  %5289 = vmatpush1.msra.mxu0 %v261
  %5290 = vmatprep.subr.mxu0 0.0
  %5291 = vmatpush1.msra.mxu0 0.0
  %5292 = vmatprep.subr.mxu0 0.0
  %5293 = vmatpush1.msra.mxu0 0.0
  %5294 = vmatprep.subr.mxu0 0.0
  %5295 = vmatpush1.msra.mxu0 0.0
  %5296 = vmatprep.subr.mxu0 0.0
  %5297 = vmatpush1.msra.mxu0 0.0
  %5298 = vmatprep.subr.mxu0 0.0
  %5299 = vmatpush1.msra.mxu0 0.0
  %5300 = vmatprep.subr.mxu0 0.0
  %5301 = vmatpush1.msra.mxu0 0.0
  %5302 = vmatprep.subr.mxu0 0.0
  %5303 = vmatpush1.msra.mxu0 0.0
  %5304 = vmatprep.subr.mxu0 0.0
  %5305 = vmatpush1.msra.mxu0 0.0
  %5306 = vmatprep.subr.mxu0 0.0
  %5307 = vmatpush1.msra.mxu0 0.0
  %5308 = vmatprep.subr.mxu0 0.0
  %5309 = vmatpush1.msra.mxu0 0.0
  %5310 = vmatprep.subr.mxu0 0.0
  %5311 = vmatpush1.msra.mxu0 0.0
  %5312 = vmatprep.subr.mxu0 0.0
  %5313 = vmatpush1.msra.mxu0 0.0
  %5314 = vmatprep.subr.mxu0 0.0
  %5315 = vmatpush1.msra.mxu0 0.0
  %5316 = vmatprep.subr.mxu0 0.0
  %5317 = vmatpush1.msra.mxu0 0.0
  %5318 = vmatprep.subr.mxu0 0.0
  %5319 = vmatpush1.msra.mxu0 0.0
  %5320 = vmatprep.subr.mxu0 0.0
  %5321 = vmatpush1.msra.mxu0 0.0
  %5322 = vmatprep.subr.mxu0 0.0
  %5323 = vmatpush1.msra.mxu0 0.0
  %5324 = vmatprep.subr.mxu0 0.0
  %5325 = vmatpush1.msra.mxu0 0.0
  %5326 = vmatprep.subr.mxu0 0.0
  %5327 = vmatpush1.msra.mxu0 0.0
  %5328 = vmatprep.subr.mxu0 0.0
  %5329 = vmatpush1.msra.mxu0 0.0
  %5330 = vmatprep.subr.mxu0 0.0
  %5331 = vmatpush1.msra.mxu0 0.0
  %5332 = vmatprep.subr.mxu0 0.0
  %5333 = vmatpush1.msra.mxu0 0.0
  %5334 = vmatprep.subr.mxu0 0.0
  %5335 = vmatpush1.msra.mxu0 0.0
  %5336 = vmatprep.subr.mxu0 0.0
  %5337 = vmatpush1.msra.mxu0 0.0
  %5338 = vmatprep.subr.mxu0 0.0
  %5339 = vmatpush1.msra.mxu0 0.0
  %5340 = vmatprep.subr.mxu0 0.0
  %5341 = vmatpush1.msra.mxu0 0.0
  %5342 = vmatprep.subr.mxu0 0.0
  %5343 = vmatpush1.msra.mxu0 0.0
  %5344 = vmatprep.subr.mxu0 0.0
  %5345 = vmatpush1.msra.mxu0 0.0
  %5346 = vmatprep.subr.mxu0 0.0
  %5347 = vmatpush1.msra.mxu0 0.0
  %5348 = vmatprep.subr.mxu0 0.0
  %5349 = vmatpush1.msra.mxu0 0.0
  %5350 = vmatprep.subr.mxu0 0.0
  %5351 = vmatpush1.msra.mxu0 0.0
  %5352 = vmatprep.mubr.f32.mxu0 0.0
  %5353 = vmatmul.mubr.f32.gmra.mrb[0].mxu0 %v5286
  %v5354 = vpop.f32.mrb[0].mxu0
  %v5355 = vadd.f32 0.0, %v5354
  %v5356 = vpop.f32.mrb[0].mxu0
  %5357 = vdwg.mxu0
  %v5359 = vlaneseq
  %v5360 = vshrl.u32 %v5359, 7
  %v5361 = vsub.s32 0, %v5360
  %v5362 = vrot.slane %v4349, %v5361
  %v5364 = vmul.f32 %v5355, %v5362
  %v5366 = vlaneseq
  %v5367 = vshrl.u32 %v5366, 7
  %v5368 = vsub.s32 0, %v5367
  %v5369 = vrot.slane %v4352, %v5368
  %v5371 = vadd.f32 %v5364, %v5369
  %v5372 = vtanh.pop %v5371
  %v5373 = vmul.f32 %v5372, %v5372
  %v5374 = vsub.f32 1.0, %v5373
  %v5375 = vmul.f32 %v5362, %v5374
  %v5376 = vmul.f32 %v108, %v5375
  %v5377 = vmul.f32 %v112, %v5375
  %v5378 = vpack.c.bf16 %v5376, %v5372
  %v5379 = vpack.c.bf16 %v5377, %v5377
  %v5381 = vsel %vm367, %v5378, 0
  %v5384 = vsel %vm367, %v5379, 0
  %5386 = vmatprep.subr.bf16.mxu0 0
  %5387 = vmatpush1.bf16.msra.mxu0 %v363
  %5388 = vmatprep.subr.bf16.mxu0 0
  %5389 = vmatpush1.bf16.msra.mxu0 %v364
  %5390 = vmatprep.subr.bf16.mxu0 0
  %5391 = vmatpush1.bf16.msra.mxu0 0
  %5392 = vmatprep.subr.bf16.mxu0 0
  %5393 = vmatpush1.bf16.msra.mxu0 0
  %5394 = vmatprep.subr.bf16.mxu0 0
  %5395 = vmatpush1.bf16.msra.mxu0 0
  %5396 = vmatprep.subr.bf16.mxu0 0
  %5397 = vmatpush1.bf16.msra.mxu0 0
  %5398 = vmatprep.subr.bf16.mxu0 0
  %5399 = vmatpush1.bf16.msra.mxu0 0
  %5400 = vmatprep.subr.bf16.mxu0 0
  %5401 = vmatpush1.bf16.msra.mxu0 0
  %5402 = vmatprep.subr.bf16.mxu0 0
  %5403 = vmatpush1.bf16.msra.mxu0 0
  %5404 = vmatprep.subr.bf16.mxu0 0
  %5405 = vmatpush1.bf16.msra.mxu0 0
  %5406 = vmatprep.subr.bf16.mxu0 0
  %5407 = vmatpush1.bf16.msra.mxu0 0
  %5408 = vmatprep.subr.bf16.mxu0 0
  %5409 = vmatpush1.bf16.msra.mxu0 0
  %5410 = vmatprep.subr.bf16.mxu0 0
  %5411 = vmatpush1.bf16.msra.mxu0 0
  %5412 = vmatprep.subr.bf16.mxu0 0
  %5413 = vmatpush1.bf16.msra.mxu0 0
  %5414 = vmatprep.subr.bf16.mxu0 0
  %5415 = vmatpush1.bf16.msra.mxu0 0
  %5416 = vmatprep.subr.bf16.mxu0 0
  %5417 = vmatpush1.bf16.msra.mxu0 0
  %5418 = vmatprep.mubr.bf16.mxu0 0
  %5419 = vmatmul.mubr.bf16.gmra.mrb[0].mxu0 %v5381
  %v5420 = vpop.f32.mrb[0].mxu0
  %v5421 = vadd.f32 0.0, %v5420
  %v5422 = vpop.f32.mrb[0].mxu0
  %v5423 = vpop.f32.mrb[0].mxu0
  %v5424 = vadd.f32 0.0, %v5423
  %v5425 = vpop.f32.mrb[0].mxu0
  %5426 = vmatprep.mubr.bf16.mxu0 0
  %5427 = vmatmul.mubr.bf16.gmra.mrb[0].mxu0 %v5384
  %v5428 = vpop.f32.mrb[0].mxu0
  %v5429 = vadd.f32 0.0, %v5428
  %v5430 = vpop.f32.mrb[0].mxu0
  %v5431 = vpop.f32.mrb[0].mxu0
  %v5432 = vpop.f32.mrb[0].mxu0
  %5433 = vdwg.mxu0
  %v5435 = vlaneseq
  %v5436 = vshrl.u32 %v5435, 7
  %v5437 = vsub.s32 0, %v5436
  %v5438 = vrot.slane %v4360, %v5437
  %v5440 = vmul.f32 %v5421, %v5438
  %v5441 = vmul.f32 %v5424, %v5438
  %v5442 = vmul.f32 %v5429, %v5438
  %v5444 = vlaneseq
  %v5445 = vshrl.u32 %v5444, 7
  %v5446 = vsub.s32 0, %v5445
  %v5447 = vrot.slane %v4363, %v5446
  %v5449 = vadd.f32 %v5440, %v5447
  %v5450 = vtanh.pop %v5449
  %v5451 = vmul.f32 %v5450, %v5450
  %v5452 = vsub.f32 1.0, %v5451
  %v5453 = vmul.f32 %v5441, %v5452
  %v5454 = vmul.f32 %v5442, %v5452
  %v5455 = vpack.c.bf16 %v5453, %v5450
  %v5456 = vpack.c.bf16 %v5454, %v5454
  %v5458 = vsel %vm367, %v5455, 0
  %v5461 = vsel %vm367, %v5456, 0
  %5463 = vmatprep.subr.bf16.mxu0 0
  %5464 = vmatpush1.bf16.msra.mxu0 %v453
  %5465 = vmatprep.subr.bf16.mxu0 0
  %5466 = vmatpush1.bf16.msra.mxu0 %v454
  %5467 = vmatprep.subr.bf16.mxu0 0
  %5468 = vmatpush1.bf16.msra.mxu0 0
  %5469 = vmatprep.subr.bf16.mxu0 0
  %5470 = vmatpush1.bf16.msra.mxu0 0
  %5471 = vmatprep.subr.bf16.mxu0 0
  %5472 = vmatpush1.bf16.msra.mxu0 0
  %5473 = vmatprep.subr.bf16.mxu0 0
  %5474 = vmatpush1.bf16.msra.mxu0 0
  %5475 = vmatprep.subr.bf16.mxu0 0
  %5476 = vmatpush1.bf16.msra.mxu0 0
  %5477 = vmatprep.subr.bf16.mxu0 0
  %5478 = vmatpush1.bf16.msra.mxu0 0
  %5479 = vmatprep.subr.bf16.mxu0 0
  %5480 = vmatpush1.bf16.msra.mxu0 0
  %5481 = vmatprep.subr.bf16.mxu0 0
  %5482 = vmatpush1.bf16.msra.mxu0 0
  %5483 = vmatprep.subr.bf16.mxu0 0
  %5484 = vmatpush1.bf16.msra.mxu0 0
  %5485 = vmatprep.subr.bf16.mxu0 0
  %5486 = vmatpush1.bf16.msra.mxu0 0
  %5487 = vmatprep.subr.bf16.mxu0 0
  %5488 = vmatpush1.bf16.msra.mxu0 0
  %5489 = vmatprep.subr.bf16.mxu0 0
  %5490 = vmatpush1.bf16.msra.mxu0 0
  %5491 = vmatprep.subr.bf16.mxu0 0
  %5492 = vmatpush1.bf16.msra.mxu0 0
  %5493 = vmatprep.subr.bf16.mxu0 0
  %5494 = vmatpush1.bf16.msra.mxu0 0
  %5495 = vmatprep.mubr.bf16.mxu0 0
  %5496 = vmatmul.mubr.bf16.gmra.mrb[0].mxu0 %v5458
  %v5497 = vpop.f32.mrb[0].mxu0
  %v5498 = vadd.f32 0.0, %v5497
  %v5499 = vpop.f32.mrb[0].mxu0
  %v5500 = vpop.f32.mrb[0].mxu0
  %v5501 = vadd.f32 0.0, %v5500
  %v5502 = vpop.f32.mrb[0].mxu0
  %5503 = vmatprep.mubr.bf16.mxu0 0
  %5504 = vmatmul.mubr.bf16.gmra.mrb[0].mxu0 %v5461
  %v5505 = vpop.f32.mrb[0].mxu0
  %v5506 = vadd.f32 0.0, %v5505
  %v5507 = vpop.f32.mrb[0].mxu0
  %v5508 = vpop.f32.mrb[0].mxu0
  %v5509 = vpop.f32.mrb[0].mxu0
  %5510 = vdwg.mxu0
  %v5512 = vlaneseq
  %v5513 = vshrl.u32 %v5512, 7
  %v5514 = vsub.s32 0, %v5513
  %v5515 = vrot.slane %v4371, %v5514
  %v5517 = vmul.f32 %v5498, %v5515
  %v5518 = vmul.f32 %v5501, %v5515
  %v5519 = vmul.f32 %v5506, %v5515
  %v5521 = vlaneseq
  %v5522 = vshrl.u32 %v5521, 7
  %v5523 = vsub.s32 0, %v5522
  %v5524 = vrot.slane %v4374, %v5523
  %v5526 = vadd.f32 %v5517, %v5524
  %v5527 = vtanh.pop %v5526
  %v5528 = vmul.f32 %v5527, %v5527
  %v5529 = vsub.f32 1.0, %v5528
  %v5530 = vmul.f32 %v5518, %v5529
  %v5531 = vmul.f32 %v5519, %v5529
  %v5532 = vpack.c.bf16 %v5530, %v5527
  %v5533 = vpack.c.bf16 %v5531, %v5531
  %v5535 = vsel %vm367, %v5532, 0
  %v5538 = vsel %vm367, %v5533, 0
  %5540 = vmatprep.subr.bf16.mxu0 0
  %5541 = vmatpush1.bf16.msra.mxu0 %v542
  %5542 = vmatprep.subr.bf16.mxu0 0
  %5543 = vmatpush1.bf16.msra.mxu0 %v543
  %5544 = vmatprep.subr.bf16.mxu0 0
  %5545 = vmatpush1.bf16.msra.mxu0 0
  %5546 = vmatprep.subr.bf16.mxu0 0
  %5547 = vmatpush1.bf16.msra.mxu0 0
  %5548 = vmatprep.subr.bf16.mxu0 0
  %5549 = vmatpush1.bf16.msra.mxu0 0
  %5550 = vmatprep.subr.bf16.mxu0 0
  %5551 = vmatpush1.bf16.msra.mxu0 0
  %5552 = vmatprep.subr.bf16.mxu0 0
  %5553 = vmatpush1.bf16.msra.mxu0 0
  %5554 = vmatprep.subr.bf16.mxu0 0
  %5555 = vmatpush1.bf16.msra.mxu0 0
  %5556 = vmatprep.subr.bf16.mxu0 0
  %5557 = vmatpush1.bf16.msra.mxu0 0
  %5558 = vmatprep.subr.bf16.mxu0 0
  %5559 = vmatpush1.bf16.msra.mxu0 0
  %5560 = vmatprep.subr.bf16.mxu0 0
  %5561 = vmatpush1.bf16.msra.mxu0 0
  %5562 = vmatprep.subr.bf16.mxu0 0
  %5563 = vmatpush1.bf16.msra.mxu0 0
  %5564 = vmatprep.subr.bf16.mxu0 0
  %5565 = vmatpush1.bf16.msra.mxu0 0
  %5566 = vmatprep.subr.bf16.mxu0 0
  %5567 = vmatpush1.bf16.msra.mxu0 0
  %5568 = vmatprep.subr.bf16.mxu0 0
  %5569 = vmatpush1.bf16.msra.mxu0 0
  %5570 = vmatprep.subr.bf16.mxu0 0
  %5571 = vmatpush1.bf16.msra.mxu0 0
  %5572 = vmatprep.mubr.bf16.mxu0 0
  %5573 = vmatmul.mubr.bf16.gmra.mrb[0].mxu0 %v5535
  %v5574 = vpop.f32.mrb[0].mxu0
  %v5575 = vadd.f32 0.0, %v5574
  %v5576 = vpop.f32.mrb[0].mxu0
  %v5577 = vpop.f32.mrb[0].mxu0
  %v5578 = vadd.f32 0.0, %v5577
  %v5579 = vpop.f32.mrb[0].mxu0
  %5580 = vmatprep.mubr.bf16.mxu0 0
  %5581 = vmatmul.mubr.bf16.gmra.mrb[0].mxu0 %v5538
  %v5582 = vpop.f32.mrb[0].mxu0
  %v5583 = vadd.f32 0.0, %v5582
  %v5584 = vpop.f32.mrb[0].mxu0
  %v5585 = vpop.f32.mrb[0].mxu0
  %v5586 = vpop.f32.mrb[0].mxu0
  %5587 = vdwg.mxu0
  %v5589 = vlaneseq
  %v5590 = vshrl.u32 %v5589, 7
  %v5591 = vsub.s32 0, %v5590
  %v5592 = vrot.slane %v4382, %v5591
  %v5594 = vmul.f32 %v5575, %v5592
  %v5595 = vmul.f32 %v5578, %v5592
  %v5596 = vmul.f32 %v5583, %v5592
  %v5598 = vlaneseq
  %v5599 = vshrl.u32 %v5598, 7
  %v5600 = vsub.s32 0, %v5599
  %v5601 = vrot.slane %v4385, %v5600
  %v5603 = vadd.f32 %v5594, %v5601
  %5605 = vrot.lane.b32.xlu0 %v5596, 127
  %v5606 = vpop.permute.xlu0 %5605
  %v5608 = vadd.f32 %v5595, %v5606
  %v5609 = vmul.f32 %v5603, %v5603
  %v5610 = vsel %vm114, %v5609, 0.0
  %5611 = vadd.xlane.f32.xlu0 %v5610
  %v5612 = vpop.xlane.xlu0 %5611
  %v5613 = vmul.f32 %v5612, 0.5
  %v5614 = vrcp.pop 6.0
  %s5615 = vtos %v5614
  %s5616 = smul.f32 %s4293, %s5615
  %v5617 = vadd.f32 %v4988, %v5271
  %v5618 = vmul.f32 %v5617, 2.0
  %v5619 = vadd.f32 %v4656, %v5618
  %v5620 = vadd.f32 %v5619, %v5603
  %v5621 = vstv %s5616
  %v5622 = vmul.f32 %v5621, %v5620
  %v5623 = vadd.f32 %v4276, %v5622
  %v5624 = vadd.f32 %v4993, %v5276
  %v5625 = vmul.f32 %v5624, 2.0
  %v5626 = vadd.f32 %v4661, %v5625
  %v5627 = vadd.f32 %v5626, %v5608
  %v5628 = vmul.f32 %v5621, %v5627
  %v5629 = vadd.f32 %v4282, %v5628
  %v5630 = vadd.f32 %v4998, %v5281
  %v5631 = vmul.f32 %v5630, 2.0
  %v5632 = vadd.f32 %v4666, %v5631
  %v5633 = vadd.f32 %v5632, %v5613
  %v5634 = vmul.f32 %v5621, %v5633
  %v5635 = vadd.f32 %v4288, %v5634
  %s5636 = scalar_lea.vmem %s22, 32
  %5637 = vst.msk [vmem:[%s5636] sm:$0xff] %vm114, %v5623
  %vm5638 = vcmask 7168
  %v5639 = vsel %vm5638, %v5629, %v5635
  %5640 = vst.msk [vmem:[%s23] sm:$0xff] %vm114, %v5639
  // Predicated region
  $region86: #{tpu_custom_call.1} parent=0 // pred_check
    _
  $region87: #{tpu_custom_call.1} parent=0 // pred_check_branch
    %5642 = sbr.rel (0) target = $region89
  $region88: #{tpu_custom_call.1} parent=0 // pred_region
    _
  $region89: #{tpu_custom_call.1} parent=0 // pred_fallthru
    _
  // Predicated region
  $region90: #{tpu_custom_call.1} parent=0 // pred_check
    _
  $region91: #{tpu_custom_call.1} parent=0 // pred_check_branch
    %5644 = sbr.rel (0) target = $region93
  $region92: #{tpu_custom_call.1} parent=0 // pred_region
    _
  $region93: #{tpu_custom_call.1} parent=0 // pred_fallthru
    _
  // Predicated region
  $region94: #{tpu_custom_call.1} parent=0 // pred_check
    _
  $region95: #{tpu_custom_call.1} parent=0 // pred_check_branch
    %5646 = sbr.rel (0) target = $region97
  $region96: #{tpu_custom_call.1} parent=0 // pred_region
    _
  $region97: #{tpu_custom_call.1} parent=0 // pred_fallthru
    _
  // Predicated region
  $region98: #{tpu_custom_call.1} parent=0 // pred_check
    _
  $region99: #{tpu_custom_call.1} parent=0 // pred_check_branch
    %5648 = sbr.rel (0) target = $region101
  $region100: #{tpu_custom_call.1} parent=0 // pred_region
    _
  $region101: #{tpu_custom_call.1} parent=0 // pred_fallthru
    _

</llo_original>
